<compile_context>
chip_gen: v7x
topology: tpu7x:2x2x1
jax: 0.10.0
libtpu: 0.0.40
codegen_flags: <defaults>
</compile_context>

<pallas_src>
import functools

import jax
import jax.numpy as jnp
from jax.experimental import pallas as pl
from jax.experimental.pallas import tpu as pltpu


# ----------------------------- fused Pallas kernel -----------------------------

def hiernet_fused_kernel(a_ref, x_ref, info_ref, hls_ref, cw_ref, sagw_ref, lbias_ref,
                         w1_ref, w2_ref, mtail_ref, o_ref, hmx_ref,
                         *, ratio, num_layers):
    f32 = jnp.float32
    NEG = f32(-1e30)

    A = a_ref[0]                                   # [N, N] dense adjacency (real edges)
    info = info_ref[0]                             # [N, 2]  (graph id, mask)
    bid = info[:, 0:1]                             # [N, 1]  graph id (f32; -1 = padding)
    m = info[:, 1:2]                               # [N, 1]  active-node mask
    x = x_ref[0] * m                               # [N, H]  zero rows for inactive nodes

    N = A.shape[0]
    H = x.shape[1]
    B = hls_ref.shape[1]
    HLS = hls_ref.shape[2]

    # ---- graph bookkeeping built in-kernel (one small [N,1]->[1,N] transpose) ----
    bid_row = jnp.transpose(bid)                                        # [1, N]
    same = (bid_row == bid).astype(f32)                                 # [N, N]
    b_iota = jax.lax.broadcasted_iota(jnp.int32, (B, N), 0).astype(f32)
    S0T = (b_iota == bid_row).astype(f32)                               # [B, N]
    idx_col = jax.lax.broadcasted_iota(jnp.int32, (N, 1), 0)
    idx_row = jax.lax.broadcasted_iota(jnp.int32, (1, N), 1)
    lower = idx_row < idx_col                                           # tie-break: lower index wins
    ones_col = jnp.ones((N, 1), f32)

    hmx_ref[...] = jnp.zeros_like(hmx_ref)        # running sum of global max pools
    h_sm = jnp.zeros((B, H), f32)                 # running sum of global add pools

    for l in range(num_layers):
        W = cw_ref[l]                                                   # [H, H]
        lb = lbias_ref[l]                                               # [2, H]
        bconv = lb[0:1, :]                                              # [1, H]
        brel = lb[1:2, 0:1]                                             # [1, 1]
        sw = sagw_ref[l]                                                # [H, 2]
        wrel, wroot = sw[:, 0:1], sw[:, 1:2]                            # [H, 1] each

        # ---- GCNConv (sym-normalized, self-loops on active nodes, bias) + ReLU ----
        xw = jnp.dot(x, W, preferred_element_type=f32)                  # [N, H]  MXU
        deg = jnp.dot(A, m, preferred_element_type=f32) + m             # active nbrs + self-loop
        d = jnp.where(deg > 0, jax.lax.rsqrt(deg), f32(0.0))            # D^{-1/2}
        scaled = d * xw
        msg = jnp.dot(A, scaled, preferred_element_type=f32) + m * scaled
        x = jnp.maximum(d * msg + bconv, 0.0) * m                       # [N, H]

        # ---- SAGPooling scorer: GraphConv(H -> 1) + tanh, on the MXU ----
        agg = jnp.dot(A, x, preferred_element_type=f32)                 # neighbor sum
        s = (jnp.dot(agg, wrel, preferred_element_type=f32)
             + jnp.dot(x, wroot, preferred_element_type=f32) + brel)    # [N, 1]
        score = jnp.tanh(s)

        # ---- keep top-ceil(ratio * n_g) nodes per graph ----
        eff = jnp.where(m > 0.5, score, NEG)                            # [N, 1]
        eff_row = jnp.transpose(eff)                                    # [1, N]  (XLU)
        better = (eff_row > eff) | ((eff_row == eff) & lower)           # [N, N]
        rank = jnp.dot(same * better.astype(f32), ones_col,
                       preferred_element_type=f32)                      # [N, 1]  MXU
        n_g = jnp.dot(same, m, preferred_element_type=f32)              # active nodes per graph
        k_g = jnp.ceil(ratio * n_g)
        m = m * (rank < k_g).astype(f32)                                # new node mask
        x = x * (score * m)                                             # x[kept] * score[kept]

        # ---- global add / max pool per graph ----
        h_sm = h_sm + jnp.dot(S0T, x, preferred_element_type=f32)       # [B, H]  MXU
        n_kept = jnp.dot(S0T, m, preferred_element_type=f32)            # [B, 1]
        for b in range(B):                                              # tiny static loop
            keep_b = jnp.where(bid == f32(b), m, f32(0.0))              # [N, 1]
            mx_b = jnp.max(jnp.where(keep_b > 0.5, x, NEG),
                           axis=0, keepdims=True)                       # [1, H]
            mx_b = jnp.where(n_kept[b:b + 1, 0:1] > 0.5, mx_b, f32(0.0))  # empty-graph guard
            hmx_ref[b:b + 1, :] = hmx_ref[b:b + 1, :] + mx_b            # static row write

    # ---- MLP head: [max | add | hls] -> 64 -> 64 -> 1 (concat folded into split matmuls) ----
    h_mx = hmx_ref[...]                                                 # [B, H]
    hls = hls_ref[0]                                                    # [B, HLS]
    b1 = mtail_ref[0:1, :]
    b2 = mtail_ref[1:2, :]
    w3_row = mtail_ref[2:3, :]
    b3 = mtail_ref[3:4, 0:1]
    z1 = (jnp.dot(h_mx, w1_ref[0:H, :], preferred_element_type=f32)
          + jnp.dot(h_sm, w1_ref[H:2 * H, :], preferred_element_type=f32)
          + jnp.dot(hls, w1_ref[2 * H:2 * H + HLS, :], preferred_element_type=f32)
          + b1)
    h1 = jnp.maximum(z1, 0.0)
    h2 = jnp.maximum(jnp.dot(h1, w2_ref[...], preferred_element_type=f32) + b2, 0.0)
    out = jnp.sum(h2 * w3_row, axis=1, keepdims=True) + b3              # [B, 1]
    o_ref[...] = out.reshape(1, B, 1)


# ----------------------------- wrapper ------------------------------------------

def hier_net_forward(X, A, batch_id, mask, hls_attr, params, pool_ratio=0.5):
    """Batched HierNet forward.

    X        [G, N, in_ch]  node features (padding rows are masked away)
    A        [G, N, N]      dense symmetric adjacency, no self-loops, zero for padding
    batch_id [G, N] int     graph id of every node (padding nodes: value ignored)
    mask     [G, N]         1.0 real node / 0.0 padding
    hls_attr [G, B, hls]    per-graph attributes
    returns  [G, B, 1]
    """
    f32 = jnp.float32
    G, N, in_ch = X.shape
    B, hls_dim = hls_attr.shape[1], hls_attr.shape[2]
    H = params["conv_w"][1].shape[0]
    d1 = params["mlp_w1"].shape[1]
    assert in_ch <= H, "layer-0 padding assumes in_channels <= hidden_channels"

    # layer-0 features/weights zero-padded to hidden width -> one stacked [3,H,H] weight
    Xp = jnp.zeros((G, N, H), f32).at[:, :, :in_ch].set(X.astype(f32))
    w0p = jnp.zeros((H, H), f32).at[:in_ch, :].set(params["conv_w"][0].astype(f32))
    cw = jnp.stack([w0p, params["conv_w"][1].astype(f32), params["conv_w"][2].astype(f32)])

    # SAG scorer weights as [H,1] columns packed side by side: [3, H, 2] = (wrel | wroot)
    sagw = jnp.stack([
        jnp.concatenate([params["sag_wrel"][l].astype(f32).reshape(H, 1),
                         params["sag_wroot"][l].astype(f32).reshape(H, 1)], axis=1)
        for l in range(3)])

    # per-layer small biases packed: row 0 = conv bias, row 1 = [sag brel, 0, ...]
    lbias = jnp.zeros((3, 2, H), f32)
    for l in range(3):
        lbias = lbias.at[l, 0, :].set(params["conv_b"][l].astype(f32).reshape(H))
        lbias = lbias.at[l, 1, 0].set(params["sag_brel"][l].astype(f32).reshape(()))

    w1 = params["mlp_w1"].astype(f32)                 # [2H+hls, d1] single slab
    w2 = params["mlp_w2"].astype(f32)                 # [d1, d1]
    # MLP tail packed: b1 | b2 | w3^T | [b3, 0, ...]
    mtail = jnp.zeros((4, d1), f32)
    mtail = mtail.at[0, :].set(params["mlp_b1"].astype(f32).reshape(d1))
    mtail = mtail.at[1, :].set(params["mlp_b2"].astype(f32).reshape(d1))
    mtail = mtail.at[2, :].set(params["mlp_w3"].astype(f32).reshape(d1))
    mtail = mtail.at[3, 0].set(params["mlp_b3"].astype(f32).reshape(()))

    # node bookkeeping packed into one [G, N, 2] tensor; padding nodes get graph id -1
    m0 = mask.astype(f32)
    bid = jnp.where(m0 > 0, batch_id.astype(f32), f32(-1.0))
    info = jnp.stack([bid, m0], axis=-1)

    kernel = functools.partial(hiernet_fused_kernel, ratio=float(pool_ratio), num_layers=3)

    def batched(shape):
        nd = len(shape)
        return pl.BlockSpec((1,) + tuple(shape[1:]),
                            lambda g, _nd=nd: (g,) + (0,) * (_nd - 1))

    def shared(shape):
        nd = len(shape)
        return pl.BlockSpec(tuple(shape), lambda g, _nd=nd: (0,) * _nd)

    args = (A.astype(f32), Xp, info, hls_attr.astype(f32),
            cw, sagw, lbias, w1, w2, mtail)
    in_specs = ([batched(a.shape) for a in args[:4]]
                + [shared(a.shape) for a in args[4:]])

    return pl.pallas_call(
        kernel,
        grid=(G,),
        in_specs=in_specs,
        out_specs=pl.BlockSpec((1, B, 1), lambda g: (g, 0, 0)),
        out_shape=jax.ShapeDtypeStruct((G, B, 1), f32),
        scratch_shapes=[pltpu.VMEM((B, H), f32)],          # per-graph max-pool accumulator
        compiler_params=pltpu.CompilerParams(dimension_semantics=("parallel",)),
    )(*args)


# ----------------------------- main ---------------------------------------------

if __name__ == "__main__":
    in_channels, hidden, hls_dim = 16, 32, 8
    G, B, N = 2, 4, 128                      # 2 mini-batches x 4 graphs, 128 padded nodes
    nodes = [[40, 30, 25, 20], [35, 32, 28, 22]]

    key = jax.random.PRNGKey(0)
    ks = jax.random.split(key, 24)

    def w(k, shape):
        return (0.1 * jax.random.normal(k, shape)).astype(jnp.float32)

    params = {
        "conv_w": [w(ks[0], (in_channels, hidden)), w(ks[1], (hidden, hidden)), w(ks[2], (hidden, hidden))],
        "conv_b": [w(ks[3], (1, hidden)), w(ks[4], (1, hidden)), w(ks[5], (1, hidden))],
        "sag_wrel": [w(ks[6], (hidden, 1)), w(ks[7], (hidden, 1)), w(ks[8], (hidden, 1))],
        "sag_wroot": [w(ks[9], (hidden, 1)), w(ks[10], (hidden, 1)), w(ks[11], (hidden, 1))],
        "sag_brel": [w(ks[12], (1, 1)), w(ks[13], (1, 1)), w(ks[14], (1, 1))],
        "mlp_w1": w(ks[15], (2 * hidden + hls_dim, 64)),
        "mlp_b1": w(ks[16], (1, 64)),
        "mlp_w2": w(ks[17], (64, 64)),
        "mlp_b2": w(ks[18], (1, 64)),
        "mlp_w3": w(ks[19], (64, 1)),
        "mlp_b3": w(ks[20], (1, 1)),
    }

    # graph membership + padding (padding nodes get id -1, mask 0)
    bid_rows, mask_rows = [], []
    for g in range(G):
        ids = []
        for gb, n in enumerate(nodes[g]):
            ids += [gb] * n
        pad = N - len(ids)
        bid_rows.append(jnp.array(ids + [-1] * pad, dtype=jnp.int32))
        mask_rows.append(jnp.array([1.0] * len(ids) + [0.0] * pad, dtype=jnp.float32))
    batch_id = jnp.stack(bid_rows)            # [G, N]
    mask0 = jnp.stack(mask_rows)              # [G, N]

    # dense symmetric adjacency, edges only inside a graph, no self-loops
    idx = jnp.arange(N)
    same_graph = ((batch_id[:, :, None] == batch_id[:, None, :])
                  & (mask0[:, :, None] > 0) & (mask0[:, None, :] > 0))
    rand_e = jax.random.bernoulli(ks[21], 0.2, (G, N, N))
    upper = (idx[None, :, None] < idx[None, None, :]) & same_graph & rand_e
    A = upper.astype(jnp.float32)
    A = A + jnp.swapaxes(A, 1, 2)

    X = jax.random.normal(ks[22], (G, N, in_channels)).astype(jnp.float32) * mask0[..., None]
    hls_attr = jax.random.normal(ks[23], (G, B, hls_dim)).astype(jnp.float32)

    @jax.jit
    def run(X, A, batch_id, mask0, hls_attr):
        return hier_net_forward(X, A, batch_id, mask0, hls_attr, params, pool_ratio=0.5)

    out = jax.block_until_ready(run(X, A, batch_id, mask0, hls_attr))
    assert out.shape == (G, B, 1) and out.dtype == jnp.float32
    assert bool(jnp.all(jnp.isfinite(out)))
    print("KERNEL_OK")
</pallas_src>

<mosaic_0001>
module attributes {stable_mosaic.version = 11 : i64} {
  func.func @hiernet_fused_kernel(%arg0: i32, %arg1: memref<1x128x128xf32, #tpu.memory_space<vmem>>, %arg2: memref<1x128x32xf32, #tpu.memory_space<vmem>>, %arg3: memref<1x128x2xf32, #tpu.memory_space<vmem>>, %arg4: memref<1x4x8xf32, #tpu.memory_space<vmem>>, %arg5: memref<3x32x32xf32, #tpu.memory_space<vmem>>, %arg6: memref<3x32x2xf32, #tpu.memory_space<vmem>>, %arg7: memref<3x2x32xf32, #tpu.memory_space<vmem>>, %arg8: memref<72x64xf32, #tpu.memory_space<vmem>>, %arg9: memref<64x64xf32, #tpu.memory_space<vmem>>, %arg10: memref<4x64xf32, #tpu.memory_space<vmem>>, %arg11: memref<1x4x1xf32, #tpu.memory_space<vmem>>, %arg12: memref<4x32xf32, #tpu.memory_space<vmem>>) attributes {dimension_semantics = [#tpu.dimension_semantics<parallel>], iteration_bounds = array<i64: 2>, scalar_prefetch = 0 : i64, scratch_operands = 1 : i64, tpu.core_type = #tpu.core_type<tc>, window_params = [{transform_indices = @transform_0, window_bounds = array<i64: 1, 128, 128>}, {transform_indices = @transform_1, window_bounds = array<i64: 1, 128, 32>}, {transform_indices = @transform_2, window_bounds = array<i64: 1, 128, 2>}, {transform_indices = @transform_3, window_bounds = array<i64: 1, 4, 8>}, {pipeline_mode = #tpu.pipeline_mode<synchronous>, transform_indices = @transform_4, window_bounds = array<i64: 3, 32, 32>}, {pipeline_mode = #tpu.pipeline_mode<synchronous>, transform_indices = @transform_5, window_bounds = array<i64: 3, 32, 2>}, {pipeline_mode = #tpu.pipeline_mode<synchronous>, transform_indices = @transform_6, window_bounds = array<i64: 3, 2, 32>}, {pipeline_mode = #tpu.pipeline_mode<synchronous>, transform_indices = @transform_7, window_bounds = array<i64: 72, 64>}, {pipeline_mode = #tpu.pipeline_mode<synchronous>, transform_indices = @transform_8, window_bounds = array<i64: 64, 64>}, {pipeline_mode = #tpu.pipeline_mode<synchronous>, transform_indices = @transform_9, window_bounds = array<i64: 4, 64>}, {transform_indices = @transform_10, window_bounds = array<i64: 1, 4, 1>}]} {
    %c0 = arith.constant 0 : index
    %c0_0 = arith.constant 0 : index
    %c0_1 = arith.constant 0 : index
    %0 = vector.load %arg1[%c0, %c0_0, %c0_1] : memref<1x128x128xf32, #tpu.memory_space<vmem>>, vector<1x128x128xf32>
    %1 = vector.shape_cast %0 : vector<1x128x128xf32> to vector<128x128xf32>
    %c0_2 = arith.constant 0 : index
    %c0_3 = arith.constant 0 : index
    %c0_4 = arith.constant 0 : index
    %2 = vector.load %arg3[%c0_2, %c0_3, %c0_4] : memref<1x128x2xf32, #tpu.memory_space<vmem>>, vector<1x128x2xf32>
    %3 = vector.shape_cast %2 : vector<1x128x2xf32> to vector<128x2xf32>
    %4 = vector.extract_strided_slice %3 {offsets = [0, 0], sizes = [128, 1], strides = [1, 1]} : vector<128x2xf32> to vector<128x1xf32>
    %5 = vector.extract_strided_slice %3 {offsets = [0, 1], sizes = [128, 1], strides = [1, 1]} : vector<128x2xf32> to vector<128x1xf32>
    %c0_5 = arith.constant 0 : index
    %c0_6 = arith.constant 0 : index
    %c0_7 = arith.constant 0 : index
    %6 = vector.load %arg2[%c0_5, %c0_6, %c0_7] : memref<1x128x32xf32, #tpu.memory_space<vmem>>, vector<1x128x32xf32>
    %7 = vector.shape_cast %6 : vector<1x128x32xf32> to vector<128x32xf32>
    %8 = vector.broadcast %5 : vector<128x1xf32> to vector<128x32xf32>
    %9 = arith.mulf %7, %8 : vector<128x32xf32>
    %10 = tpu.transpose %4, [1, 0] : vector<128x1xf32> -> vector<1x128xf32>
    %11 = vector.broadcast %10 : vector<1x128xf32> to vector<128x128xf32>
    %12 = vector.broadcast %4 : vector<128x1xf32> to vector<128x128xf32>
    %13 = arith.cmpf oeq, %11, %12 : vector<128x128xf32>
    %14 = arith.extui %13 : vector<128x128xi1> to vector<128x128xi32>
    %15 = arith.sitofp %14 : vector<128x128xi32> to vector<128x128xf32>
    %16 = tpu.iota {dimensions = array<i32: 0>} : vector<4x128xi32>
    %17 = arith.sitofp %16 : vector<4x128xi32> to vector<4x128xf32>
    %18 = vector.broadcast %10 : vector<1x128xf32> to vector<4x128xf32>
    %19 = arith.cmpf oeq, %17, %18 : vector<4x128xf32>
    %20 = arith.extui %19 : vector<4x128xi1> to vector<4x128xi32>
    %21 = arith.sitofp %20 : vector<4x128xi32> to vector<4x128xf32>
    %22 = tpu.iota {dimensions = array<i32: 0>} : vector<128x1xi32>
    %23 = tpu.iota {dimensions = array<i32: 1>} : vector<1x128xi32>
    %24 = vector.broadcast %23 : vector<1x128xi32> to vector<128x128xi32>
    %25 = vector.broadcast %22 : vector<128x1xi32> to vector<128x128xi32>
    %26 = arith.cmpi slt, %24, %25 : vector<128x128xi32>
    %cst = arith.constant 1.000000e+00 : f32
    %27 = vector.broadcast %cst : f32 to vector<128x1xf32>
    %cst_8 = arith.constant 0.000000e+00 : f32
    %28 = vector.broadcast %cst_8 : f32 to vector<4x32xf32>
    %c0_9 = arith.constant 0 : index
    %c0_10 = arith.constant 0 : index
    %29 = vector.load %arg12[%c0_9, %c0_10] : memref<4x32xf32, #tpu.memory_space<vmem>>, vector<4x32xf32>
    tpu.vector_store %arg12[%c0_9, %c0_10], %28 {strides = array<i32>} : memref<4x32xf32, #tpu.memory_space<vmem>>, vector<4x32xf32>,
    %cst_11 = arith.constant 0.000000e+00 : f32
    %30 = vector.broadcast %cst_11 : f32 to vector<4x32xf32>
    %c0_12 = arith.constant 0 : index
    %c0_13 = arith.constant 0 : index
    %c0_14 = arith.constant 0 : index
    %31 = vector.load %arg5[%c0_12, %c0_13, %c0_14] : memref<3x32x32xf32, #tpu.memory_space<vmem>>, vector<1x32x32xf32>
    %32 = vector.shape_cast %31 : vector<1x32x32xf32> to vector<32x32xf32>
    %c0_15 = arith.constant 0 : index
    %c0_16 = arith.constant 0 : index
    %c0_17 = arith.constant 0 : index
    %33 = vector.load %arg7[%c0_15, %c0_16, %c0_17] : memref<3x2x32xf32, #tpu.memory_space<vmem>>, vector<1x2x32xf32>
    %34 = vector.shape_cast %33 : vector<1x2x32xf32> to vector<2x32xf32>
    %35 = vector.extract_strided_slice %34 {offsets = [0, 0], sizes = [1, 32], strides = [1, 1]} : vector<2x32xf32> to vector<1x32xf32>
    %36 = vector.extract_strided_slice %34 {offsets = [1, 0], sizes = [1, 1], strides = [1, 1]} : vector<2x32xf32> to vector<1x1xf32>
    %c0_18 = arith.constant 0 : index
    %c0_19 = arith.constant 0 : index
    %c0_20 = arith.constant 0 : index
    %37 = vector.load %arg6[%c0_18, %c0_19, %c0_20] : memref<3x32x2xf32, #tpu.memory_space<vmem>>, vector<1x32x2xf32>
    %38 = vector.shape_cast %37 : vector<1x32x2xf32> to vector<32x2xf32>
    %39 = vector.extract_strided_slice %38 {offsets = [0, 0], sizes = [32, 1], strides = [1, 1]} : vector<32x2xf32> to vector<32x1xf32>
    %40 = vector.extract_strided_slice %38 {offsets = [0, 1], sizes = [32, 1], strides = [1, 1]} : vector<32x2xf32> to vector<32x1xf32>
    %cst_21 = arith.constant dense<0.000000e+00> : vector<128x32xf32>
    %41 = tpu.matmul %9, %32, %cst_21 {dimension_numbers = #tpu.dot_dimension_numbers<[1], [0], [0], [1], [0, 0, 1, 1], [], []>} : vector<128x32xf32>, vector<32x32xf32>, vector<128x32xf32> -> vector<128x32xf32>
    %cst_22 = arith.constant dense<0.000000e+00> : vector<128x1xf32>
    %42 = tpu.matmul %1, %5, %cst_22 {dimension_numbers = #tpu.dot_dimension_numbers<[1], [0], [0], [1], [0, 0, 1, 1], [], []>} : vector<128x128xf32>, vector<128x1xf32>, vector<128x1xf32> -> vector<128x1xf32>
    %43 = arith.addf %42, %5 : vector<128x1xf32>
    %cst_23 = arith.constant 0.000000e+00 : f32
    %44 = vector.broadcast %cst_23 : f32 to vector<128x1xf32>
    %45 = arith.cmpf ogt, %43, %44 : vector<128x1xf32>
    %46 = math.rsqrt %43 : vector<128x1xf32>
    %cst_24 = arith.constant 0.000000e+00 : f32
    %47 = vector.broadcast %cst_24 : f32 to vector<128x1xf32>
    %48 = arith.select %45, %46, %47 : vector<128x1xi1>, vector<128x1xf32>
    %49 = vector.broadcast %48 : vector<128x1xf32> to vector<128x32xf32>
    %50 = arith.mulf %49, %41 : vector<128x32xf32>
    %cst_25 = arith.constant dense<0.000000e+00> : vector<128x32xf32>
    %51 = tpu.matmul %1, %50, %cst_25 {dimension_numbers = #tpu.dot_dimension_numbers<[1], [0], [0], [1], [0, 0, 1, 1], [], []>} : vector<128x128xf32>, vector<128x32xf32>, vector<128x32xf32> -> vector<128x32xf32>
    %52 = vector.broadcast %5 : vector<128x1xf32> to vector<128x32xf32>
    %53 = arith.mulf %52, %50 : vector<128x32xf32>
    %54 = arith.addf %51, %53 : vector<128x32xf32>
    %55 = vector.broadcast %48 : vector<128x1xf32> to vector<128x32xf32>
    %56 = arith.mulf %55, %54 : vector<128x32xf32>
    %57 = vector.broadcast %35 : vector<1x32xf32> to vector<128x32xf32>
    %58 = arith.addf %56, %57 : vector<128x32xf32>
    %cst_26 = arith.constant 0.000000e+00 : f32
    %59 = vector.broadcast %cst_26 : f32 to vector<128x32xf32>
    %60 = arith.maximumf %58, %59 : vector<128x32xf32>
    %61 = vector.broadcast %5 : vector<128x1xf32> to vector<128x32xf32>
    %62 = arith.mulf %60, %61 : vector<128x32xf32>
    %cst_27 = arith.constant dense<0.000000e+00> : vector<128x32xf32>
    %63 = tpu.matmul %1, %62, %cst_27 {dimension_numbers = #tpu.dot_dimension_numbers<[1], [0], [0], [1], [0, 0, 1, 1], [], []>} : vector<128x128xf32>, vector<128x32xf32>, vector<128x32xf32> -> vector<128x32xf32>
    %cst_28 = arith.constant dense<0.000000e+00> : vector<128x1xf32>
    %64 = tpu.matmul %63, %39, %cst_28 {dimension_numbers = #tpu.dot_dimension_numbers<[1], [0], [0], [1], [0, 0, 1, 1], [], []>} : vector<128x32xf32>, vector<32x1xf32>, vector<128x1xf32> -> vector<128x1xf32>
    %cst_29 = arith.constant dense<0.000000e+00> : vector<128x1xf32>
    %65 = tpu.matmul %62, %40, %cst_29 {dimension_numbers = #tpu.dot_dimension_numbers<[1], [0], [0], [1], [0, 0, 1, 1], [], []>} : vector<128x32xf32>, vector<32x1xf32>, vector<128x1xf32> -> vector<128x1xf32>
    %66 = arith.addf %64, %65 : vector<128x1xf32>
    %67 = vector.broadcast %36 : vector<1x1xf32> to vector<128x1xf32>
    %68 = arith.addf %66, %67 : vector<128x1xf32>
    %69 = math.tanh %68 : vector<128x1xf32>
    %cst_30 = arith.constant 5.000000e-01 : f32
    %70 = vector.broadcast %cst_30 : f32 to vector<128x1xf32>
    %71 = arith.cmpf ogt, %5, %70 : vector<128x1xf32>
    %cst_31 = arith.constant -1.000000e+30 : f32
    %72 = vector.broadcast %cst_31 : f32 to vector<128x1xf32>
    %73 = arith.select %71, %69, %72 : vector<128x1xi1>, vector<128x1xf32>
    %74 = tpu.transpose %73, [1, 0] : vector<128x1xf32> -> vector<1x128xf32>
    %75 = vector.broadcast %74 : vector<1x128xf32> to vector<128x128xf32>
    %76 = vector.broadcast %73 : vector<128x1xf32> to vector<128x128xf32>
    %77 = arith.cmpf ogt, %75, %76 : vector<128x128xf32>
    %78 = vector.broadcast %74 : vector<1x128xf32> to vector<128x128xf32>
    %79 = vector.broadcast %73 : vector<128x1xf32> to vector<128x128xf32>
    %80 = arith.cmpf oeq, %78, %79 : vector<128x128xf32>
    %81 = arith.andi %80, %26 : vector<128x128xi1>
    %82 = arith.ori %77, %81 : vector<128x128xi1>
    %83 = arith.extui %82 : vector<128x128xi1> to vector<128x128xi32>
    %84 = arith.sitofp %83 : vector<128x128xi32> to vector<128x128xf32>
    %85 = arith.mulf %15, %84 : vector<128x128xf32>
    %cst_32 = arith.constant dense<0.000000e+00> : vector<128x1xf32>
    %86 = tpu.matmul %85, %27, %cst_32 {dimension_numbers = #tpu.dot_dimension_numbers<[1], [0], [0], [1], [0, 0, 1, 1], [], []>} : vector<128x128xf32>, vector<128x1xf32>, vector<128x1xf32> -> vector<128x1xf32>
    %cst_33 = arith.constant dense<0.000000e+00> : vector<128x1xf32>
    %87 = tpu.matmul %15, %5, %cst_33 {dimension_numbers = #tpu.dot_dimension_numbers<[1], [0], [0], [1], [0, 0, 1, 1], [], []>} : vector<128x128xf32>, vector<128x1xf32>, vector<128x1xf32> -> vector<128x1xf32>
    %cst_34 = arith.constant 5.000000e-01 : f32
    %88 = vector.broadcast %cst_34 : f32 to vector<128x1xf32>
    %89 = arith.mulf %88, %87 : vector<128x1xf32>
    %90 = math.ceil %89 : vector<128x1xf32>
    %91 = arith.cmpf olt, %86, %90 : vector<128x1xf32>
    %92 = arith.extui %91 : vector<128x1xi1> to vector<128x1xi32>
    %93 = arith.sitofp %92 : vector<128x1xi32> to vector<128x1xf32>
    %94 = arith.mulf %5, %93 : vector<128x1xf32>
    %95 = arith.mulf %69, %94 : vector<128x1xf32>
    %96 = vector.broadcast %95 : vector<128x1xf32> to vector<128x32xf32>
    %97 = arith.mulf %62, %96 : vector<128x32xf32>
    %cst_35 = arith.constant dense<0.000000e+00> : vector<4x32xf32>
    %98 = tpu.matmul %21, %97, %cst_35 {dimension_numbers = #tpu.dot_dimension_numbers<[1], [0], [0], [1], [0, 0, 1, 1], [], []>} : vector<4x128xf32>, vector<128x32xf32>, vector<4x32xf32> -> vector<4x32xf32>
    %99 = arith.addf %30, %98 : vector<4x32xf32>
    %cst_36 = arith.constant dense<0.000000e+00> : vector<4x1xf32>
    %100 = tpu.matmul %21, %94, %cst_36 {dimension_numbers = #tpu.dot_dimension_numbers<[1], [0], [0], [1], [0, 0, 1, 1], [], []>} : vector<4x128xf32>, vector<128x1xf32>, vector<4x1xf32> -> vector<4x1xf32>
    %cst_37 = arith.constant 0.000000e+00 : f32
    %101 = vector.broadcast %cst_37 : f32 to vector<128x1xf32>
    %102 = arith.cmpf oeq, %4, %101 : vector<128x1xf32>
    %cst_38 = arith.constant 0.000000e+00 : f32
    %103 = vector.broadcast %cst_38 : f32 to vector<128x1xf32>
    %104 = arith.select %102, %94, %103 : vector<128x1xi1>, vector<128x1xf32>
    %cst_39 = arith.constant 5.000000e-01 : f32
    %105 = vector.broadcast %cst_39 : f32 to vector<128x1xf32>
    %106 = arith.cmpf ogt, %104, %105 : vector<128x1xf32>
    %cst_40 = arith.constant -1.000000e+30 : f32
    %107 = vector.shape_cast %106 : vector<128x1xi1> to vector<128x1xi1>
    %108 = vector.broadcast %107 : vector<128x1xi1> to vector<128x32xi1>
    %109 = vector.broadcast %cst_40 : f32 to vector<128x32xf32>
    %110 = arith.select %108, %97, %109 : vector<128x32xi1>, vector<128x32xf32>
    %cst_41 = arith.constant dense<0xFF800000> : vector<32xf32>
    %111 = vector.multi_reduction <maximumf>, %110, %cst_41 [0] : vector<128x32xf32> to vector<32xf32>
    %112 = vector.shape_cast %111 : vector<32xf32> to vector<1x32xf32>
    %113 = vector.extract_strided_slice %100 {offsets = [0, 0], sizes = [1, 1], strides = [1, 1]} : vector<4x1xf32> to vector<1x1xf32>
    %cst_42 = arith.constant 5.000000e-01 : f32
    %114 = vector.broadcast %cst_42 : f32 to vector<1x1xf32>
    %115 = arith.cmpf ogt, %113, %114 : vector<1x1xf32>
    %cst_43 = arith.constant 0.000000e+00 : f32
    %116 = vector.shape_cast %115 : vector<1x1xi1> to vector<1x1xi1>
    %117 = vector.broadcast %116 : vector<1x1xi1> to vector<1x32xi1>
    %118 = vector.broadcast %cst_43 : f32 to vector<1x32xf32>
    %119 = arith.select %117, %112, %118 : vector<1x32xi1>, vector<1x32xf32>
    %c0_44 = arith.constant 0 : index
    %c0_45 = arith.constant 0 : index
    %120 = vector.load %arg12[%c0_44, %c0_45] : memref<4x32xf32, #tpu.memory_space<vmem>>, vector<1x32xf32>
    %121 = arith.addf %120, %119 : vector<1x32xf32>
    %c0_46 = arith.constant 0 : index
    %c0_47 = arith.constant 0 : index
    %122 = vector.load %arg12[%c0_46, %c0_47] : memref<4x32xf32, #tpu.memory_space<vmem>>, vector<1x32xf32>
    tpu.vector_store %arg12[%c0_46, %c0_47], %121 {strides = array<i32>} : memref<4x32xf32, #tpu.memory_space<vmem>>, vector<1x32xf32>,
    %cst_48 = arith.constant 1.000000e+00 : f32
    %123 = vector.broadcast %cst_48 : f32 to vector<128x1xf32>
    %124 = arith.cmpf oeq, %4, %123 : vector<128x1xf32>
    %cst_49 = arith.constant 0.000000e+00 : f32
    %125 = vector.broadcast %cst_49 : f32 to vector<128x1xf32>
    %126 = arith.select %124, %94, %125 : vector<128x1xi1>, vector<128x1xf32>
    %cst_50 = arith.constant 5.000000e-01 : f32
    %127 = vector.broadcast %cst_50 : f32 to vector<128x1xf32>
    %128 = arith.cmpf ogt, %126, %127 : vector<128x1xf32>
    %cst_51 = arith.constant -1.000000e+30 : f32
    %129 = vector.shape_cast %128 : vector<128x1xi1> to vector<128x1xi1>
    %130 = vector.broadcast %129 : vector<128x1xi1> to vector<128x32xi1>
    %131 = vector.broadcast %cst_51 : f32 to vector<128x32xf32>
    %132 = arith.select %130, %97, %131 : vector<128x32xi1>, vector<128x32xf32>
    %cst_52 = arith.constant dense<0xFF800000> : vector<32xf32>
    %133 = vector.multi_reduction <maximumf>, %132, %cst_52 [0] : vector<128x32xf32> to vector<32xf32>
    %134 = vector.shape_cast %133 : vector<32xf32> to vector<1x32xf32>
    %135 = vector.extract_strided_slice %100 {offsets = [1, 0], sizes = [1, 1], strides = [1, 1]} : vector<4x1xf32> to vector<1x1xf32>
    %cst_53 = arith.constant 5.000000e-01 : f32
    %136 = vector.broadcast %cst_53 : f32 to vector<1x1xf32>
    %137 = arith.cmpf ogt, %135, %136 : vector<1x1xf32>
    %cst_54 = arith.constant 0.000000e+00 : f32
    %138 = vector.shape_cast %137 : vector<1x1xi1> to vector<1x1xi1>
    %139 = vector.broadcast %138 : vector<1x1xi1> to vector<1x32xi1>
    %140 = vector.broadcast %cst_54 : f32 to vector<1x32xf32>
    %141 = arith.select %139, %134, %140 : vector<1x32xi1>, vector<1x32xf32>
    %c1 = arith.constant 1 : index
    %c0_55 = arith.constant 0 : index
    %142 = vector.load %arg12[%c1, %c0_55] : memref<4x32xf32, #tpu.memory_space<vmem>>, vector<1x32xf32>
    %143 = arith.addf %142, %141 : vector<1x32xf32>
    %c1_56 = arith.constant 1 : index
    %c0_57 = arith.constant 0 : index
    %144 = vector.load %arg12[%c1_56, %c0_57] : memref<4x32xf32, #tpu.memory_space<vmem>>, vector<1x32xf32>
    tpu.vector_store %arg12[%c1_56, %c0_57], %143 {strides = array<i32>} : memref<4x32xf32, #tpu.memory_space<vmem>>, vector<1x32xf32>,
    %cst_58 = arith.constant 2.000000e+00 : f32
    %145 = vector.broadcast %cst_58 : f32 to vector<128x1xf32>
    %146 = arith.cmpf oeq, %4, %145 : vector<128x1xf32>
    %cst_59 = arith.constant 0.000000e+00 : f32
    %147 = vector.broadcast %cst_59 : f32 to vector<128x1xf32>
    %148 = arith.select %146, %94, %147 : vector<128x1xi1>, vector<128x1xf32>
    %cst_60 = arith.constant 5.000000e-01 : f32
    %149 = vector.broadcast %cst_60 : f32 to vector<128x1xf32>
    %150 = arith.cmpf ogt, %148, %149 : vector<128x1xf32>
    %cst_61 = arith.constant -1.000000e+30 : f32
    %151 = vector.shape_cast %150 : vector<128x1xi1> to vector<128x1xi1>
    %152 = vector.broadcast %151 : vector<128x1xi1> to vector<128x32xi1>
    %153 = vector.broadcast %cst_61 : f32 to vector<128x32xf32>
    %154 = arith.select %152, %97, %153 : vector<128x32xi1>, vector<128x32xf32>
    %cst_62 = arith.constant dense<0xFF800000> : vector<32xf32>
    %155 = vector.multi_reduction <maximumf>, %154, %cst_62 [0] : vector<128x32xf32> to vector<32xf32>
    %156 = vector.shape_cast %155 : vector<32xf32> to vector<1x32xf32>
    %157 = vector.extract_strided_slice %100 {offsets = [2, 0], sizes = [1, 1], strides = [1, 1]} : vector<4x1xf32> to vector<1x1xf32>
    %cst_63 = arith.constant 5.000000e-01 : f32
    %158 = vector.broadcast %cst_63 : f32 to vector<1x1xf32>
    %159 = arith.cmpf ogt, %157, %158 : vector<1x1xf32>
    %cst_64 = arith.constant 0.000000e+00 : f32
    %160 = vector.shape_cast %159 : vector<1x1xi1> to vector<1x1xi1>
    %161 = vector.broadcast %160 : vector<1x1xi1> to vector<1x32xi1>
    %162 = vector.broadcast %cst_64 : f32 to vector<1x32xf32>
    %163 = arith.select %161, %156, %162 : vector<1x32xi1>, vector<1x32xf32>
    %c2 = arith.constant 2 : index
    %c0_65 = arith.constant 0 : index
    %164 = vector.load %arg12[%c2, %c0_65] : memref<4x32xf32, #tpu.memory_space<vmem>>, vector<1x32xf32>
    %165 = arith.addf %164, %163 : vector<1x32xf32>
    %c2_66 = arith.constant 2 : index
    %c0_67 = arith.constant 0 : index
    %166 = vector.load %arg12[%c2_66, %c0_67] : memref<4x32xf32, #tpu.memory_space<vmem>>, vector<1x32xf32>
    tpu.vector_store %arg12[%c2_66, %c0_67], %165 {strides = array<i32>} : memref<4x32xf32, #tpu.memory_space<vmem>>, vector<1x32xf32>,
    %cst_68 = arith.constant 3.000000e+00 : f32
    %167 = vector.broadcast %cst_68 : f32 to vector<128x1xf32>
    %168 = arith.cmpf oeq, %4, %167 : vector<128x1xf32>
    %cst_69 = arith.constant 0.000000e+00 : f32
    %169 = vector.broadcast %cst_69 : f32 to vector<128x1xf32>
    %170 = arith.select %168, %94, %169 : vector<128x1xi1>, vector<128x1xf32>
    %cst_70 = arith.constant 5.000000e-01 : f32
    %171 = vector.broadcast %cst_70 : f32 to vector<128x1xf32>
    %172 = arith.cmpf ogt, %170, %171 : vector<128x1xf32>
    %cst_71 = arith.constant -1.000000e+30 : f32
    %173 = vector.shape_cast %172 : vector<128x1xi1> to vector<128x1xi1>
    %174 = vector.broadcast %173 : vector<128x1xi1> to vector<128x32xi1>
    %175 = vector.broadcast %cst_71 : f32 to vector<128x32xf32>
    %176 = arith.select %174, %97, %175 : vector<128x32xi1>, vector<128x32xf32>
    %cst_72 = arith.constant dense<0xFF800000> : vector<32xf32>
    %177 = vector.multi_reduction <maximumf>, %176, %cst_72 [0] : vector<128x32xf32> to vector<32xf32>
    %178 = vector.shape_cast %177 : vector<32xf32> to vector<1x32xf32>
    %179 = vector.extract_strided_slice %100 {offsets = [3, 0], sizes = [1, 1], strides = [1, 1]} : vector<4x1xf32> to vector<1x1xf32>
    %cst_73 = arith.constant 5.000000e-01 : f32
    %180 = vector.broadcast %cst_73 : f32 to vector<1x1xf32>
    %181 = arith.cmpf ogt, %179, %180 : vector<1x1xf32>
    %cst_74 = arith.constant 0.000000e+00 : f32
    %182 = vector.shape_cast %181 : vector<1x1xi1> to vector<1x1xi1>
    %183 = vector.broadcast %182 : vector<1x1xi1> to vector<1x32xi1>
    %184 = vector.broadcast %cst_74 : f32 to vector<1x32xf32>
    %185 = arith.select %183, %178, %184 : vector<1x32xi1>, vector<1x32xf32>
    %c3 = arith.constant 3 : index
    %c0_75 = arith.constant 0 : index
    %186 = vector.load %arg12[%c3, %c0_75] : memref<4x32xf32, #tpu.memory_space<vmem>>, vector<1x32xf32>
    %187 = arith.addf %186, %185 : vector<1x32xf32>
    %c3_76 = arith.constant 3 : index
    %c0_77 = arith.constant 0 : index
    %188 = vector.load %arg12[%c3_76, %c0_77] : memref<4x32xf32, #tpu.memory_space<vmem>>, vector<1x32xf32>
    tpu.vector_store %arg12[%c3_76, %c0_77], %187 {strides = array<i32>} : memref<4x32xf32, #tpu.memory_space<vmem>>, vector<1x32xf32>,
    %c1_78 = arith.constant 1 : index
    %c0_79 = arith.constant 0 : index
    %c0_80 = arith.constant 0 : index
    %189 = vector.load %arg5[%c1_78, %c0_79, %c0_80] : memref<3x32x32xf32, #tpu.memory_space<vmem>>, vector<1x32x32xf32>
    %190 = vector.shape_cast %189 : vector<1x32x32xf32> to vector<32x32xf32>
    %c1_81 = arith.constant 1 : index
    %c0_82 = arith.constant 0 : index
    %c0_83 = arith.constant 0 : index
    %191 = vector.load %arg7[%c1_81, %c0_82, %c0_83] : memref<3x2x32xf32, #tpu.memory_space<vmem>>, vector<1x2x32xf32>
    %192 = vector.shape_cast %191 : vector<1x2x32xf32> to vector<2x32xf32>
    %193 = vector.extract_strided_slice %192 {offsets = [0, 0], sizes = [1, 32], strides = [1, 1]} : vector<2x32xf32> to vector<1x32xf32>
    %194 = vector.extract_strided_slice %192 {offsets = [1, 0], sizes = [1, 1], strides = [1, 1]} : vector<2x32xf32> to vector<1x1xf32>
    %c1_84 = arith.constant 1 : index
    %c0_85 = arith.constant 0 : index
    %c0_86 = arith.constant 0 : index
    %195 = vector.load %arg6[%c1_84, %c0_85, %c0_86] : memref<3x32x2xf32, #tpu.memory_space<vmem>>, vector<1x32x2xf32>
    %196 = vector.shape_cast %195 : vector<1x32x2xf32> to vector<32x2xf32>
    %197 = vector.extract_strided_slice %196 {offsets = [0, 0], sizes = [32, 1], strides = [1, 1]} : vector<32x2xf32> to vector<32x1xf32>
    %198 = vector.extract_strided_slice %196 {offsets = [0, 1], sizes = [32, 1], strides = [1, 1]} : vector<32x2xf32> to vector<32x1xf32>
    %cst_87 = arith.constant dense<0.000000e+00> : vector<128x32xf32>
    %199 = tpu.matmul %97, %190, %cst_87 {dimension_numbers = #tpu.dot_dimension_numbers<[1], [0], [0], [1], [0, 0, 1, 1], [], []>} : vector<128x32xf32>, vector<32x32xf32>, vector<128x32xf32> -> vector<128x32xf32>
    %cst_88 = arith.constant dense<0.000000e+00> : vector<128x1xf32>
    %200 = tpu.matmul %1, %94, %cst_88 {dimension_numbers = #tpu.dot_dimension_numbers<[1], [0], [0], [1], [0, 0, 1, 1], [], []>} : vector<128x128xf32>, vector<128x1xf32>, vector<128x1xf32> -> vector<128x1xf32>
    %201 = arith.addf %200, %94 : vector<128x1xf32>
    %cst_89 = arith.constant 0.000000e+00 : f32
    %202 = vector.broadcast %cst_89 : f32 to vector<128x1xf32>
    %203 = arith.cmpf ogt, %201, %202 : vector<128x1xf32>
    %204 = math.rsqrt %201 : vector<128x1xf32>
    %cst_90 = arith.constant 0.000000e+00 : f32
    %205 = vector.broadcast %cst_90 : f32 to vector<128x1xf32>
    %206 = arith.select %203, %204, %205 : vector<128x1xi1>, vector<128x1xf32>
    %207 = vector.broadcast %206 : vector<128x1xf32> to vector<128x32xf32>
    %208 = arith.mulf %207, %199 : vector<128x32xf32>
    %cst_91 = arith.constant dense<0.000000e+00> : vector<128x32xf32>
    %209 = tpu.matmul %1, %208, %cst_91 {dimension_numbers = #tpu.dot_dimension_numbers<[1], [0], [0], [1], [0, 0, 1, 1], [], []>} : vector<128x128xf32>, vector<128x32xf32>, vector<128x32xf32> -> vector<128x32xf32>
    %210 = vector.broadcast %94 : vector<128x1xf32> to vector<128x32xf32>
    %211 = arith.mulf %210, %208 : vector<128x32xf32>
    %212 = arith.addf %209, %211 : vector<128x32xf32>
    %213 = vector.broadcast %206 : vector<128x1xf32> to vector<128x32xf32>
    %214 = arith.mulf %213, %212 : vector<128x32xf32>
    %215 = vector.broadcast %193 : vector<1x32xf32> to vector<128x32xf32>
    %216 = arith.addf %214, %215 : vector<128x32xf32>
    %cst_92 = arith.constant 0.000000e+00 : f32
    %217 = vector.broadcast %cst_92 : f32 to vector<128x32xf32>
    %218 = arith.maximumf %216, %217 : vector<128x32xf32>
    %219 = vector.broadcast %94 : vector<128x1xf32> to vector<128x32xf32>
    %220 = arith.mulf %218, %219 : vector<128x32xf32>
    %cst_93 = arith.constant dense<0.000000e+00> : vector<128x32xf32>
    %221 = tpu.matmul %1, %220, %cst_93 {dimension_numbers = #tpu.dot_dimension_numbers<[1], [0], [0], [1], [0, 0, 1, 1], [], []>} : vector<128x128xf32>, vector<128x32xf32>, vector<128x32xf32> -> vector<128x32xf32>
    %cst_94 = arith.constant dense<0.000000e+00> : vector<128x1xf32>
    %222 = tpu.matmul %221, %197, %cst_94 {dimension_numbers = #tpu.dot_dimension_numbers<[1], [0], [0], [1], [0, 0, 1, 1], [], []>} : vector<128x32xf32>, vector<32x1xf32>, vector<128x1xf32> -> vector<128x1xf32>
    %cst_95 = arith.constant dense<0.000000e+00> : vector<128x1xf32>
    %223 = tpu.matmul %220, %198, %cst_95 {dimension_numbers = #tpu.dot_dimension_numbers<[1], [0], [0], [1], [0, 0, 1, 1], [], []>} : vector<128x32xf32>, vector<32x1xf32>, vector<128x1xf32> -> vector<128x1xf32>
    %224 = arith.addf %222, %223 : vector<128x1xf32>
    %225 = vector.broadcast %194 : vector<1x1xf32> to vector<128x1xf32>
    %226 = arith.addf %224, %225 : vector<128x1xf32>
    %227 = math.tanh %226 : vector<128x1xf32>
    %cst_96 = arith.constant 5.000000e-01 : f32
    %228 = vector.broadcast %cst_96 : f32 to vector<128x1xf32>
    %229 = arith.cmpf ogt, %94, %228 : vector<128x1xf32>
    %cst_97 = arith.constant -1.000000e+30 : f32
    %230 = vector.broadcast %cst_97 : f32 to vector<128x1xf32>
    %231 = arith.select %229, %227, %230 : vector<128x1xi1>, vector<128x1xf32>
    %232 = tpu.transpose %231, [1, 0] : vector<128x1xf32> -> vector<1x128xf32>
    %233 = vector.broadcast %232 : vector<1x128xf32> to vector<128x128xf32>
    %234 = vector.broadcast %231 : vector<128x1xf32> to vector<128x128xf32>
    %235 = arith.cmpf ogt, %233, %234 : vector<128x128xf32>
    %236 = vector.broadcast %232 : vector<1x128xf32> to vector<128x128xf32>
    %237 = vector.broadcast %231 : vector<128x1xf32> to vector<128x128xf32>
    %238 = arith.cmpf oeq, %236, %237 : vector<128x128xf32>
    %239 = arith.andi %238, %26 : vector<128x128xi1>
    %240 = arith.ori %235, %239 : vector<128x128xi1>
    %241 = arith.extui %240 : vector<128x128xi1> to vector<128x128xi32>
    %242 = arith.sitofp %241 : vector<128x128xi32> to vector<128x128xf32>
    %243 = arith.mulf %15, %242 : vector<128x128xf32>
    %cst_98 = arith.constant dense<0.000000e+00> : vector<128x1xf32>
    %244 = tpu.matmul %243, %27, %cst_98 {dimension_numbers = #tpu.dot_dimension_numbers<[1], [0], [0], [1], [0, 0, 1, 1], [], []>} : vector<128x128xf32>, vector<128x1xf32>, vector<128x1xf32> -> vector<128x1xf32>
    %cst_99 = arith.constant dense<0.000000e+00> : vector<128x1xf32>
    %245 = tpu.matmul %15, %94, %cst_99 {dimension_numbers = #tpu.dot_dimension_numbers<[1], [0], [0], [1], [0, 0, 1, 1], [], []>} : vector<128x128xf32>, vector<128x1xf32>, vector<128x1xf32> -> vector<128x1xf32>
    %cst_100 = arith.constant 5.000000e-01 : f32
    %246 = vector.broadcast %cst_100 : f32 to vector<128x1xf32>
    %247 = arith.mulf %246, %245 : vector<128x1xf32>
    %248 = math.ceil %247 : vector<128x1xf32>
    %249 = arith.cmpf olt, %244, %248 : vector<128x1xf32>
    %250 = arith.extui %249 : vector<128x1xi1> to vector<128x1xi32>
    %251 = arith.sitofp %250 : vector<128x1xi32> to vector<128x1xf32>
    %252 = arith.mulf %94, %251 : vector<128x1xf32>
    %253 = arith.mulf %227, %252 : vector<128x1xf32>
    %254 = vector.broadcast %253 : vector<128x1xf32> to vector<128x32xf32>
    %255 = arith.mulf %220, %254 : vector<128x32xf32>
    %cst_101 = arith.constant dense<0.000000e+00> : vector<4x32xf32>
    %256 = tpu.matmul %21, %255, %cst_101 {dimension_numbers = #tpu.dot_dimension_numbers<[1], [0], [0], [1], [0, 0, 1, 1], [], []>} : vector<4x128xf32>, vector<128x32xf32>, vector<4x32xf32> -> vector<4x32xf32>
    %257 = arith.addf %99, %256 : vector<4x32xf32>
    %cst_102 = arith.constant dense<0.000000e+00> : vector<4x1xf32>
    %258 = tpu.matmul %21, %252, %cst_102 {dimension_numbers = #tpu.dot_dimension_numbers<[1], [0], [0], [1], [0, 0, 1, 1], [], []>} : vector<4x128xf32>, vector<128x1xf32>, vector<4x1xf32> -> vector<4x1xf32>
    %cst_103 = arith.constant 0.000000e+00 : f32
    %259 = vector.broadcast %cst_103 : f32 to vector<128x1xf32>
    %260 = arith.cmpf oeq, %4, %259 : vector<128x1xf32>
    %cst_104 = arith.constant 0.000000e+00 : f32
    %261 = vector.broadcast %cst_104 : f32 to vector<128x1xf32>
    %262 = arith.select %260, %252, %261 : vector<128x1xi1>, vector<128x1xf32>
    %cst_105 = arith.constant 5.000000e-01 : f32
    %263 = vector.broadcast %cst_105 : f32 to vector<128x1xf32>
    %264 = arith.cmpf ogt, %262, %263 : vector<128x1xf32>
    %cst_106 = arith.constant -1.000000e+30 : f32
    %265 = vector.shape_cast %264 : vector<128x1xi1> to vector<128x1xi1>
    %266 = vector.broadcast %265 : vector<128x1xi1> to vector<128x32xi1>
    %267 = vector.broadcast %cst_106 : f32 to vector<128x32xf32>
    %268 = arith.select %266, %255, %267 : vector<128x32xi1>, vector<128x32xf32>
    %cst_107 = arith.constant dense<0xFF800000> : vector<32xf32>
    %269 = vector.multi_reduction <maximumf>, %268, %cst_107 [0] : vector<128x32xf32> to vector<32xf32>
    %270 = vector.shape_cast %269 : vector<32xf32> to vector<1x32xf32>
    %271 = vector.extract_strided_slice %258 {offsets = [0, 0], sizes = [1, 1], strides = [1, 1]} : vector<4x1xf32> to vector<1x1xf32>
    %cst_108 = arith.constant 5.000000e-01 : f32
    %272 = vector.broadcast %cst_108 : f32 to vector<1x1xf32>
    %273 = arith.cmpf ogt, %271, %272 : vector<1x1xf32>
    %cst_109 = arith.constant 0.000000e+00 : f32
    %274 = vector.shape_cast %273 : vector<1x1xi1> to vector<1x1xi1>
    %275 = vector.broadcast %274 : vector<1x1xi1> to vector<1x32xi1>
    %276 = vector.broadcast %cst_109 : f32 to vector<1x32xf32>
    %277 = arith.select %275, %270, %276 : vector<1x32xi1>, vector<1x32xf32>
    %c0_110 = arith.constant 0 : index
    %c0_111 = arith.constant 0 : index
    %278 = vector.load %arg12[%c0_110, %c0_111] : memref<4x32xf32, #tpu.memory_space<vmem>>, vector<1x32xf32>
    %279 = arith.addf %278, %277 : vector<1x32xf32>
    %c0_112 = arith.constant 0 : index
    %c0_113 = arith.constant 0 : index
    %280 = vector.load %arg12[%c0_112, %c0_113] : memref<4x32xf32, #tpu.memory_space<vmem>>, vector<1x32xf32>
    tpu.vector_store %arg12[%c0_112, %c0_113], %279 {strides = array<i32>} : memref<4x32xf32, #tpu.memory_space<vmem>>, vector<1x32xf32>,
    %cst_114 = arith.constant 1.000000e+00 : f32
    %281 = vector.broadcast %cst_114 : f32 to vector<128x1xf32>
    %282 = arith.cmpf oeq, %4, %281 : vector<128x1xf32>
    %cst_115 = arith.constant 0.000000e+00 : f32
    %283 = vector.broadcast %cst_115 : f32 to vector<128x1xf32>
    %284 = arith.select %282, %252, %283 : vector<128x1xi1>, vector<128x1xf32>
    %cst_116 = arith.constant 5.000000e-01 : f32
    %285 = vector.broadcast %cst_116 : f32 to vector<128x1xf32>
    %286 = arith.cmpf ogt, %284, %285 : vector<128x1xf32>
    %cst_117 = arith.constant -1.000000e+30 : f32
    %287 = vector.shape_cast %286 : vector<128x1xi1> to vector<128x1xi1>
    %288 = vector.broadcast %287 : vector<128x1xi1> to vector<128x32xi1>
    %289 = vector.broadcast %cst_117 : f32 to vector<128x32xf32>
    %290 = arith.select %288, %255, %289 : vector<128x32xi1>, vector<128x32xf32>
    %cst_118 = arith.constant dense<0xFF800000> : vector<32xf32>
    %291 = vector.multi_reduction <maximumf>, %290, %cst_118 [0] : vector<128x32xf32> to vector<32xf32>
    %292 = vector.shape_cast %291 : vector<32xf32> to vector<1x32xf32>
    %293 = vector.extract_strided_slice %258 {offsets = [1, 0], sizes = [1, 1], strides = [1, 1]} : vector<4x1xf32> to vector<1x1xf32>
    %cst_119 = arith.constant 5.000000e-01 : f32
    %294 = vector.broadcast %cst_119 : f32 to vector<1x1xf32>
    %295 = arith.cmpf ogt, %293, %294 : vector<1x1xf32>
    %cst_120 = arith.constant 0.000000e+00 : f32
    %296 = vector.shape_cast %295 : vector<1x1xi1> to vector<1x1xi1>
    %297 = vector.broadcast %296 : vector<1x1xi1> to vector<1x32xi1>
    %298 = vector.broadcast %cst_120 : f32 to vector<1x32xf32>
    %299 = arith.select %297, %292, %298 : vector<1x32xi1>, vector<1x32xf32>
    %c1_121 = arith.constant 1 : index
    %c0_122 = arith.constant 0 : index
    %300 = vector.load %arg12[%c1_121, %c0_122] : memref<4x32xf32, #tpu.memory_space<vmem>>, vector<1x32xf32>
    %301 = arith.addf %300, %299 : vector<1x32xf32>
    %c1_123 = arith.constant 1 : index
    %c0_124 = arith.constant 0 : index
    %302 = vector.load %arg12[%c1_123, %c0_124] : memref<4x32xf32, #tpu.memory_space<vmem>>, vector<1x32xf32>
    tpu.vector_store %arg12[%c1_123, %c0_124], %301 {strides = array<i32>} : memref<4x32xf32, #tpu.memory_space<vmem>>, vector<1x32xf32>,
    %cst_125 = arith.constant 2.000000e+00 : f32
    %303 = vector.broadcast %cst_125 : f32 to vector<128x1xf32>
    %304 = arith.cmpf oeq, %4, %303 : vector<128x1xf32>
    %cst_126 = arith.constant 0.000000e+00 : f32
    %305 = vector.broadcast %cst_126 : f32 to vector<128x1xf32>
    %306 = arith.select %304, %252, %305 : vector<128x1xi1>, vector<128x1xf32>
    %cst_127 = arith.constant 5.000000e-01 : f32
    %307 = vector.broadcast %cst_127 : f32 to vector<128x1xf32>
    %308 = arith.cmpf ogt, %306, %307 : vector<128x1xf32>
    %cst_128 = arith.constant -1.000000e+30 : f32
    %309 = vector.shape_cast %308 : vector<128x1xi1> to vector<128x1xi1>
    %310 = vector.broadcast %309 : vector<128x1xi1> to vector<128x32xi1>
    %311 = vector.broadcast %cst_128 : f32 to vector<128x32xf32>
    %312 = arith.select %310, %255, %311 : vector<128x32xi1>, vector<128x32xf32>
    %cst_129 = arith.constant dense<0xFF800000> : vector<32xf32>
    %313 = vector.multi_reduction <maximumf>, %312, %cst_129 [0] : vector<128x32xf32> to vector<32xf32>
    %314 = vector.shape_cast %313 : vector<32xf32> to vector<1x32xf32>
    %315 = vector.extract_strided_slice %258 {offsets = [2, 0], sizes = [1, 1], strides = [1, 1]} : vector<4x1xf32> to vector<1x1xf32>
    %cst_130 = arith.constant 5.000000e-01 : f32
    %316 = vector.broadcast %cst_130 : f32 to vector<1x1xf32>
    %317 = arith.cmpf ogt, %315, %316 : vector<1x1xf32>
    %cst_131 = arith.constant 0.000000e+00 : f32
    %318 = vector.shape_cast %317 : vector<1x1xi1> to vector<1x1xi1>
    %319 = vector.broadcast %318 : vector<1x1xi1> to vector<1x32xi1>
    %320 = vector.broadcast %cst_131 : f32 to vector<1x32xf32>
    %321 = arith.select %319, %314, %320 : vector<1x32xi1>, vector<1x32xf32>
    %c2_132 = arith.constant 2 : index
    %c0_133 = arith.constant 0 : index
    %322 = vector.load %arg12[%c2_132, %c0_133] : memref<4x32xf32, #tpu.memory_space<vmem>>, vector<1x32xf32>
    %323 = arith.addf %322, %321 : vector<1x32xf32>
    %c2_134 = arith.constant 2 : index
    %c0_135 = arith.constant 0 : index
    %324 = vector.load %arg12[%c2_134, %c0_135] : memref<4x32xf32, #tpu.memory_space<vmem>>, vector<1x32xf32>
    tpu.vector_store %arg12[%c2_134, %c0_135], %323 {strides = array<i32>} : memref<4x32xf32, #tpu.memory_space<vmem>>, vector<1x32xf32>,
    %cst_136 = arith.constant 3.000000e+00 : f32
    %325 = vector.broadcast %cst_136 : f32 to vector<128x1xf32>
    %326 = arith.cmpf oeq, %4, %325 : vector<128x1xf32>
    %cst_137 = arith.constant 0.000000e+00 : f32
    %327 = vector.broadcast %cst_137 : f32 to vector<128x1xf32>
    %328 = arith.select %326, %252, %327 : vector<128x1xi1>, vector<128x1xf32>
    %cst_138 = arith.constant 5.000000e-01 : f32
    %329 = vector.broadcast %cst_138 : f32 to vector<128x1xf32>
    %330 = arith.cmpf ogt, %328, %329 : vector<128x1xf32>
    %cst_139 = arith.constant -1.000000e+30 : f32
    %331 = vector.shape_cast %330 : vector<128x1xi1> to vector<128x1xi1>
    %332 = vector.broadcast %331 : vector<128x1xi1> to vector<128x32xi1>
    %333 = vector.broadcast %cst_139 : f32 to vector<128x32xf32>
    %334 = arith.select %332, %255, %333 : vector<128x32xi1>, vector<128x32xf32>
    %cst_140 = arith.constant dense<0xFF800000> : vector<32xf32>
    %335 = vector.multi_reduction <maximumf>, %334, %cst_140 [0] : vector<128x32xf32> to vector<32xf32>
    %336 = vector.shape_cast %335 : vector<32xf32> to vector<1x32xf32>
    %337 = vector.extract_strided_slice %258 {offsets = [3, 0], sizes = [1, 1], strides = [1, 1]} : vector<4x1xf32> to vector<1x1xf32>
    %cst_141 = arith.constant 5.000000e-01 : f32
    %338 = vector.broadcast %cst_141 : f32 to vector<1x1xf32>
    %339 = arith.cmpf ogt, %337, %338 : vector<1x1xf32>
    %cst_142 = arith.constant 0.000000e+00 : f32
    %340 = vector.shape_cast %339 : vector<1x1xi1> to vector<1x1xi1>
    %341 = vector.broadcast %340 : vector<1x1xi1> to vector<1x32xi1>
    %342 = vector.broadcast %cst_142 : f32 to vector<1x32xf32>
    %343 = arith.select %341, %336, %342 : vector<1x32xi1>, vector<1x32xf32>
    %c3_143 = arith.constant 3 : index
    %c0_144 = arith.constant 0 : index
    %344 = vector.load %arg12[%c3_143, %c0_144] : memref<4x32xf32, #tpu.memory_space<vmem>>, vector<1x32xf32>
    %345 = arith.addf %344, %343 : vector<1x32xf32>
    %c3_145 = arith.constant 3 : index
    %c0_146 = arith.constant 0 : index
    %346 = vector.load %arg12[%c3_145, %c0_146] : memref<4x32xf32, #tpu.memory_space<vmem>>, vector<1x32xf32>
    tpu.vector_store %arg12[%c3_145, %c0_146], %345 {strides = array<i32>} : memref<4x32xf32, #tpu.memory_space<vmem>>, vector<1x32xf32>,
    %c2_147 = arith.constant 2 : index
    %c0_148 = arith.constant 0 : index
    %c0_149 = arith.constant 0 : index
    %347 = vector.load %arg5[%c2_147, %c0_148, %c0_149] : memref<3x32x32xf32, #tpu.memory_space<vmem>>, vector<1x32x32xf32>
    %348 = vector.shape_cast %347 : vector<1x32x32xf32> to vector<32x32xf32>
    %c2_150 = arith.constant 2 : index
    %c0_151 = arith.constant 0 : index
    %c0_152 = arith.constant 0 : index
    %349 = vector.load %arg7[%c2_150, %c0_151, %c0_152] : memref<3x2x32xf32, #tpu.memory_space<vmem>>, vector<1x2x32xf32>
    %350 = vector.shape_cast %349 : vector<1x2x32xf32> to vector<2x32xf32>
    %351 = vector.extract_strided_slice %350 {offsets = [0, 0], sizes = [1, 32], strides = [1, 1]} : vector<2x32xf32> to vector<1x32xf32>
    %352 = vector.extract_strided_slice %350 {offsets = [1, 0], sizes = [1, 1], strides = [1, 1]} : vector<2x32xf32> to vector<1x1xf32>
    %c2_153 = arith.constant 2 : index
    %c0_154 = arith.constant 0 : index
    %c0_155 = arith.constant 0 : index
    %353 = vector.load %arg6[%c2_153, %c0_154, %c0_155] : memref<3x32x2xf32, #tpu.memory_space<vmem>>, vector<1x32x2xf32>
    %354 = vector.shape_cast %353 : vector<1x32x2xf32> to vector<32x2xf32>
    %355 = vector.extract_strided_slice %354 {offsets = [0, 0], sizes = [32, 1], strides = [1, 1]} : vector<32x2xf32> to vector<32x1xf32>
    %356 = vector.extract_strided_slice %354 {offsets = [0, 1], sizes = [32, 1], strides = [1, 1]} : vector<32x2xf32> to vector<32x1xf32>
    %cst_156 = arith.constant dense<0.000000e+00> : vector<128x32xf32>
    %357 = tpu.matmul %255, %348, %cst_156 {dimension_numbers = #tpu.dot_dimension_numbers<[1], [0], [0], [1], [0, 0, 1, 1], [], []>} : vector<128x32xf32>, vector<32x32xf32>, vector<128x32xf32> -> vector<128x32xf32>
    %cst_157 = arith.constant dense<0.000000e+00> : vector<128x1xf32>
    %358 = tpu.matmul %1, %252, %cst_157 {dimension_numbers = #tpu.dot_dimension_numbers<[1], [0], [0], [1], [0, 0, 1, 1], [], []>} : vector<128x128xf32>, vector<128x1xf32>, vector<128x1xf32> -> vector<128x1xf32>
    %359 = arith.addf %358, %252 : vector<128x1xf32>
    %cst_158 = arith.constant 0.000000e+00 : f32
    %360 = vector.broadcast %cst_158 : f32 to vector<128x1xf32>
    %361 = arith.cmpf ogt, %359, %360 : vector<128x1xf32>
    %362 = math.rsqrt %359 : vector<128x1xf32>
    %cst_159 = arith.constant 0.000000e+00 : f32
    %363 = vector.broadcast %cst_159 : f32 to vector<128x1xf32>
    %364 = arith.select %361, %362, %363 : vector<128x1xi1>, vector<128x1xf32>
    %365 = vector.broadcast %364 : vector<128x1xf32> to vector<128x32xf32>
    %366 = arith.mulf %365, %357 : vector<128x32xf32>
    %cst_160 = arith.constant dense<0.000000e+00> : vector<128x32xf32>
    %367 = tpu.matmul %1, %366, %cst_160 {dimension_numbers = #tpu.dot_dimension_numbers<[1], [0], [0], [1], [0, 0, 1, 1], [], []>} : vector<128x128xf32>, vector<128x32xf32>, vector<128x32xf32> -> vector<128x32xf32>
    %368 = vector.broadcast %252 : vector<128x1xf32> to vector<128x32xf32>
    %369 = arith.mulf %368, %366 : vector<128x32xf32>
    %370 = arith.addf %367, %369 : vector<128x32xf32>
    %371 = vector.broadcast %364 : vector<128x1xf32> to vector<128x32xf32>
    %372 = arith.mulf %371, %370 : vector<128x32xf32>
    %373 = vector.broadcast %351 : vector<1x32xf32> to vector<128x32xf32>
    %374 = arith.addf %372, %373 : vector<128x32xf32>
    %cst_161 = arith.constant 0.000000e+00 : f32
    %375 = vector.broadcast %cst_161 : f32 to vector<128x32xf32>
    %376 = arith.maximumf %374, %375 : vector<128x32xf32>
    %377 = vector.broadcast %252 : vector<128x1xf32> to vector<128x32xf32>
    %378 = arith.mulf %376, %377 : vector<128x32xf32>
    %cst_162 = arith.constant dense<0.000000e+00> : vector<128x32xf32>
    %379 = tpu.matmul %1, %378, %cst_162 {dimension_numbers = #tpu.dot_dimension_numbers<[1], [0], [0], [1], [0, 0, 1, 1], [], []>} : vector<128x128xf32>, vector<128x32xf32>, vector<128x32xf32> -> vector<128x32xf32>
    %cst_163 = arith.constant dense<0.000000e+00> : vector<128x1xf32>
    %380 = tpu.matmul %379, %355, %cst_163 {dimension_numbers = #tpu.dot_dimension_numbers<[1], [0], [0], [1], [0, 0, 1, 1], [], []>} : vector<128x32xf32>, vector<32x1xf32>, vector<128x1xf32> -> vector<128x1xf32>
    %cst_164 = arith.constant dense<0.000000e+00> : vector<128x1xf32>
    %381 = tpu.matmul %378, %356, %cst_164 {dimension_numbers = #tpu.dot_dimension_numbers<[1], [0], [0], [1], [0, 0, 1, 1], [], []>} : vector<128x32xf32>, vector<32x1xf32>, vector<128x1xf32> -> vector<128x1xf32>
    %382 = arith.addf %380, %381 : vector<128x1xf32>
    %383 = vector.broadcast %352 : vector<1x1xf32> to vector<128x1xf32>
    %384 = arith.addf %382, %383 : vector<128x1xf32>
    %385 = math.tanh %384 : vector<128x1xf32>
    %cst_165 = arith.constant 5.000000e-01 : f32
    %386 = vector.broadcast %cst_165 : f32 to vector<128x1xf32>
    %387 = arith.cmpf ogt, %252, %386 : vector<128x1xf32>
    %cst_166 = arith.constant -1.000000e+30 : f32
    %388 = vector.broadcast %cst_166 : f32 to vector<128x1xf32>
    %389 = arith.select %387, %385, %388 : vector<128x1xi1>, vector<128x1xf32>
    %390 = tpu.transpose %389, [1, 0] : vector<128x1xf32> -> vector<1x128xf32>
    %391 = vector.broadcast %390 : vector<1x128xf32> to vector<128x128xf32>
    %392 = vector.broadcast %389 : vector<128x1xf32> to vector<128x128xf32>
    %393 = arith.cmpf ogt, %391, %392 : vector<128x128xf32>
    %394 = vector.broadcast %390 : vector<1x128xf32> to vector<128x128xf32>
    %395 = vector.broadcast %389 : vector<128x1xf32> to vector<128x128xf32>
    %396 = arith.cmpf oeq, %394, %395 : vector<128x128xf32>
    %397 = arith.andi %396, %26 : vector<128x128xi1>
    %398 = arith.ori %393, %397 : vector<128x128xi1>
    %399 = arith.extui %398 : vector<128x128xi1> to vector<128x128xi32>
    %400 = arith.sitofp %399 : vector<128x128xi32> to vector<128x128xf32>
    %401 = arith.mulf %15, %400 : vector<128x128xf32>
    %cst_167 = arith.constant dense<0.000000e+00> : vector<128x1xf32>
    %402 = tpu.matmul %401, %27, %cst_167 {dimension_numbers = #tpu.dot_dimension_numbers<[1], [0], [0], [1], [0, 0, 1, 1], [], []>} : vector<128x128xf32>, vector<128x1xf32>, vector<128x1xf32> -> vector<128x1xf32>
    %cst_168 = arith.constant dense<0.000000e+00> : vector<128x1xf32>
    %403 = tpu.matmul %15, %252, %cst_168 {dimension_numbers = #tpu.dot_dimension_numbers<[1], [0], [0], [1], [0, 0, 1, 1], [], []>} : vector<128x128xf32>, vector<128x1xf32>, vector<128x1xf32> -> vector<128x1xf32>
    %cst_169 = arith.constant 5.000000e-01 : f32
    %404 = vector.broadcast %cst_169 : f32 to vector<128x1xf32>
    %405 = arith.mulf %404, %403 : vector<128x1xf32>
    %406 = math.ceil %405 : vector<128x1xf32>
    %407 = arith.cmpf olt, %402, %406 : vector<128x1xf32>
    %408 = arith.extui %407 : vector<128x1xi1> to vector<128x1xi32>
    %409 = arith.sitofp %408 : vector<128x1xi32> to vector<128x1xf32>
    %410 = arith.mulf %252, %409 : vector<128x1xf32>
    %411 = arith.mulf %385, %410 : vector<128x1xf32>
    %412 = vector.broadcast %411 : vector<128x1xf32> to vector<128x32xf32>
    %413 = arith.mulf %378, %412 : vector<128x32xf32>
    %cst_170 = arith.constant dense<0.000000e+00> : vector<4x32xf32>
    %414 = tpu.matmul %21, %413, %cst_170 {dimension_numbers = #tpu.dot_dimension_numbers<[1], [0], [0], [1], [0, 0, 1, 1], [], []>} : vector<4x128xf32>, vector<128x32xf32>, vector<4x32xf32> -> vector<4x32xf32>
    %415 = arith.addf %257, %414 : vector<4x32xf32>
    %cst_171 = arith.constant dense<0.000000e+00> : vector<4x1xf32>
    %416 = tpu.matmul %21, %410, %cst_171 {dimension_numbers = #tpu.dot_dimension_numbers<[1], [0], [0], [1], [0, 0, 1, 1], [], []>} : vector<4x128xf32>, vector<128x1xf32>, vector<4x1xf32> -> vector<4x1xf32>
    %cst_172 = arith.constant 0.000000e+00 : f32
    %417 = vector.broadcast %cst_172 : f32 to vector<128x1xf32>
    %418 = arith.cmpf oeq, %4, %417 : vector<128x1xf32>
    %cst_173 = arith.constant 0.000000e+00 : f32
    %419 = vector.broadcast %cst_173 : f32 to vector<128x1xf32>
    %420 = arith.select %418, %410, %419 : vector<128x1xi1>, vector<128x1xf32>
    %cst_174 = arith.constant 5.000000e-01 : f32
    %421 = vector.broadcast %cst_174 : f32 to vector<128x1xf32>
    %422 = arith.cmpf ogt, %420, %421 : vector<128x1xf32>
    %cst_175 = arith.constant -1.000000e+30 : f32
    %423 = vector.shape_cast %422 : vector<128x1xi1> to vector<128x1xi1>
    %424 = vector.broadcast %423 : vector<128x1xi1> to vector<128x32xi1>
    %425 = vector.broadcast %cst_175 : f32 to vector<128x32xf32>
    %426 = arith.select %424, %413, %425 : vector<128x32xi1>, vector<128x32xf32>
    %cst_176 = arith.constant dense<0xFF800000> : vector<32xf32>
    %427 = vector.multi_reduction <maximumf>, %426, %cst_176 [0] : vector<128x32xf32> to vector<32xf32>
    %428 = vector.shape_cast %427 : vector<32xf32> to vector<1x32xf32>
    %429 = vector.extract_strided_slice %416 {offsets = [0, 0], sizes = [1, 1], strides = [1, 1]} : vector<4x1xf32> to vector<1x1xf32>
    %cst_177 = arith.constant 5.000000e-01 : f32
    %430 = vector.broadcast %cst_177 : f32 to vector<1x1xf32>
    %431 = arith.cmpf ogt, %429, %430 : vector<1x1xf32>
    %cst_178 = arith.constant 0.000000e+00 : f32
    %432 = vector.shape_cast %431 : vector<1x1xi1> to vector<1x1xi1>
    %433 = vector.broadcast %432 : vector<1x1xi1> to vector<1x32xi1>
    %434 = vector.broadcast %cst_178 : f32 to vector<1x32xf32>
    %435 = arith.select %433, %428, %434 : vector<1x32xi1>, vector<1x32xf32>
    %c0_179 = arith.constant 0 : index
    %c0_180 = arith.constant 0 : index
    %436 = vector.load %arg12[%c0_179, %c0_180] : memref<4x32xf32, #tpu.memory_space<vmem>>, vector<1x32xf32>
    %437 = arith.addf %436, %435 : vector<1x32xf32>
    %c0_181 = arith.constant 0 : index
    %c0_182 = arith.constant 0 : index
    %438 = vector.load %arg12[%c0_181, %c0_182] : memref<4x32xf32, #tpu.memory_space<vmem>>, vector<1x32xf32>
    tpu.vector_store %arg12[%c0_181, %c0_182], %437 {strides = array<i32>} : memref<4x32xf32, #tpu.memory_space<vmem>>, vector<1x32xf32>,
    %cst_183 = arith.constant 1.000000e+00 : f32
    %439 = vector.broadcast %cst_183 : f32 to vector<128x1xf32>
    %440 = arith.cmpf oeq, %4, %439 : vector<128x1xf32>
    %cst_184 = arith.constant 0.000000e+00 : f32
    %441 = vector.broadcast %cst_184 : f32 to vector<128x1xf32>
    %442 = arith.select %440, %410, %441 : vector<128x1xi1>, vector<128x1xf32>
    %cst_185 = arith.constant 5.000000e-01 : f32
    %443 = vector.broadcast %cst_185 : f32 to vector<128x1xf32>
    %444 = arith.cmpf ogt, %442, %443 : vector<128x1xf32>
    %cst_186 = arith.constant -1.000000e+30 : f32
    %445 = vector.shape_cast %444 : vector<128x1xi1> to vector<128x1xi1>
    %446 = vector.broadcast %445 : vector<128x1xi1> to vector<128x32xi1>
    %447 = vector.broadcast %cst_186 : f32 to vector<128x32xf32>
    %448 = arith.select %446, %413, %447 : vector<128x32xi1>, vector<128x32xf32>
    %cst_187 = arith.constant dense<0xFF800000> : vector<32xf32>
    %449 = vector.multi_reduction <maximumf>, %448, %cst_187 [0] : vector<128x32xf32> to vector<32xf32>
    %450 = vector.shape_cast %449 : vector<32xf32> to vector<1x32xf32>
    %451 = vector.extract_strided_slice %416 {offsets = [1, 0], sizes = [1, 1], strides = [1, 1]} : vector<4x1xf32> to vector<1x1xf32>
    %cst_188 = arith.constant 5.000000e-01 : f32
    %452 = vector.broadcast %cst_188 : f32 to vector<1x1xf32>
    %453 = arith.cmpf ogt, %451, %452 : vector<1x1xf32>
    %cst_189 = arith.constant 0.000000e+00 : f32
    %454 = vector.shape_cast %453 : vector<1x1xi1> to vector<1x1xi1>
    %455 = vector.broadcast %454 : vector<1x1xi1> to vector<1x32xi1>
    %456 = vector.broadcast %cst_189 : f32 to vector<1x32xf32>
    %457 = arith.select %455, %450, %456 : vector<1x32xi1>, vector<1x32xf32>
    %c1_190 = arith.constant 1 : index
    %c0_191 = arith.constant 0 : index
    %458 = vector.load %arg12[%c1_190, %c0_191] : memref<4x32xf32, #tpu.memory_space<vmem>>, vector<1x32xf32>
    %459 = arith.addf %458, %457 : vector<1x32xf32>
    %c1_192 = arith.constant 1 : index
    %c0_193 = arith.constant 0 : index
    %460 = vector.load %arg12[%c1_192, %c0_193] : memref<4x32xf32, #tpu.memory_space<vmem>>, vector<1x32xf32>
    tpu.vector_store %arg12[%c1_192, %c0_193], %459 {strides = array<i32>} : memref<4x32xf32, #tpu.memory_space<vmem>>, vector<1x32xf32>,
    %cst_194 = arith.constant 2.000000e+00 : f32
    %461 = vector.broadcast %cst_194 : f32 to vector<128x1xf32>
    %462 = arith.cmpf oeq, %4, %461 : vector<128x1xf32>
    %cst_195 = arith.constant 0.000000e+00 : f32
    %463 = vector.broadcast %cst_195 : f32 to vector<128x1xf32>
    %464 = arith.select %462, %410, %463 : vector<128x1xi1>, vector<128x1xf32>
    %cst_196 = arith.constant 5.000000e-01 : f32
    %465 = vector.broadcast %cst_196 : f32 to vector<128x1xf32>
    %466 = arith.cmpf ogt, %464, %465 : vector<128x1xf32>
    %cst_197 = arith.constant -1.000000e+30 : f32
    %467 = vector.shape_cast %466 : vector<128x1xi1> to vector<128x1xi1>
    %468 = vector.broadcast %467 : vector<128x1xi1> to vector<128x32xi1>
    %469 = vector.broadcast %cst_197 : f32 to vector<128x32xf32>
    %470 = arith.select %468, %413, %469 : vector<128x32xi1>, vector<128x32xf32>
    %cst_198 = arith.constant dense<0xFF800000> : vector<32xf32>
    %471 = vector.multi_reduction <maximumf>, %470, %cst_198 [0] : vector<128x32xf32> to vector<32xf32>
    %472 = vector.shape_cast %471 : vector<32xf32> to vector<1x32xf32>
    %473 = vector.extract_strided_slice %416 {offsets = [2, 0], sizes = [1, 1], strides = [1, 1]} : vector<4x1xf32> to vector<1x1xf32>
    %cst_199 = arith.constant 5.000000e-01 : f32
    %474 = vector.broadcast %cst_199 : f32 to vector<1x1xf32>
    %475 = arith.cmpf ogt, %473, %474 : vector<1x1xf32>
    %cst_200 = arith.constant 0.000000e+00 : f32
    %476 = vector.shape_cast %475 : vector<1x1xi1> to vector<1x1xi1>
    %477 = vector.broadcast %476 : vector<1x1xi1> to vector<1x32xi1>
    %478 = vector.broadcast %cst_200 : f32 to vector<1x32xf32>
    %479 = arith.select %477, %472, %478 : vector<1x32xi1>, vector<1x32xf32>
    %c2_201 = arith.constant 2 : index
    %c0_202 = arith.constant 0 : index
    %480 = vector.load %arg12[%c2_201, %c0_202] : memref<4x32xf32, #tpu.memory_space<vmem>>, vector<1x32xf32>
    %481 = arith.addf %480, %479 : vector<1x32xf32>
    %c2_203 = arith.constant 2 : index
    %c0_204 = arith.constant 0 : index
    %482 = vector.load %arg12[%c2_203, %c0_204] : memref<4x32xf32, #tpu.memory_space<vmem>>, vector<1x32xf32>
    tpu.vector_store %arg12[%c2_203, %c0_204], %481 {strides = array<i32>} : memref<4x32xf32, #tpu.memory_space<vmem>>, vector<1x32xf32>,
    %cst_205 = arith.constant 3.000000e+00 : f32
    %483 = vector.broadcast %cst_205 : f32 to vector<128x1xf32>
    %484 = arith.cmpf oeq, %4, %483 : vector<128x1xf32>
    %cst_206 = arith.constant 0.000000e+00 : f32
    %485 = vector.broadcast %cst_206 : f32 to vector<128x1xf32>
    %486 = arith.select %484, %410, %485 : vector<128x1xi1>, vector<128x1xf32>
    %cst_207 = arith.constant 5.000000e-01 : f32
    %487 = vector.broadcast %cst_207 : f32 to vector<128x1xf32>
    %488 = arith.cmpf ogt, %486, %487 : vector<128x1xf32>
    %cst_208 = arith.constant -1.000000e+30 : f32
    %489 = vector.shape_cast %488 : vector<128x1xi1> to vector<128x1xi1>
    %490 = vector.broadcast %489 : vector<128x1xi1> to vector<128x32xi1>
    %491 = vector.broadcast %cst_208 : f32 to vector<128x32xf32>
    %492 = arith.select %490, %413, %491 : vector<128x32xi1>, vector<128x32xf32>
    %cst_209 = arith.constant dense<0xFF800000> : vector<32xf32>
    %493 = vector.multi_reduction <maximumf>, %492, %cst_209 [0] : vector<128x32xf32> to vector<32xf32>
    %494 = vector.shape_cast %493 : vector<32xf32> to vector<1x32xf32>
    %495 = vector.extract_strided_slice %416 {offsets = [3, 0], sizes = [1, 1], strides = [1, 1]} : vector<4x1xf32> to vector<1x1xf32>
    %cst_210 = arith.constant 5.000000e-01 : f32
    %496 = vector.broadcast %cst_210 : f32 to vector<1x1xf32>
    %497 = arith.cmpf ogt, %495, %496 : vector<1x1xf32>
    %cst_211 = arith.constant 0.000000e+00 : f32
    %498 = vector.shape_cast %497 : vector<1x1xi1> to vector<1x1xi1>
    %499 = vector.broadcast %498 : vector<1x1xi1> to vector<1x32xi1>
    %500 = vector.broadcast %cst_211 : f32 to vector<1x32xf32>
    %501 = arith.select %499, %494, %500 : vector<1x32xi1>, vector<1x32xf32>
    %c3_212 = arith.constant 3 : index
    %c0_213 = arith.constant 0 : index
    %502 = vector.load %arg12[%c3_212, %c0_213] : memref<4x32xf32, #tpu.memory_space<vmem>>, vector<1x32xf32>
    %503 = arith.addf %502, %501 : vector<1x32xf32>
    %c3_214 = arith.constant 3 : index
    %c0_215 = arith.constant 0 : index
    %504 = vector.load %arg12[%c3_214, %c0_215] : memref<4x32xf32, #tpu.memory_space<vmem>>, vector<1x32xf32>
    tpu.vector_store %arg12[%c3_214, %c0_215], %503 {strides = array<i32>} : memref<4x32xf32, #tpu.memory_space<vmem>>, vector<1x32xf32>,
    %c0_216 = arith.constant 0 : index
    %c0_217 = arith.constant 0 : index
    %505 = vector.load %arg12[%c0_216, %c0_217] : memref<4x32xf32, #tpu.memory_space<vmem>>, vector<4x32xf32>
    %c0_218 = arith.constant 0 : index
    %c0_219 = arith.constant 0 : index
    %c0_220 = arith.constant 0 : index
    %506 = vector.load %arg4[%c0_218, %c0_219, %c0_220] : memref<1x4x8xf32, #tpu.memory_space<vmem>>, vector<1x4x8xf32>
    %507 = vector.shape_cast %506 : vector<1x4x8xf32> to vector<4x8xf32>
    %c0_221 = arith.constant 0 : index
    %c0_222 = arith.constant 0 : index
    %508 = vector.load %arg10[%c0_221, %c0_222] : memref<4x64xf32, #tpu.memory_space<vmem>>, vector<1x64xf32>
    %c1_223 = arith.constant 1 : index
    %c0_224 = arith.constant 0 : index
    %509 = vector.load %arg10[%c1_223, %c0_224] : memref<4x64xf32, #tpu.memory_space<vmem>>, vector<1x64xf32>
    %c2_225 = arith.constant 2 : index
    %c0_226 = arith.constant 0 : index
    %510 = vector.load %arg10[%c2_225, %c0_226] : memref<4x64xf32, #tpu.memory_space<vmem>>, vector<1x64xf32>
    %c3_227 = arith.constant 3 : index
    %c0_228 = arith.constant 0 : index
    %511 = vector.load %arg10[%c3_227, %c0_228] : memref<4x64xf32, #tpu.memory_space<vmem>>, vector<1x1xf32>
    %c0_229 = arith.constant 0 : index
    %c0_230 = arith.constant 0 : index
    %512 = vector.load %arg8[%c0_229, %c0_230] : memref<72x64xf32, #tpu.memory_space<vmem>>, vector<32x64xf32>
    %cst_231 = arith.constant dense<0.000000e+00> : vector<4x64xf32>
    %513 = tpu.matmul %505, %512, %cst_231 {dimension_numbers = #tpu.dot_dimension_numbers<[1], [0], [0], [1], [0, 0, 1, 1], [], []>} : vector<4x32xf32>, vector<32x64xf32>, vector<4x64xf32> -> vector<4x64xf32>
    %c32 = arith.constant 32 : index
    %c0_232 = arith.constant 0 : index
    %514 = vector.load %arg8[%c32, %c0_232] : memref<72x64xf32, #tpu.memory_space<vmem>>, vector<32x64xf32>
    %cst_233 = arith.constant dense<0.000000e+00> : vector<4x64xf32>
    %515 = tpu.matmul %415, %514, %cst_233 {dimension_numbers = #tpu.dot_dimension_numbers<[1], [0], [0], [1], [0, 0, 1, 1], [], []>} : vector<4x32xf32>, vector<32x64xf32>, vector<4x64xf32> -> vector<4x64xf32>
    %516 = arith.addf %513, %515 : vector<4x64xf32>
    %c64 = arith.constant 64 : index
    %c0_234 = arith.constant 0 : index
    %517 = vector.load %arg8[%c64, %c0_234] : memref<72x64xf32, #tpu.memory_space<vmem>>, vector<8x64xf32>
    %cst_235 = arith.constant dense<0.000000e+00> : vector<4x64xf32>
    %518 = tpu.matmul %507, %517, %cst_235 {dimension_numbers = #tpu.dot_dimension_numbers<[1], [0], [0], [1], [0, 0, 1, 1], [], []>} : vector<4x8xf32>, vector<8x64xf32>, vector<4x64xf32> -> vector<4x64xf32>
    %519 = arith.addf %516, %518 : vector<4x64xf32>
    %520 = vector.broadcast %508 : vector<1x64xf32> to vector<4x64xf32>
    %521 = arith.addf %519, %520 : vector<4x64xf32>
    %cst_236 = arith.constant 0.000000e+00 : f32
    %522 = vector.broadcast %cst_236 : f32 to vector<4x64xf32>
    %523 = arith.maximumf %521, %522 : vector<4x64xf32>
    %c0_237 = arith.constant 0 : index
    %c0_238 = arith.constant 0 : index
    %524 = vector.load %arg9[%c0_237, %c0_238] : memref<64x64xf32, #tpu.memory_space<vmem>>, vector<64x64xf32>
    %cst_239 = arith.constant dense<0.000000e+00> : vector<4x64xf32>
    %525 = tpu.matmul %523, %524, %cst_239 {dimension_numbers = #tpu.dot_dimension_numbers<[1], [0], [0], [1], [0, 0, 1, 1], [], []>} : vector<4x64xf32>, vector<64x64xf32>, vector<4x64xf32> -> vector<4x64xf32>
    %526 = vector.broadcast %509 : vector<1x64xf32> to vector<4x64xf32>
    %527 = arith.addf %525, %526 : vector<4x64xf32>
    %cst_240 = arith.constant 0.000000e+00 : f32
    %528 = vector.broadcast %cst_240 : f32 to vector<4x64xf32>
    %529 = arith.maximumf %527, %528 : vector<4x64xf32>
    %530 = vector.broadcast %510 : vector<1x64xf32> to vector<4x64xf32>
    %531 = arith.mulf %529, %530 : vector<4x64xf32>
    %cst_241 = arith.constant dense<0.000000e+00> : vector<4xf32>
    %532 = vector.multi_reduction <add>, %531, %cst_241 [1] : vector<4x64xf32> to vector<4xf32>
    %533 = vector.shape_cast %532 : vector<4xf32> to vector<4x1xf32>
    %534 = vector.broadcast %511 : vector<1x1xf32> to vector<4x1xf32>
    %535 = arith.addf %533, %534 : vector<4x1xf32>
    %536 = vector.shape_cast %535 : vector<4x1xf32> to vector<1x4x1xf32>
    %c0_242 = arith.constant 0 : index
    %c0_243 = arith.constant 0 : index
    %c0_244 = arith.constant 0 : index
    %537 = vector.load %arg11[%c0_242, %c0_243, %c0_244] : memref<1x4x1xf32, #tpu.memory_space<vmem>>, vector<1x4x1xf32>
    tpu.vector_store %arg11[%c0_242, %c0_243, %c0_244], %536 {strides = array<i32>} : memref<1x4x1xf32, #tpu.memory_space<vmem>>, vector<1x4x1xf32>,
    return
  }
  func.func @transform_0(%arg0: i32) -> (i32, i32, i32) {
    %c0_i32 = arith.constant 0 : i32
    %c0_i32_0 = arith.constant 0 : i32
    %c0_i32_1 = arith.constant 0 : i32
    return %arg0, %c0_i32, %c0_i32_0 : i32, i32, i32
  }
  func.func @transform_1(%arg0: i32) -> (i32, i32, i32) {
    %c0_i32 = arith.constant 0 : i32
    %c0_i32_0 = arith.constant 0 : i32
    %c0_i32_1 = arith.constant 0 : i32
    return %arg0, %c0_i32, %c0_i32_0 : i32, i32, i32
  }
  func.func @transform_2(%arg0: i32) -> (i32, i32, i32) {
    %c0_i32 = arith.constant 0 : i32
    %c0_i32_0 = arith.constant 0 : i32
    %c0_i32_1 = arith.constant 0 : i32
    return %arg0, %c0_i32, %c0_i32_0 : i32, i32, i32
  }
  func.func @transform_3(%arg0: i32) -> (i32, i32, i32) {
    %c0_i32 = arith.constant 0 : i32
    %c0_i32_0 = arith.constant 0 : i32
    %c0_i32_1 = arith.constant 0 : i32
    return %arg0, %c0_i32, %c0_i32_0 : i32, i32, i32
  }
  func.func @transform_4(%arg0: i32) -> (i32, i32, i32) {
    %c0_i32 = arith.constant 0 : i32
    %c0_i32_0 = arith.constant 0 : i32
    %c0_i32_1 = arith.constant 0 : i32
    %c0_i32_2 = arith.constant 0 : i32
    return %c0_i32, %c0_i32_0, %c0_i32_1 : i32, i32, i32
  }
  func.func @transform_5(%arg0: i32) -> (i32, i32, i32) {
    %c0_i32 = arith.constant 0 : i32
    %c0_i32_0 = arith.constant 0 : i32
    %c0_i32_1 = arith.constant 0 : i32
    %c0_i32_2 = arith.constant 0 : i32
    return %c0_i32, %c0_i32_0, %c0_i32_1 : i32, i32, i32
  }
  func.func @transform_6(%arg0: i32) -> (i32, i32, i32) {
    %c0_i32 = arith.constant 0 : i32
    %c0_i32_0 = arith.constant 0 : i32
    %c0_i32_1 = arith.constant 0 : i32
    %c0_i32_2 = arith.constant 0 : i32
    return %c0_i32, %c0_i32_0, %c0_i32_1 : i32, i32, i32
  }
  func.func @transform_7(%arg0: i32) -> (i32, i32) {
    %c0_i32 = arith.constant 0 : i32
    %c0_i32_0 = arith.constant 0 : i32
    %c0_i32_1 = arith.constant 0 : i32
    return %c0_i32, %c0_i32_0 : i32, i32
  }
  func.func @transform_8(%arg0: i32) -> (i32, i32) {
    %c0_i32 = arith.constant 0 : i32
    %c0_i32_0 = arith.constant 0 : i32
    %c0_i32_1 = arith.constant 0 : i32
    return %c0_i32, %c0_i32_0 : i32, i32
  }
  func.func @transform_9(%arg0: i32) -> (i32, i32) {
    %c0_i32 = arith.constant 0 : i32
    %c0_i32_0 = arith.constant 0 : i32
    %c0_i32_1 = arith.constant 0 : i32
    return %c0_i32, %c0_i32_0 : i32, i32
  }
  func.func @transform_10(%arg0: i32) -> (i32, i32, i32) {
    %c0_i32 = arith.constant 0 : i32
    %c0_i32_0 = arith.constant 0 : i32
    %c0_i32_1 = arith.constant 0 : i32
    return %arg0, %c0_i32, %c0_i32_0 : i32, i32, i32
  }
}

</mosaic_0001>

<llo_original>
// kernel: run.1
$region0: #{run.1}
  #allocation0 [shape = 'u32[]', space=smem, size = 0x4, offset = 0x4, fixed_abs, tag = 'smem constant byte address 0x4 - core index']
  #allocation1 [shape = 'u32[144,128]{1,0:T(1,128)}', space=vmem, size = 0x12000, scoped, tag = 'internal scratch']
  #allocation2 [shape = 'f32[4,32]{1,0:T(4,128)}', space=vmem, size = 0x800, scoped, tag = 'scratch operand']
  %s0 = inlined_call_operand.vmem [shape: f32[2,128,128], index: 0, kind: input, shape index: {}]
  %s1 = inlined_call_operand.vmem [shape: f32[2,128,32], index: 1, kind: input, shape index: {}]
  %s2 = inlined_call_operand.vmem [shape: f32[2,128,2], index: 2, kind: input, shape index: {}]
  %s3 = inlined_call_operand.vmem [shape: f32[2,4,8], index: 3, kind: input, shape index: {}]
  %s4 = inlined_call_operand.vmem [shape: f32[3,32,32], index: 4, kind: input, shape index: {}]
  %s5 = inlined_call_operand.vmem [shape: f32[3,32,2], index: 5, kind: input, shape index: {}]
  %s6 = inlined_call_operand.vmem [shape: f32[3,2,32], index: 6, kind: input, shape index: {}]
  %s7 = inlined_call_operand.vmem [shape: f32[72,64], index: 7, kind: input, shape index: {}]
  %s8 = inlined_call_operand.vmem [shape: f32[64,64], index: 8, kind: input, shape index: {}]
  %s9 = inlined_call_operand.vmem [shape: f32[4,64], index: 9, kind: input, shape index: {}]
  %s10 = inlined_call_operand.vmem [shape: f32[2,4,1], index: 10, kind: output, shape index: {}]
  %s11 = sld [smem:[#allocation0]]
  $region73: #{run.1} parent=0
    _
  %s13 = ssub.s32 1, %s11
  %s14 = scalar_select 0, %s13, %s11
  loop: start=0, step=1, limit=4
  $region2: #{run.1} parent=0 // loop_pre_header
    _
  $region3: #{run.1} parent=0 // loop_header
    %s16 = sphi 0, %s20
    %p17 = scmp.ge.s32.totalorder %s16, 4
    %s26 = sphi 0, %s28
    %s29 = sphi 0, %s26
    %s30 = sphi 0, %s29
    %s46 = sphi 0, %s30
    %s52 = sphi 0, %s54
    %s55 = sphi 0, %s52
    %s56 = sphi 0, %s55
    %s72 = sphi 0, %s56
    %s78 = sphi 0, %s80
    %s81 = sphi 0, %s78
    %s82 = sphi 0, %s81
    %s98 = sphi 0, %s82
    %s104 = sphi 0, %s106
    %s107 = sphi 0, %s104
    %s108 = sphi 0, %s107
    %s124 = sphi 0, %s108
    %s128 = sphi 0, %s128
    %s130 = sphi 0, %s128
    %s131 = sphi 0, %s130
    %s145 = sphi 0, %s131
    %s149 = sphi 0, %s149
    %s151 = sphi 0, %s149
    %s152 = sphi 0, %s151
    %s166 = sphi 0, %s152
    %s170 = sphi 0, %s170
    %s172 = sphi 0, %s170
    %s173 = sphi 0, %s172
    %s187 = sphi 0, %s173
    %s191 = sphi 0, %s191
    %s193 = sphi 0, %s191
    %s194 = sphi 0, %s193
    %s208 = sphi 0, %s194
    %s212 = sphi 0, %s212
    %s214 = sphi 0, %s212
    %s215 = sphi 0, %s214
    %s229 = sphi 0, %s215
    %s233 = sphi 0, %s233
    %s235 = sphi 0, %s233
    %s236 = sphi 0, %s235
    %s250 = sphi 0, %s236
    %s256 = sphi 0, %s258
    %s259 = sphi 0, %s256
    %s260 = sphi 0, %s259
    %s276 = sphi 0, %s260
  $region4: #{run.1} parent=0 // loop_header_branch
    %19 = sbr.rel (%p17) target = $region8
  $region5: #{run.1} parent=0 // loop_body
    %s21 = ssub.s32 %s16, 1
    %s22 = ssub.s32 %s16, 2
    %s23 = sadd.s32 %s16, 1
    %s24 = ssub.s32 %s16, %s23
    %p25 = scmp.eq.s32.totalorder %s24, 0
    %s27 = sadd.s32 %s26, 1
    %s28 = scalar_select %p25, %s26, %s27
    %p31 = pneg %p25
    %p32 = scmp.eq.s32.totalorder %s16, 1
    %p33 = por %p31, %p32
    %p34 = scmp.ne.s32.totalorder %s26, %s29
    %p35 = scmp.eq.s32.totalorder %s16, 0
    %p36 = por %p34, %p35
    %p37 = scmp.ne.s32.totalorder %s26, %s29
    %p38 = scmp.eq.s32.totalorder %s21, 1
    %p39 = por %p37, %p38
    %p40 = scmp.ne.s32.totalorder %s29, %s30
    %p41 = scmp.eq.s32.totalorder %s21, 0
    %p42 = por %p40, %p41
    %p43 = scmp.ne.s32.totalorder %s29, %s30
    %p44 = scmp.eq.s32.totalorder %s22, 1
    %p45 = por %p43, %p44
    %p47 = scmp.ne.s32.totalorder %s30, %s46
    %p48 = scmp.eq.s32.totalorder %s22, 0
    %p49 = por %p47, %p48
    %s50 = ssub.s32 %s16, %s23
    %p51 = scmp.eq.s32.totalorder %s50, 0
    %s53 = sadd.s32 %s52, 1
    %s54 = scalar_select %p51, %s52, %s53
    %p57 = pneg %p51
    %p58 = scmp.eq.s32.totalorder %s16, 1
    %p59 = por %p57, %p58
    %p60 = scmp.ne.s32.totalorder %s52, %s55
    %p61 = scmp.eq.s32.totalorder %s16, 0
    %p62 = por %p60, %p61
    %p63 = scmp.ne.s32.totalorder %s52, %s55
    %p64 = scmp.eq.s32.totalorder %s21, 1
    %p65 = por %p63, %p64
    %p66 = scmp.ne.s32.totalorder %s55, %s56
    %p67 = scmp.eq.s32.totalorder %s21, 0
    %p68 = por %p66, %p67
    %p69 = scmp.ne.s32.totalorder %s55, %s56
    %p70 = scmp.eq.s32.totalorder %s22, 1
    %p71 = por %p69, %p70
    %p73 = scmp.ne.s32.totalorder %s56, %s72
    %p74 = scmp.eq.s32.totalorder %s22, 0
    %p75 = por %p73, %p74
    %s76 = ssub.s32 %s16, %s23
    %p77 = scmp.eq.s32.totalorder %s76, 0
    %s79 = sadd.s32 %s78, 1
    %s80 = scalar_select %p77, %s78, %s79
    %p83 = pneg %p77
    %p84 = scmp.eq.s32.totalorder %s16, 1
    %p85 = por %p83, %p84
    %p86 = scmp.ne.s32.totalorder %s78, %s81
    %p87 = scmp.eq.s32.totalorder %s16, 0
    %p88 = por %p86, %p87
    %p89 = scmp.ne.s32.totalorder %s78, %s81
    %p90 = scmp.eq.s32.totalorder %s21, 1
    %p91 = por %p89, %p90
    %p92 = scmp.ne.s32.totalorder %s81, %s82
    %p93 = scmp.eq.s32.totalorder %s21, 0
    %p94 = por %p92, %p93
    %p95 = scmp.ne.s32.totalorder %s81, %s82
    %p96 = scmp.eq.s32.totalorder %s22, 1
    %p97 = por %p95, %p96
    %p99 = scmp.ne.s32.totalorder %s82, %s98
    %p100 = scmp.eq.s32.totalorder %s22, 0
    %p101 = por %p99, %p100
    %s102 = ssub.s32 %s16, %s23
    %p103 = scmp.eq.s32.totalorder %s102, 0
    %s105 = sadd.s32 %s104, 1
    %s106 = scalar_select %p103, %s104, %s105
    %p109 = pneg %p103
    %p110 = scmp.eq.s32.totalorder %s16, 1
    %p111 = por %p109, %p110
    %p112 = scmp.ne.s32.totalorder %s104, %s107
    %p113 = scmp.eq.s32.totalorder %s16, 0
    %p114 = por %p112, %p113
    %p115 = scmp.ne.s32.totalorder %s104, %s107
    %p116 = scmp.eq.s32.totalorder %s21, 1
    %p117 = por %p115, %p116
    %p118 = scmp.ne.s32.totalorder %s107, %s108
    %p119 = scmp.eq.s32.totalorder %s21, 0
    %p120 = por %p118, %p119
    %p121 = scmp.ne.s32.totalorder %s107, %s108
    %p122 = scmp.eq.s32.totalorder %s22, 1
    %p123 = por %p121, %p122
    %p125 = scmp.ne.s32.totalorder %s108, %s124
    %p126 = scmp.eq.s32.totalorder %s22, 0
    %p127 = por %p125, %p126
    %s129 = sadd.s32 %s128, 1
    %p132 = scmp.eq.s32.totalorder %s16, 1
    %p133 = scmp.ne.s32.totalorder %s128, %s130
    %p134 = scmp.eq.s32.totalorder %s16, 0
    %p135 = por %p133, %p134
    %p136 = scmp.ne.s32.totalorder %s128, %s130
    %p137 = scmp.eq.s32.totalorder %s21, 1
    %p138 = por %p136, %p137
    %p139 = scmp.ne.s32.totalorder %s130, %s131
    %p140 = scmp.eq.s32.totalorder %s21, 0
    %p141 = por %p139, %p140
    %p142 = scmp.ne.s32.totalorder %s130, %s131
    %p143 = scmp.eq.s32.totalorder %s22, 1
    %p144 = por %p142, %p143
    %p146 = scmp.ne.s32.totalorder %s131, %s145
    %p147 = scmp.eq.s32.totalorder %s22, 0
    %p148 = por %p146, %p147
    %s150 = sadd.s32 %s149, 1
    %p153 = scmp.eq.s32.totalorder %s16, 1
    %p154 = scmp.ne.s32.totalorder %s149, %s151
    %p155 = scmp.eq.s32.totalorder %s16, 0
    %p156 = por %p154, %p155
    %p157 = scmp.ne.s32.totalorder %s149, %s151
    %p158 = scmp.eq.s32.totalorder %s21, 1
    %p159 = por %p157, %p158
    %p160 = scmp.ne.s32.totalorder %s151, %s152
    %p161 = scmp.eq.s32.totalorder %s21, 0
    %p162 = por %p160, %p161
    %p163 = scmp.ne.s32.totalorder %s151, %s152
    %p164 = scmp.eq.s32.totalorder %s22, 1
    %p165 = por %p163, %p164
    %p167 = scmp.ne.s32.totalorder %s152, %s166
    %p168 = scmp.eq.s32.totalorder %s22, 0
    %p169 = por %p167, %p168
    %s171 = sadd.s32 %s170, 1
    %p174 = scmp.eq.s32.totalorder %s16, 1
    %p175 = scmp.ne.s32.totalorder %s170, %s172
    %p176 = scmp.eq.s32.totalorder %s16, 0
    %p177 = por %p175, %p176
    %p178 = scmp.ne.s32.totalorder %s170, %s172
    %p179 = scmp.eq.s32.totalorder %s21, 1
    %p180 = por %p178, %p179
    %p181 = scmp.ne.s32.totalorder %s172, %s173
    %p182 = scmp.eq.s32.totalorder %s21, 0
    %p183 = por %p181, %p182
    %p184 = scmp.ne.s32.totalorder %s172, %s173
    %p185 = scmp.eq.s32.totalorder %s22, 1
    %p186 = por %p184, %p185
    %p188 = scmp.ne.s32.totalorder %s173, %s187
    %p189 = scmp.eq.s32.totalorder %s22, 0
    %p190 = por %p188, %p189
    %s192 = sadd.s32 %s191, 1
    %p195 = scmp.eq.s32.totalorder %s16, 1
    %p196 = scmp.ne.s32.totalorder %s191, %s193
    %p197 = scmp.eq.s32.totalorder %s16, 0
    %p198 = por %p196, %p197
    %p199 = scmp.ne.s32.totalorder %s191, %s193
    %p200 = scmp.eq.s32.totalorder %s21, 1
    %p201 = por %p199, %p200
    %p202 = scmp.ne.s32.totalorder %s193, %s194
    %p203 = scmp.eq.s32.totalorder %s21, 0
    %p204 = por %p202, %p203
    %p205 = scmp.ne.s32.totalorder %s193, %s194
    %p206 = scmp.eq.s32.totalorder %s22, 1
    %p207 = por %p205, %p206
    %p209 = scmp.ne.s32.totalorder %s194, %s208
    %p210 = scmp.eq.s32.totalorder %s22, 0
    %p211 = por %p209, %p210
    %s213 = sadd.s32 %s212, 1
    %p216 = scmp.eq.s32.totalorder %s16, 1
    %p217 = scmp.ne.s32.totalorder %s212, %s214
    %p218 = scmp.eq.s32.totalorder %s16, 0
    %p219 = por %p217, %p218
    %p220 = scmp.ne.s32.totalorder %s212, %s214
    %p221 = scmp.eq.s32.totalorder %s21, 1
    %p222 = por %p220, %p221
    %p223 = scmp.ne.s32.totalorder %s214, %s215
    %p224 = scmp.eq.s32.totalorder %s21, 0
    %p225 = por %p223, %p224
    %p226 = scmp.ne.s32.totalorder %s214, %s215
    %p227 = scmp.eq.s32.totalorder %s22, 1
    %p228 = por %p226, %p227
    %p230 = scmp.ne.s32.totalorder %s215, %s229
    %p231 = scmp.eq.s32.totalorder %s22, 0
    %p232 = por %p230, %p231
    %s234 = sadd.s32 %s233, 1
    %p237 = scmp.eq.s32.totalorder %s16, 1
    %p238 = scmp.ne.s32.totalorder %s233, %s235
    %p239 = scmp.eq.s32.totalorder %s16, 0
    %p240 = por %p238, %p239
    %p241 = scmp.ne.s32.totalorder %s233, %s235
    %p242 = scmp.eq.s32.totalorder %s21, 1
    %p243 = por %p241, %p242
    %p244 = scmp.ne.s32.totalorder %s235, %s236
    %p245 = scmp.eq.s32.totalorder %s21, 0
    %p246 = por %p244, %p245
    %p247 = scmp.ne.s32.totalorder %s235, %s236
    %p248 = scmp.eq.s32.totalorder %s22, 1
    %p249 = por %p247, %p248
    %p251 = scmp.ne.s32.totalorder %s236, %s250
    %p252 = scmp.eq.s32.totalorder %s22, 0
    %p253 = por %p251, %p252
    %s254 = ssub.s32 %s16, %s23
    %p255 = scmp.eq.s32.totalorder %s254, 0
    %s257 = sadd.s32 %s256, 1
    %s258 = scalar_select %p255, %s256, %s257
    %p261 = pneg %p255
    %p262 = scmp.eq.s32.totalorder %s16, 1
    %p263 = por %p261, %p262
    %p264 = scmp.ne.s32.totalorder %s256, %s259
    %p265 = scmp.eq.s32.totalorder %s16, 0
    %p266 = por %p264, %p265
    %p267 = scmp.ne.s32.totalorder %s256, %s259
    %p268 = scmp.eq.s32.totalorder %s21, 1
    %p269 = por %p267, %p268
    %p270 = scmp.ne.s32.totalorder %s259, %s260
    %p271 = scmp.eq.s32.totalorder %s21, 0
    %p272 = por %p270, %p271
    %p273 = scmp.ne.s32.totalorder %s259, %s260
    %p274 = scmp.eq.s32.totalorder %s22, 1
    %p275 = por %p273, %p274
    %p277 = scmp.ne.s32.totalorder %s260, %s276
    %p278 = scmp.eq.s32.totalorder %s22, 0
    %p279 = por %p277, %p278
    %p280 = scmp.le.s32.totalorder 1, %s16
    %p281 = scmp.lt.s32.totalorder %s16, 3
    %p282 = pnand %p280, %p281
    %p283 = pneg %p282
    // Predicated region
    $region9: #{run.1} parent=5 // pred_check
      _
    $region10: #{run.1} parent=5 // pred_check_branch
      %285 = sbr.rel (%p282) target = $region12
    $region11: #{run.1} parent=5 // pred_region
      %s286 = ssub.s32 %s16, 1
      // Predicated region
      $region13: #{run.1} parent=11 // pred_check
        %p287 = pneg %p141
      $region14: #{run.1} parent=11 // pred_check_branch
        %289 = sbr.rel (%p287) target = $region16
      $region15: #{run.1} parent=11 // pred_region
        _
      $region16: #{run.1} parent=11 // pred_fallthru
        _
      // Predicated region
      $region17: #{run.1} parent=11 // pred_check
        %p290 = pneg %p162
      $region18: #{run.1} parent=11 // pred_check_branch
        %292 = sbr.rel (%p290) target = $region20
      $region19: #{run.1} parent=11 // pred_region
        _
      $region20: #{run.1} parent=11 // pred_fallthru
        _
      // Predicated region
      $region21: #{run.1} parent=11 // pred_check
        %p293 = pneg %p183
      $region22: #{run.1} parent=11 // pred_check_branch
        %295 = sbr.rel (%p293) target = $region24
      $region23: #{run.1} parent=11 // pred_region
        _
      $region24: #{run.1} parent=11 // pred_fallthru
        _
      // Predicated region
      $region25: #{run.1} parent=11 // pred_check
        %p296 = pneg %p204
      $region26: #{run.1} parent=11 // pred_check_branch
        %298 = sbr.rel (%p296) target = $region28
      $region27: #{run.1} parent=11 // pred_region
        _
      $region28: #{run.1} parent=11 // pred_fallthru
        _
      // Predicated region
      $region29: #{run.1} parent=11 // pred_check
        %p299 = pneg %p225
      $region30: #{run.1} parent=11 // pred_check_branch
        %301 = sbr.rel (%p299) target = $region32
      $region31: #{run.1} parent=11 // pred_region
        _
      $region32: #{run.1} parent=11 // pred_fallthru
        _
      // Predicated region
      $region33: #{run.1} parent=11 // pred_check
        %p302 = pneg %p246
      $region34: #{run.1} parent=11 // pred_check_branch
        %304 = sbr.rel (%p302) target = $region36
      $region35: #{run.1} parent=11 // pred_region
        _
      $region36: #{run.1} parent=11 // pred_fallthru
        _
    $region12: #{run.1} parent=5 // pred_fallthru
      _
    %p305 = scmp.lt.s32.totalorder %s16, 2
    // Predicated region
    $region37: #{run.1} parent=5 // pred_check
      %p306 = pneg %p305
    $region38: #{run.1} parent=5 // pred_check_branch
      %308 = sbr.rel (%p306) target = $region40
    $region39: #{run.1} parent=5 // pred_region
      // Predicated region
      $region41: #{run.1} parent=39 // pred_check
        %p309 = pneg %p36
      $region42: #{run.1} parent=39 // pred_check_branch
        %311 = sbr.rel (%p309) target = $region44
      $region43: #{run.1} parent=39 // pred_region
        %p312 = scmp.lt.s32.totalorder %s16, 1
        %s313 = scalar_select %p312, %s16, 1
        %s314 = smul.addr %s313, 16
        %s315 = smul.addr %s314, 8
        %s316 = scalar_lea.vmem %s0, %s315
      $region44: #{run.1} parent=39 // pred_fallthru
        _
      // Predicated region
      $region45: #{run.1} parent=39 // pred_check
        %p317 = pneg %p62
      $region46: #{run.1} parent=39 // pred_check_branch
        %319 = sbr.rel (%p317) target = $region48
      $region47: #{run.1} parent=39 // pred_region
        %p320 = scmp.lt.s32.totalorder %s16, 1
        %s321 = scalar_select %p320, %s16, 1
        %s322 = smul.addr %s321, 16
        %s323 = smul.addr %s322, 8
        %s324 = scalar_lea.vmem %s1, %s323
      $region48: #{run.1} parent=39 // pred_fallthru
        _
      // Predicated region
      $region49: #{run.1} parent=39 // pred_check
        %p325 = pneg %p88
      $region50: #{run.1} parent=39 // pred_check_branch
        %327 = sbr.rel (%p325) target = $region52
      $region51: #{run.1} parent=39 // pred_region
        %p328 = scmp.lt.s32.totalorder %s16, 1
        %s329 = scalar_select %p328, %s16, 1
        %s330 = smul.addr %s329, 16
        %s331 = smul.addr %s330, 8
        %s332 = scalar_lea.vmem %s2, %s331
      $region52: #{run.1} parent=39 // pred_fallthru
        _
      // Predicated region
      $region53: #{run.1} parent=39 // pred_check
        %p333 = pneg %p114
      $region54: #{run.1} parent=39 // pred_check_branch
        %335 = sbr.rel (%p333) target = $region56
      $region55: #{run.1} parent=39 // pred_region
        %p336 = scmp.lt.s32.totalorder %s16, 1
        %s337 = scalar_select %p336, %s16, 1
        %s338 = smul.addr %s337, 4
        %s339 = scalar_lea.vmem %s3, %s338
      $region56: #{run.1} parent=39 // pred_fallthru
        _
    $region40: #{run.1} parent=5 // pred_fallthru
      _
    %p340 = scmp.le.s32.totalorder 1, %s16
    %p341 = scmp.lt.s32.totalorder %s16, 3
    %p342 = pnand %p340, %p341
    %p343 = pneg %p342
    // Predicated region
    $region57: #{run.1} parent=5 // pred_check
      _
    $region58: #{run.1} parent=5 // pred_check_branch
      %345 = sbr.rel (%p342) target = $region60
    $region59: #{run.1} parent=5 // pred_region
      %s346 = ssub.s32 %s16, 1
      %p347 = scmp.lt.s32.totalorder %s21, 1
      %s348 = scalar_select %p347, %s21, 1
      %s349 = smul.addr %s348, 16
      %s350 = smul.addr %s349, 8
      %s351 = scalar_lea.vmem %s0, %s350
      %p352 = pneg %p42
      %p353 = pneg %p39
      %p354 = scmp.lt.s32.totalorder %s21, 1
      %s355 = scalar_select %p354, %s21, 1
      %s356 = smul.addr %s355, 16
      %s357 = smul.addr %s356, 8
      %s358 = scalar_lea.vmem %s1, %s357
      %p359 = pneg %p68
      %p360 = pneg %p65
      %p361 = scmp.lt.s32.totalorder %s21, 1
      %s362 = scalar_select %p361, %s21, 1
      %s363 = smul.addr %s362, 16
      %s364 = smul.addr %s363, 8
      %s365 = scalar_lea.vmem %s2, %s364
      %p366 = pneg %p94
      %p367 = pneg %p91
      %p368 = scmp.lt.s32.totalorder %s21, 1
      %s369 = scalar_select %p368, %s21, 1
      %s370 = smul.addr %s369, 4
      %s371 = scalar_lea.vmem %s3, %s370
      %p372 = pneg %p120
      %p373 = pneg %p117
      %p374 = pneg %p141
      %p375 = pneg %p138
      %p376 = pneg %p162
      %p377 = pneg %p159
      %p378 = pneg %p183
      %p379 = pneg %p180
      %p380 = pneg %p204
      %p381 = pneg %p201
      %p382 = pneg %p225
      %p383 = pneg %p222
      %p384 = pneg %p246
      %p385 = pneg %p243
      %p386 = pneg %p272
      %p387 = pneg %p269
      %p388 = scmp.lt.s32.totalorder %s21, 1
      %s389 = scalar_select %p388, %s21, 1
      %s390 = smul.addr %s389, 4
      %s391 = scalar_lea.vmem %s10, %s390
      %p392 = scmp.lt.s32.totalorder %s21, 1
      %s393 = scalar_select %p392, %s21, 1
      %s394 = smul.addr %s393, 16
      %s395 = smul.addr %s394, 8
      %s396 = scalar_lea.vmem %s0, %s395
      %p397 = scmp.lt.s32.totalorder %s21, 1
      %s398 = scalar_select %p397, %s21, 1
      %s399 = smul.addr %s398, 16
      %s400 = smul.addr %s399, 8
      %s401 = scalar_lea.vmem %s1, %s400
      %p402 = scmp.lt.s32.totalorder %s21, 1
      %s403 = scalar_select %p402, %s21, 1
      %s404 = smul.addr %s403, 16
      %s405 = smul.addr %s404, 8
      %s406 = scalar_lea.vmem %s2, %s405
      %p407 = scmp.lt.s32.totalorder %s21, 1
      %s408 = scalar_select %p407, %s21, 1
      %s409 = smul.addr %s408, 4
      %s410 = scalar_lea.vmem %s3, %s409
      %p411 = scmp.lt.s32.totalorder %s21, 1
      %s412 = scalar_select %p411, %s21, 1
      %s413 = smul.addr %s412, 4
      %s414 = scalar_lea.vmem %s10, %s413
      %v415 = vld [vmem:[%s396] sm:$0xff]
      %v416 = vld [vmem:[%s396 + $0x8] sm:$0xff]
      %v417 = vld [vmem:[%s396 + $0x10] sm:$0xff]
      %v418 = vld [vmem:[%s396 + $0x18] sm:$0xff]
      %v419 = vld [vmem:[%s396 + $0x20] sm:$0xff]
      %v420 = vld [vmem:[%s396 + $0x28] sm:$0xff]
      %v421 = vld [vmem:[%s396 + $0x30] sm:$0xff]
      %v422 = vld [vmem:[%s396 + $0x38] sm:$0xff]
      %v423 = vld [vmem:[%s396 + $0x40] sm:$0xff]
      %v424 = vld [vmem:[%s396 + $0x48] sm:$0xff]
      %v425 = vld [vmem:[%s396 + $0x50] sm:$0xff]
      %v426 = vld [vmem:[%s396 + $0x58] sm:$0xff]
      %v427 = vld [vmem:[%s396 + $0x60] sm:$0xff]
      %v428 = vld [vmem:[%s396 + $0x68] sm:$0xff]
      %v429 = vld [vmem:[%s396 + $0x70] sm:$0xff]
      %v430 = vld [vmem:[%s396 + $0x78] sm:$0xff]
      %v431 = vld [vmem:[%s406] sm:$0xff]
      %v432 = vld [vmem:[%s406 + $0x8] sm:$0xff]
      %v433 = vld [vmem:[%s406 + $0x10] sm:$0xff]
      %v434 = vld [vmem:[%s406 + $0x18] sm:$0xff]
      %v435 = vld [vmem:[%s406 + $0x20] sm:$0xff]
      %v436 = vld [vmem:[%s406 + $0x28] sm:$0xff]
      %v437 = vld [vmem:[%s406 + $0x30] sm:$0xff]
      %v438 = vld [vmem:[%s406 + $0x38] sm:$0xff]
      %v439 = vld [vmem:[%s406 + $0x40] sm:$0xff]
      %v440 = vld [vmem:[%s406 + $0x48] sm:$0xff]
      %v441 = vld [vmem:[%s406 + $0x50] sm:$0xff]
      %v442 = vld [vmem:[%s406 + $0x58] sm:$0xff]
      %v443 = vld [vmem:[%s406 + $0x60] sm:$0xff]
      %v444 = vld [vmem:[%s406 + $0x68] sm:$0xff]
      %v445 = vld [vmem:[%s406 + $0x70] sm:$0xff]
      %v446 = vld [vmem:[%s406 + $0x78] sm:$0xff]
      %v447 = vld [vmem:[%s401] sm:$0xff]
      %v448 = vld [vmem:[%s401 + $0x8] sm:$0xff]
      %v449 = vld [vmem:[%s401 + $0x10] sm:$0xff]
      %v450 = vld [vmem:[%s401 + $0x18] sm:$0xff]
      %v451 = vld [vmem:[%s401 + $0x20] sm:$0xff]
      %v452 = vld [vmem:[%s401 + $0x28] sm:$0xff]
      %v453 = vld [vmem:[%s401 + $0x30] sm:$0xff]
      %v454 = vld [vmem:[%s401 + $0x38] sm:$0xff]
      %v455 = vld [vmem:[%s401 + $0x40] sm:$0xff]
      %v456 = vld [vmem:[%s401 + $0x48] sm:$0xff]
      %v457 = vld [vmem:[%s401 + $0x50] sm:$0xff]
      %v458 = vld [vmem:[%s401 + $0x58] sm:$0xff]
      %v459 = vld [vmem:[%s401 + $0x60] sm:$0xff]
      %v460 = vld [vmem:[%s401 + $0x68] sm:$0xff]
      %v461 = vld [vmem:[%s401 + $0x70] sm:$0xff]
      %v462 = vld [vmem:[%s401 + $0x78] sm:$0xff]
      %464 = vset.pattern.permute.xlu0 1
      %465 = vperm.xlu0 %464, %v431
      %v466 = vpop.permute.xlu0 %465
      %469 = vset.pattern.permute.xlu0 1
      %470 = vperm.xlu0 %469, %v432
      %v471 = vpop.permute.xlu0 %470
      %474 = vset.pattern.permute.xlu0 1
      %475 = vperm.xlu0 %474, %v433
      %v476 = vpop.permute.xlu0 %475
      %479 = vset.pattern.permute.xlu0 1
      %480 = vperm.xlu0 %479, %v434
      %v481 = vpop.permute.xlu0 %480
      %484 = vset.pattern.permute.xlu0 1
      %485 = vperm.xlu0 %484, %v435
      %v486 = vpop.permute.xlu0 %485
      %489 = vset.pattern.permute.xlu0 1
      %490 = vperm.xlu0 %489, %v436
      %v491 = vpop.permute.xlu0 %490
      %494 = vset.pattern.permute.xlu0 1
      %495 = vperm.xlu0 %494, %v437
      %v496 = vpop.permute.xlu0 %495
      %499 = vset.pattern.permute.xlu0 1
      %500 = vperm.xlu0 %499, %v438
      %v501 = vpop.permute.xlu0 %500
      %504 = vset.pattern.permute.xlu0 1
      %505 = vperm.xlu0 %504, %v439
      %v506 = vpop.permute.xlu0 %505
      %509 = vset.pattern.permute.xlu0 1
      %510 = vperm.xlu0 %509, %v440
      %v511 = vpop.permute.xlu0 %510
      %514 = vset.pattern.permute.xlu0 1
      %515 = vperm.xlu0 %514, %v441
      %v516 = vpop.permute.xlu0 %515
      %519 = vset.pattern.permute.xlu0 1
      %520 = vperm.xlu0 %519, %v442
      %v521 = vpop.permute.xlu0 %520
      %524 = vset.pattern.permute.xlu0 1
      %525 = vperm.xlu0 %524, %v443
      %v526 = vpop.permute.xlu0 %525
      %529 = vset.pattern.permute.xlu0 1
      %530 = vperm.xlu0 %529, %v444
      %v531 = vpop.permute.xlu0 %530
      %534 = vset.pattern.permute.xlu0 1
      %535 = vperm.xlu0 %534, %v445
      %v536 = vpop.permute.xlu0 %535
      %539 = vset.pattern.permute.xlu0 1
      %540 = vperm.xlu0 %539, %v446
      %v541 = vpop.permute.xlu0 %540
      %v543 = vmul.f32 %v447, %v466
      %v544 = vmul.f32 %v448, %v471
      %v545 = vmul.f32 %v449, %v476
      %v546 = vmul.f32 %v450, %v481
      %v547 = vmul.f32 %v451, %v486
      %v548 = vmul.f32 %v452, %v491
      %v549 = vmul.f32 %v453, %v496
      %v550 = vmul.f32 %v454, %v501
      %v551 = vmul.f32 %v455, %v506
      %v552 = vmul.f32 %v456, %v511
      %v553 = vmul.f32 %v457, %v516
      %v554 = vmul.f32 %v458, %v521
      %v555 = vmul.f32 %v459, %v526
      %v556 = vmul.f32 %v460, %v531
      %v557 = vmul.f32 %v461, %v536
      %v558 = vmul.f32 %v462, %v541
      %559 = vxpose.xlu0.b32.start [1/16] %v431, 128
      %560 = vxpose.xlu0.b32.cont [2/16] %v432, 128
      %561 = vxpose.xlu0.b32.cont [3/16] %v433, 128
      %562 = vxpose.xlu0.b32.cont [4/16] %v434, 128
      %563 = vxpose.xlu0.b32.cont [5/16] %v435, 128
      %564 = vxpose.xlu0.b32.cont [6/16] %v436, 128
      %565 = vxpose.xlu0.b32.cont [7/16] %v437, 128
      %566 = vxpose.xlu0.b32.cont [8/16] %v438, 128
      %567 = vxpose.xlu0.b32.cont [9/16] %v439, 128
      %568 = vxpose.xlu0.b32.cont [10/16] %v440, 128
      %569 = vxpose.xlu0.b32.cont [11/16] %v441, 128
      %570 = vxpose.xlu0.b32.cont [12/16] %v442, 128
      %571 = vxpose.xlu0.b32.cont [13/16] %v443, 128
      %572 = vxpose.xlu0.b32.cont [14/16] %v444, 128
      %573 = vxpose.xlu0.b32.cont [15/16] %v445, 128
      %574 = vxpose.xlu0.b32.end [16/16] %v446, 128
      %v575 = vpop.trf.xlu0
      %v576 = vpop.trf.xlu0
      %v577 = vpop.trf.xlu0
      %v578 = vpop.trf.xlu0
      %v579 = vpop.trf.xlu0
      %v580 = vpop.trf.xlu0
      %v581 = vpop.trf.xlu0
      %v582 = vpop.trf.xlu0
      %v583 = vpop.trf.xlu0
      %v584 = vpop.trf.xlu0
      %v585 = vpop.trf.xlu0
      %v586 = vpop.trf.xlu0
      %v587 = vpop.trf.xlu0
      %v588 = vpop.trf.xlu0
      %v589 = vpop.trf.xlu0
      %v590 = vpop.trf.xlu0
      %v591 = vlaneseq
      %v592 = vshrl.u32 %v591, 7
      %v593 = vsub.s32 0, %v592
      %v594 = vrot.slane %v575, %v593
      %595 = vset.pattern.permute.xlu0 0
      %596 = vperm.xlu0 %595, %v431
      %v597 = vpop.permute.xlu0 %596
      %599 = vset.pattern.permute.xlu0 0
      %600 = vperm.xlu0 %599, %v432
      %v601 = vpop.permute.xlu0 %600
      %603 = vset.pattern.permute.xlu0 0
      %604 = vperm.xlu0 %603, %v433
      %v605 = vpop.permute.xlu0 %604
      %607 = vset.pattern.permute.xlu0 0
      %608 = vperm.xlu0 %607, %v434
      %v609 = vpop.permute.xlu0 %608
      %611 = vset.pattern.permute.xlu0 0
      %612 = vperm.xlu0 %611, %v435
      %v613 = vpop.permute.xlu0 %612
      %615 = vset.pattern.permute.xlu0 0
      %616 = vperm.xlu0 %615, %v436
      %v617 = vpop.permute.xlu0 %616
      %619 = vset.pattern.permute.xlu0 0
      %620 = vperm.xlu0 %619, %v437
      %v621 = vpop.permute.xlu0 %620
      %623 = vset.pattern.permute.xlu0 0
      %624 = vperm.xlu0 %623, %v438
      %v625 = vpop.permute.xlu0 %624
      %627 = vset.pattern.permute.xlu0 0
      %628 = vperm.xlu0 %627, %v439
      %v629 = vpop.permute.xlu0 %628
      %631 = vset.pattern.permute.xlu0 0
      %632 = vperm.xlu0 %631, %v440
      %v633 = vpop.permute.xlu0 %632
      %635 = vset.pattern.permute.xlu0 0
      %636 = vperm.xlu0 %635, %v441
      %v637 = vpop.permute.xlu0 %636
      %639 = vset.pattern.permute.xlu0 0
      %640 = vperm.xlu0 %639, %v442
      %v641 = vpop.permute.xlu0 %640
      %643 = vset.pattern.permute.xlu0 0
      %644 = vperm.xlu0 %643, %v443
      %v645 = vpop.permute.xlu0 %644
      %647 = vset.pattern.permute.xlu0 0
      %648 = vperm.xlu0 %647, %v444
      %v649 = vpop.permute.xlu0 %648
      %651 = vset.pattern.permute.xlu0 0
      %652 = vperm.xlu0 %651, %v445
      %v653 = vpop.permute.xlu0 %652
      %655 = vset.pattern.permute.xlu0 0
      %656 = vperm.xlu0 %655, %v446
      %v657 = vpop.permute.xlu0 %656
      %vm659 = vcmp.eq.f32.partialorder %v594, %v597
      %vm660 = vcmp.eq.f32.partialorder %v594, %v601
      %vm661 = vcmp.eq.f32.partialorder %v594, %v605
      %vm662 = vcmp.eq.f32.partialorder %v594, %v609
      %vm663 = vcmp.eq.f32.partialorder %v594, %v613
      %vm664 = vcmp.eq.f32.partialorder %v594, %v617
      %vm665 = vcmp.eq.f32.partialorder %v594, %v621
      %vm666 = vcmp.eq.f32.partialorder %v594, %v625
      %vm667 = vcmp.eq.f32.partialorder %v594, %v629
      %vm668 = vcmp.eq.f32.partialorder %v594, %v633
      %vm669 = vcmp.eq.f32.partialorder %v594, %v637
      %vm670 = vcmp.eq.f32.partialorder %v594, %v641
      %vm671 = vcmp.eq.f32.partialorder %v594, %v645
      %vm672 = vcmp.eq.f32.partialorder %v594, %v649
      %vm673 = vcmp.eq.f32.partialorder %v594, %v653
      %vm674 = vcmp.eq.f32.partialorder %v594, %v657
      %v675 = vsel %vm659, 1, 0
      %v676 = vsel %vm660, 1, 0
      %v677 = vsel %vm661, 1, 0
      %v678 = vsel %vm662, 1, 0
      %v679 = vsel %vm663, 1, 0
      %v680 = vsel %vm664, 1, 0
      %v681 = vsel %vm665, 1, 0
      %v682 = vsel %vm666, 1, 0
      %v683 = vsel %vm667, 1, 0
      %v684 = vsel %vm668, 1, 0
      %v685 = vsel %vm669, 1, 0
      %v686 = vsel %vm670, 1, 0
      %v687 = vsel %vm671, 1, 0
      %v688 = vsel %vm672, 1, 0
      %v689 = vsel %vm673, 1, 0
      %v690 = vsel %vm674, 1, 0
      %v691 = vcvt.s32.f32 %v675
      %v692 = vcvt.s32.f32 %v676
      %v693 = vcvt.s32.f32 %v677
      %v694 = vcvt.s32.f32 %v678
      %v695 = vcvt.s32.f32 %v679
      %v696 = vcvt.s32.f32 %v680
      %v697 = vcvt.s32.f32 %v681
      %v698 = vcvt.s32.f32 %v682
      %v699 = vcvt.s32.f32 %v683
      %v700 = vcvt.s32.f32 %v684
      %v701 = vcvt.s32.f32 %v685
      %v702 = vcvt.s32.f32 %v686
      %v703 = vcvt.s32.f32 %v687
      %v704 = vcvt.s32.f32 %v688
      %v705 = vcvt.s32.f32 %v689
      %v706 = vcvt.s32.f32 %v690
      %v707 = vlaneseq
      %v708 = vshrl.u32 %v707, 7
      %v709 = vcvt.s32.f32 %v708
      %vm710 = vcmp.eq.f32.partialorder %v709, %v594
      %v711 = vsel %vm710, 1, 0
      %v712 = vcvt.s32.f32 %v711
      %v713 = vadd.s32 %v708, 8
      %v714 = vadd.s32 %v708, 16
      %v715 = vadd.s32 %v708, 24
      %v716 = vadd.s32 %v708, 32
      %v717 = vadd.s32 %v708, 40
      %v718 = vadd.s32 %v708, 48
      %v719 = vadd.s32 %v708, 56
      %v720 = vadd.s32 %v708, 64
      %v721 = vadd.s32 %v708, 72
      %v722 = vadd.s32 %v708, 80
      %v723 = vadd.s32 %v708, 88
      %v724 = vadd.s32 %v708, 96
      %v725 = vadd.s32 %v708, 104
      %v726 = vadd.s32 %v708, 112
      %v727 = vadd.s32 %v708, 120
      %v728 = vlaneseq
      %v729 = vand.u32 %v728, 127
      %vm730 = vcmp.lt.s32.totalorder %v729, %v708
      %vm731 = vcmp.lt.s32.totalorder %v729, %v713
      %vm732 = vcmp.lt.s32.totalorder %v729, %v714
      %vm733 = vcmp.lt.s32.totalorder %v729, %v715
      %vm734 = vcmp.lt.s32.totalorder %v729, %v716
      %vm735 = vcmp.lt.s32.totalorder %v729, %v717
      %vm736 = vcmp.lt.s32.totalorder %v729, %v718
      %vm737 = vcmp.lt.s32.totalorder %v729, %v719
      %vm738 = vcmp.lt.s32.totalorder %v729, %v720
      %vm739 = vcmp.lt.s32.totalorder %v729, %v721
      %vm740 = vcmp.lt.s32.totalorder %v729, %v722
      %vm741 = vcmp.lt.s32.totalorder %v729, %v723
      %vm742 = vcmp.lt.s32.totalorder %v729, %v724
      %vm743 = vcmp.lt.s32.totalorder %v729, %v725
      %vm744 = vcmp.lt.s32.totalorder %v729, %v726
      %vm745 = vcmp.lt.s32.totalorder %v729, %v727
      %vm746 = vcmask 257024
      %747 = vst.msk [vmem:[#allocation2] sm:$0xf] %vm746, 0.0
      %v748 = vld [vmem:[%s4] sm:$0xff]
      %v749 = vld [vmem:[%s4 + $0x8] sm:$0xff]
      %v750 = vld [vmem:[%s4 + $0x10] sm:$0xff]
      %v751 = vld [vmem:[%s4 + $0x18] sm:$0xff]
      %v752 = vld [vmem:[%s6] sm:$0x3]
      %v753 = vld [vmem:[%s5] sm:$0xff]
      %v754 = vld [vmem:[%s5 + $0x8] sm:$0xff]
      %v755 = vld [vmem:[%s5 + $0x10] sm:$0xff]
      %v756 = vld [vmem:[%s5 + $0x18] sm:$0xff]
      %vm757 = vcmask 261120
      %v759 = vsel %vm757, %v543, 0
      %v762 = vsel %vm757, %v544, 0
      %v765 = vsel %vm757, %v545, 0
      %v768 = vsel %vm757, %v546, 0
      %v771 = vsel %vm757, %v547, 0
      %v774 = vsel %vm757, %v548, 0
      %v777 = vsel %vm757, %v549, 0
      %v780 = vsel %vm757, %v550, 0
      %v783 = vsel %vm757, %v551, 0
      %v786 = vsel %vm757, %v552, 0
      %v789 = vsel %vm757, %v553, 0
      %v792 = vsel %vm757, %v554, 0
      %v795 = vsel %vm757, %v555, 0
      %v798 = vsel %vm757, %v556, 0
      %v801 = vsel %vm757, %v557, 0
      %v804 = vsel %vm757, %v558, 0
      %806 = vmatprep.subr.mxu0 0.0
      %807 = vmatpush1.msra.mxu0 %v748
      %808 = vmatprep.subr.mxu0 0.0
      %809 = vmatpush1.msra.mxu0 %v749
      %810 = vmatprep.subr.mxu0 0.0
      %811 = vmatpush1.msra.mxu0 %v750
      %812 = vmatprep.subr.mxu0 0.0
      %813 = vmatpush1.msra.mxu0 %v751
      %814 = vmatprep.subr.mxu0 0.0
      %815 = vmatpush1.msra.mxu0 0.0
      %816 = vmatprep.subr.mxu0 0.0
      %817 = vmatpush1.msra.mxu0 0.0
      %818 = vmatprep.subr.mxu0 0.0
      %819 = vmatpush1.msra.mxu0 0.0
      %820 = vmatprep.subr.mxu0 0.0
      %821 = vmatpush1.msra.mxu0 0.0
      %822 = vmatprep.subr.mxu0 0.0
      %823 = vmatpush1.msra.mxu0 0.0
      %824 = vmatprep.subr.mxu0 0.0
      %825 = vmatpush1.msra.mxu0 0.0
      %826 = vmatprep.subr.mxu0 0.0
      %827 = vmatpush1.msra.mxu0 0.0
      %828 = vmatprep.subr.mxu0 0.0
      %829 = vmatpush1.msra.mxu0 0.0
      %830 = vmatprep.subr.mxu0 0.0
      %831 = vmatpush1.msra.mxu0 0.0
      %832 = vmatprep.subr.mxu0 0.0
      %833 = vmatpush1.msra.mxu0 0.0
      %834 = vmatprep.subr.mxu0 0.0
      %835 = vmatpush1.msra.mxu0 0.0
      %836 = vmatprep.subr.mxu0 0.0
      %837 = vmatpush1.msra.mxu0 0.0
      %838 = vmatprep.subr.mxu0 0.0
      %839 = vmatpush1.msra.mxu0 0.0
      %840 = vmatprep.subr.mxu0 0.0
      %841 = vmatpush1.msra.mxu0 0.0
      %842 = vmatprep.subr.mxu0 0.0
      %843 = vmatpush1.msra.mxu0 0.0
      %844 = vmatprep.subr.mxu0 0.0
      %845 = vmatpush1.msra.mxu0 0.0
      %846 = vmatprep.subr.mxu0 0.0
      %847 = vmatpush1.msra.mxu0 0.0
      %848 = vmatprep.subr.mxu0 0.0
      %849 = vmatpush1.msra.mxu0 0.0
      %850 = vmatprep.subr.mxu0 0.0
      %851 = vmatpush1.msra.mxu0 0.0
      %852 = vmatprep.subr.mxu0 0.0
      %853 = vmatpush1.msra.mxu0 0.0
      %854 = vmatprep.subr.mxu0 0.0
      %855 = vmatpush1.msra.mxu0 0.0
      %856 = vmatprep.subr.mxu0 0.0
      %857 = vmatpush1.msra.mxu0 0.0
      %858 = vmatprep.subr.mxu0 0.0
      %859 = vmatpush1.msra.mxu0 0.0
      %860 = vmatprep.subr.mxu0 0.0
      %861 = vmatpush1.msra.mxu0 0.0
      %862 = vmatprep.subr.mxu0 0.0
      %863 = vmatpush1.msra.mxu0 0.0
      %864 = vmatprep.subr.mxu0 0.0
      %865 = vmatpush1.msra.mxu0 0.0
      %866 = vmatprep.subr.mxu0 0.0
      %867 = vmatpush1.msra.mxu0 0.0
      %868 = vmatprep.subr.mxu0 0.0
      %869 = vmatpush1.msra.mxu0 0.0
      %870 = vmatprep.mubr.f32.mxu0 0.0
      %871 = vmatmul.mubr.f32.gmra.mrb[0].mxu0 %v759
      %v872 = vpop.f32.mrb[0].mxu0
      %v873 = vadd.f32 0.0, %v872
      %v874 = vpop.f32.mrb[0].mxu0
      %875 = vmatprep.mubr.f32.mxu0 0.0
      %876 = vmatmul.mubr.f32.gmra.mrb[0].mxu0 %v762
      %v877 = vpop.f32.mrb[0].mxu0
      %v878 = vadd.f32 0.0, %v877
      %v879 = vpop.f32.mrb[0].mxu0
      %880 = vmatprep.mubr.f32.mxu0 0.0
      %881 = vmatmul.mubr.f32.gmra.mrb[0].mxu0 %v765
      %v882 = vpop.f32.mrb[0].mxu0
      %v883 = vadd.f32 0.0, %v882
      %v884 = vpop.f32.mrb[0].mxu0
      %885 = vmatprep.mubr.f32.mxu0 0.0
      %886 = vmatmul.mubr.f32.gmra.mrb[0].mxu0 %v768
      %v887 = vpop.f32.mrb[0].mxu0
      %v888 = vadd.f32 0.0, %v887
      %v889 = vpop.f32.mrb[0].mxu0
      %890 = vmatprep.mubr.f32.mxu0 0.0
      %891 = vmatmul.mubr.f32.gmra.mrb[0].mxu0 %v771
      %v892 = vpop.f32.mrb[0].mxu0
      %v893 = vadd.f32 0.0, %v892
      %v894 = vpop.f32.mrb[0].mxu0
      %895 = vmatprep.mubr.f32.mxu0 0.0
      %896 = vmatmul.mubr.f32.gmra.mrb[0].mxu0 %v774
      %v897 = vpop.f32.mrb[0].mxu0
      %v898 = vadd.f32 0.0, %v897
      %v899 = vpop.f32.mrb[0].mxu0
      %900 = vmatprep.mubr.f32.mxu0 0.0
      %901 = vmatmul.mubr.f32.gmra.mrb[0].mxu0 %v777
      %v902 = vpop.f32.mrb[0].mxu0
      %v903 = vadd.f32 0.0, %v902
      %v904 = vpop.f32.mrb[0].mxu0
      %905 = vmatprep.mubr.f32.mxu0 0.0
      %906 = vmatmul.mubr.f32.gmra.mrb[0].mxu0 %v780
      %v907 = vpop.f32.mrb[0].mxu0
      %v908 = vadd.f32 0.0, %v907
      %v909 = vpop.f32.mrb[0].mxu0
      %910 = vmatprep.mubr.f32.mxu0 0.0
      %911 = vmatmul.mubr.f32.gmra.mrb[0].mxu0 %v783
      %v912 = vpop.f32.mrb[0].mxu0
      %v913 = vadd.f32 0.0, %v912
      %v914 = vpop.f32.mrb[0].mxu0
      %915 = vmatprep.mubr.f32.mxu0 0.0
      %916 = vmatmul.mubr.f32.gmra.mrb[0].mxu0 %v786
      %v917 = vpop.f32.mrb[0].mxu0
      %v918 = vadd.f32 0.0, %v917
      %v919 = vpop.f32.mrb[0].mxu0
      %920 = vmatprep.mubr.f32.mxu0 0.0
      %921 = vmatmul.mubr.f32.gmra.mrb[0].mxu0 %v789
      %v922 = vpop.f32.mrb[0].mxu0
      %v923 = vadd.f32 0.0, %v922
      %v924 = vpop.f32.mrb[0].mxu0
      %925 = vmatprep.mubr.f32.mxu0 0.0
      %926 = vmatmul.mubr.f32.gmra.mrb[0].mxu0 %v792
      %v927 = vpop.f32.mrb[0].mxu0
      %v928 = vadd.f32 0.0, %v927
      %v929 = vpop.f32.mrb[0].mxu0
      %930 = vmatprep.mubr.f32.mxu0 0.0
      %931 = vmatmul.mubr.f32.gmra.mrb[0].mxu0 %v795
      %v932 = vpop.f32.mrb[0].mxu0
      %v933 = vadd.f32 0.0, %v932
      %v934 = vpop.f32.mrb[0].mxu0
      %935 = vmatprep.mubr.f32.mxu0 0.0
      %936 = vmatmul.mubr.f32.gmra.mrb[0].mxu0 %v798
      %v937 = vpop.f32.mrb[0].mxu0
      %v938 = vadd.f32 0.0, %v937
      %v939 = vpop.f32.mrb[0].mxu0
      %940 = vmatprep.mubr.f32.mxu0 0.0
      %941 = vmatmul.mubr.f32.gmra.mrb[0].mxu0 %v801
      %v942 = vpop.f32.mrb[0].mxu0
      %v943 = vadd.f32 0.0, %v942
      %v944 = vpop.f32.mrb[0].mxu0
      %945 = vmatprep.mubr.f32.mxu0 0.0
      %946 = vmatmul.mubr.f32.gmra.mrb[0].mxu0 %v804
      %v947 = vpop.f32.mrb[0].mxu0
      %v948 = vadd.f32 0.0, %v947
      %v949 = vpop.f32.mrb[0].mxu0
      %950 = vdwg.mxu0
      %951 = vrot.lane.b32.xlu0 %v431, 127
      %v952 = vpop.permute.xlu0 %951
      %953 = vrot.lane.b32.xlu0 %v432, 127
      %v954 = vpop.permute.xlu0 %953
      %955 = vrot.lane.b32.xlu0 %v433, 127
      %v956 = vpop.permute.xlu0 %955
      %957 = vrot.lane.b32.xlu0 %v434, 127
      %v958 = vpop.permute.xlu0 %957
      %959 = vrot.lane.b32.xlu0 %v435, 127
      %v960 = vpop.permute.xlu0 %959
      %961 = vrot.lane.b32.xlu0 %v436, 127
      %v962 = vpop.permute.xlu0 %961
      %963 = vrot.lane.b32.xlu0 %v437, 127
      %v964 = vpop.permute.xlu0 %963
      %965 = vrot.lane.b32.xlu0 %v438, 127
      %v966 = vpop.permute.xlu0 %965
      %967 = vrot.lane.b32.xlu0 %v439, 127
      %v968 = vpop.permute.xlu0 %967
      %969 = vrot.lane.b32.xlu0 %v440, 127
      %v970 = vpop.permute.xlu0 %969
      %971 = vrot.lane.b32.xlu0 %v441, 127
      %v972 = vpop.permute.xlu0 %971
      %973 = vrot.lane.b32.xlu0 %v442, 127
      %v974 = vpop.permute.xlu0 %973
      %975 = vrot.lane.b32.xlu0 %v443, 127
      %v976 = vpop.permute.xlu0 %975
      %977 = vrot.lane.b32.xlu0 %v444, 127
      %v978 = vpop.permute.xlu0 %977
      %979 = vrot.lane.b32.xlu0 %v445, 127
      %v980 = vpop.permute.xlu0 %979
      %981 = vrot.lane.b32.xlu0 %v446, 127
      %v982 = vpop.permute.xlu0 %981
      %999 = vmatprep.subr.mxu0 0.0
      %1000 = vmatpush1.msra.mxu0 %v952
      %1001 = vmatprep.subr.mxu0 0.0
      %1002 = vmatpush1.msra.mxu0 %v954
      %1003 = vmatprep.subr.mxu0 0.0
      %1004 = vmatpush1.msra.mxu0 %v956
      %1005 = vmatprep.subr.mxu0 0.0
      %1006 = vmatpush1.msra.mxu0 %v958
      %1007 = vmatprep.subr.mxu0 0.0
      %1008 = vmatpush1.msra.mxu0 %v960
      %1009 = vmatprep.subr.mxu0 0.0
      %1010 = vmatpush1.msra.mxu0 %v962
      %1011 = vmatprep.subr.mxu0 0.0
      %1012 = vmatpush1.msra.mxu0 %v964
      %1013 = vmatprep.subr.mxu0 0.0
      %1014 = vmatpush1.msra.mxu0 %v966
      %1015 = vmatprep.subr.mxu0 0.0
      %1016 = vmatpush1.msra.mxu0 %v968
      %1017 = vmatprep.subr.mxu0 0.0
      %1018 = vmatpush1.msra.mxu0 %v970
      %1019 = vmatprep.subr.mxu0 0.0
      %1020 = vmatpush1.msra.mxu0 %v972
      %1021 = vmatprep.subr.mxu0 0.0
      %1022 = vmatpush1.msra.mxu0 %v974
      %1023 = vmatprep.subr.mxu0 0.0
      %1024 = vmatpush1.msra.mxu0 %v976
      %1025 = vmatprep.subr.mxu0 0.0
      %1026 = vmatpush1.msra.mxu0 %v978
      %1027 = vmatprep.subr.mxu0 0.0
      %1028 = vmatpush1.msra.mxu0 %v980
      %1029 = vmatprep.subr.mxu0 0.0
      %1030 = vmatpush1.msra.mxu0 %v982
      %1031 = vmatprep.subr.mxu0 0.0
      %1032 = vmatpush1.msra.mxu0 0.0
      %1033 = vmatprep.subr.mxu0 0.0
      %1034 = vmatpush1.msra.mxu0 0.0
      %1035 = vmatprep.subr.mxu0 0.0
      %1036 = vmatpush1.msra.mxu0 0.0
      %1037 = vmatprep.subr.mxu0 0.0
      %1038 = vmatpush1.msra.mxu0 0.0
      %1039 = vmatprep.subr.mxu0 0.0
      %1040 = vmatpush1.msra.mxu0 0.0
      %1041 = vmatprep.subr.mxu0 0.0
      %1042 = vmatpush1.msra.mxu0 0.0
      %1043 = vmatprep.subr.mxu0 0.0
      %1044 = vmatpush1.msra.mxu0 0.0
      %1045 = vmatprep.subr.mxu0 0.0
      %1046 = vmatpush1.msra.mxu0 0.0
      %1047 = vmatprep.subr.mxu0 0.0
      %1048 = vmatpush1.msra.mxu0 0.0
      %1049 = vmatprep.subr.mxu0 0.0
      %1050 = vmatpush1.msra.mxu0 0.0
      %1051 = vmatprep.subr.mxu0 0.0
      %1052 = vmatpush1.msra.mxu0 0.0
      %1053 = vmatprep.subr.mxu0 0.0
      %1054 = vmatpush1.msra.mxu0 0.0
      %1055 = vmatprep.subr.mxu0 0.0
      %1056 = vmatpush1.msra.mxu0 0.0
      %1057 = vmatprep.subr.mxu0 0.0
      %1058 = vmatpush1.msra.mxu0 0.0
      %1059 = vmatprep.subr.mxu0 0.0
      %1060 = vmatpush1.msra.mxu0 0.0
      %1061 = vmatprep.subr.mxu0 0.0
      %1062 = vmatpush1.msra.mxu0 0.0
      %1063 = vmatprep.mubr.f32.mxu0 0.0
      %1064 = vmatmul.mubr.f32.gmra.mrb[0].mxu0 %v415
      %v1065 = vpop.f32.mrb[0].mxu0
      %v1066 = vadd.f32 %v952, %v1065
      %v1067 = vpop.f32.mrb[0].mxu0
      %1068 = vmatprep.mubr.f32.mxu0 0.0
      %1069 = vmatmul.mubr.f32.gmra.mrb[0].mxu0 %v416
      %v1070 = vpop.f32.mrb[0].mxu0
      %v1071 = vadd.f32 %v954, %v1070
      %v1072 = vpop.f32.mrb[0].mxu0
      %1073 = vmatprep.mubr.f32.mxu0 0.0
      %1074 = vmatmul.mubr.f32.gmra.mrb[0].mxu0 %v417
      %v1075 = vpop.f32.mrb[0].mxu0
      %v1076 = vadd.f32 %v956, %v1075
      %v1077 = vpop.f32.mrb[0].mxu0
      %1078 = vmatprep.mubr.f32.mxu0 0.0
      %1079 = vmatmul.mubr.f32.gmra.mrb[0].mxu0 %v418
      %v1080 = vpop.f32.mrb[0].mxu0
      %v1081 = vadd.f32 %v958, %v1080
      %v1082 = vpop.f32.mrb[0].mxu0
      %1083 = vmatprep.mubr.f32.mxu0 0.0
      %1084 = vmatmul.mubr.f32.gmra.mrb[0].mxu0 %v419
      %v1085 = vpop.f32.mrb[0].mxu0
      %v1086 = vadd.f32 %v960, %v1085
      %v1087 = vpop.f32.mrb[0].mxu0
      %1088 = vmatprep.mubr.f32.mxu0 0.0
      %1089 = vmatmul.mubr.f32.gmra.mrb[0].mxu0 %v420
      %v1090 = vpop.f32.mrb[0].mxu0
      %v1091 = vadd.f32 %v962, %v1090
      %v1092 = vpop.f32.mrb[0].mxu0
      %1093 = vmatprep.mubr.f32.mxu0 0.0
      %1094 = vmatmul.mubr.f32.gmra.mrb[0].mxu0 %v421
      %v1095 = vpop.f32.mrb[0].mxu0
      %v1096 = vadd.f32 %v964, %v1095
      %v1097 = vpop.f32.mrb[0].mxu0
      %1098 = vmatprep.mubr.f32.mxu0 0.0
      %1099 = vmatmul.mubr.f32.gmra.mrb[0].mxu0 %v422
      %v1100 = vpop.f32.mrb[0].mxu0
      %v1101 = vadd.f32 %v966, %v1100
      %v1102 = vpop.f32.mrb[0].mxu0
      %1103 = vmatprep.mubr.f32.mxu0 0.0
      %1104 = vmatmul.mubr.f32.gmra.mrb[0].mxu0 %v423
      %v1105 = vpop.f32.mrb[0].mxu0
      %v1106 = vadd.f32 %v968, %v1105
      %v1107 = vpop.f32.mrb[0].mxu0
      %1108 = vmatprep.mubr.f32.mxu0 0.0
      %1109 = vmatmul.mubr.f32.gmra.mrb[0].mxu0 %v424
      %v1110 = vpop.f32.mrb[0].mxu0
      %v1111 = vadd.f32 %v970, %v1110
      %v1112 = vpop.f32.mrb[0].mxu0
      %1113 = vmatprep.mubr.f32.mxu0 0.0
      %1114 = vmatmul.mubr.f32.gmra.mrb[0].mxu0 %v425
      %v1115 = vpop.f32.mrb[0].mxu0
      %v1116 = vadd.f32 %v972, %v1115
      %v1117 = vpop.f32.mrb[0].mxu0
      %1118 = vmatprep.mubr.f32.mxu0 0.0
      %1119 = vmatmul.mubr.f32.gmra.mrb[0].mxu0 %v426
      %v1120 = vpop.f32.mrb[0].mxu0
      %v1121 = vadd.f32 %v974, %v1120
      %v1122 = vpop.f32.mrb[0].mxu0
      %1123 = vmatprep.mubr.f32.mxu0 0.0
      %1124 = vmatmul.mubr.f32.gmra.mrb[0].mxu0 %v427
      %v1125 = vpop.f32.mrb[0].mxu0
      %v1126 = vadd.f32 %v976, %v1125
      %v1127 = vpop.f32.mrb[0].mxu0
      %1128 = vmatprep.mubr.f32.mxu0 0.0
      %1129 = vmatmul.mubr.f32.gmra.mrb[0].mxu0 %v428
      %v1130 = vpop.f32.mrb[0].mxu0
      %v1131 = vadd.f32 %v978, %v1130
      %v1132 = vpop.f32.mrb[0].mxu0
      %1133 = vmatprep.mubr.f32.mxu0 0.0
      %1134 = vmatmul.mubr.f32.gmra.mrb[0].mxu0 %v429
      %v1135 = vpop.f32.mrb[0].mxu0
      %v1136 = vadd.f32 %v980, %v1135
      %v1137 = vpop.f32.mrb[0].mxu0
      %1138 = vmatprep.mubr.f32.mxu0 0.0
      %1139 = vmatmul.mubr.f32.gmra.mrb[0].mxu0 %v430
      %v1140 = vpop.f32.mrb[0].mxu0
      %v1141 = vadd.f32 %v982, %v1140
      %v1142 = vpop.f32.mrb[0].mxu0
      %1143 = vdwg.mxu0
      %vm1144 = vcmp.gt.f32.partialorder %v1066, 0.0
      %vm1145 = vcmp.gt.f32.partialorder %v1071, 0.0
      %vm1146 = vcmp.gt.f32.partialorder %v1076, 0.0
      %vm1147 = vcmp.gt.f32.partialorder %v1081, 0.0
      %vm1148 = vcmp.gt.f32.partialorder %v1086, 0.0
      %vm1149 = vcmp.gt.f32.partialorder %v1091, 0.0
      %vm1150 = vcmp.gt.f32.partialorder %v1096, 0.0
      %vm1151 = vcmp.gt.f32.partialorder %v1101, 0.0
      %vm1152 = vcmp.gt.f32.partialorder %v1106, 0.0
      %vm1153 = vcmp.gt.f32.partialorder %v1111, 0.0
      %vm1154 = vcmp.gt.f32.partialorder %v1116, 0.0
      %vm1155 = vcmp.gt.f32.partialorder %v1121, 0.0
      %vm1156 = vcmp.gt.f32.partialorder %v1126, 0.0
      %vm1157 = vcmp.gt.f32.partialorder %v1131, 0.0
      %vm1158 = vcmp.gt.f32.partialorder %v1136, 0.0
      %vm1159 = vcmp.gt.f32.partialorder %v1141, 0.0
      %v1160 = vrsqrt.pop %v1066
      %v1161 = vrsqrt.pop %v1071
      %v1162 = vrsqrt.pop %v1076
      %v1163 = vrsqrt.pop %v1081
      %v1164 = vrsqrt.pop %v1086
      %v1165 = vrsqrt.pop %v1091
      %v1166 = vrsqrt.pop %v1096
      %v1167 = vrsqrt.pop %v1101
      %v1168 = vrsqrt.pop %v1106
      %v1169 = vrsqrt.pop %v1111
      %v1170 = vrsqrt.pop %v1116
      %v1171 = vrsqrt.pop %v1121
      %v1172 = vrsqrt.pop %v1126
      %v1173 = vrsqrt.pop %v1131
      %v1174 = vrsqrt.pop %v1136
      %v1175 = vrsqrt.pop %v1141
      %v1176 = vsel %vm1144, %v1160, 0.0
      %v1177 = vsel %vm1145, %v1161, 0.0
      %v1178 = vsel %vm1146, %v1162, 0.0
      %v1179 = vsel %vm1147, %v1163, 0.0
      %v1180 = vsel %vm1148, %v1164, 0.0
      %v1181 = vsel %vm1149, %v1165, 0.0
      %v1182 = vsel %vm1150, %v1166, 0.0
      %v1183 = vsel %vm1151, %v1167, 0.0
      %v1184 = vsel %vm1152, %v1168, 0.0
      %v1185 = vsel %vm1153, %v1169, 0.0
      %v1186 = vsel %vm1154, %v1170, 0.0
      %v1187 = vsel %vm1155, %v1171, 0.0
      %v1188 = vsel %vm1156, %v1172, 0.0
      %v1189 = vsel %vm1157, %v1173, 0.0
      %v1190 = vsel %vm1158, %v1174, 0.0
      %v1191 = vsel %vm1159, %v1175, 0.0
      %1193 = vset.pattern.permute.xlu0 0
      %1194 = vperm.xlu0 %1193, %v1176
      %v1195 = vpop.permute.xlu0 %1194
      %1198 = vset.pattern.permute.xlu0 0
      %1199 = vperm.xlu0 %1198, %v1177
      %v1200 = vpop.permute.xlu0 %1199
      %1203 = vset.pattern.permute.xlu0 0
      %1204 = vperm.xlu0 %1203, %v1178
      %v1205 = vpop.permute.xlu0 %1204
      %1208 = vset.pattern.permute.xlu0 0
      %1209 = vperm.xlu0 %1208, %v1179
      %v1210 = vpop.permute.xlu0 %1209
      %1213 = vset.pattern.permute.xlu0 0
      %1214 = vperm.xlu0 %1213, %v1180
      %v1215 = vpop.permute.xlu0 %1214
      %1218 = vset.pattern.permute.xlu0 0
      %1219 = vperm.xlu0 %1218, %v1181
      %v1220 = vpop.permute.xlu0 %1219
      %1223 = vset.pattern.permute.xlu0 0
      %1224 = vperm.xlu0 %1223, %v1182
      %v1225 = vpop.permute.xlu0 %1224
      %1228 = vset.pattern.permute.xlu0 0
      %1229 = vperm.xlu0 %1228, %v1183
      %v1230 = vpop.permute.xlu0 %1229
      %1233 = vset.pattern.permute.xlu0 0
      %1234 = vperm.xlu0 %1233, %v1184
      %v1235 = vpop.permute.xlu0 %1234
      %1238 = vset.pattern.permute.xlu0 0
      %1239 = vperm.xlu0 %1238, %v1185
      %v1240 = vpop.permute.xlu0 %1239
      %1243 = vset.pattern.permute.xlu0 0
      %1244 = vperm.xlu0 %1243, %v1186
      %v1245 = vpop.permute.xlu0 %1244
      %1248 = vset.pattern.permute.xlu0 0
      %1249 = vperm.xlu0 %1248, %v1187
      %v1250 = vpop.permute.xlu0 %1249
      %1253 = vset.pattern.permute.xlu0 0
      %1254 = vperm.xlu0 %1253, %v1188
      %v1255 = vpop.permute.xlu0 %1254
      %1258 = vset.pattern.permute.xlu0 0
      %1259 = vperm.xlu0 %1258, %v1189
      %v1260 = vpop.permute.xlu0 %1259
      %1263 = vset.pattern.permute.xlu0 0
      %1264 = vperm.xlu0 %1263, %v1190
      %v1265 = vpop.permute.xlu0 %1264
      %1268 = vset.pattern.permute.xlu0 0
      %1269 = vperm.xlu0 %1268, %v1191
      %v1270 = vpop.permute.xlu0 %1269
      %v1272 = vmul.f32 %v1195, %v873
      %v1273 = vmul.f32 %v1200, %v878
      %v1274 = vmul.f32 %v1205, %v883
      %v1275 = vmul.f32 %v1210, %v888
      %v1276 = vmul.f32 %v1215, %v893
      %v1277 = vmul.f32 %v1220, %v898
      %v1278 = vmul.f32 %v1225, %v903
      %v1279 = vmul.f32 %v1230, %v908
      %v1280 = vmul.f32 %v1235, %v913
      %v1281 = vmul.f32 %v1240, %v918
      %v1282 = vmul.f32 %v1245, %v923
      %v1283 = vmul.f32 %v1250, %v928
      %v1284 = vmul.f32 %v1255, %v933
      %v1285 = vmul.f32 %v1260, %v938
      %v1286 = vmul.f32 %v1265, %v943
      %v1287 = vmul.f32 %v1270, %v948
      %v1288 = vmul.f32 %v466, %v1272
      %v1289 = vmul.f32 %v471, %v1273
      %v1290 = vmul.f32 %v476, %v1274
      %v1291 = vmul.f32 %v481, %v1275
      %v1292 = vmul.f32 %v486, %v1276
      %v1293 = vmul.f32 %v491, %v1277
      %v1294 = vmul.f32 %v496, %v1278
      %v1295 = vmul.f32 %v501, %v1279
      %v1296 = vmul.f32 %v506, %v1280
      %v1297 = vmul.f32 %v511, %v1281
      %v1298 = vmul.f32 %v516, %v1282
      %v1299 = vmul.f32 %v521, %v1283
      %v1300 = vmul.f32 %v526, %v1284
      %v1301 = vmul.f32 %v531, %v1285
      %v1302 = vmul.f32 %v536, %v1286
      %v1303 = vmul.f32 %v541, %v1287
      %1304 = vmatprep.subr.mxu0 0.0
      %1305 = vmatpush1.msra.mxu0 %v1272
      %1306 = vmatprep.subr.mxu0 0.0
      %1307 = vmatpush1.msra.mxu0 %v1273
      %1308 = vmatprep.subr.mxu0 0.0
      %1309 = vmatpush1.msra.mxu0 %v1274
      %1310 = vmatprep.subr.mxu0 0.0
      %1311 = vmatpush1.msra.mxu0 %v1275
      %1312 = vmatprep.subr.mxu0 0.0
      %1313 = vmatpush1.msra.mxu0 %v1276
      %1314 = vmatprep.subr.mxu0 0.0
      %1315 = vmatpush1.msra.mxu0 %v1277
      %1316 = vmatprep.subr.mxu0 0.0
      %1317 = vmatpush1.msra.mxu0 %v1278
      %1318 = vmatprep.subr.mxu0 0.0
      %1319 = vmatpush1.msra.mxu0 %v1279
      %1320 = vmatprep.subr.mxu0 0.0
      %1321 = vmatpush1.msra.mxu0 %v1280
      %1322 = vmatprep.subr.mxu0 0.0
      %1323 = vmatpush1.msra.mxu0 %v1281
      %1324 = vmatprep.subr.mxu0 0.0
      %1325 = vmatpush1.msra.mxu0 %v1282
      %1326 = vmatprep.subr.mxu0 0.0
      %1327 = vmatpush1.msra.mxu0 %v1283
      %1328 = vmatprep.subr.mxu0 0.0
      %1329 = vmatpush1.msra.mxu0 %v1284
      %1330 = vmatprep.subr.mxu0 0.0
      %1331 = vmatpush1.msra.mxu0 %v1285
      %1332 = vmatprep.subr.mxu0 0.0
      %1333 = vmatpush1.msra.mxu0 %v1286
      %1334 = vmatprep.subr.mxu0 0.0
      %1335 = vmatpush1.msra.mxu0 %v1287
      %1336 = vmatprep.subr.mxu0 0.0
      %1337 = vmatpush1.msra.mxu0 0.0
      %1338 = vmatprep.subr.mxu0 0.0
      %1339 = vmatpush1.msra.mxu0 0.0
      %1340 = vmatprep.subr.mxu0 0.0
      %1341 = vmatpush1.msra.mxu0 0.0
      %1342 = vmatprep.subr.mxu0 0.0
      %1343 = vmatpush1.msra.mxu0 0.0
      %1344 = vmatprep.subr.mxu0 0.0
      %1345 = vmatpush1.msra.mxu0 0.0
      %1346 = vmatprep.subr.mxu0 0.0
      %1347 = vmatpush1.msra.mxu0 0.0
      %1348 = vmatprep.subr.mxu0 0.0
      %1349 = vmatpush1.msra.mxu0 0.0
      %1350 = vmatprep.subr.mxu0 0.0
      %1351 = vmatpush1.msra.mxu0 0.0
      %1352 = vmatprep.subr.mxu0 0.0
      %1353 = vmatpush1.msra.mxu0 0.0
      %1354 = vmatprep.subr.mxu0 0.0
      %1355 = vmatpush1.msra.mxu0 0.0
      %1356 = vmatprep.subr.mxu0 0.0
      %1357 = vmatpush1.msra.mxu0 0.0
      %1358 = vmatprep.subr.mxu0 0.0
      %1359 = vmatpush1.msra.mxu0 0.0
      %1360 = vmatprep.subr.mxu0 0.0
      %1361 = vmatpush1.msra.mxu0 0.0
      %1362 = vmatprep.subr.mxu0 0.0
      %1363 = vmatpush1.msra.mxu0 0.0
      %1364 = vmatprep.subr.mxu0 0.0
      %1365 = vmatpush1.msra.mxu0 0.0
      %1366 = vmatprep.subr.mxu0 0.0
      %1367 = vmatpush1.msra.mxu0 0.0
      %1368 = vmatprep.mubr.f32.mxu0 0.0
      %1369 = vmatmul.mubr.f32.gmra.mrb[0].mxu0 %v415
      %v1370 = vpop.f32.mrb[0].mxu0
      %v1371 = vadd.f32 %v1288, %v1370
      %v1372 = vpop.f32.mrb[0].mxu0
      %1373 = vmatprep.mubr.f32.mxu0 0.0
      %1374 = vmatmul.mubr.f32.gmra.mrb[0].mxu0 %v416
      %v1375 = vpop.f32.mrb[0].mxu0
      %v1376 = vadd.f32 %v1289, %v1375
      %v1377 = vpop.f32.mrb[0].mxu0
      %1378 = vmatprep.mubr.f32.mxu0 0.0
      %1379 = vmatmul.mubr.f32.gmra.mrb[0].mxu0 %v417
      %v1380 = vpop.f32.mrb[0].mxu0
      %v1381 = vadd.f32 %v1290, %v1380
      %v1382 = vpop.f32.mrb[0].mxu0
      %1383 = vmatprep.mubr.f32.mxu0 0.0
      %1384 = vmatmul.mubr.f32.gmra.mrb[0].mxu0 %v418
      %v1385 = vpop.f32.mrb[0].mxu0
      %v1386 = vadd.f32 %v1291, %v1385
      %v1387 = vpop.f32.mrb[0].mxu0
      %1388 = vmatprep.mubr.f32.mxu0 0.0
      %1389 = vmatmul.mubr.f32.gmra.mrb[0].mxu0 %v419
      %v1390 = vpop.f32.mrb[0].mxu0
      %v1391 = vadd.f32 %v1292, %v1390
      %v1392 = vpop.f32.mrb[0].mxu0
      %1393 = vmatprep.mubr.f32.mxu0 0.0
      %1394 = vmatmul.mubr.f32.gmra.mrb[0].mxu0 %v420
      %v1395 = vpop.f32.mrb[0].mxu0
      %v1396 = vadd.f32 %v1293, %v1395
      %v1397 = vpop.f32.mrb[0].mxu0
      %1398 = vmatprep.mubr.f32.mxu0 0.0
      %1399 = vmatmul.mubr.f32.gmra.mrb[0].mxu0 %v421
      %v1400 = vpop.f32.mrb[0].mxu0
      %v1401 = vadd.f32 %v1294, %v1400
      %v1402 = vpop.f32.mrb[0].mxu0
      %1403 = vmatprep.mubr.f32.mxu0 0.0
      %1404 = vmatmul.mubr.f32.gmra.mrb[0].mxu0 %v422
      %v1405 = vpop.f32.mrb[0].mxu0
      %v1406 = vadd.f32 %v1295, %v1405
      %v1407 = vpop.f32.mrb[0].mxu0
      %1408 = vmatprep.mubr.f32.mxu0 0.0
      %1409 = vmatmul.mubr.f32.gmra.mrb[0].mxu0 %v423
      %v1410 = vpop.f32.mrb[0].mxu0
      %v1411 = vadd.f32 %v1296, %v1410
      %v1412 = vpop.f32.mrb[0].mxu0
      %1413 = vmatprep.mubr.f32.mxu0 0.0
      %1414 = vmatmul.mubr.f32.gmra.mrb[0].mxu0 %v424
      %v1415 = vpop.f32.mrb[0].mxu0
      %v1416 = vadd.f32 %v1297, %v1415
      %v1417 = vpop.f32.mrb[0].mxu0
      %1418 = vmatprep.mubr.f32.mxu0 0.0
      %1419 = vmatmul.mubr.f32.gmra.mrb[0].mxu0 %v425
      %v1420 = vpop.f32.mrb[0].mxu0
      %v1421 = vadd.f32 %v1298, %v1420
      %v1422 = vpop.f32.mrb[0].mxu0
      %1423 = vmatprep.mubr.f32.mxu0 0.0
      %1424 = vmatmul.mubr.f32.gmra.mrb[0].mxu0 %v426
      %v1425 = vpop.f32.mrb[0].mxu0
      %v1426 = vadd.f32 %v1299, %v1425
      %v1427 = vpop.f32.mrb[0].mxu0
      %1428 = vmatprep.mubr.f32.mxu0 0.0
      %1429 = vmatmul.mubr.f32.gmra.mrb[0].mxu0 %v427
      %v1430 = vpop.f32.mrb[0].mxu0
      %v1431 = vadd.f32 %v1300, %v1430
      %v1432 = vpop.f32.mrb[0].mxu0
      %1433 = vmatprep.mubr.f32.mxu0 0.0
      %1434 = vmatmul.mubr.f32.gmra.mrb[0].mxu0 %v428
      %v1435 = vpop.f32.mrb[0].mxu0
      %v1436 = vadd.f32 %v1301, %v1435
      %v1437 = vpop.f32.mrb[0].mxu0
      %1438 = vmatprep.mubr.f32.mxu0 0.0
      %1439 = vmatmul.mubr.f32.gmra.mrb[0].mxu0 %v429
      %v1440 = vpop.f32.mrb[0].mxu0
      %v1441 = vadd.f32 %v1302, %v1440
      %v1442 = vpop.f32.mrb[0].mxu0
      %1443 = vmatprep.mubr.f32.mxu0 0.0
      %1444 = vmatmul.mubr.f32.gmra.mrb[0].mxu0 %v430
      %v1445 = vpop.f32.mrb[0].mxu0
      %v1446 = vadd.f32 %v1303, %v1445
      %v1447 = vpop.f32.mrb[0].mxu0
      %1448 = vdwg.mxu0
      %v1449 = vmul.f32 %v1195, %v1371
      %v1450 = vmul.f32 %v1200, %v1376
      %v1451 = vmul.f32 %v1205, %v1381
      %v1452 = vmul.f32 %v1210, %v1386
      %v1453 = vmul.f32 %v1215, %v1391
      %v1454 = vmul.f32 %v1220, %v1396
      %v1455 = vmul.f32 %v1225, %v1401
      %v1456 = vmul.f32 %v1230, %v1406
      %v1457 = vmul.f32 %v1235, %v1411
      %v1458 = vmul.f32 %v1240, %v1416
      %v1459 = vmul.f32 %v1245, %v1421
      %v1460 = vmul.f32 %v1250, %v1426
      %v1461 = vmul.f32 %v1255, %v1431
      %v1462 = vmul.f32 %v1260, %v1436
      %v1463 = vmul.f32 %v1265, %v1441
      %v1464 = vmul.f32 %v1270, %v1446
      %v1465 = vlaneseq
      %v1466 = vshrl.u32 %v1465, 7
      %v1467 = vsub.s32 0, %v1466
      %v1468 = vrot.slane %v752, %v1467
      %v1469 = vadd.f32 %v1449, %v1468
      %v1470 = vadd.f32 %v1450, %v1468
      %v1471 = vadd.f32 %v1451, %v1468
      %v1472 = vadd.f32 %v1452, %v1468
      %v1473 = vadd.f32 %v1453, %v1468
      %v1474 = vadd.f32 %v1454, %v1468
      %v1475 = vadd.f32 %v1455, %v1468
      %v1476 = vadd.f32 %v1456, %v1468
      %v1477 = vadd.f32 %v1457, %v1468
      %v1478 = vadd.f32 %v1458, %v1468
      %v1479 = vadd.f32 %v1459, %v1468
      %v1480 = vadd.f32 %v1460, %v1468
      %v1481 = vadd.f32 %v1461, %v1468
      %v1482 = vadd.f32 %v1462, %v1468
      %v1483 = vadd.f32 %v1463, %v1468
      %v1484 = vadd.f32 %v1464, %v1468
      %v1485 = vmax.f32 %v1469, 0.0
      %v1486 = vmax.f32 %v1470, 0.0
      %v1487 = vmax.f32 %v1471, 0.0
      %v1488 = vmax.f32 %v1472, 0.0
      %v1489 = vmax.f32 %v1473, 0.0
      %v1490 = vmax.f32 %v1474, 0.0
      %v1491 = vmax.f32 %v1475, 0.0
      %v1492 = vmax.f32 %v1476, 0.0
      %v1493 = vmax.f32 %v1477, 0.0
      %v1494 = vmax.f32 %v1478, 0.0
      %v1495 = vmax.f32 %v1479, 0.0
      %v1496 = vmax.f32 %v1480, 0.0
      %v1497 = vmax.f32 %v1481, 0.0
      %v1498 = vmax.f32 %v1482, 0.0
      %v1499 = vmax.f32 %v1483, 0.0
      %v1500 = vmax.f32 %v1484, 0.0
      %v1501 = vmul.f32 %v1485, %v466
      %v1502 = vmul.f32 %v1486, %v471
      %v1503 = vmul.f32 %v1487, %v476
      %v1504 = vmul.f32 %v1488, %v481
      %v1505 = vmul.f32 %v1489, %v486
      %v1506 = vmul.f32 %v1490, %v491
      %v1507 = vmul.f32 %v1491, %v496
      %v1508 = vmul.f32 %v1492, %v501
      %v1509 = vmul.f32 %v1493, %v506
      %v1510 = vmul.f32 %v1494, %v511
      %v1511 = vmul.f32 %v1495, %v516
      %v1512 = vmul.f32 %v1496, %v521
      %v1513 = vmul.f32 %v1497, %v526
      %v1514 = vmul.f32 %v1498, %v531
      %v1515 = vmul.f32 %v1499, %v536
      %v1516 = vmul.f32 %v1500, %v541
      %1517 = vmatprep.subr.mxu0 0.0
      %1518 = vmatpush1.msra.mxu0 %v1501
      %1519 = vmatprep.subr.mxu0 0.0
      %1520 = vmatpush1.msra.mxu0 %v1502
      %1521 = vmatprep.subr.mxu0 0.0
      %1522 = vmatpush1.msra.mxu0 %v1503
      %1523 = vmatprep.subr.mxu0 0.0
      %1524 = vmatpush1.msra.mxu0 %v1504
      %1525 = vmatprep.subr.mxu0 0.0
      %1526 = vmatpush1.msra.mxu0 %v1505
      %1527 = vmatprep.subr.mxu0 0.0
      %1528 = vmatpush1.msra.mxu0 %v1506
      %1529 = vmatprep.subr.mxu0 0.0
      %1530 = vmatpush1.msra.mxu0 %v1507
      %1531 = vmatprep.subr.mxu0 0.0
      %1532 = vmatpush1.msra.mxu0 %v1508
      %1533 = vmatprep.subr.mxu0 0.0
      %1534 = vmatpush1.msra.mxu0 %v1509
      %1535 = vmatprep.subr.mxu0 0.0
      %1536 = vmatpush1.msra.mxu0 %v1510
      %1537 = vmatprep.subr.mxu0 0.0
      %1538 = vmatpush1.msra.mxu0 %v1511
      %1539 = vmatprep.subr.mxu0 0.0
      %1540 = vmatpush1.msra.mxu0 %v1512
      %1541 = vmatprep.subr.mxu0 0.0
      %1542 = vmatpush1.msra.mxu0 %v1513
      %1543 = vmatprep.subr.mxu0 0.0
      %1544 = vmatpush1.msra.mxu0 %v1514
      %1545 = vmatprep.subr.mxu0 0.0
      %1546 = vmatpush1.msra.mxu0 %v1515
      %1547 = vmatprep.subr.mxu0 0.0
      %1548 = vmatpush1.msra.mxu0 %v1516
      %1549 = vmatprep.subr.mxu0 0.0
      %1550 = vmatpush1.msra.mxu0 0.0
      %1551 = vmatprep.subr.mxu0 0.0
      %1552 = vmatpush1.msra.mxu0 0.0
      %1553 = vmatprep.subr.mxu0 0.0
      %1554 = vmatpush1.msra.mxu0 0.0
      %1555 = vmatprep.subr.mxu0 0.0
      %1556 = vmatpush1.msra.mxu0 0.0
      %1557 = vmatprep.subr.mxu0 0.0
      %1558 = vmatpush1.msra.mxu0 0.0
      %1559 = vmatprep.subr.mxu0 0.0
      %1560 = vmatpush1.msra.mxu0 0.0
      %1561 = vmatprep.subr.mxu0 0.0
      %1562 = vmatpush1.msra.mxu0 0.0
      %1563 = vmatprep.subr.mxu0 0.0
      %1564 = vmatpush1.msra.mxu0 0.0
      %1565 = vmatprep.subr.mxu0 0.0
      %1566 = vmatpush1.msra.mxu0 0.0
      %1567 = vmatprep.subr.mxu0 0.0
      %1568 = vmatpush1.msra.mxu0 0.0
      %1569 = vmatprep.subr.mxu0 0.0
      %1570 = vmatpush1.msra.mxu0 0.0
      %1571 = vmatprep.subr.mxu0 0.0
      %1572 = vmatpush1.msra.mxu0 0.0
      %1573 = vmatprep.subr.mxu0 0.0
      %1574 = vmatpush1.msra.mxu0 0.0
      %1575 = vmatprep.subr.mxu0 0.0
      %1576 = vmatpush1.msra.mxu0 0.0
      %1577 = vmatprep.subr.mxu0 0.0
      %1578 = vmatpush1.msra.mxu0 0.0
      %1579 = vmatprep.subr.mxu0 0.0
      %1580 = vmatpush1.msra.mxu0 0.0
      %1581 = vmatprep.mubr.f32.mxu0 0.0
      %1582 = vmatmul.mubr.f32.gmra.mrb[0].mxu0 %v415
      %v1583 = vpop.f32.mrb[0].mxu0
      %v1584 = vadd.f32 0.0, %v1583
      %v1585 = vpop.f32.mrb[0].mxu0
      %1586 = vmatprep.mubr.f32.mxu0 0.0
      %1587 = vmatmul.mubr.f32.gmra.mrb[0].mxu0 %v416
      %v1588 = vpop.f32.mrb[0].mxu0
      %v1589 = vadd.f32 0.0, %v1588
      %v1590 = vpop.f32.mrb[0].mxu0
      %1591 = vmatprep.mubr.f32.mxu0 0.0
      %1592 = vmatmul.mubr.f32.gmra.mrb[0].mxu0 %v417
      %v1593 = vpop.f32.mrb[0].mxu0
      %v1594 = vadd.f32 0.0, %v1593
      %v1595 = vpop.f32.mrb[0].mxu0
      %1596 = vmatprep.mubr.f32.mxu0 0.0
      %1597 = vmatmul.mubr.f32.gmra.mrb[0].mxu0 %v418
      %v1598 = vpop.f32.mrb[0].mxu0
      %v1599 = vadd.f32 0.0, %v1598
      %v1600 = vpop.f32.mrb[0].mxu0
      %1601 = vmatprep.mubr.f32.mxu0 0.0
      %1602 = vmatmul.mubr.f32.gmra.mrb[0].mxu0 %v419
      %v1603 = vpop.f32.mrb[0].mxu0
      %v1604 = vadd.f32 0.0, %v1603
      %v1605 = vpop.f32.mrb[0].mxu0
      %1606 = vmatprep.mubr.f32.mxu0 0.0
      %1607 = vmatmul.mubr.f32.gmra.mrb[0].mxu0 %v420
      %v1608 = vpop.f32.mrb[0].mxu0
      %v1609 = vadd.f32 0.0, %v1608
      %v1610 = vpop.f32.mrb[0].mxu0
      %1611 = vmatprep.mubr.f32.mxu0 0.0
      %1612 = vmatmul.mubr.f32.gmra.mrb[0].mxu0 %v421
      %v1613 = vpop.f32.mrb[0].mxu0
      %v1614 = vadd.f32 0.0, %v1613
      %v1615 = vpop.f32.mrb[0].mxu0
      %1616 = vmatprep.mubr.f32.mxu0 0.0
      %1617 = vmatmul.mubr.f32.gmra.mrb[0].mxu0 %v422
      %v1618 = vpop.f32.mrb[0].mxu0
      %v1619 = vadd.f32 0.0, %v1618
      %v1620 = vpop.f32.mrb[0].mxu0
      %1621 = vmatprep.mubr.f32.mxu0 0.0
      %1622 = vmatmul.mubr.f32.gmra.mrb[0].mxu0 %v423
      %v1623 = vpop.f32.mrb[0].mxu0
      %v1624 = vadd.f32 0.0, %v1623
      %v1625 = vpop.f32.mrb[0].mxu0
      %1626 = vmatprep.mubr.f32.mxu0 0.0
      %1627 = vmatmul.mubr.f32.gmra.mrb[0].mxu0 %v424
      %v1628 = vpop.f32.mrb[0].mxu0
      %v1629 = vadd.f32 0.0, %v1628
      %v1630 = vpop.f32.mrb[0].mxu0
      %1631 = vmatprep.mubr.f32.mxu0 0.0
      %1632 = vmatmul.mubr.f32.gmra.mrb[0].mxu0 %v425
      %v1633 = vpop.f32.mrb[0].mxu0
      %v1634 = vadd.f32 0.0, %v1633
      %v1635 = vpop.f32.mrb[0].mxu0
      %1636 = vmatprep.mubr.f32.mxu0 0.0
      %1637 = vmatmul.mubr.f32.gmra.mrb[0].mxu0 %v426
      %v1638 = vpop.f32.mrb[0].mxu0
      %v1639 = vadd.f32 0.0, %v1638
      %v1640 = vpop.f32.mrb[0].mxu0
      %1641 = vmatprep.mubr.f32.mxu0 0.0
      %1642 = vmatmul.mubr.f32.gmra.mrb[0].mxu0 %v427
      %v1643 = vpop.f32.mrb[0].mxu0
      %v1644 = vadd.f32 0.0, %v1643
      %v1645 = vpop.f32.mrb[0].mxu0
      %1646 = vmatprep.mubr.f32.mxu0 0.0
      %1647 = vmatmul.mubr.f32.gmra.mrb[0].mxu0 %v428
      %v1648 = vpop.f32.mrb[0].mxu0
      %v1649 = vadd.f32 0.0, %v1648
      %v1650 = vpop.f32.mrb[0].mxu0
      %1651 = vmatprep.mubr.f32.mxu0 0.0
      %1652 = vmatmul.mubr.f32.gmra.mrb[0].mxu0 %v429
      %v1653 = vpop.f32.mrb[0].mxu0
      %v1654 = vadd.f32 0.0, %v1653
      %v1655 = vpop.f32.mrb[0].mxu0
      %1656 = vmatprep.mubr.f32.mxu0 0.0
      %1657 = vmatmul.mubr.f32.gmra.mrb[0].mxu0 %v430
      %v1658 = vpop.f32.mrb[0].mxu0
      %v1659 = vadd.f32 0.0, %v1658
      %v1660 = vpop.f32.mrb[0].mxu0
      %1661 = vdwg.mxu0
      %1666 = vrot.lane.b32.xlu0 %v753, 127
      %v1667 = vpop.permute.xlu0 %1666
      %1668 = vrot.lane.b32.xlu0 %v754, 127
      %v1669 = vpop.permute.xlu0 %1668
      %1670 = vrot.lane.b32.xlu0 %v755, 127
      %v1671 = vpop.permute.xlu0 %1670
      %1672 = vrot.lane.b32.xlu0 %v756, 127
      %v1673 = vpop.permute.xlu0 %1672
      %v1679 = vsel %vm757, %v1501, 0
      %v1682 = vsel %vm757, %v1502, 0
      %v1685 = vsel %vm757, %v1503, 0
      %v1688 = vsel %vm757, %v1504, 0
      %v1691 = vsel %vm757, %v1505, 0
      %v1694 = vsel %vm757, %v1506, 0
      %v1697 = vsel %vm757, %v1507, 0
      %v1700 = vsel %vm757, %v1508, 0
      %v1703 = vsel %vm757, %v1509, 0
      %v1706 = vsel %vm757, %v1510, 0
      %v1709 = vsel %vm757, %v1511, 0
      %v1712 = vsel %vm757, %v1512, 0
      %v1715 = vsel %vm757, %v1513, 0
      %v1718 = vsel %vm757, %v1514, 0
      %v1721 = vsel %vm757, %v1515, 0
      %v1724 = vsel %vm757, %v1516, 0
      %1726 = vmatprep.subr.mxu0 0.0
      %1727 = vmatpush1.msra.mxu0 %v1667
      %1728 = vmatprep.subr.mxu0 0.0
      %1729 = vmatpush1.msra.mxu0 %v1669
      %1730 = vmatprep.subr.mxu0 0.0
      %1731 = vmatpush1.msra.mxu0 %v1671
      %1732 = vmatprep.subr.mxu0 0.0
      %1733 = vmatpush1.msra.mxu0 %v1673
      %1734 = vmatprep.subr.mxu0 0.0
      %1735 = vmatpush1.msra.mxu0 0.0
      %1736 = vmatprep.subr.mxu0 0.0
      %1737 = vmatpush1.msra.mxu0 0.0
      %1738 = vmatprep.subr.mxu0 0.0
      %1739 = vmatpush1.msra.mxu0 0.0
      %1740 = vmatprep.subr.mxu0 0.0
      %1741 = vmatpush1.msra.mxu0 0.0
      %1742 = vmatprep.subr.mxu0 0.0
      %1743 = vmatpush1.msra.mxu0 0.0
      %1744 = vmatprep.subr.mxu0 0.0
      %1745 = vmatpush1.msra.mxu0 0.0
      %1746 = vmatprep.subr.mxu0 0.0
      %1747 = vmatpush1.msra.mxu0 0.0
      %1748 = vmatprep.subr.mxu0 0.0
      %1749 = vmatpush1.msra.mxu0 0.0
      %1750 = vmatprep.subr.mxu0 0.0
      %1751 = vmatpush1.msra.mxu0 0.0
      %1752 = vmatprep.subr.mxu0 0.0
      %1753 = vmatpush1.msra.mxu0 0.0
      %1754 = vmatprep.subr.mxu0 0.0
      %1755 = vmatpush1.msra.mxu0 0.0
      %1756 = vmatprep.subr.mxu0 0.0
      %1757 = vmatpush1.msra.mxu0 0.0
      %1758 = vmatprep.subr.mxu0 0.0
      %1759 = vmatpush1.msra.mxu0 0.0
      %1760 = vmatprep.subr.mxu0 0.0
      %1761 = vmatpush1.msra.mxu0 0.0
      %1762 = vmatprep.subr.mxu0 0.0
      %1763 = vmatpush1.msra.mxu0 0.0
      %1764 = vmatprep.subr.mxu0 0.0
      %1765 = vmatpush1.msra.mxu0 0.0
      %1766 = vmatprep.subr.mxu0 0.0
      %1767 = vmatpush1.msra.mxu0 0.0
      %1768 = vmatprep.subr.mxu0 0.0
      %1769 = vmatpush1.msra.mxu0 0.0
      %1770 = vmatprep.subr.mxu0 0.0
      %1771 = vmatpush1.msra.mxu0 0.0
      %1772 = vmatprep.subr.mxu0 0.0
      %1773 = vmatpush1.msra.mxu0 0.0
      %1774 = vmatprep.subr.mxu0 0.0
      %1775 = vmatpush1.msra.mxu0 0.0
      %1776 = vmatprep.subr.mxu0 0.0
      %1777 = vmatpush1.msra.mxu0 0.0
      %1778 = vmatprep.subr.mxu0 0.0
      %1779 = vmatpush1.msra.mxu0 0.0
      %1780 = vmatprep.subr.mxu0 0.0
      %1781 = vmatpush1.msra.mxu0 0.0
      %1782 = vmatprep.subr.mxu0 0.0
      %1783 = vmatpush1.msra.mxu0 0.0
      %1784 = vmatprep.subr.mxu0 0.0
      %1785 = vmatpush1.msra.mxu0 0.0
      %1786 = vmatprep.subr.mxu0 0.0
      %1787 = vmatpush1.msra.mxu0 0.0
      %1788 = vmatprep.subr.mxu0 0.0
      %1789 = vmatpush1.msra.mxu0 0.0
      %1790 = vmatprep.mubr.f32.mxu0 0.0
      %1791 = vmatmul.mubr.f32.gmra.mrb[0].mxu0 %v1679
      %v1792 = vpop.f32.mrb[0].mxu0
      %v1793 = vadd.f32 0.0, %v1792
      %v1794 = vpop.f32.mrb[0].mxu0
      %1795 = vmatprep.mubr.f32.mxu0 0.0
      %1796 = vmatmul.mubr.f32.gmra.mrb[0].mxu0 %v1682
      %v1797 = vpop.f32.mrb[0].mxu0
      %v1798 = vadd.f32 0.0, %v1797
      %v1799 = vpop.f32.mrb[0].mxu0
      %1800 = vmatprep.mubr.f32.mxu0 0.0
      %1801 = vmatmul.mubr.f32.gmra.mrb[0].mxu0 %v1685
      %v1802 = vpop.f32.mrb[0].mxu0
      %v1803 = vadd.f32 0.0, %v1802
      %v1804 = vpop.f32.mrb[0].mxu0
      %1805 = vmatprep.mubr.f32.mxu0 0.0
      %1806 = vmatmul.mubr.f32.gmra.mrb[0].mxu0 %v1688
      %v1807 = vpop.f32.mrb[0].mxu0
      %v1808 = vadd.f32 0.0, %v1807
      %v1809 = vpop.f32.mrb[0].mxu0
      %1810 = vmatprep.mubr.f32.mxu0 0.0
      %1811 = vmatmul.mubr.f32.gmra.mrb[0].mxu0 %v1691
      %v1812 = vpop.f32.mrb[0].mxu0
      %v1813 = vadd.f32 0.0, %v1812
      %v1814 = vpop.f32.mrb[0].mxu0
      %1815 = vmatprep.mubr.f32.mxu0 0.0
      %1816 = vmatmul.mubr.f32.gmra.mrb[0].mxu0 %v1694
      %v1817 = vpop.f32.mrb[0].mxu0
      %v1818 = vadd.f32 0.0, %v1817
      %v1819 = vpop.f32.mrb[0].mxu0
      %1820 = vmatprep.mubr.f32.mxu0 0.0
      %1821 = vmatmul.mubr.f32.gmra.mrb[0].mxu0 %v1697
      %v1822 = vpop.f32.mrb[0].mxu0
      %v1823 = vadd.f32 0.0, %v1822
      %v1824 = vpop.f32.mrb[0].mxu0
      %1825 = vmatprep.mubr.f32.mxu0 0.0
      %1826 = vmatmul.mubr.f32.gmra.mrb[0].mxu0 %v1700
      %v1827 = vpop.f32.mrb[0].mxu0
      %v1828 = vadd.f32 0.0, %v1827
      %v1829 = vpop.f32.mrb[0].mxu0
      %1830 = vmatprep.mubr.f32.mxu0 0.0
      %1831 = vmatmul.mubr.f32.gmra.mrb[0].mxu0 %v1703
      %v1832 = vpop.f32.mrb[0].mxu0
      %v1833 = vadd.f32 0.0, %v1832
      %v1834 = vpop.f32.mrb[0].mxu0
      %1835 = vmatprep.mubr.f32.mxu0 0.0
      %1836 = vmatmul.mubr.f32.gmra.mrb[0].mxu0 %v1706
      %v1837 = vpop.f32.mrb[0].mxu0
      %v1838 = vadd.f32 0.0, %v1837
      %v1839 = vpop.f32.mrb[0].mxu0
      %1840 = vmatprep.mubr.f32.mxu0 0.0
      %1841 = vmatmul.mubr.f32.gmra.mrb[0].mxu0 %v1709
      %v1842 = vpop.f32.mrb[0].mxu0
      %v1843 = vadd.f32 0.0, %v1842
      %v1844 = vpop.f32.mrb[0].mxu0
      %1845 = vmatprep.mubr.f32.mxu0 0.0
      %1846 = vmatmul.mubr.f32.gmra.mrb[0].mxu0 %v1712
      %v1847 = vpop.f32.mrb[0].mxu0
      %v1848 = vadd.f32 0.0, %v1847
      %v1849 = vpop.f32.mrb[0].mxu0
      %1850 = vmatprep.mubr.f32.mxu0 0.0
      %1851 = vmatmul.mubr.f32.gmra.mrb[0].mxu0 %v1715
      %v1852 = vpop.f32.mrb[0].mxu0
      %v1853 = vadd.f32 0.0, %v1852
      %v1854 = vpop.f32.mrb[0].mxu0
      %1855 = vmatprep.mubr.f32.mxu0 0.0
      %1856 = vmatmul.mubr.f32.gmra.mrb[0].mxu0 %v1718
      %v1857 = vpop.f32.mrb[0].mxu0
      %v1858 = vadd.f32 0.0, %v1857
      %v1859 = vpop.f32.mrb[0].mxu0
      %1860 = vmatprep.mubr.f32.mxu0 0.0
      %1861 = vmatmul.mubr.f32.gmra.mrb[0].mxu0 %v1721
      %v1862 = vpop.f32.mrb[0].mxu0
      %v1863 = vadd.f32 0.0, %v1862
      %v1864 = vpop.f32.mrb[0].mxu0
      %1865 = vmatprep.mubr.f32.mxu0 0.0
      %1866 = vmatmul.mubr.f32.gmra.mrb[0].mxu0 %v1724
      %v1867 = vpop.f32.mrb[0].mxu0
      %v1868 = vadd.f32 0.0, %v1867
      %v1869 = vpop.f32.mrb[0].mxu0
      %1870 = vdwg.mxu0
      %v1872 = vsel %vm757, %v1584, 0
      %v1875 = vsel %vm757, %v1589, 0
      %v1878 = vsel %vm757, %v1594, 0
      %v1881 = vsel %vm757, %v1599, 0
      %v1884 = vsel %vm757, %v1604, 0
      %v1887 = vsel %vm757, %v1609, 0
      %v1890 = vsel %vm757, %v1614, 0
      %v1893 = vsel %vm757, %v1619, 0
      %v1896 = vsel %vm757, %v1624, 0
      %v1899 = vsel %vm757, %v1629, 0
      %v1902 = vsel %vm757, %v1634, 0
      %v1905 = vsel %vm757, %v1639, 0
      %v1908 = vsel %vm757, %v1644, 0
      %v1911 = vsel %vm757, %v1649, 0
      %v1914 = vsel %vm757, %v1654, 0
      %v1917 = vsel %vm757, %v1659, 0
      %1919 = vmatprep.subr.mxu0 0.0
      %1920 = vmatpush1.msra.mxu0 %v753
      %1921 = vmatprep.subr.mxu0 0.0
      %1922 = vmatpush1.msra.mxu0 %v754
      %1923 = vmatprep.subr.mxu0 0.0
      %1924 = vmatpush1.msra.mxu0 %v755
      %1925 = vmatprep.subr.mxu0 0.0
      %1926 = vmatpush1.msra.mxu0 %v756
      %1927 = vmatprep.subr.mxu0 0.0
      %1928 = vmatpush1.msra.mxu0 0.0
      %1929 = vmatprep.subr.mxu0 0.0
      %1930 = vmatpush1.msra.mxu0 0.0
      %1931 = vmatprep.subr.mxu0 0.0
      %1932 = vmatpush1.msra.mxu0 0.0
      %1933 = vmatprep.subr.mxu0 0.0
      %1934 = vmatpush1.msra.mxu0 0.0
      %1935 = vmatprep.subr.mxu0 0.0
      %1936 = vmatpush1.msra.mxu0 0.0
      %1937 = vmatprep.subr.mxu0 0.0
      %1938 = vmatpush1.msra.mxu0 0.0
      %1939 = vmatprep.subr.mxu0 0.0
      %1940 = vmatpush1.msra.mxu0 0.0
      %1941 = vmatprep.subr.mxu0 0.0
      %1942 = vmatpush1.msra.mxu0 0.0
      %1943 = vmatprep.subr.mxu0 0.0
      %1944 = vmatpush1.msra.mxu0 0.0
      %1945 = vmatprep.subr.mxu0 0.0
      %1946 = vmatpush1.msra.mxu0 0.0
      %1947 = vmatprep.subr.mxu0 0.0
      %1948 = vmatpush1.msra.mxu0 0.0
      %1949 = vmatprep.subr.mxu0 0.0
      %1950 = vmatpush1.msra.mxu0 0.0
      %1951 = vmatprep.subr.mxu0 0.0
      %1952 = vmatpush1.msra.mxu0 0.0
      %1953 = vmatprep.subr.mxu0 0.0
      %1954 = vmatpush1.msra.mxu0 0.0
      %1955 = vmatprep.subr.mxu0 0.0
      %1956 = vmatpush1.msra.mxu0 0.0
      %1957 = vmatprep.subr.mxu0 0.0
      %1958 = vmatpush1.msra.mxu0 0.0
      %1959 = vmatprep.subr.mxu0 0.0
      %1960 = vmatpush1.msra.mxu0 0.0
      %1961 = vmatprep.subr.mxu0 0.0
      %1962 = vmatpush1.msra.mxu0 0.0
      %1963 = vmatprep.subr.mxu0 0.0
      %1964 = vmatpush1.msra.mxu0 0.0
      %1965 = vmatprep.subr.mxu0 0.0
      %1966 = vmatpush1.msra.mxu0 0.0
      %1967 = vmatprep.subr.mxu0 0.0
      %1968 = vmatpush1.msra.mxu0 0.0
      %1969 = vmatprep.subr.mxu0 0.0
      %1970 = vmatpush1.msra.mxu0 0.0
      %1971 = vmatprep.subr.mxu0 0.0
      %1972 = vmatpush1.msra.mxu0 0.0
      %1973 = vmatprep.subr.mxu0 0.0
      %1974 = vmatpush1.msra.mxu0 0.0
      %1975 = vmatprep.subr.mxu0 0.0
      %1976 = vmatpush1.msra.mxu0 0.0
      %1977 = vmatprep.subr.mxu0 0.0
      %1978 = vmatpush1.msra.mxu0 0.0
      %1979 = vmatprep.subr.mxu0 0.0
      %1980 = vmatpush1.msra.mxu0 0.0
      %1981 = vmatprep.subr.mxu0 0.0
      %1982 = vmatpush1.msra.mxu0 0.0
      %1983 = vmatprep.mubr.f32.mxu0 0.0
      %1984 = vmatmul.mubr.f32.gmra.mrb[0].mxu0 %v1872
      %v1985 = vpop.f32.mrb[0].mxu0
      %v1986 = vadd.f32 %v1793, %v1985
      %v1987 = vpop.f32.mrb[0].mxu0
      %1988 = vmatprep.mubr.f32.mxu0 0.0
      %1989 = vmatmul.mubr.f32.gmra.mrb[0].mxu0 %v1875
      %v1990 = vpop.f32.mrb[0].mxu0
      %v1991 = vadd.f32 %v1798, %v1990
      %v1992 = vpop.f32.mrb[0].mxu0
      %1993 = vmatprep.mubr.f32.mxu0 0.0
      %1994 = vmatmul.mubr.f32.gmra.mrb[0].mxu0 %v1878
      %v1995 = vpop.f32.mrb[0].mxu0
      %v1996 = vadd.f32 %v1803, %v1995
      %v1997 = vpop.f32.mrb[0].mxu0
      %1998 = vmatprep.mubr.f32.mxu0 0.0
      %1999 = vmatmul.mubr.f32.gmra.mrb[0].mxu0 %v1881
      %v2000 = vpop.f32.mrb[0].mxu0
      %v2001 = vadd.f32 %v1808, %v2000
      %v2002 = vpop.f32.mrb[0].mxu0
      %2003 = vmatprep.mubr.f32.mxu0 0.0
      %2004 = vmatmul.mubr.f32.gmra.mrb[0].mxu0 %v1884
      %v2005 = vpop.f32.mrb[0].mxu0
      %v2006 = vadd.f32 %v1813, %v2005
      %v2007 = vpop.f32.mrb[0].mxu0
      %2008 = vmatprep.mubr.f32.mxu0 0.0
      %2009 = vmatmul.mubr.f32.gmra.mrb[0].mxu0 %v1887
      %v2010 = vpop.f32.mrb[0].mxu0
      %v2011 = vadd.f32 %v1818, %v2010
      %v2012 = vpop.f32.mrb[0].mxu0
      %2013 = vmatprep.mubr.f32.mxu0 0.0
      %2014 = vmatmul.mubr.f32.gmra.mrb[0].mxu0 %v1890
      %v2015 = vpop.f32.mrb[0].mxu0
      %v2016 = vadd.f32 %v1823, %v2015
      %v2017 = vpop.f32.mrb[0].mxu0
      %2018 = vmatprep.mubr.f32.mxu0 0.0
      %2019 = vmatmul.mubr.f32.gmra.mrb[0].mxu0 %v1893
      %v2020 = vpop.f32.mrb[0].mxu0
      %v2021 = vadd.f32 %v1828, %v2020
      %v2022 = vpop.f32.mrb[0].mxu0
      %2023 = vmatprep.mubr.f32.mxu0 0.0
      %2024 = vmatmul.mubr.f32.gmra.mrb[0].mxu0 %v1896
      %v2025 = vpop.f32.mrb[0].mxu0
      %v2026 = vadd.f32 %v1833, %v2025
      %v2027 = vpop.f32.mrb[0].mxu0
      %2028 = vmatprep.mubr.f32.mxu0 0.0
      %2029 = vmatmul.mubr.f32.gmra.mrb[0].mxu0 %v1899
      %v2030 = vpop.f32.mrb[0].mxu0
      %v2031 = vadd.f32 %v1838, %v2030
      %v2032 = vpop.f32.mrb[0].mxu0
      %2033 = vmatprep.mubr.f32.mxu0 0.0
      %2034 = vmatmul.mubr.f32.gmra.mrb[0].mxu0 %v1902
      %v2035 = vpop.f32.mrb[0].mxu0
      %v2036 = vadd.f32 %v1843, %v2035
      %v2037 = vpop.f32.mrb[0].mxu0
      %2038 = vmatprep.mubr.f32.mxu0 0.0
      %2039 = vmatmul.mubr.f32.gmra.mrb[0].mxu0 %v1905
      %v2040 = vpop.f32.mrb[0].mxu0
      %v2041 = vadd.f32 %v1848, %v2040
      %v2042 = vpop.f32.mrb[0].mxu0
      %2043 = vmatprep.mubr.f32.mxu0 0.0
      %2044 = vmatmul.mubr.f32.gmra.mrb[0].mxu0 %v1908
      %v2045 = vpop.f32.mrb[0].mxu0
      %v2046 = vadd.f32 %v1853, %v2045
      %v2047 = vpop.f32.mrb[0].mxu0
      %2048 = vmatprep.mubr.f32.mxu0 0.0
      %2049 = vmatmul.mubr.f32.gmra.mrb[0].mxu0 %v1911
      %v2050 = vpop.f32.mrb[0].mxu0
      %v2051 = vadd.f32 %v1858, %v2050
      %v2052 = vpop.f32.mrb[0].mxu0
      %2053 = vmatprep.mubr.f32.mxu0 0.0
      %2054 = vmatmul.mubr.f32.gmra.mrb[0].mxu0 %v1914
      %v2055 = vpop.f32.mrb[0].mxu0
      %v2056 = vadd.f32 %v1863, %v2055
      %v2057 = vpop.f32.mrb[0].mxu0
      %2058 = vmatprep.mubr.f32.mxu0 0.0
      %2059 = vmatmul.mubr.f32.gmra.mrb[0].mxu0 %v1917
      %v2060 = vpop.f32.mrb[0].mxu0
      %v2061 = vadd.f32 %v1868, %v2060
      %v2062 = vpop.f32.mrb[0].mxu0
      %2063 = vdwg.mxu0
      %v2064 = vlaneseq
      %v2065 = vshrl.u32 %v2064, 7
      %v2066 = vsub.s32 1, %v2065
      %v2067 = vrot.slane %v752, %v2066
      %v2068 = vadd.f32 %v1986, %v2067
      %v2069 = vadd.f32 %v1991, %v2067
      %v2070 = vadd.f32 %v1996, %v2067
      %v2071 = vadd.f32 %v2001, %v2067
      %v2072 = vadd.f32 %v2006, %v2067
      %v2073 = vadd.f32 %v2011, %v2067
      %v2074 = vadd.f32 %v2016, %v2067
      %v2075 = vadd.f32 %v2021, %v2067
      %v2076 = vadd.f32 %v2026, %v2067
      %v2077 = vadd.f32 %v2031, %v2067
      %v2078 = vadd.f32 %v2036, %v2067
      %v2079 = vadd.f32 %v2041, %v2067
      %v2080 = vadd.f32 %v2046, %v2067
      %v2081 = vadd.f32 %v2051, %v2067
      %v2082 = vadd.f32 %v2056, %v2067
      %v2083 = vadd.f32 %v2061, %v2067
      %v2084 = vtanh.pop %v2068
      %v2085 = vtanh.pop %v2069
      %v2086 = vtanh.pop %v2070
      %v2087 = vtanh.pop %v2071
      %v2088 = vtanh.pop %v2072
      %v2089 = vtanh.pop %v2073
      %v2090 = vtanh.pop %v2074
      %v2091 = vtanh.pop %v2075
      %v2092 = vtanh.pop %v2076
      %v2093 = vtanh.pop %v2077
      %v2094 = vtanh.pop %v2078
      %v2095 = vtanh.pop %v2079
      %v2096 = vtanh.pop %v2080
      %v2097 = vtanh.pop %v2081
      %v2098 = vtanh.pop %v2082
      %v2099 = vtanh.pop %v2083
      %vm2100 = vcmp.gt.f32.partialorder %v431, 0.5
      %vm2101 = vcmp.gt.f32.partialorder %v432, 0.5
      %vm2102 = vcmp.gt.f32.partialorder %v433, 0.5
      %vm2103 = vcmp.gt.f32.partialorder %v434, 0.5
      %vm2104 = vcmp.gt.f32.partialorder %v435, 0.5
      %vm2105 = vcmp.gt.f32.partialorder %v436, 0.5
      %vm2106 = vcmp.gt.f32.partialorder %v437, 0.5
      %vm2107 = vcmp.gt.f32.partialorder %v438, 0.5
      %vm2108 = vcmp.gt.f32.partialorder %v439, 0.5
      %vm2109 = vcmp.gt.f32.partialorder %v440, 0.5
      %vm2110 = vcmp.gt.f32.partialorder %v441, 0.5
      %vm2111 = vcmp.gt.f32.partialorder %v442, 0.5
      %vm2112 = vcmp.gt.f32.partialorder %v443, 0.5
      %vm2113 = vcmp.gt.f32.partialorder %v444, 0.5
      %vm2114 = vcmp.gt.f32.partialorder %v445, 0.5
      %vm2115 = vcmp.gt.f32.partialorder %v446, 0.5
      %2132 = vrot.lane.b32.xlu0 %v2084, 1
      %v2133 = vpop.permute.xlu0 %2132
      %2134 = vrot.lane.b32.xlu0 %v2085, 1
      %v2135 = vpop.permute.xlu0 %2134
      %2136 = vrot.lane.b32.xlu0 %v2086, 1
      %v2137 = vpop.permute.xlu0 %2136
      %2138 = vrot.lane.b32.xlu0 %v2087, 1
      %v2139 = vpop.permute.xlu0 %2138
      %2140 = vrot.lane.b32.xlu0 %v2088, 1
      %v2141 = vpop.permute.xlu0 %2140
      %2142 = vrot.lane.b32.xlu0 %v2089, 1
      %v2143 = vpop.permute.xlu0 %2142
      %2144 = vrot.lane.b32.xlu0 %v2090, 1
      %v2145 = vpop.permute.xlu0 %2144
      %2146 = vrot.lane.b32.xlu0 %v2091, 1
      %v2147 = vpop.permute.xlu0 %2146
      %2148 = vrot.lane.b32.xlu0 %v2092, 1
      %v2149 = vpop.permute.xlu0 %2148
      %2150 = vrot.lane.b32.xlu0 %v2093, 1
      %v2151 = vpop.permute.xlu0 %2150
      %2152 = vrot.lane.b32.xlu0 %v2094, 1
      %v2153 = vpop.permute.xlu0 %2152
      %2154 = vrot.lane.b32.xlu0 %v2095, 1
      %v2155 = vpop.permute.xlu0 %2154
      %2156 = vrot.lane.b32.xlu0 %v2096, 1
      %v2157 = vpop.permute.xlu0 %2156
      %2158 = vrot.lane.b32.xlu0 %v2097, 1
      %v2159 = vpop.permute.xlu0 %2158
      %2160 = vrot.lane.b32.xlu0 %v2098, 1
      %v2161 = vpop.permute.xlu0 %2160
      %2162 = vrot.lane.b32.xlu0 %v2099, 1
      %v2163 = vpop.permute.xlu0 %2162
      %v2180 = vsel %vm2100, %v2133, -1e+30
      %v2181 = vsel %vm2101, %v2135, -1e+30
      %v2182 = vsel %vm2102, %v2137, -1e+30
      %v2183 = vsel %vm2103, %v2139, -1e+30
      %v2184 = vsel %vm2104, %v2141, -1e+30
      %v2185 = vsel %vm2105, %v2143, -1e+30
      %v2186 = vsel %vm2106, %v2145, -1e+30
      %v2187 = vsel %vm2107, %v2147, -1e+30
      %v2188 = vsel %vm2108, %v2149, -1e+30
      %v2189 = vsel %vm2109, %v2151, -1e+30
      %v2190 = vsel %vm2110, %v2153, -1e+30
      %v2191 = vsel %vm2111, %v2155, -1e+30
      %v2192 = vsel %vm2112, %v2157, -1e+30
      %v2193 = vsel %vm2113, %v2159, -1e+30
      %v2194 = vsel %vm2114, %v2161, -1e+30
      %v2195 = vsel %vm2115, %v2163, -1e+30
      %2212 = vrot.lane.b32.xlu0 %v2180, 127
      %v2213 = vpop.permute.xlu0 %2212
      %2214 = vrot.lane.b32.xlu0 %v2181, 127
      %v2215 = vpop.permute.xlu0 %2214
      %2216 = vrot.lane.b32.xlu0 %v2182, 127
      %v2217 = vpop.permute.xlu0 %2216
      %2218 = vrot.lane.b32.xlu0 %v2183, 127
      %v2219 = vpop.permute.xlu0 %2218
      %2220 = vrot.lane.b32.xlu0 %v2184, 127
      %v2221 = vpop.permute.xlu0 %2220
      %2222 = vrot.lane.b32.xlu0 %v2185, 127
      %v2223 = vpop.permute.xlu0 %2222
      %2224 = vrot.lane.b32.xlu0 %v2186, 127
      %v2225 = vpop.permute.xlu0 %2224
      %2226 = vrot.lane.b32.xlu0 %v2187, 127
      %v2227 = vpop.permute.xlu0 %2226
      %2228 = vrot.lane.b32.xlu0 %v2188, 127
      %v2229 = vpop.permute.xlu0 %2228
      %2230 = vrot.lane.b32.xlu0 %v2189, 127
      %v2231 = vpop.permute.xlu0 %2230
      %2232 = vrot.lane.b32.xlu0 %v2190, 127
      %v2233 = vpop.permute.xlu0 %2232
      %2234 = vrot.lane.b32.xlu0 %v2191, 127
      %v2235 = vpop.permute.xlu0 %2234
      %2236 = vrot.lane.b32.xlu0 %v2192, 127
      %v2237 = vpop.permute.xlu0 %2236
      %2238 = vrot.lane.b32.xlu0 %v2193, 127
      %v2239 = vpop.permute.xlu0 %2238
      %2240 = vrot.lane.b32.xlu0 %v2194, 127
      %v2241 = vpop.permute.xlu0 %2240
      %2242 = vrot.lane.b32.xlu0 %v2195, 127
      %v2243 = vpop.permute.xlu0 %2242
      %2260 = vxpose.xlu0.b32.start [1/16] %v2213, 128
      %2261 = vxpose.xlu0.b32.cont [2/16] %v2215, 128
      %2262 = vxpose.xlu0.b32.cont [3/16] %v2217, 128
      %2263 = vxpose.xlu0.b32.cont [4/16] %v2219, 128
      %2264 = vxpose.xlu0.b32.cont [5/16] %v2221, 128
      %2265 = vxpose.xlu0.b32.cont [6/16] %v2223, 128
      %2266 = vxpose.xlu0.b32.cont [7/16] %v2225, 128
      %2267 = vxpose.xlu0.b32.cont [8/16] %v2227, 128
      %2268 = vxpose.xlu0.b32.cont [9/16] %v2229, 128
      %2269 = vxpose.xlu0.b32.cont [10/16] %v2231, 128
      %2270 = vxpose.xlu0.b32.cont [11/16] %v2233, 128
      %2271 = vxpose.xlu0.b32.cont [12/16] %v2235, 128
      %2272 = vxpose.xlu0.b32.cont [13/16] %v2237, 128
      %2273 = vxpose.xlu0.b32.cont [14/16] %v2239, 128
      %2274 = vxpose.xlu0.b32.cont [15/16] %v2241, 128
      %2275 = vxpose.xlu0.b32.end [16/16] %v2243, 128
      %v2276 = vpop.trf.xlu0
      %v2277 = vpop.trf.xlu0
      %v2278 = vpop.trf.xlu0
      %v2279 = vpop.trf.xlu0
      %v2280 = vpop.trf.xlu0
      %v2281 = vpop.trf.xlu0
      %v2282 = vpop.trf.xlu0
      %v2283 = vpop.trf.xlu0
      %v2284 = vpop.trf.xlu0
      %v2285 = vpop.trf.xlu0
      %v2286 = vpop.trf.xlu0
      %v2287 = vpop.trf.xlu0
      %v2288 = vpop.trf.xlu0
      %v2289 = vpop.trf.xlu0
      %v2290 = vpop.trf.xlu0
      %v2291 = vpop.trf.xlu0
      %v2292 = vlaneseq
      %v2293 = vshrl.u32 %v2292, 7
      %v2294 = vsub.s32 0, %v2293
      %v2295 = vrot.slane %v2276, %v2294
      %2296 = vset.pattern.permute.xlu0 1
      %2297 = vperm.xlu0 %2296, %v2180
      %v2298 = vpop.permute.xlu0 %2297
      %2300 = vset.pattern.permute.xlu0 1
      %2301 = vperm.xlu0 %2300, %v2181
      %v2302 = vpop.permute.xlu0 %2301
      %2304 = vset.pattern.permute.xlu0 1
      %2305 = vperm.xlu0 %2304, %v2182
      %v2306 = vpop.permute.xlu0 %2305
      %2308 = vset.pattern.permute.xlu0 1
      %2309 = vperm.xlu0 %2308, %v2183
      %v2310 = vpop.permute.xlu0 %2309
      %2312 = vset.pattern.permute.xlu0 1
      %2313 = vperm.xlu0 %2312, %v2184
      %v2314 = vpop.permute.xlu0 %2313
      %2316 = vset.pattern.permute.xlu0 1
      %2317 = vperm.xlu0 %2316, %v2185
      %v2318 = vpop.permute.xlu0 %2317
      %2320 = vset.pattern.permute.xlu0 1
      %2321 = vperm.xlu0 %2320, %v2186
      %v2322 = vpop.permute.xlu0 %2321
      %2324 = vset.pattern.permute.xlu0 1
      %2325 = vperm.xlu0 %2324, %v2187
      %v2326 = vpop.permute.xlu0 %2325
      %2328 = vset.pattern.permute.xlu0 1
      %2329 = vperm.xlu0 %2328, %v2188
      %v2330 = vpop.permute.xlu0 %2329
      %2332 = vset.pattern.permute.xlu0 1
      %2333 = vperm.xlu0 %2332, %v2189
      %v2334 = vpop.permute.xlu0 %2333
      %2336 = vset.pattern.permute.xlu0 1
      %2337 = vperm.xlu0 %2336, %v2190
      %v2338 = vpop.permute.xlu0 %2337
      %2340 = vset.pattern.permute.xlu0 1
      %2341 = vperm.xlu0 %2340, %v2191
      %v2342 = vpop.permute.xlu0 %2341
      %2344 = vset.pattern.permute.xlu0 1
      %2345 = vperm.xlu0 %2344, %v2192
      %v2346 = vpop.permute.xlu0 %2345
      %2348 = vset.pattern.permute.xlu0 1
      %2349 = vperm.xlu0 %2348, %v2193
      %v2350 = vpop.permute.xlu0 %2349
      %2352 = vset.pattern.permute.xlu0 1
      %2353 = vperm.xlu0 %2352, %v2194
      %v2354 = vpop.permute.xlu0 %2353
      %2356 = vset.pattern.permute.xlu0 1
      %2357 = vperm.xlu0 %2356, %v2195
      %v2358 = vpop.permute.xlu0 %2357
      %vm2360 = vcmp.gt.f32.partialorder %v2295, %v2298
      %vm2361 = vcmp.gt.f32.partialorder %v2295, %v2302
      %vm2362 = vcmp.gt.f32.partialorder %v2295, %v2306
      %vm2363 = vcmp.gt.f32.partialorder %v2295, %v2310
      %vm2364 = vcmp.gt.f32.partialorder %v2295, %v2314
      %vm2365 = vcmp.gt.f32.partialorder %v2295, %v2318
      %vm2366 = vcmp.gt.f32.partialorder %v2295, %v2322
      %vm2367 = vcmp.gt.f32.partialorder %v2295, %v2326
      %vm2368 = vcmp.gt.f32.partialorder %v2295, %v2330
      %vm2369 = vcmp.gt.f32.partialorder %v2295, %v2334
      %vm2370 = vcmp.gt.f32.partialorder %v2295, %v2338
      %vm2371 = vcmp.gt.f32.partialorder %v2295, %v2342
      %vm2372 = vcmp.gt.f32.partialorder %v2295, %v2346
      %vm2373 = vcmp.gt.f32.partialorder %v2295, %v2350
      %vm2374 = vcmp.gt.f32.partialorder %v2295, %v2354
      %vm2375 = vcmp.gt.f32.partialorder %v2295, %v2358
      %vm2376 = vcmp.eq.f32.partialorder %v2295, %v2298
      %vm2377 = vcmp.eq.f32.partialorder %v2295, %v2302
      %vm2378 = vcmp.eq.f32.partialorder %v2295, %v2306
      %vm2379 = vcmp.eq.f32.partialorder %v2295, %v2310
      %vm2380 = vcmp.eq.f32.partialorder %v2295, %v2314
      %vm2381 = vcmp.eq.f32.partialorder %v2295, %v2318
      %vm2382 = vcmp.eq.f32.partialorder %v2295, %v2322
      %vm2383 = vcmp.eq.f32.partialorder %v2295, %v2326
      %vm2384 = vcmp.eq.f32.partialorder %v2295, %v2330
      %vm2385 = vcmp.eq.f32.partialorder %v2295, %v2334
      %vm2386 = vcmp.eq.f32.partialorder %v2295, %v2338
      %vm2387 = vcmp.eq.f32.partialorder %v2295, %v2342
      %vm2388 = vcmp.eq.f32.partialorder %v2295, %v2346
      %vm2389 = vcmp.eq.f32.partialorder %v2295, %v2350
      %vm2390 = vcmp.eq.f32.partialorder %v2295, %v2354
      %vm2391 = vcmp.eq.f32.partialorder %v2295, %v2358
      %vm2392 = vmand %vm2376, %vm730
      %vm2393 = vmand %vm2377, %vm731
      %vm2394 = vmand %vm2378, %vm732
      %vm2395 = vmand %vm2379, %vm733
      %vm2396 = vmand %vm2380, %vm734
      %vm2397 = vmand %vm2381, %vm735
      %vm2398 = vmand %vm2382, %vm736
      %vm2399 = vmand %vm2383, %vm737
      %vm2400 = vmand %vm2384, %vm738
      %vm2401 = vmand %vm2385, %vm739
      %vm2402 = vmand %vm2386, %vm740
      %vm2403 = vmand %vm2387, %vm741
      %vm2404 = vmand %vm2388, %vm742
      %vm2405 = vmand %vm2389, %vm743
      %vm2406 = vmand %vm2390, %vm744
      %vm2407 = vmand %vm2391, %vm745
      %vm2408 = vmor %vm2360, %vm2392
      %vm2409 = vmor %vm2361, %vm2393
      %vm2410 = vmor %vm2362, %vm2394
      %vm2411 = vmor %vm2363, %vm2395
      %vm2412 = vmor %vm2364, %vm2396
      %vm2413 = vmor %vm2365, %vm2397
      %vm2414 = vmor %vm2366, %vm2398
      %vm2415 = vmor %vm2367, %vm2399
      %vm2416 = vmor %vm2368, %vm2400
      %vm2417 = vmor %vm2369, %vm2401
      %vm2418 = vmor %vm2370, %vm2402
      %vm2419 = vmor %vm2371, %vm2403
      %vm2420 = vmor %vm2372, %vm2404
      %vm2421 = vmor %vm2373, %vm2405
      %vm2422 = vmor %vm2374, %vm2406
      %vm2423 = vmor %vm2375, %vm2407
      %v2424 = vsel %vm2408, 1, 0
      %v2425 = vsel %vm2409, 1, 0
      %v2426 = vsel %vm2410, 1, 0
      %v2427 = vsel %vm2411, 1, 0
      %v2428 = vsel %vm2412, 1, 0
      %v2429 = vsel %vm2413, 1, 0
      %v2430 = vsel %vm2414, 1, 0
      %v2431 = vsel %vm2415, 1, 0
      %v2432 = vsel %vm2416, 1, 0
      %v2433 = vsel %vm2417, 1, 0
      %v2434 = vsel %vm2418, 1, 0
      %v2435 = vsel %vm2419, 1, 0
      %v2436 = vsel %vm2420, 1, 0
      %v2437 = vsel %vm2421, 1, 0
      %v2438 = vsel %vm2422, 1, 0
      %v2439 = vsel %vm2423, 1, 0
      %v2440 = vcvt.s32.f32 %v2424
      %v2441 = vcvt.s32.f32 %v2425
      %v2442 = vcvt.s32.f32 %v2426
      %v2443 = vcvt.s32.f32 %v2427
      %v2444 = vcvt.s32.f32 %v2428
      %v2445 = vcvt.s32.f32 %v2429
      %v2446 = vcvt.s32.f32 %v2430
      %v2447 = vcvt.s32.f32 %v2431
      %v2448 = vcvt.s32.f32 %v2432
      %v2449 = vcvt.s32.f32 %v2433
      %v2450 = vcvt.s32.f32 %v2434
      %v2451 = vcvt.s32.f32 %v2435
      %v2452 = vcvt.s32.f32 %v2436
      %v2453 = vcvt.s32.f32 %v2437
      %v2454 = vcvt.s32.f32 %v2438
      %v2455 = vcvt.s32.f32 %v2439
      %v2456 = vmul.f32 %v691, %v2440
      %v2457 = vmul.f32 %v692, %v2441
      %v2458 = vmul.f32 %v693, %v2442
      %v2459 = vmul.f32 %v694, %v2443
      %v2460 = vmul.f32 %v695, %v2444
      %v2461 = vmul.f32 %v696, %v2445
      %v2462 = vmul.f32 %v697, %v2446
      %v2463 = vmul.f32 %v698, %v2447
      %v2464 = vmul.f32 %v699, %v2448
      %v2465 = vmul.f32 %v700, %v2449
      %v2466 = vmul.f32 %v701, %v2450
      %v2467 = vmul.f32 %v702, %v2451
      %v2468 = vmul.f32 %v703, %v2452
      %v2469 = vmul.f32 %v704, %v2453
      %v2470 = vmul.f32 %v705, %v2454
      %v2471 = vmul.f32 %v706, %v2455
      %2472 = vmatprep.subr.mxu0 0.0
      %2473 = vmatpush1.msra.mxu0 1.0
      %2474 = vmatprep.subr.mxu0 0.0
      %2475 = vmatpush1.msra.mxu0 1.0
      %2476 = vmatprep.subr.mxu0 0.0
      %2477 = vmatpush1.msra.mxu0 1.0
      %2478 = vmatprep.subr.mxu0 0.0
      %2479 = vmatpush1.msra.mxu0 1.0
      %2480 = vmatprep.subr.mxu0 0.0
      %2481 = vmatpush1.msra.mxu0 1.0
      %2482 = vmatprep.subr.mxu0 0.0
      %2483 = vmatpush1.msra.mxu0 1.0
      %2484 = vmatprep.subr.mxu0 0.0
      %2485 = vmatpush1.msra.mxu0 1.0
      %2486 = vmatprep.subr.mxu0 0.0
      %2487 = vmatpush1.msra.mxu0 1.0
      %2488 = vmatprep.subr.mxu0 0.0
      %2489 = vmatpush1.msra.mxu0 1.0
      %2490 = vmatprep.subr.mxu0 0.0
      %2491 = vmatpush1.msra.mxu0 1.0
      %2492 = vmatprep.subr.mxu0 0.0
      %2493 = vmatpush1.msra.mxu0 1.0
      %2494 = vmatprep.subr.mxu0 0.0
      %2495 = vmatpush1.msra.mxu0 1.0
      %2496 = vmatprep.subr.mxu0 0.0
      %2497 = vmatpush1.msra.mxu0 1.0
      %2498 = vmatprep.subr.mxu0 0.0
      %2499 = vmatpush1.msra.mxu0 1.0
      %2500 = vmatprep.subr.mxu0 0.0
      %2501 = vmatpush1.msra.mxu0 1.0
      %2502 = vmatprep.subr.mxu0 0.0
      %2503 = vmatpush1.msra.mxu0 1.0
      %2504 = vmatprep.subr.mxu0 0.0
      %2505 = vmatpush1.msra.mxu0 0.0
      %2506 = vmatprep.subr.mxu0 0.0
      %2507 = vmatpush1.msra.mxu0 0.0
      %2508 = vmatprep.subr.mxu0 0.0
      %2509 = vmatpush1.msra.mxu0 0.0
      %2510 = vmatprep.subr.mxu0 0.0
      %2511 = vmatpush1.msra.mxu0 0.0
      %2512 = vmatprep.subr.mxu0 0.0
      %2513 = vmatpush1.msra.mxu0 0.0
      %2514 = vmatprep.subr.mxu0 0.0
      %2515 = vmatpush1.msra.mxu0 0.0
      %2516 = vmatprep.subr.mxu0 0.0
      %2517 = vmatpush1.msra.mxu0 0.0
      %2518 = vmatprep.subr.mxu0 0.0
      %2519 = vmatpush1.msra.mxu0 0.0
      %2520 = vmatprep.subr.mxu0 0.0
      %2521 = vmatpush1.msra.mxu0 0.0
      %2522 = vmatprep.subr.mxu0 0.0
      %2523 = vmatpush1.msra.mxu0 0.0
      %2524 = vmatprep.subr.mxu0 0.0
      %2525 = vmatpush1.msra.mxu0 0.0
      %2526 = vmatprep.subr.mxu0 0.0
      %2527 = vmatpush1.msra.mxu0 0.0
      %2528 = vmatprep.subr.mxu0 0.0
      %2529 = vmatpush1.msra.mxu0 0.0
      %2530 = vmatprep.subr.mxu0 0.0
      %2531 = vmatpush1.msra.mxu0 0.0
      %2532 = vmatprep.subr.mxu0 0.0
      %2533 = vmatpush1.msra.mxu0 0.0
      %2534 = vmatprep.subr.mxu0 0.0
      %2535 = vmatpush1.msra.mxu0 0.0
      %2536 = vmatprep.mubr.f32.mxu0 0.0
      %2537 = vmatmul.mubr.f32.gmra.mrb[0].mxu0 %v2456
      %v2538 = vpop.f32.mrb[0].mxu0
      %v2539 = vadd.f32 0.0, %v2538
      %v2540 = vpop.f32.mrb[0].mxu0
      %2541 = vmatprep.mubr.f32.mxu0 0.0
      %2542 = vmatmul.mubr.f32.gmra.mrb[0].mxu0 %v2457
      %v2543 = vpop.f32.mrb[0].mxu0
      %v2544 = vadd.f32 0.0, %v2543
      %v2545 = vpop.f32.mrb[0].mxu0
      %2546 = vmatprep.mubr.f32.mxu0 0.0
      %2547 = vmatmul.mubr.f32.gmra.mrb[0].mxu0 %v2458
      %v2548 = vpop.f32.mrb[0].mxu0
      %v2549 = vadd.f32 0.0, %v2548
      %v2550 = vpop.f32.mrb[0].mxu0
      %2551 = vmatprep.mubr.f32.mxu0 0.0
      %2552 = vmatmul.mubr.f32.gmra.mrb[0].mxu0 %v2459
      %v2553 = vpop.f32.mrb[0].mxu0
      %v2554 = vadd.f32 0.0, %v2553
      %v2555 = vpop.f32.mrb[0].mxu0
      %2556 = vmatprep.mubr.f32.mxu0 0.0
      %2557 = vmatmul.mubr.f32.gmra.mrb[0].mxu0 %v2460
      %v2558 = vpop.f32.mrb[0].mxu0
      %v2559 = vadd.f32 0.0, %v2558
      %v2560 = vpop.f32.mrb[0].mxu0
      %2561 = vmatprep.mubr.f32.mxu0 0.0
      %2562 = vmatmul.mubr.f32.gmra.mrb[0].mxu0 %v2461
      %v2563 = vpop.f32.mrb[0].mxu0
      %v2564 = vadd.f32 0.0, %v2563
      %v2565 = vpop.f32.mrb[0].mxu0
      %2566 = vmatprep.mubr.f32.mxu0 0.0
      %2567 = vmatmul.mubr.f32.gmra.mrb[0].mxu0 %v2462
      %v2568 = vpop.f32.mrb[0].mxu0
      %v2569 = vadd.f32 0.0, %v2568
      %v2570 = vpop.f32.mrb[0].mxu0
      %2571 = vmatprep.mubr.f32.mxu0 0.0
      %2572 = vmatmul.mubr.f32.gmra.mrb[0].mxu0 %v2463
      %v2573 = vpop.f32.mrb[0].mxu0
      %v2574 = vadd.f32 0.0, %v2573
      %v2575 = vpop.f32.mrb[0].mxu0
      %2576 = vmatprep.mubr.f32.mxu0 0.0
      %2577 = vmatmul.mubr.f32.gmra.mrb[0].mxu0 %v2464
      %v2578 = vpop.f32.mrb[0].mxu0
      %v2579 = vadd.f32 0.0, %v2578
      %v2580 = vpop.f32.mrb[0].mxu0
      %2581 = vmatprep.mubr.f32.mxu0 0.0
      %2582 = vmatmul.mubr.f32.gmra.mrb[0].mxu0 %v2465
      %v2583 = vpop.f32.mrb[0].mxu0
      %v2584 = vadd.f32 0.0, %v2583
      %v2585 = vpop.f32.mrb[0].mxu0
      %2586 = vmatprep.mubr.f32.mxu0 0.0
      %2587 = vmatmul.mubr.f32.gmra.mrb[0].mxu0 %v2466
      %v2588 = vpop.f32.mrb[0].mxu0
      %v2589 = vadd.f32 0.0, %v2588
      %v2590 = vpop.f32.mrb[0].mxu0
      %2591 = vmatprep.mubr.f32.mxu0 0.0
      %2592 = vmatmul.mubr.f32.gmra.mrb[0].mxu0 %v2467
      %v2593 = vpop.f32.mrb[0].mxu0
      %v2594 = vadd.f32 0.0, %v2593
      %v2595 = vpop.f32.mrb[0].mxu0
      %2596 = vmatprep.mubr.f32.mxu0 0.0
      %2597 = vmatmul.mubr.f32.gmra.mrb[0].mxu0 %v2468
      %v2598 = vpop.f32.mrb[0].mxu0
      %v2599 = vadd.f32 0.0, %v2598
      %v2600 = vpop.f32.mrb[0].mxu0
      %2601 = vmatprep.mubr.f32.mxu0 0.0
      %2602 = vmatmul.mubr.f32.gmra.mrb[0].mxu0 %v2469
      %v2603 = vpop.f32.mrb[0].mxu0
      %v2604 = vadd.f32 0.0, %v2603
      %v2605 = vpop.f32.mrb[0].mxu0
      %2606 = vmatprep.mubr.f32.mxu0 0.0
      %2607 = vmatmul.mubr.f32.gmra.mrb[0].mxu0 %v2470
      %v2608 = vpop.f32.mrb[0].mxu0
      %v2609 = vadd.f32 0.0, %v2608
      %v2610 = vpop.f32.mrb[0].mxu0
      %2611 = vmatprep.mubr.f32.mxu0 0.0
      %2612 = vmatmul.mubr.f32.gmra.mrb[0].mxu0 %v2471
      %v2613 = vpop.f32.mrb[0].mxu0
      %v2614 = vadd.f32 0.0, %v2613
      %v2615 = vpop.f32.mrb[0].mxu0
      %2616 = vdwg.mxu0
      %2617 = vmatprep.subr.mxu0 0.0
      %2618 = vmatpush1.msra.mxu0 %v952
      %2619 = vmatprep.subr.mxu0 0.0
      %2620 = vmatpush1.msra.mxu0 %v954
      %2621 = vmatprep.subr.mxu0 0.0
      %2622 = vmatpush1.msra.mxu0 %v956
      %2623 = vmatprep.subr.mxu0 0.0
      %2624 = vmatpush1.msra.mxu0 %v958
      %2625 = vmatprep.subr.mxu0 0.0
      %2626 = vmatpush1.msra.mxu0 %v960
      %2627 = vmatprep.subr.mxu0 0.0
      %2628 = vmatpush1.msra.mxu0 %v962
      %2629 = vmatprep.subr.mxu0 0.0
      %2630 = vmatpush1.msra.mxu0 %v964
      %2631 = vmatprep.subr.mxu0 0.0
      %2632 = vmatpush1.msra.mxu0 %v966
      %2633 = vmatprep.subr.mxu0 0.0
      %2634 = vmatpush1.msra.mxu0 %v968
      %2635 = vmatprep.subr.mxu0 0.0
      %2636 = vmatpush1.msra.mxu0 %v970
      %2637 = vmatprep.subr.mxu0 0.0
      %2638 = vmatpush1.msra.mxu0 %v972
      %2639 = vmatprep.subr.mxu0 0.0
      %2640 = vmatpush1.msra.mxu0 %v974
      %2641 = vmatprep.subr.mxu0 0.0
      %2642 = vmatpush1.msra.mxu0 %v976
      %2643 = vmatprep.subr.mxu0 0.0
      %2644 = vmatpush1.msra.mxu0 %v978
      %2645 = vmatprep.subr.mxu0 0.0
      %2646 = vmatpush1.msra.mxu0 %v980
      %2647 = vmatprep.subr.mxu0 0.0
      %2648 = vmatpush1.msra.mxu0 %v982
      %2649 = vmatprep.subr.mxu0 0.0
      %2650 = vmatpush1.msra.mxu0 0.0
      %2651 = vmatprep.subr.mxu0 0.0
      %2652 = vmatpush1.msra.mxu0 0.0
      %2653 = vmatprep.subr.mxu0 0.0
      %2654 = vmatpush1.msra.mxu0 0.0
      %2655 = vmatprep.subr.mxu0 0.0
      %2656 = vmatpush1.msra.mxu0 0.0
      %2657 = vmatprep.subr.mxu0 0.0
      %2658 = vmatpush1.msra.mxu0 0.0
      %2659 = vmatprep.subr.mxu0 0.0
      %2660 = vmatpush1.msra.mxu0 0.0
      %2661 = vmatprep.subr.mxu0 0.0
      %2662 = vmatpush1.msra.mxu0 0.0
      %2663 = vmatprep.subr.mxu0 0.0
      %2664 = vmatpush1.msra.mxu0 0.0
      %2665 = vmatprep.subr.mxu0 0.0
      %2666 = vmatpush1.msra.mxu0 0.0
      %2667 = vmatprep.subr.mxu0 0.0
      %2668 = vmatpush1.msra.mxu0 0.0
      %2669 = vmatprep.subr.mxu0 0.0
      %2670 = vmatpush1.msra.mxu0 0.0
      %2671 = vmatprep.subr.mxu0 0.0
      %2672 = vmatpush1.msra.mxu0 0.0
      %2673 = vmatprep.subr.mxu0 0.0
      %2674 = vmatpush1.msra.mxu0 0.0
      %2675 = vmatprep.subr.mxu0 0.0
      %2676 = vmatpush1.msra.mxu0 0.0
      %2677 = vmatprep.subr.mxu0 0.0
      %2678 = vmatpush1.msra.mxu0 0.0
      %2679 = vmatprep.subr.mxu0 0.0
      %2680 = vmatpush1.msra.mxu0 0.0
      %2681 = vmatprep.mubr.f32.mxu0 0.0
      %2682 = vmatmul.mubr.f32.gmra.mrb[0].mxu0 %v691
      %v2683 = vpop.f32.mrb[0].mxu0
      %v2684 = vadd.f32 0.0, %v2683
      %v2685 = vpop.f32.mrb[0].mxu0
      %2686 = vmatprep.mubr.f32.mxu0 0.0
      %2687 = vmatmul.mubr.f32.gmra.mrb[0].mxu0 %v692
      %v2688 = vpop.f32.mrb[0].mxu0
      %v2689 = vadd.f32 0.0, %v2688
      %v2690 = vpop.f32.mrb[0].mxu0
      %2691 = vmatprep.mubr.f32.mxu0 0.0
      %2692 = vmatmul.mubr.f32.gmra.mrb[0].mxu0 %v693
      %v2693 = vpop.f32.mrb[0].mxu0
      %v2694 = vadd.f32 0.0, %v2693
      %v2695 = vpop.f32.mrb[0].mxu0
      %2696 = vmatprep.mubr.f32.mxu0 0.0
      %2697 = vmatmul.mubr.f32.gmra.mrb[0].mxu0 %v694
      %v2698 = vpop.f32.mrb[0].mxu0
      %v2699 = vadd.f32 0.0, %v2698
      %v2700 = vpop.f32.mrb[0].mxu0
      %2701 = vmatprep.mubr.f32.mxu0 0.0
      %2702 = vmatmul.mubr.f32.gmra.mrb[0].mxu0 %v695
      %v2703 = vpop.f32.mrb[0].mxu0
      %v2704 = vadd.f32 0.0, %v2703
      %v2705 = vpop.f32.mrb[0].mxu0
      %2706 = vmatprep.mubr.f32.mxu0 0.0
      %2707 = vmatmul.mubr.f32.gmra.mrb[0].mxu0 %v696
      %v2708 = vpop.f32.mrb[0].mxu0
      %v2709 = vadd.f32 0.0, %v2708
      %v2710 = vpop.f32.mrb[0].mxu0
      %2711 = vmatprep.mubr.f32.mxu0 0.0
      %2712 = vmatmul.mubr.f32.gmra.mrb[0].mxu0 %v697
      %v2713 = vpop.f32.mrb[0].mxu0
      %v2714 = vadd.f32 0.0, %v2713
      %v2715 = vpop.f32.mrb[0].mxu0
      %2716 = vmatprep.mubr.f32.mxu0 0.0
      %2717 = vmatmul.mubr.f32.gmra.mrb[0].mxu0 %v698
      %v2718 = vpop.f32.mrb[0].mxu0
      %v2719 = vadd.f32 0.0, %v2718
      %v2720 = vpop.f32.mrb[0].mxu0
      %2721 = vmatprep.mubr.f32.mxu0 0.0
      %2722 = vmatmul.mubr.f32.gmra.mrb[0].mxu0 %v699
      %v2723 = vpop.f32.mrb[0].mxu0
      %v2724 = vadd.f32 0.0, %v2723
      %v2725 = vpop.f32.mrb[0].mxu0
      %2726 = vmatprep.mubr.f32.mxu0 0.0
      %2727 = vmatmul.mubr.f32.gmra.mrb[0].mxu0 %v700
      %v2728 = vpop.f32.mrb[0].mxu0
      %v2729 = vadd.f32 0.0, %v2728
      %v2730 = vpop.f32.mrb[0].mxu0
      %2731 = vmatprep.mubr.f32.mxu0 0.0
      %2732 = vmatmul.mubr.f32.gmra.mrb[0].mxu0 %v701
      %v2733 = vpop.f32.mrb[0].mxu0
      %v2734 = vadd.f32 0.0, %v2733
      %v2735 = vpop.f32.mrb[0].mxu0
      %2736 = vmatprep.mubr.f32.mxu0 0.0
      %2737 = vmatmul.mubr.f32.gmra.mrb[0].mxu0 %v702
      %v2738 = vpop.f32.mrb[0].mxu0
      %v2739 = vadd.f32 0.0, %v2738
      %v2740 = vpop.f32.mrb[0].mxu0
      %2741 = vmatprep.mubr.f32.mxu0 0.0
      %2742 = vmatmul.mubr.f32.gmra.mrb[0].mxu0 %v703
      %v2743 = vpop.f32.mrb[0].mxu0
      %v2744 = vadd.f32 0.0, %v2743
      %v2745 = vpop.f32.mrb[0].mxu0
      %2746 = vmatprep.mubr.f32.mxu0 0.0
      %2747 = vmatmul.mubr.f32.gmra.mrb[0].mxu0 %v704
      %v2748 = vpop.f32.mrb[0].mxu0
      %v2749 = vadd.f32 0.0, %v2748
      %v2750 = vpop.f32.mrb[0].mxu0
      %2751 = vmatprep.mubr.f32.mxu0 0.0
      %2752 = vmatmul.mubr.f32.gmra.mrb[0].mxu0 %v705
      %v2753 = vpop.f32.mrb[0].mxu0
      %v2754 = vadd.f32 0.0, %v2753
      %v2755 = vpop.f32.mrb[0].mxu0
      %2756 = vmatprep.mubr.f32.mxu0 0.0
      %2757 = vmatmul.mubr.f32.gmra.mrb[0].mxu0 %v706
      %v2758 = vpop.f32.mrb[0].mxu0
      %v2759 = vadd.f32 0.0, %v2758
      %v2760 = vpop.f32.mrb[0].mxu0
      %2761 = vdwg.mxu0
      %v2762 = vmul.f32 %v2684, 0.5
      %v2763 = vmul.f32 %v2689, 0.5
      %v2764 = vmul.f32 %v2694, 0.5
      %v2765 = vmul.f32 %v2699, 0.5
      %v2766 = vmul.f32 %v2704, 0.5
      %v2767 = vmul.f32 %v2709, 0.5
      %v2768 = vmul.f32 %v2714, 0.5
      %v2769 = vmul.f32 %v2719, 0.5
      %v2770 = vmul.f32 %v2724, 0.5
      %v2771 = vmul.f32 %v2729, 0.5
      %v2772 = vmul.f32 %v2734, 0.5
      %v2773 = vmul.f32 %v2739, 0.5
      %v2774 = vmul.f32 %v2744, 0.5
      %v2775 = vmul.f32 %v2749, 0.5
      %v2776 = vmul.f32 %v2754, 0.5
      %v2777 = vmul.f32 %v2759, 0.5
      %v2778 = vceil.f32 %v2762
      %v2779 = vceil.f32 %v2763
      %v2780 = vceil.f32 %v2764
      %v2781 = vceil.f32 %v2765
      %v2782 = vceil.f32 %v2766
      %v2783 = vceil.f32 %v2767
      %v2784 = vceil.f32 %v2768
      %v2785 = vceil.f32 %v2769
      %v2786 = vceil.f32 %v2770
      %v2787 = vceil.f32 %v2771
      %v2788 = vceil.f32 %v2772
      %v2789 = vceil.f32 %v2773
      %v2790 = vceil.f32 %v2774
      %v2791 = vceil.f32 %v2775
      %v2792 = vceil.f32 %v2776
      %v2793 = vceil.f32 %v2777
      %vm2794 = vcmp.lt.f32.partialorder %v2539, %v2778
      %vm2795 = vcmp.lt.f32.partialorder %v2544, %v2779
      %vm2796 = vcmp.lt.f32.partialorder %v2549, %v2780
      %vm2797 = vcmp.lt.f32.partialorder %v2554, %v2781
      %vm2798 = vcmp.lt.f32.partialorder %v2559, %v2782
      %vm2799 = vcmp.lt.f32.partialorder %v2564, %v2783
      %vm2800 = vcmp.lt.f32.partialorder %v2569, %v2784
      %vm2801 = vcmp.lt.f32.partialorder %v2574, %v2785
      %vm2802 = vcmp.lt.f32.partialorder %v2579, %v2786
      %vm2803 = vcmp.lt.f32.partialorder %v2584, %v2787
      %vm2804 = vcmp.lt.f32.partialorder %v2589, %v2788
      %vm2805 = vcmp.lt.f32.partialorder %v2594, %v2789
      %vm2806 = vcmp.lt.f32.partialorder %v2599, %v2790
      %vm2807 = vcmp.lt.f32.partialorder %v2604, %v2791
      %vm2808 = vcmp.lt.f32.partialorder %v2609, %v2792
      %vm2809 = vcmp.lt.f32.partialorder %v2614, %v2793
      %v2810 = vsel %vm2794, 1, 0
      %v2811 = vsel %vm2795, 1, 0
      %v2812 = vsel %vm2796, 1, 0
      %v2813 = vsel %vm2797, 1, 0
      %v2814 = vsel %vm2798, 1, 0
      %v2815 = vsel %vm2799, 1, 0
      %v2816 = vsel %vm2800, 1, 0
      %v2817 = vsel %vm2801, 1, 0
      %v2818 = vsel %vm2802, 1, 0
      %v2819 = vsel %vm2803, 1, 0
      %v2820 = vsel %vm2804, 1, 0
      %v2821 = vsel %vm2805, 1, 0
      %v2822 = vsel %vm2806, 1, 0
      %v2823 = vsel %vm2807, 1, 0
      %v2824 = vsel %vm2808, 1, 0
      %v2825 = vsel %vm2809, 1, 0
      %v2826 = vcvt.s32.f32 %v2810
      %v2827 = vcvt.s32.f32 %v2811
      %v2828 = vcvt.s32.f32 %v2812
      %v2829 = vcvt.s32.f32 %v2813
      %v2830 = vcvt.s32.f32 %v2814
      %v2831 = vcvt.s32.f32 %v2815
      %v2832 = vcvt.s32.f32 %v2816
      %v2833 = vcvt.s32.f32 %v2817
      %v2834 = vcvt.s32.f32 %v2818
      %v2835 = vcvt.s32.f32 %v2819
      %v2836 = vcvt.s32.f32 %v2820
      %v2837 = vcvt.s32.f32 %v2821
      %v2838 = vcvt.s32.f32 %v2822
      %v2839 = vcvt.s32.f32 %v2823
      %v2840 = vcvt.s32.f32 %v2824
      %v2841 = vcvt.s32.f32 %v2825
      %2858 = vrot.lane.b32.xlu0 %v2826, 1
      %v2859 = vpop.permute.xlu0 %2858
      %2860 = vrot.lane.b32.xlu0 %v2827, 1
      %v2861 = vpop.permute.xlu0 %2860
      %2862 = vrot.lane.b32.xlu0 %v2828, 1
      %v2863 = vpop.permute.xlu0 %2862
      %2864 = vrot.lane.b32.xlu0 %v2829, 1
      %v2865 = vpop.permute.xlu0 %2864
      %2866 = vrot.lane.b32.xlu0 %v2830, 1
      %v2867 = vpop.permute.xlu0 %2866
      %2868 = vrot.lane.b32.xlu0 %v2831, 1
      %v2869 = vpop.permute.xlu0 %2868
      %2870 = vrot.lane.b32.xlu0 %v2832, 1
      %v2871 = vpop.permute.xlu0 %2870
      %2872 = vrot.lane.b32.xlu0 %v2833, 1
      %v2873 = vpop.permute.xlu0 %2872
      %2874 = vrot.lane.b32.xlu0 %v2834, 1
      %v2875 = vpop.permute.xlu0 %2874
      %2876 = vrot.lane.b32.xlu0 %v2835, 1
      %v2877 = vpop.permute.xlu0 %2876
      %2878 = vrot.lane.b32.xlu0 %v2836, 1
      %v2879 = vpop.permute.xlu0 %2878
      %2880 = vrot.lane.b32.xlu0 %v2837, 1
      %v2881 = vpop.permute.xlu0 %2880
      %2882 = vrot.lane.b32.xlu0 %v2838, 1
      %v2883 = vpop.permute.xlu0 %2882
      %2884 = vrot.lane.b32.xlu0 %v2839, 1
      %v2885 = vpop.permute.xlu0 %2884
      %2886 = vrot.lane.b32.xlu0 %v2840, 1
      %v2887 = vpop.permute.xlu0 %2886
      %2888 = vrot.lane.b32.xlu0 %v2841, 1
      %v2889 = vpop.permute.xlu0 %2888
      %v2906 = vmul.f32 %v431, %v2859
      %v2907 = vmul.f32 %v432, %v2861
      %v2908 = vmul.f32 %v433, %v2863
      %v2909 = vmul.f32 %v434, %v2865
      %v2910 = vmul.f32 %v435, %v2867
      %v2911 = vmul.f32 %v436, %v2869
      %v2912 = vmul.f32 %v437, %v2871
      %v2913 = vmul.f32 %v438, %v2873
      %v2914 = vmul.f32 %v439, %v2875
      %v2915 = vmul.f32 %v440, %v2877
      %v2916 = vmul.f32 %v441, %v2879
      %v2917 = vmul.f32 %v442, %v2881
      %v2918 = vmul.f32 %v443, %v2883
      %v2919 = vmul.f32 %v444, %v2885
      %v2920 = vmul.f32 %v445, %v2887
      %v2921 = vmul.f32 %v446, %v2889
      %2938 = vrot.lane.b32.xlu0 %v2906, 127
      %v2939 = vpop.permute.xlu0 %2938
      %2940 = vrot.lane.b32.xlu0 %v2907, 127
      %v2941 = vpop.permute.xlu0 %2940
      %2942 = vrot.lane.b32.xlu0 %v2908, 127
      %v2943 = vpop.permute.xlu0 %2942
      %2944 = vrot.lane.b32.xlu0 %v2909, 127
      %v2945 = vpop.permute.xlu0 %2944
      %2946 = vrot.lane.b32.xlu0 %v2910, 127
      %v2947 = vpop.permute.xlu0 %2946
      %2948 = vrot.lane.b32.xlu0 %v2911, 127
      %v2949 = vpop.permute.xlu0 %2948
      %2950 = vrot.lane.b32.xlu0 %v2912, 127
      %v2951 = vpop.permute.xlu0 %2950
      %2952 = vrot.lane.b32.xlu0 %v2913, 127
      %v2953 = vpop.permute.xlu0 %2952
      %2954 = vrot.lane.b32.xlu0 %v2914, 127
      %v2955 = vpop.permute.xlu0 %2954
      %2956 = vrot.lane.b32.xlu0 %v2915, 127
      %v2957 = vpop.permute.xlu0 %2956
      %2958 = vrot.lane.b32.xlu0 %v2916, 127
      %v2959 = vpop.permute.xlu0 %2958
      %2960 = vrot.lane.b32.xlu0 %v2917, 127
      %v2961 = vpop.permute.xlu0 %2960
      %2962 = vrot.lane.b32.xlu0 %v2918, 127
      %v2963 = vpop.permute.xlu0 %2962
      %2964 = vrot.lane.b32.xlu0 %v2919, 127
      %v2965 = vpop.permute.xlu0 %2964
      %2966 = vrot.lane.b32.xlu0 %v2920, 127
      %v2967 = vpop.permute.xlu0 %2966
      %2968 = vrot.lane.b32.xlu0 %v2921, 127
      %v2969 = vpop.permute.xlu0 %2968
      %v2986 = vmul.f32 %v2084, %v2939
      %v2987 = vmul.f32 %v2085, %v2941
      %v2988 = vmul.f32 %v2086, %v2943
      %v2989 = vmul.f32 %v2087, %v2945
      %v2990 = vmul.f32 %v2088, %v2947
      %v2991 = vmul.f32 %v2089, %v2949
      %v2992 = vmul.f32 %v2090, %v2951
      %v2993 = vmul.f32 %v2091, %v2953
      %v2994 = vmul.f32 %v2092, %v2955
      %v2995 = vmul.f32 %v2093, %v2957
      %v2996 = vmul.f32 %v2094, %v2959
      %v2997 = vmul.f32 %v2095, %v2961
      %v2998 = vmul.f32 %v2096, %v2963
      %v2999 = vmul.f32 %v2097, %v2965
      %v3000 = vmul.f32 %v2098, %v2967
      %v3001 = vmul.f32 %v2099, %v2969
      %3003 = vset.pattern.permute.xlu0 0
      %3004 = vperm.xlu0 %3003, %v2986
      %v3005 = vpop.permute.xlu0 %3004
      %3008 = vset.pattern.permute.xlu0 0
      %3009 = vperm.xlu0 %3008, %v2987
      %v3010 = vpop.permute.xlu0 %3009
      %3013 = vset.pattern.permute.xlu0 0
      %3014 = vperm.xlu0 %3013, %v2988
      %v3015 = vpop.permute.xlu0 %3014
      %3018 = vset.pattern.permute.xlu0 0
      %3019 = vperm.xlu0 %3018, %v2989
      %v3020 = vpop.permute.xlu0 %3019
      %3023 = vset.pattern.permute.xlu0 0
      %3024 = vperm.xlu0 %3023, %v2990
      %v3025 = vpop.permute.xlu0 %3024
      %3028 = vset.pattern.permute.xlu0 0
      %3029 = vperm.xlu0 %3028, %v2991
      %v3030 = vpop.permute.xlu0 %3029
      %3033 = vset.pattern.permute.xlu0 0
      %3034 = vperm.xlu0 %3033, %v2992
      %v3035 = vpop.permute.xlu0 %3034
      %3038 = vset.pattern.permute.xlu0 0
      %3039 = vperm.xlu0 %3038, %v2993
      %v3040 = vpop.permute.xlu0 %3039
      %3043 = vset.pattern.permute.xlu0 0
      %3044 = vperm.xlu0 %3043, %v2994
      %v3045 = vpop.permute.xlu0 %3044
      %3048 = vset.pattern.permute.xlu0 0
      %3049 = vperm.xlu0 %3048, %v2995
      %v3050 = vpop.permute.xlu0 %3049
      %3053 = vset.pattern.permute.xlu0 0
      %3054 = vperm.xlu0 %3053, %v2996
      %v3055 = vpop.permute.xlu0 %3054
      %3058 = vset.pattern.permute.xlu0 0
      %3059 = vperm.xlu0 %3058, %v2997
      %v3060 = vpop.permute.xlu0 %3059
      %3063 = vset.pattern.permute.xlu0 0
      %3064 = vperm.xlu0 %3063, %v2998
      %v3065 = vpop.permute.xlu0 %3064
      %3068 = vset.pattern.permute.xlu0 0
      %3069 = vperm.xlu0 %3068, %v2999
      %v3070 = vpop.permute.xlu0 %3069
      %3073 = vset.pattern.permute.xlu0 0
      %3074 = vperm.xlu0 %3073, %v3000
      %v3075 = vpop.permute.xlu0 %3074
      %3078 = vset.pattern.permute.xlu0 0
      %3079 = vperm.xlu0 %3078, %v3001
      %v3080 = vpop.permute.xlu0 %3079
      %v3082 = vmul.f32 %v1501, %v3005
      %v3083 = vmul.f32 %v1502, %v3010
      %v3084 = vmul.f32 %v1503, %v3015
      %v3085 = vmul.f32 %v1504, %v3020
      %v3086 = vmul.f32 %v1505, %v3025
      %v3087 = vmul.f32 %v1506, %v3030
      %v3088 = vmul.f32 %v1507, %v3035
      %v3089 = vmul.f32 %v1508, %v3040
      %v3090 = vmul.f32 %v1509, %v3045
      %v3091 = vmul.f32 %v1510, %v3050
      %v3092 = vmul.f32 %v1511, %v3055
      %v3093 = vmul.f32 %v1512, %v3060
      %v3094 = vmul.f32 %v1513, %v3065
      %v3095 = vmul.f32 %v1514, %v3070
      %v3096 = vmul.f32 %v1515, %v3075
      %v3097 = vmul.f32 %v1516, %v3080
      %3098 = vmatprep.subr.mxu0 0.0
      %3099 = vmatpush1.msra.mxu0 %v2939
      %3100 = vmatprep.subr.mxu0 0.0
      %3101 = vmatpush1.msra.mxu0 %v2941
      %3102 = vmatprep.subr.mxu0 0.0
      %3103 = vmatpush1.msra.mxu0 %v2943
      %3104 = vmatprep.subr.mxu0 0.0
      %3105 = vmatpush1.msra.mxu0 %v2945
      %3106 = vmatprep.subr.mxu0 0.0
      %3107 = vmatpush1.msra.mxu0 %v2947
      %3108 = vmatprep.subr.mxu0 0.0
      %3109 = vmatpush1.msra.mxu0 %v2949
      %3110 = vmatprep.subr.mxu0 0.0
      %3111 = vmatpush1.msra.mxu0 %v2951
      %3112 = vmatprep.subr.mxu0 0.0
      %3113 = vmatpush1.msra.mxu0 %v2953
      %3114 = vmatprep.subr.mxu0 0.0
      %3115 = vmatpush1.msra.mxu0 %v2955
      %3116 = vmatprep.subr.mxu0 0.0
      %3117 = vmatpush1.msra.mxu0 %v2957
      %3118 = vmatprep.subr.mxu0 0.0
      %3119 = vmatpush1.msra.mxu0 %v2959
      %3120 = vmatprep.subr.mxu0 0.0
      %3121 = vmatpush1.msra.mxu0 %v2961
      %3122 = vmatprep.subr.mxu0 0.0
      %3123 = vmatpush1.msra.mxu0 %v2963
      %3124 = vmatprep.subr.mxu0 0.0
      %3125 = vmatpush1.msra.mxu0 %v2965
      %3126 = vmatprep.subr.mxu0 0.0
      %3127 = vmatpush1.msra.mxu0 %v2967
      %3128 = vmatprep.subr.mxu0 0.0
      %3129 = vmatpush1.msra.mxu0 %v2969
      %3130 = vmatprep.subr.mxu0 0.0
      %3131 = vmatpush1.msra.mxu0 0.0
      %3132 = vmatprep.subr.mxu0 0.0
      %3133 = vmatpush1.msra.mxu0 0.0
      %3134 = vmatprep.subr.mxu0 0.0
      %3135 = vmatpush1.msra.mxu0 0.0
      %3136 = vmatprep.subr.mxu0 0.0
      %3137 = vmatpush1.msra.mxu0 0.0
      %3138 = vmatprep.subr.mxu0 0.0
      %3139 = vmatpush1.msra.mxu0 0.0
      %3140 = vmatprep.subr.mxu0 0.0
      %3141 = vmatpush1.msra.mxu0 0.0
      %3142 = vmatprep.subr.mxu0 0.0
      %3143 = vmatpush1.msra.mxu0 0.0
      %3144 = vmatprep.subr.mxu0 0.0
      %3145 = vmatpush1.msra.mxu0 0.0
      %3146 = vmatprep.subr.mxu0 0.0
      %3147 = vmatpush1.msra.mxu0 0.0
      %3148 = vmatprep.subr.mxu0 0.0
      %3149 = vmatpush1.msra.mxu0 0.0
      %3150 = vmatprep.subr.mxu0 0.0
      %3151 = vmatpush1.msra.mxu0 0.0
      %3152 = vmatprep.subr.mxu0 0.0
      %3153 = vmatpush1.msra.mxu0 0.0
      %3154 = vmatprep.subr.mxu0 0.0
      %3155 = vmatpush1.msra.mxu0 0.0
      %3156 = vmatprep.subr.mxu0 0.0
      %3157 = vmatpush1.msra.mxu0 0.0
      %3158 = vmatprep.subr.mxu0 0.0
      %3159 = vmatpush1.msra.mxu0 0.0
      %3160 = vmatprep.subr.mxu0 0.0
      %3161 = vmatpush1.msra.mxu0 0.0
      %3162 = vmatprep.mubr.f32.mxu0 0.0
      %3163 = vmatmul.mubr.f32.gmra.mrb[0].mxu0 %v712
      %v3164 = vpop.f32.mrb[0].mxu0
      %v3165 = vadd.f32 0.0, %v3164
      %v3166 = vpop.f32.mrb[0].mxu0
      %3167 = vdwg.mxu0
      %vm3168 = vcmp.eq.f32.partialorder %v431, 0.0
      %vm3169 = vcmp.eq.f32.partialorder %v432, 0.0
      %vm3170 = vcmp.eq.f32.partialorder %v433, 0.0
      %vm3171 = vcmp.eq.f32.partialorder %v434, 0.0
      %vm3172 = vcmp.eq.f32.partialorder %v435, 0.0
      %vm3173 = vcmp.eq.f32.partialorder %v436, 0.0
      %vm3174 = vcmp.eq.f32.partialorder %v437, 0.0
      %vm3175 = vcmp.eq.f32.partialorder %v438, 0.0
      %vm3176 = vcmp.eq.f32.partialorder %v439, 0.0
      %vm3177 = vcmp.eq.f32.partialorder %v440, 0.0
      %vm3178 = vcmp.eq.f32.partialorder %v441, 0.0
      %vm3179 = vcmp.eq.f32.partialorder %v442, 0.0
      %vm3180 = vcmp.eq.f32.partialorder %v443, 0.0
      %vm3181 = vcmp.eq.f32.partialorder %v444, 0.0
      %vm3182 = vcmp.eq.f32.partialorder %v445, 0.0
      %vm3183 = vcmp.eq.f32.partialorder %v446, 0.0
      %v3184 = vsel %vm3168, %v2939, 0.0
      %v3185 = vsel %vm3169, %v2941, 0.0
      %v3186 = vsel %vm3170, %v2943, 0.0
      %v3187 = vsel %vm3171, %v2945, 0.0
      %v3188 = vsel %vm3172, %v2947, 0.0
      %v3189 = vsel %vm3173, %v2949, 0.0
      %v3190 = vsel %vm3174, %v2951, 0.0
      %v3191 = vsel %vm3175, %v2953, 0.0
      %v3192 = vsel %vm3176, %v2955, 0.0
      %v3193 = vsel %vm3177, %v2957, 0.0
      %v3194 = vsel %vm3178, %v2959, 0.0
      %v3195 = vsel %vm3179, %v2961, 0.0
      %v3196 = vsel %vm3180, %v2963, 0.0
      %v3197 = vsel %vm3181, %v2965, 0.0
      %v3198 = vsel %vm3182, %v2967, 0.0
      %v3199 = vsel %vm3183, %v2969, 0.0
      %vm3200 = vcmp.gt.f32.partialorder %v3184, 0.5
      %vm3201 = vcmp.gt.f32.partialorder %v3185, 0.5
      %vm3202 = vcmp.gt.f32.partialorder %v3186, 0.5
      %vm3203 = vcmp.gt.f32.partialorder %v3187, 0.5
      %vm3204 = vcmp.gt.f32.partialorder %v3188, 0.5
      %vm3205 = vcmp.gt.f32.partialorder %v3189, 0.5
      %vm3206 = vcmp.gt.f32.partialorder %v3190, 0.5
      %vm3207 = vcmp.gt.f32.partialorder %v3191, 0.5
      %vm3208 = vcmp.gt.f32.partialorder %v3192, 0.5
      %vm3209 = vcmp.gt.f32.partialorder %v3193, 0.5
      %vm3210 = vcmp.gt.f32.partialorder %v3194, 0.5
      %vm3211 = vcmp.gt.f32.partialorder %v3195, 0.5
      %vm3212 = vcmp.gt.f32.partialorder %v3196, 0.5
      %vm3213 = vcmp.gt.f32.partialorder %v3197, 0.5
      %vm3214 = vcmp.gt.f32.partialorder %v3198, 0.5
      %vm3215 = vcmp.gt.f32.partialorder %v3199, 0.5
      %v3216 = vsel %vm3200, 1, 0
      %v3217 = vsel %vm3201, 1, 0
      %v3218 = vsel %vm3202, 1, 0
      %v3219 = vsel %vm3203, 1, 0
      %v3220 = vsel %vm3204, 1, 0
      %v3221 = vsel %vm3205, 1, 0
      %v3222 = vsel %vm3206, 1, 0
      %v3223 = vsel %vm3207, 1, 0
      %v3224 = vsel %vm3208, 1, 0
      %v3225 = vsel %vm3209, 1, 0
      %v3226 = vsel %vm3210, 1, 0
      %v3227 = vsel %vm3211, 1, 0
      %v3228 = vsel %vm3212, 1, 0
      %v3229 = vsel %vm3213, 1, 0
      %v3230 = vsel %vm3214, 1, 0
      %v3231 = vsel %vm3215, 1, 0
      %3232 = vset.pattern.permute.xlu0 0
      %3233 = vperm.xlu0 %3232, %v3216
      %v3234 = vpop.permute.xlu0 %3233
      %3235 = vset.pattern.permute.xlu0 0
      %3236 = vperm.xlu0 %3235, %v3217
      %v3237 = vpop.permute.xlu0 %3236
      %3238 = vset.pattern.permute.xlu0 0
      %3239 = vperm.xlu0 %3238, %v3218
      %v3240 = vpop.permute.xlu0 %3239
      %3241 = vset.pattern.permute.xlu0 0
      %3242 = vperm.xlu0 %3241, %v3219
      %v3243 = vpop.permute.xlu0 %3242
      %3244 = vset.pattern.permute.xlu0 0
      %3245 = vperm.xlu0 %3244, %v3220
      %v3246 = vpop.permute.xlu0 %3245
      %3247 = vset.pattern.permute.xlu0 0
      %3248 = vperm.xlu0 %3247, %v3221
      %v3249 = vpop.permute.xlu0 %3248
      %3250 = vset.pattern.permute.xlu0 0
      %3251 = vperm.xlu0 %3250, %v3222
      %v3252 = vpop.permute.xlu0 %3251
      %3253 = vset.pattern.permute.xlu0 0
      %3254 = vperm.xlu0 %3253, %v3223
      %v3255 = vpop.permute.xlu0 %3254
      %3256 = vset.pattern.permute.xlu0 0
      %3257 = vperm.xlu0 %3256, %v3224
      %v3258 = vpop.permute.xlu0 %3257
      %3259 = vset.pattern.permute.xlu0 0
      %3260 = vperm.xlu0 %3259, %v3225
      %v3261 = vpop.permute.xlu0 %3260
      %3262 = vset.pattern.permute.xlu0 0
      %3263 = vperm.xlu0 %3262, %v3226
      %v3264 = vpop.permute.xlu0 %3263
      %3265 = vset.pattern.permute.xlu0 0
      %3266 = vperm.xlu0 %3265, %v3227
      %v3267 = vpop.permute.xlu0 %3266
      %3268 = vset.pattern.permute.xlu0 0
      %3269 = vperm.xlu0 %3268, %v3228
      %v3270 = vpop.permute.xlu0 %3269
      %3271 = vset.pattern.permute.xlu0 0
      %3272 = vperm.xlu0 %3271, %v3229
      %v3273 = vpop.permute.xlu0 %3272
      %3274 = vset.pattern.permute.xlu0 0
      %3275 = vperm.xlu0 %3274, %v3230
      %v3276 = vpop.permute.xlu0 %3275
      %3277 = vset.pattern.permute.xlu0 0
      %3278 = vperm.xlu0 %3277, %v3231
      %v3279 = vpop.permute.xlu0 %3278
      %vm3280 = vcmp.eq.s32.totalorder %v3234, 1
      %vm3281 = vcmp.eq.s32.totalorder %v3237, 1
      %vm3282 = vcmp.eq.s32.totalorder %v3240, 1
      %vm3283 = vcmp.eq.s32.totalorder %v3243, 1
      %vm3284 = vcmp.eq.s32.totalorder %v3246, 1
      %vm3285 = vcmp.eq.s32.totalorder %v3249, 1
      %vm3286 = vcmp.eq.s32.totalorder %v3252, 1
      %vm3287 = vcmp.eq.s32.totalorder %v3255, 1
      %vm3288 = vcmp.eq.s32.totalorder %v3258, 1
      %vm3289 = vcmp.eq.s32.totalorder %v3261, 1
      %vm3290 = vcmp.eq.s32.totalorder %v3264, 1
      %vm3291 = vcmp.eq.s32.totalorder %v3267, 1
      %vm3292 = vcmp.eq.s32.totalorder %v3270, 1
      %vm3293 = vcmp.eq.s32.totalorder %v3273, 1
      %vm3294 = vcmp.eq.s32.totalorder %v3276, 1
      %vm3295 = vcmp.eq.s32.totalorder %v3279, 1
      %v3296 = vsel %vm3280, %v3082, -1e+30
      %v3297 = vsel %vm3281, %v3083, -1e+30
      %v3298 = vsel %vm3282, %v3084, -1e+30
      %v3299 = vsel %vm3283, %v3085, -1e+30
      %v3300 = vsel %vm3284, %v3086, -1e+30
      %v3301 = vsel %vm3285, %v3087, -1e+30
      %v3302 = vsel %vm3286, %v3088, -1e+30
      %v3303 = vsel %vm3287, %v3089, -1e+30
      %v3304 = vsel %vm3288, %v3090, -1e+30
      %v3305 = vsel %vm3289, %v3091, -1e+30
      %v3306 = vsel %vm3290, %v3092, -1e+30
      %v3307 = vsel %vm3291, %v3093, -1e+30
      %v3308 = vsel %vm3292, %v3094, -1e+30
      %v3309 = vsel %vm3293, %v3095, -1e+30
      %v3310 = vsel %vm3294, %v3096, -1e+30
      %v3311 = vsel %vm3295, %v3097, -1e+30
      %v3312 = vsel %vm757, %v3296, -inf
      %v3313 = vsel %vm757, %v3297, -inf
      %v3314 = vsel %vm757, %v3298, -inf
      %v3315 = vsel %vm757, %v3299, -inf
      %v3316 = vsel %vm757, %v3300, -inf
      %v3317 = vmax.f32 %v3312, %v3316
      %v3318 = vsel %vm757, %v3301, -inf
      %v3319 = vmax.f32 %v3313, %v3318
      %v3320 = vsel %vm757, %v3302, -inf
      %v3321 = vmax.f32 %v3314, %v3320
      %v3322 = vsel %vm757, %v3303, -inf
      %v3323 = vmax.f32 %v3315, %v3322
      %v3324 = vsel %vm757, %v3304, -inf
      %v3325 = vmax.f32 %v3317, %v3324
      %v3326 = vsel %vm757, %v3305, -inf
      %v3327 = vmax.f32 %v3319, %v3326
      %v3328 = vsel %vm757, %v3306, -inf
      %v3329 = vmax.f32 %v3321, %v3328
      %v3330 = vsel %vm757, %v3307, -inf
      %v3331 = vmax.f32 %v3323, %v3330
      %v3332 = vsel %vm757, %v3308, -inf
      %v3333 = vmax.f32 %v3325, %v3332
      %v3334 = vsel %vm757, %v3309, -inf
      %v3335 = vmax.f32 %v3327, %v3334
      %v3336 = vsel %vm757, %v3310, -inf
      %v3337 = vmax.f32 %v3329, %v3336
      %v3338 = vsel %vm757, %v3311, -inf
      %v3339 = vmax.f32 %v3331, %v3338
      %v3340 = vmax.f32 %v3333, %v3335
      %v3341 = vmax.f32 %v3337, %v3339
      %v3342 = vmax.f32 %v3340, %v3341
      %v3343 = vrot.slane %v3342, 4
      %v3344 = vmax.f32 %v3342, %v3343
      %v3345 = vrot.slane %v3344, 2
      %v3346 = vmax.f32 %v3344, %v3345
      %v3347 = vrot.slane %v3346, 1
      %v3348 = vmax.f32 %v3346, %v3347
      %vm3349 = vcmp.gt.f32.partialorder %v3165, 0.5
      %v3350 = vsel %vm3349, 1, 0
      %3351 = vset.pattern.permute.xlu0 0
      %3352 = vperm.xlu0 %3351, %v3350
      %v3353 = vpop.permute.xlu0 %3352
      %vm3354 = vcmp.eq.s32.totalorder %v3353, 1
      %v3355 = vsel %vm3354, %v3348, 0.0
      %v3356 = vld [vmem:[#allocation2] sm:$0x1]
      %v3357 = vadd.f32 %v3356, %v3355
      %vm3358 = vcmask 253952
      %3359 = vst.msk [vmem:[#allocation2] sm:$0x1] %vm3358, %v3357
      %vm3360 = vcmp.eq.f32.partialorder %v431, 1.0
      %vm3361 = vcmp.eq.f32.partialorder %v432, 1.0
      %vm3362 = vcmp.eq.f32.partialorder %v433, 1.0
      %vm3363 = vcmp.eq.f32.partialorder %v434, 1.0
      %vm3364 = vcmp.eq.f32.partialorder %v435, 1.0
      %vm3365 = vcmp.eq.f32.partialorder %v436, 1.0
      %vm3366 = vcmp.eq.f32.partialorder %v437, 1.0
      %vm3367 = vcmp.eq.f32.partialorder %v438, 1.0
      %vm3368 = vcmp.eq.f32.partialorder %v439, 1.0
      %vm3369 = vcmp.eq.f32.partialorder %v440, 1.0
      %vm3370 = vcmp.eq.f32.partialorder %v441, 1.0
      %vm3371 = vcmp.eq.f32.partialorder %v442, 1.0
      %vm3372 = vcmp.eq.f32.partialorder %v443, 1.0
      %vm3373 = vcmp.eq.f32.partialorder %v444, 1.0
      %vm3374 = vcmp.eq.f32.partialorder %v445, 1.0
      %vm3375 = vcmp.eq.f32.partialorder %v446, 1.0
      %v3376 = vsel %vm3360, %v2939, 0.0
      %v3377 = vsel %vm3361, %v2941, 0.0
      %v3378 = vsel %vm3362, %v2943, 0.0
      %v3379 = vsel %vm3363, %v2945, 0.0
      %v3380 = vsel %vm3364, %v2947, 0.0
      %v3381 = vsel %vm3365, %v2949, 0.0
      %v3382 = vsel %vm3366, %v2951, 0.0
      %v3383 = vsel %vm3367, %v2953, 0.0
      %v3384 = vsel %vm3368, %v2955, 0.0
      %v3385 = vsel %vm3369, %v2957, 0.0
      %v3386 = vsel %vm3370, %v2959, 0.0
      %v3387 = vsel %vm3371, %v2961, 0.0
      %v3388 = vsel %vm3372, %v2963, 0.0
      %v3389 = vsel %vm3373, %v2965, 0.0
      %v3390 = vsel %vm3374, %v2967, 0.0
      %v3391 = vsel %vm3375, %v2969, 0.0
      %vm3392 = vcmp.gt.f32.partialorder %v3376, 0.5
      %vm3393 = vcmp.gt.f32.partialorder %v3377, 0.5
      %vm3394 = vcmp.gt.f32.partialorder %v3378, 0.5
      %vm3395 = vcmp.gt.f32.partialorder %v3379, 0.5
      %vm3396 = vcmp.gt.f32.partialorder %v3380, 0.5
      %vm3397 = vcmp.gt.f32.partialorder %v3381, 0.5
      %vm3398 = vcmp.gt.f32.partialorder %v3382, 0.5
      %vm3399 = vcmp.gt.f32.partialorder %v3383, 0.5
      %vm3400 = vcmp.gt.f32.partialorder %v3384, 0.5
      %vm3401 = vcmp.gt.f32.partialorder %v3385, 0.5
      %vm3402 = vcmp.gt.f32.partialorder %v3386, 0.5
      %vm3403 = vcmp.gt.f32.partialorder %v3387, 0.5
      %vm3404 = vcmp.gt.f32.partialorder %v3388, 0.5
      %vm3405 = vcmp.gt.f32.partialorder %v3389, 0.5
      %vm3406 = vcmp.gt.f32.partialorder %v3390, 0.5
      %vm3407 = vcmp.gt.f32.partialorder %v3391, 0.5
      %v3408 = vsel %vm3392, 1, 0
      %v3409 = vsel %vm3393, 1, 0
      %v3410 = vsel %vm3394, 1, 0
      %v3411 = vsel %vm3395, 1, 0
      %v3412 = vsel %vm3396, 1, 0
      %v3413 = vsel %vm3397, 1, 0
      %v3414 = vsel %vm3398, 1, 0
      %v3415 = vsel %vm3399, 1, 0
      %v3416 = vsel %vm3400, 1, 0
      %v3417 = vsel %vm3401, 1, 0
      %v3418 = vsel %vm3402, 1, 0
      %v3419 = vsel %vm3403, 1, 0
      %v3420 = vsel %vm3404, 1, 0
      %v3421 = vsel %vm3405, 1, 0
      %v3422 = vsel %vm3406, 1, 0
      %v3423 = vsel %vm3407, 1, 0
      %3424 = vset.pattern.permute.xlu0 0
      %3425 = vperm.xlu0 %3424, %v3408
      %v3426 = vpop.permute.xlu0 %3425
      %3427 = vset.pattern.permute.xlu0 0
      %3428 = vperm.xlu0 %3427, %v3409
      %v3429 = vpop.permute.xlu0 %3428
      %3430 = vset.pattern.permute.xlu0 0
      %3431 = vperm.xlu0 %3430, %v3410
      %v3432 = vpop.permute.xlu0 %3431
      %3433 = vset.pattern.permute.xlu0 0
      %3434 = vperm.xlu0 %3433, %v3411
      %v3435 = vpop.permute.xlu0 %3434
      %3436 = vset.pattern.permute.xlu0 0
      %3437 = vperm.xlu0 %3436, %v3412
      %v3438 = vpop.permute.xlu0 %3437
      %3439 = vset.pattern.permute.xlu0 0
      %3440 = vperm.xlu0 %3439, %v3413
      %v3441 = vpop.permute.xlu0 %3440
      %3442 = vset.pattern.permute.xlu0 0
      %3443 = vperm.xlu0 %3442, %v3414
      %v3444 = vpop.permute.xlu0 %3443
      %3445 = vset.pattern.permute.xlu0 0
      %3446 = vperm.xlu0 %3445, %v3415
      %v3447 = vpop.permute.xlu0 %3446
      %3448 = vset.pattern.permute.xlu0 0
      %3449 = vperm.xlu0 %3448, %v3416
      %v3450 = vpop.permute.xlu0 %3449
      %3451 = vset.pattern.permute.xlu0 0
      %3452 = vperm.xlu0 %3451, %v3417
      %v3453 = vpop.permute.xlu0 %3452
      %3454 = vset.pattern.permute.xlu0 0
      %3455 = vperm.xlu0 %3454, %v3418
      %v3456 = vpop.permute.xlu0 %3455
      %3457 = vset.pattern.permute.xlu0 0
      %3458 = vperm.xlu0 %3457, %v3419
      %v3459 = vpop.permute.xlu0 %3458
      %3460 = vset.pattern.permute.xlu0 0
      %3461 = vperm.xlu0 %3460, %v3420
      %v3462 = vpop.permute.xlu0 %3461
      %3463 = vset.pattern.permute.xlu0 0
      %3464 = vperm.xlu0 %3463, %v3421
      %v3465 = vpop.permute.xlu0 %3464
      %3466 = vset.pattern.permute.xlu0 0
      %3467 = vperm.xlu0 %3466, %v3422
      %v3468 = vpop.permute.xlu0 %3467
      %3469 = vset.pattern.permute.xlu0 0
      %3470 = vperm.xlu0 %3469, %v3423
      %v3471 = vpop.permute.xlu0 %3470
      %vm3472 = vcmp.eq.s32.totalorder %v3426, 1
      %vm3473 = vcmp.eq.s32.totalorder %v3429, 1
      %vm3474 = vcmp.eq.s32.totalorder %v3432, 1
      %vm3475 = vcmp.eq.s32.totalorder %v3435, 1
      %vm3476 = vcmp.eq.s32.totalorder %v3438, 1
      %vm3477 = vcmp.eq.s32.totalorder %v3441, 1
      %vm3478 = vcmp.eq.s32.totalorder %v3444, 1
      %vm3479 = vcmp.eq.s32.totalorder %v3447, 1
      %vm3480 = vcmp.eq.s32.totalorder %v3450, 1
      %vm3481 = vcmp.eq.s32.totalorder %v3453, 1
      %vm3482 = vcmp.eq.s32.totalorder %v3456, 1
      %vm3483 = vcmp.eq.s32.totalorder %v3459, 1
      %vm3484 = vcmp.eq.s32.totalorder %v3462, 1
      %vm3485 = vcmp.eq.s32.totalorder %v3465, 1
      %vm3486 = vcmp.eq.s32.totalorder %v3468, 1
      %vm3487 = vcmp.eq.s32.totalorder %v3471, 1
      %v3488 = vsel %vm3472, %v3082, -1e+30
      %v3489 = vsel %vm3473, %v3083, -1e+30
      %v3490 = vsel %vm3474, %v3084, -1e+30
      %v3491 = vsel %vm3475, %v3085, -1e+30
      %v3492 = vsel %vm3476, %v3086, -1e+30
      %v3493 = vsel %vm3477, %v3087, -1e+30
      %v3494 = vsel %vm3478, %v3088, -1e+30
      %v3495 = vsel %vm3479, %v3089, -1e+30
      %v3496 = vsel %vm3480, %v3090, -1e+30
      %v3497 = vsel %vm3481, %v3091, -1e+30
      %v3498 = vsel %vm3482, %v3092, -1e+30
      %v3499 = vsel %vm3483, %v3093, -1e+30
      %v3500 = vsel %vm3484, %v3094, -1e+30
      %v3501 = vsel %vm3485, %v3095, -1e+30
      %v3502 = vsel %vm3486, %v3096, -1e+30
      %v3503 = vsel %vm3487, %v3097, -1e+30
      %v3504 = vsel %vm757, %v3488, -inf
      %v3505 = vsel %vm757, %v3489, -inf
      %v3506 = vsel %vm757, %v3490, -inf
      %v3507 = vsel %vm757, %v3491, -inf
      %v3508 = vsel %vm757, %v3492, -inf
      %v3509 = vmax.f32 %v3504, %v3508
      %v3510 = vsel %vm757, %v3493, -inf
      %v3511 = vmax.f32 %v3505, %v3510
      %v3512 = vsel %vm757, %v3494, -inf
      %v3513 = vmax.f32 %v3506, %v3512
      %v3514 = vsel %vm757, %v3495, -inf
      %v3515 = vmax.f32 %v3507, %v3514
      %v3516 = vsel %vm757, %v3496, -inf
      %v3517 = vmax.f32 %v3509, %v3516
      %v3518 = vsel %vm757, %v3497, -inf
      %v3519 = vmax.f32 %v3511, %v3518
      %v3520 = vsel %vm757, %v3498, -inf
      %v3521 = vmax.f32 %v3513, %v3520
      %v3522 = vsel %vm757, %v3499, -inf
      %v3523 = vmax.f32 %v3515, %v3522
      %v3524 = vsel %vm757, %v3500, -inf
      %v3525 = vmax.f32 %v3517, %v3524
      %v3526 = vsel %vm757, %v3501, -inf
      %v3527 = vmax.f32 %v3519, %v3526
      %v3528 = vsel %vm757, %v3502, -inf
      %v3529 = vmax.f32 %v3521, %v3528
      %v3530 = vsel %vm757, %v3503, -inf
      %v3531 = vmax.f32 %v3523, %v3530
      %v3532 = vmax.f32 %v3525, %v3527
      %v3533 = vmax.f32 %v3529, %v3531
      %v3534 = vmax.f32 %v3532, %v3533
      %v3535 = vrot.slane %v3534, 4
      %v3536 = vmax.f32 %v3534, %v3535
      %v3537 = vrot.slane %v3536, 2
      %v3538 = vmax.f32 %v3536, %v3537
      %v3539 = vrot.slane %v3538, 1
      %v3540 = vmax.f32 %v3538, %v3539
      %v3541 = vsel %vm3354, %v3540, 0.0
      %v3542 = vld [vmem:[#allocation2 + $0x1] sm:$0x1]
      %v3544 = vrot.slane %v3541, 1
      %v3546 = vadd.f32 %v3542, %v3544
      %3547 = vst.msk [vmem:[#allocation2 + $0x1] sm:$0x1] %vm3358, %v3546
      %vm3548 = vcmp.eq.f32.partialorder %v431, 2.0
      %vm3549 = vcmp.eq.f32.partialorder %v432, 2.0
      %vm3550 = vcmp.eq.f32.partialorder %v433, 2.0
      %vm3551 = vcmp.eq.f32.partialorder %v434, 2.0
      %vm3552 = vcmp.eq.f32.partialorder %v435, 2.0
      %vm3553 = vcmp.eq.f32.partialorder %v436, 2.0
      %vm3554 = vcmp.eq.f32.partialorder %v437, 2.0
      %vm3555 = vcmp.eq.f32.partialorder %v438, 2.0
      %vm3556 = vcmp.eq.f32.partialorder %v439, 2.0
      %vm3557 = vcmp.eq.f32.partialorder %v440, 2.0
      %vm3558 = vcmp.eq.f32.partialorder %v441, 2.0
      %vm3559 = vcmp.eq.f32.partialorder %v442, 2.0
      %vm3560 = vcmp.eq.f32.partialorder %v443, 2.0
      %vm3561 = vcmp.eq.f32.partialorder %v444, 2.0
      %vm3562 = vcmp.eq.f32.partialorder %v445, 2.0
      %vm3563 = vcmp.eq.f32.partialorder %v446, 2.0
      %v3564 = vsel %vm3548, %v2939, 0.0
      %v3565 = vsel %vm3549, %v2941, 0.0
      %v3566 = vsel %vm3550, %v2943, 0.0
      %v3567 = vsel %vm3551, %v2945, 0.0
      %v3568 = vsel %vm3552, %v2947, 0.0
      %v3569 = vsel %vm3553, %v2949, 0.0
      %v3570 = vsel %vm3554, %v2951, 0.0
      %v3571 = vsel %vm3555, %v2953, 0.0
      %v3572 = vsel %vm3556, %v2955, 0.0
      %v3573 = vsel %vm3557, %v2957, 0.0
      %v3574 = vsel %vm3558, %v2959, 0.0
      %v3575 = vsel %vm3559, %v2961, 0.0
      %v3576 = vsel %vm3560, %v2963, 0.0
      %v3577 = vsel %vm3561, %v2965, 0.0
      %v3578 = vsel %vm3562, %v2967, 0.0
      %v3579 = vsel %vm3563, %v2969, 0.0
      %vm3580 = vcmp.gt.f32.partialorder %v3564, 0.5
      %vm3581 = vcmp.gt.f32.partialorder %v3565, 0.5
      %vm3582 = vcmp.gt.f32.partialorder %v3566, 0.5
      %vm3583 = vcmp.gt.f32.partialorder %v3567, 0.5
      %vm3584 = vcmp.gt.f32.partialorder %v3568, 0.5
      %vm3585 = vcmp.gt.f32.partialorder %v3569, 0.5
      %vm3586 = vcmp.gt.f32.partialorder %v3570, 0.5
      %vm3587 = vcmp.gt.f32.partialorder %v3571, 0.5
      %vm3588 = vcmp.gt.f32.partialorder %v3572, 0.5
      %vm3589 = vcmp.gt.f32.partialorder %v3573, 0.5
      %vm3590 = vcmp.gt.f32.partialorder %v3574, 0.5
      %vm3591 = vcmp.gt.f32.partialorder %v3575, 0.5
      %vm3592 = vcmp.gt.f32.partialorder %v3576, 0.5
      %vm3593 = vcmp.gt.f32.partialorder %v3577, 0.5
      %vm3594 = vcmp.gt.f32.partialorder %v3578, 0.5
      %vm3595 = vcmp.gt.f32.partialorder %v3579, 0.5
      %v3596 = vsel %vm3580, 1, 0
      %v3597 = vsel %vm3581, 1, 0
      %v3598 = vsel %vm3582, 1, 0
      %v3599 = vsel %vm3583, 1, 0
      %v3600 = vsel %vm3584, 1, 0
      %v3601 = vsel %vm3585, 1, 0
      %v3602 = vsel %vm3586, 1, 0
      %v3603 = vsel %vm3587, 1, 0
      %v3604 = vsel %vm3588, 1, 0
      %v3605 = vsel %vm3589, 1, 0
      %v3606 = vsel %vm3590, 1, 0
      %v3607 = vsel %vm3591, 1, 0
      %v3608 = vsel %vm3592, 1, 0
      %v3609 = vsel %vm3593, 1, 0
      %v3610 = vsel %vm3594, 1, 0
      %v3611 = vsel %vm3595, 1, 0
      %3612 = vset.pattern.permute.xlu0 0
      %3613 = vperm.xlu0 %3612, %v3596
      %v3614 = vpop.permute.xlu0 %3613
      %3615 = vset.pattern.permute.xlu0 0
      %3616 = vperm.xlu0 %3615, %v3597
      %v3617 = vpop.permute.xlu0 %3616
      %3618 = vset.pattern.permute.xlu0 0
      %3619 = vperm.xlu0 %3618, %v3598
      %v3620 = vpop.permute.xlu0 %3619
      %3621 = vset.pattern.permute.xlu0 0
      %3622 = vperm.xlu0 %3621, %v3599
      %v3623 = vpop.permute.xlu0 %3622
      %3624 = vset.pattern.permute.xlu0 0
      %3625 = vperm.xlu0 %3624, %v3600
      %v3626 = vpop.permute.xlu0 %3625
      %3627 = vset.pattern.permute.xlu0 0
      %3628 = vperm.xlu0 %3627, %v3601
      %v3629 = vpop.permute.xlu0 %3628
      %3630 = vset.pattern.permute.xlu0 0
      %3631 = vperm.xlu0 %3630, %v3602
      %v3632 = vpop.permute.xlu0 %3631
      %3633 = vset.pattern.permute.xlu0 0
      %3634 = vperm.xlu0 %3633, %v3603
      %v3635 = vpop.permute.xlu0 %3634
      %3636 = vset.pattern.permute.xlu0 0
      %3637 = vperm.xlu0 %3636, %v3604
      %v3638 = vpop.permute.xlu0 %3637
      %3639 = vset.pattern.permute.xlu0 0
      %3640 = vperm.xlu0 %3639, %v3605
      %v3641 = vpop.permute.xlu0 %3640
      %3642 = vset.pattern.permute.xlu0 0
      %3643 = vperm.xlu0 %3642, %v3606
      %v3644 = vpop.permute.xlu0 %3643
      %3645 = vset.pattern.permute.xlu0 0
      %3646 = vperm.xlu0 %3645, %v3607
      %v3647 = vpop.permute.xlu0 %3646
      %3648 = vset.pattern.permute.xlu0 0
      %3649 = vperm.xlu0 %3648, %v3608
      %v3650 = vpop.permute.xlu0 %3649
      %3651 = vset.pattern.permute.xlu0 0
      %3652 = vperm.xlu0 %3651, %v3609
      %v3653 = vpop.permute.xlu0 %3652
      %3654 = vset.pattern.permute.xlu0 0
      %3655 = vperm.xlu0 %3654, %v3610
      %v3656 = vpop.permute.xlu0 %3655
      %3657 = vset.pattern.permute.xlu0 0
      %3658 = vperm.xlu0 %3657, %v3611
      %v3659 = vpop.permute.xlu0 %3658
      %vm3660 = vcmp.eq.s32.totalorder %v3614, 1
      %vm3661 = vcmp.eq.s32.totalorder %v3617, 1
      %vm3662 = vcmp.eq.s32.totalorder %v3620, 1
      %vm3663 = vcmp.eq.s32.totalorder %v3623, 1
      %vm3664 = vcmp.eq.s32.totalorder %v3626, 1
      %vm3665 = vcmp.eq.s32.totalorder %v3629, 1
      %vm3666 = vcmp.eq.s32.totalorder %v3632, 1
      %vm3667 = vcmp.eq.s32.totalorder %v3635, 1
      %vm3668 = vcmp.eq.s32.totalorder %v3638, 1
      %vm3669 = vcmp.eq.s32.totalorder %v3641, 1
      %vm3670 = vcmp.eq.s32.totalorder %v3644, 1
      %vm3671 = vcmp.eq.s32.totalorder %v3647, 1
      %vm3672 = vcmp.eq.s32.totalorder %v3650, 1
      %vm3673 = vcmp.eq.s32.totalorder %v3653, 1
      %vm3674 = vcmp.eq.s32.totalorder %v3656, 1
      %vm3675 = vcmp.eq.s32.totalorder %v3659, 1
      %v3676 = vsel %vm3660, %v3082, -1e+30
      %v3677 = vsel %vm3661, %v3083, -1e+30
      %v3678 = vsel %vm3662, %v3084, -1e+30
      %v3679 = vsel %vm3663, %v3085, -1e+30
      %v3680 = vsel %vm3664, %v3086, -1e+30
      %v3681 = vsel %vm3665, %v3087, -1e+30
      %v3682 = vsel %vm3666, %v3088, -1e+30
      %v3683 = vsel %vm3667, %v3089, -1e+30
      %v3684 = vsel %vm3668, %v3090, -1e+30
      %v3685 = vsel %vm3669, %v3091, -1e+30
      %v3686 = vsel %vm3670, %v3092, -1e+30
      %v3687 = vsel %vm3671, %v3093, -1e+30
      %v3688 = vsel %vm3672, %v3094, -1e+30
      %v3689 = vsel %vm3673, %v3095, -1e+30
      %v3690 = vsel %vm3674, %v3096, -1e+30
      %v3691 = vsel %vm3675, %v3097, -1e+30
      %v3692 = vsel %vm757, %v3676, -inf
      %v3693 = vsel %vm757, %v3677, -inf
      %v3694 = vsel %vm757, %v3678, -inf
      %v3695 = vsel %vm757, %v3679, -inf
      %v3696 = vsel %vm757, %v3680, -inf
      %v3697 = vmax.f32 %v3692, %v3696
      %v3698 = vsel %vm757, %v3681, -inf
      %v3699 = vmax.f32 %v3693, %v3698
      %v3700 = vsel %vm757, %v3682, -inf
      %v3701 = vmax.f32 %v3694, %v3700
      %v3702 = vsel %vm757, %v3683, -inf
      %v3703 = vmax.f32 %v3695, %v3702
      %v3704 = vsel %vm757, %v3684, -inf
      %v3705 = vmax.f32 %v3697, %v3704
      %v3706 = vsel %vm757, %v3685, -inf
      %v3707 = vmax.f32 %v3699, %v3706
      %v3708 = vsel %vm757, %v3686, -inf
      %v3709 = vmax.f32 %v3701, %v3708
      %v3710 = vsel %vm757, %v3687, -inf
      %v3711 = vmax.f32 %v3703, %v3710
      %v3712 = vsel %vm757, %v3688, -inf
      %v3713 = vmax.f32 %v3705, %v3712
      %v3714 = vsel %vm757, %v3689, -inf
      %v3715 = vmax.f32 %v3707, %v3714
      %v3716 = vsel %vm757, %v3690, -inf
      %v3717 = vmax.f32 %v3709, %v3716
      %v3718 = vsel %vm757, %v3691, -inf
      %v3719 = vmax.f32 %v3711, %v3718
      %v3720 = vmax.f32 %v3713, %v3715
      %v3721 = vmax.f32 %v3717, %v3719
      %v3722 = vmax.f32 %v3720, %v3721
      %v3723 = vrot.slane %v3722, 4
      %v3724 = vmax.f32 %v3722, %v3723
      %v3725 = vrot.slane %v3724, 2
      %v3726 = vmax.f32 %v3724, %v3725
      %v3727 = vrot.slane %v3726, 1
      %v3728 = vmax.f32 %v3726, %v3727
      %v3729 = vsel %vm3354, %v3728, 0.0
      %v3730 = vld [vmem:[#allocation2 + $0x2] sm:$0x1]
      %v3732 = vrot.slane %v3729, 2
      %v3734 = vadd.f32 %v3730, %v3732
      %3735 = vst.msk [vmem:[#allocation2 + $0x2] sm:$0x1] %vm3358, %v3734
      %vm3736 = vcmp.eq.f32.partialorder %v431, 3.0
      %vm3737 = vcmp.eq.f32.partialorder %v432, 3.0
      %vm3738 = vcmp.eq.f32.partialorder %v433, 3.0
      %vm3739 = vcmp.eq.f32.partialorder %v434, 3.0
      %vm3740 = vcmp.eq.f32.partialorder %v435, 3.0
      %vm3741 = vcmp.eq.f32.partialorder %v436, 3.0
      %vm3742 = vcmp.eq.f32.partialorder %v437, 3.0
      %vm3743 = vcmp.eq.f32.partialorder %v438, 3.0
      %vm3744 = vcmp.eq.f32.partialorder %v439, 3.0
      %vm3745 = vcmp.eq.f32.partialorder %v440, 3.0
      %vm3746 = vcmp.eq.f32.partialorder %v441, 3.0
      %vm3747 = vcmp.eq.f32.partialorder %v442, 3.0
      %vm3748 = vcmp.eq.f32.partialorder %v443, 3.0
      %vm3749 = vcmp.eq.f32.partialorder %v444, 3.0
      %vm3750 = vcmp.eq.f32.partialorder %v445, 3.0
      %vm3751 = vcmp.eq.f32.partialorder %v446, 3.0
      %v3752 = vsel %vm3736, %v2939, 0.0
      %v3753 = vsel %vm3737, %v2941, 0.0
      %v3754 = vsel %vm3738, %v2943, 0.0
      %v3755 = vsel %vm3739, %v2945, 0.0
      %v3756 = vsel %vm3740, %v2947, 0.0
      %v3757 = vsel %vm3741, %v2949, 0.0
      %v3758 = vsel %vm3742, %v2951, 0.0
      %v3759 = vsel %vm3743, %v2953, 0.0
      %v3760 = vsel %vm3744, %v2955, 0.0
      %v3761 = vsel %vm3745, %v2957, 0.0
      %v3762 = vsel %vm3746, %v2959, 0.0
      %v3763 = vsel %vm3747, %v2961, 0.0
      %v3764 = vsel %vm3748, %v2963, 0.0
      %v3765 = vsel %vm3749, %v2965, 0.0
      %v3766 = vsel %vm3750, %v2967, 0.0
      %v3767 = vsel %vm3751, %v2969, 0.0
      %vm3768 = vcmp.gt.f32.partialorder %v3752, 0.5
      %vm3769 = vcmp.gt.f32.partialorder %v3753, 0.5
      %vm3770 = vcmp.gt.f32.partialorder %v3754, 0.5
      %vm3771 = vcmp.gt.f32.partialorder %v3755, 0.5
      %vm3772 = vcmp.gt.f32.partialorder %v3756, 0.5
      %vm3773 = vcmp.gt.f32.partialorder %v3757, 0.5
      %vm3774 = vcmp.gt.f32.partialorder %v3758, 0.5
      %vm3775 = vcmp.gt.f32.partialorder %v3759, 0.5
      %vm3776 = vcmp.gt.f32.partialorder %v3760, 0.5
      %vm3777 = vcmp.gt.f32.partialorder %v3761, 0.5
      %vm3778 = vcmp.gt.f32.partialorder %v3762, 0.5
      %vm3779 = vcmp.gt.f32.partialorder %v3763, 0.5
      %vm3780 = vcmp.gt.f32.partialorder %v3764, 0.5
      %vm3781 = vcmp.gt.f32.partialorder %v3765, 0.5
      %vm3782 = vcmp.gt.f32.partialorder %v3766, 0.5
      %vm3783 = vcmp.gt.f32.partialorder %v3767, 0.5
      %v3784 = vsel %vm3768, 1, 0
      %v3785 = vsel %vm3769, 1, 0
      %v3786 = vsel %vm3770, 1, 0
      %v3787 = vsel %vm3771, 1, 0
      %v3788 = vsel %vm3772, 1, 0
      %v3789 = vsel %vm3773, 1, 0
      %v3790 = vsel %vm3774, 1, 0
      %v3791 = vsel %vm3775, 1, 0
      %v3792 = vsel %vm3776, 1, 0
      %v3793 = vsel %vm3777, 1, 0
      %v3794 = vsel %vm3778, 1, 0
      %v3795 = vsel %vm3779, 1, 0
      %v3796 = vsel %vm3780, 1, 0
      %v3797 = vsel %vm3781, 1, 0
      %v3798 = vsel %vm3782, 1, 0
      %v3799 = vsel %vm3783, 1, 0
      %3800 = vset.pattern.permute.xlu0 0
      %3801 = vperm.xlu0 %3800, %v3784
      %v3802 = vpop.permute.xlu0 %3801
      %3803 = vset.pattern.permute.xlu0 0
      %3804 = vperm.xlu0 %3803, %v3785
      %v3805 = vpop.permute.xlu0 %3804
      %3806 = vset.pattern.permute.xlu0 0
      %3807 = vperm.xlu0 %3806, %v3786
      %v3808 = vpop.permute.xlu0 %3807
      %3809 = vset.pattern.permute.xlu0 0
      %3810 = vperm.xlu0 %3809, %v3787
      %v3811 = vpop.permute.xlu0 %3810
      %3812 = vset.pattern.permute.xlu0 0
      %3813 = vperm.xlu0 %3812, %v3788
      %v3814 = vpop.permute.xlu0 %3813
      %3815 = vset.pattern.permute.xlu0 0
      %3816 = vperm.xlu0 %3815, %v3789
      %v3817 = vpop.permute.xlu0 %3816
      %3818 = vset.pattern.permute.xlu0 0
      %3819 = vperm.xlu0 %3818, %v3790
      %v3820 = vpop.permute.xlu0 %3819
      %3821 = vset.pattern.permute.xlu0 0
      %3822 = vperm.xlu0 %3821, %v3791
      %v3823 = vpop.permute.xlu0 %3822
      %3824 = vset.pattern.permute.xlu0 0
      %3825 = vperm.xlu0 %3824, %v3792
      %v3826 = vpop.permute.xlu0 %3825
      %3827 = vset.pattern.permute.xlu0 0
      %3828 = vperm.xlu0 %3827, %v3793
      %v3829 = vpop.permute.xlu0 %3828
      %3830 = vset.pattern.permute.xlu0 0
      %3831 = vperm.xlu0 %3830, %v3794
      %v3832 = vpop.permute.xlu0 %3831
      %3833 = vset.pattern.permute.xlu0 0
      %3834 = vperm.xlu0 %3833, %v3795
      %v3835 = vpop.permute.xlu0 %3834
      %3836 = vset.pattern.permute.xlu0 0
      %3837 = vperm.xlu0 %3836, %v3796
      %v3838 = vpop.permute.xlu0 %3837
      %3839 = vset.pattern.permute.xlu0 0
      %3840 = vperm.xlu0 %3839, %v3797
      %v3841 = vpop.permute.xlu0 %3840
      %3842 = vset.pattern.permute.xlu0 0
      %3843 = vperm.xlu0 %3842, %v3798
      %v3844 = vpop.permute.xlu0 %3843
      %3845 = vset.pattern.permute.xlu0 0
      %3846 = vperm.xlu0 %3845, %v3799
      %v3847 = vpop.permute.xlu0 %3846
      %vm3848 = vcmp.eq.s32.totalorder %v3802, 1
      %vm3849 = vcmp.eq.s32.totalorder %v3805, 1
      %vm3850 = vcmp.eq.s32.totalorder %v3808, 1
      %vm3851 = vcmp.eq.s32.totalorder %v3811, 1
      %vm3852 = vcmp.eq.s32.totalorder %v3814, 1
      %vm3853 = vcmp.eq.s32.totalorder %v3817, 1
      %vm3854 = vcmp.eq.s32.totalorder %v3820, 1
      %vm3855 = vcmp.eq.s32.totalorder %v3823, 1
      %vm3856 = vcmp.eq.s32.totalorder %v3826, 1
      %vm3857 = vcmp.eq.s32.totalorder %v3829, 1
      %vm3858 = vcmp.eq.s32.totalorder %v3832, 1
      %vm3859 = vcmp.eq.s32.totalorder %v3835, 1
      %vm3860 = vcmp.eq.s32.totalorder %v3838, 1
      %vm3861 = vcmp.eq.s32.totalorder %v3841, 1
      %vm3862 = vcmp.eq.s32.totalorder %v3844, 1
      %vm3863 = vcmp.eq.s32.totalorder %v3847, 1
      %v3864 = vsel %vm3848, %v3082, -1e+30
      %v3865 = vsel %vm3849, %v3083, -1e+30
      %v3866 = vsel %vm3850, %v3084, -1e+30
      %v3867 = vsel %vm3851, %v3085, -1e+30
      %v3868 = vsel %vm3852, %v3086, -1e+30
      %v3869 = vsel %vm3853, %v3087, -1e+30
      %v3870 = vsel %vm3854, %v3088, -1e+30
      %v3871 = vsel %vm3855, %v3089, -1e+30
      %v3872 = vsel %vm3856, %v3090, -1e+30
      %v3873 = vsel %vm3857, %v3091, -1e+30
      %v3874 = vsel %vm3858, %v3092, -1e+30
      %v3875 = vsel %vm3859, %v3093, -1e+30
      %v3876 = vsel %vm3860, %v3094, -1e+30
      %v3877 = vsel %vm3861, %v3095, -1e+30
      %v3878 = vsel %vm3862, %v3096, -1e+30
      %v3879 = vsel %vm3863, %v3097, -1e+30
      %v3880 = vsel %vm757, %v3864, -inf
      %v3881 = vsel %vm757, %v3865, -inf
      %v3882 = vsel %vm757, %v3866, -inf
      %v3883 = vsel %vm757, %v3867, -inf
      %v3884 = vsel %vm757, %v3868, -inf
      %v3885 = vmax.f32 %v3880, %v3884
      %v3886 = vsel %vm757, %v3869, -inf
      %v3887 = vmax.f32 %v3881, %v3886
      %v3888 = vsel %vm757, %v3870, -inf
      %v3889 = vmax.f32 %v3882, %v3888
      %v3890 = vsel %vm757, %v3871, -inf
      %v3891 = vmax.f32 %v3883, %v3890
      %v3892 = vsel %vm757, %v3872, -inf
      %v3893 = vmax.f32 %v3885, %v3892
      %v3894 = vsel %vm757, %v3873, -inf
      %v3895 = vmax.f32 %v3887, %v3894
      %v3896 = vsel %vm757, %v3874, -inf
      %v3897 = vmax.f32 %v3889, %v3896
      %v3898 = vsel %vm757, %v3875, -inf
      %v3899 = vmax.f32 %v3891, %v3898
      %v3900 = vsel %vm757, %v3876, -inf
      %v3901 = vmax.f32 %v3893, %v3900
      %v3902 = vsel %vm757, %v3877, -inf
      %v3903 = vmax.f32 %v3895, %v3902
      %v3904 = vsel %vm757, %v3878, -inf
      %v3905 = vmax.f32 %v3897, %v3904
      %v3906 = vsel %vm757, %v3879, -inf
      %v3907 = vmax.f32 %v3899, %v3906
      %v3908 = vmax.f32 %v3901, %v3903
      %v3909 = vmax.f32 %v3905, %v3907
      %v3910 = vmax.f32 %v3908, %v3909
      %v3911 = vrot.slane %v3910, 4
      %v3912 = vmax.f32 %v3910, %v3911
      %v3913 = vrot.slane %v3912, 2
      %v3914 = vmax.f32 %v3912, %v3913
      %v3915 = vrot.slane %v3914, 1
      %v3916 = vmax.f32 %v3914, %v3915
      %v3917 = vsel %vm3354, %v3916, 0.0
      %v3918 = vld [vmem:[#allocation2 + $0x3] sm:$0x1]
      %v3920 = vrot.slane %v3917, 3
      %v3922 = vadd.f32 %v3918, %v3920
      %3923 = vst.msk [vmem:[#allocation2 + $0x3] sm:$0x1] %vm3358, %v3922
      %s3924 = scalar_lea.vmem %s4, 32
      %v3925 = vld [vmem:[%s3924] sm:$0xff]
      %v3926 = vld [vmem:[%s3924 + $0x8] sm:$0xff]
      %v3927 = vld [vmem:[%s3924 + $0x10] sm:$0xff]
      %v3928 = vld [vmem:[%s3924 + $0x18] sm:$0xff]
      %s3929 = scalar_lea.vmem %s6, 2
      %v3930 = vld [vmem:[%s3929] sm:$0x3]
      %s3931 = scalar_lea.vmem %s5, 32
      %v3932 = vld [vmem:[%s3931] sm:$0xff]
      %v3933 = vld [vmem:[%s3931 + $0x8] sm:$0xff]
      %v3934 = vld [vmem:[%s3931 + $0x10] sm:$0xff]
      %v3935 = vld [vmem:[%s3931 + $0x18] sm:$0xff]
      %v3937 = vsel %vm757, %v3082, 0
      %v3940 = vsel %vm757, %v3083, 0
      %v3943 = vsel %vm757, %v3084, 0
      %v3946 = vsel %vm757, %v3085, 0
      %v3949 = vsel %vm757, %v3086, 0
      %v3952 = vsel %vm757, %v3087, 0
      %v3955 = vsel %vm757, %v3088, 0
      %v3958 = vsel %vm757, %v3089, 0
      %v3961 = vsel %vm757, %v3090, 0
      %v3964 = vsel %vm757, %v3091, 0
      %v3967 = vsel %vm757, %v3092, 0
      %v3970 = vsel %vm757, %v3093, 0
      %v3973 = vsel %vm757, %v3094, 0
      %v3976 = vsel %vm757, %v3095, 0
      %v3979 = vsel %vm757, %v3096, 0
      %v3982 = vsel %vm757, %v3097, 0
      %3984 = vmatprep.subr.mxu0 0.0
      %3985 = vmatpush1.msra.mxu0 %v3925
      %3986 = vmatprep.subr.mxu0 0.0
      %3987 = vmatpush1.msra.mxu0 %v3926
      %3988 = vmatprep.subr.mxu0 0.0
      %3989 = vmatpush1.msra.mxu0 %v3927
      %3990 = vmatprep.subr.mxu0 0.0
      %3991 = vmatpush1.msra.mxu0 %v3928
      %3992 = vmatprep.subr.mxu0 0.0
      %3993 = vmatpush1.msra.mxu0 0.0
      %3994 = vmatprep.subr.mxu0 0.0
      %3995 = vmatpush1.msra.mxu0 0.0
      %3996 = vmatprep.subr.mxu0 0.0
      %3997 = vmatpush1.msra.mxu0 0.0
      %3998 = vmatprep.subr.mxu0 0.0
      %3999 = vmatpush1.msra.mxu0 0.0
      %4000 = vmatprep.subr.mxu0 0.0
      %4001 = vmatpush1.msra.mxu0 0.0
      %4002 = vmatprep.subr.mxu0 0.0
      %4003 = vmatpush1.msra.mxu0 0.0
      %4004 = vmatprep.subr.mxu0 0.0
      %4005 = vmatpush1.msra.mxu0 0.0
      %4006 = vmatprep.subr.mxu0 0.0
      %4007 = vmatpush1.msra.mxu0 0.0
      %4008 = vmatprep.subr.mxu0 0.0
      %4009 = vmatpush1.msra.mxu0 0.0
      %4010 = vmatprep.subr.mxu0 0.0
      %4011 = vmatpush1.msra.mxu0 0.0
      %4012 = vmatprep.subr.mxu0 0.0
      %4013 = vmatpush1.msra.mxu0 0.0
      %4014 = vmatprep.subr.mxu0 0.0
      %4015 = vmatpush1.msra.mxu0 0.0
      %4016 = vmatprep.subr.mxu0 0.0
      %4017 = vmatpush1.msra.mxu0 0.0
      %4018 = vmatprep.subr.mxu0 0.0
      %4019 = vmatpush1.msra.mxu0 0.0
      %4020 = vmatprep.subr.mxu0 0.0
      %4021 = vmatpush1.msra.mxu0 0.0
      %4022 = vmatprep.subr.mxu0 0.0
      %4023 = vmatpush1.msra.mxu0 0.0
      %4024 = vmatprep.subr.mxu0 0.0
      %4025 = vmatpush1.msra.mxu0 0.0
      %4026 = vmatprep.subr.mxu0 0.0
      %4027 = vmatpush1.msra.mxu0 0.0
      %4028 = vmatprep.subr.mxu0 0.0
      %4029 = vmatpush1.msra.mxu0 0.0
      %4030 = vmatprep.subr.mxu0 0.0
      %4031 = vmatpush1.msra.mxu0 0.0
      %4032 = vmatprep.subr.mxu0 0.0
      %4033 = vmatpush1.msra.mxu0 0.0
      %4034 = vmatprep.subr.mxu0 0.0
      %4035 = vmatpush1.msra.mxu0 0.0
      %4036 = vmatprep.subr.mxu0 0.0
      %4037 = vmatpush1.msra.mxu0 0.0
      %4038 = vmatprep.subr.mxu0 0.0
      %4039 = vmatpush1.msra.mxu0 0.0
      %4040 = vmatprep.subr.mxu0 0.0
      %4041 = vmatpush1.msra.mxu0 0.0
      %4042 = vmatprep.subr.mxu0 0.0
      %4043 = vmatpush1.msra.mxu0 0.0
      %4044 = vmatprep.subr.mxu0 0.0
      %4045 = vmatpush1.msra.mxu0 0.0
      %4046 = vmatprep.subr.mxu0 0.0
      %4047 = vmatpush1.msra.mxu0 0.0
      %4048 = vmatprep.mubr.f32.mxu0 0.0
      %4049 = vmatmul.mubr.f32.gmra.mrb[0].mxu0 %v3937
      %v4050 = vpop.f32.mrb[0].mxu0
      %v4051 = vadd.f32 0.0, %v4050
      %v4052 = vpop.f32.mrb[0].mxu0
      %4053 = vmatprep.mubr.f32.mxu0 0.0
      %4054 = vmatmul.mubr.f32.gmra.mrb[0].mxu0 %v3940
      %v4055 = vpop.f32.mrb[0].mxu0
      %v4056 = vadd.f32 0.0, %v4055
      %v4057 = vpop.f32.mrb[0].mxu0
      %4058 = vmatprep.mubr.f32.mxu0 0.0
      %4059 = vmatmul.mubr.f32.gmra.mrb[0].mxu0 %v3943
      %v4060 = vpop.f32.mrb[0].mxu0
      %v4061 = vadd.f32 0.0, %v4060
      %v4062 = vpop.f32.mrb[0].mxu0
      %4063 = vmatprep.mubr.f32.mxu0 0.0
      %4064 = vmatmul.mubr.f32.gmra.mrb[0].mxu0 %v3946
      %v4065 = vpop.f32.mrb[0].mxu0
      %v4066 = vadd.f32 0.0, %v4065
      %v4067 = vpop.f32.mrb[0].mxu0
      %4068 = vmatprep.mubr.f32.mxu0 0.0
      %4069 = vmatmul.mubr.f32.gmra.mrb[0].mxu0 %v3949
      %v4070 = vpop.f32.mrb[0].mxu0
      %v4071 = vadd.f32 0.0, %v4070
      %v4072 = vpop.f32.mrb[0].mxu0
      %4073 = vmatprep.mubr.f32.mxu0 0.0
      %4074 = vmatmul.mubr.f32.gmra.mrb[0].mxu0 %v3952
      %v4075 = vpop.f32.mrb[0].mxu0
      %v4076 = vadd.f32 0.0, %v4075
      %v4077 = vpop.f32.mrb[0].mxu0
      %4078 = vmatprep.mubr.f32.mxu0 0.0
      %4079 = vmatmul.mubr.f32.gmra.mrb[0].mxu0 %v3955
      %v4080 = vpop.f32.mrb[0].mxu0
      %v4081 = vadd.f32 0.0, %v4080
      %v4082 = vpop.f32.mrb[0].mxu0
      %4083 = vmatprep.mubr.f32.mxu0 0.0
      %4084 = vmatmul.mubr.f32.gmra.mrb[0].mxu0 %v3958
      %v4085 = vpop.f32.mrb[0].mxu0
      %v4086 = vadd.f32 0.0, %v4085
      %v4087 = vpop.f32.mrb[0].mxu0
      %4088 = vmatprep.mubr.f32.mxu0 0.0
      %4089 = vmatmul.mubr.f32.gmra.mrb[0].mxu0 %v3961
      %v4090 = vpop.f32.mrb[0].mxu0
      %v4091 = vadd.f32 0.0, %v4090
      %v4092 = vpop.f32.mrb[0].mxu0
      %4093 = vmatprep.mubr.f32.mxu0 0.0
      %4094 = vmatmul.mubr.f32.gmra.mrb[0].mxu0 %v3964
      %v4095 = vpop.f32.mrb[0].mxu0
      %v4096 = vadd.f32 0.0, %v4095
      %v4097 = vpop.f32.mrb[0].mxu0
      %4098 = vmatprep.mubr.f32.mxu0 0.0
      %4099 = vmatmul.mubr.f32.gmra.mrb[0].mxu0 %v3967
      %v4100 = vpop.f32.mrb[0].mxu0
      %v4101 = vadd.f32 0.0, %v4100
      %v4102 = vpop.f32.mrb[0].mxu0
      %4103 = vmatprep.mubr.f32.mxu0 0.0
      %4104 = vmatmul.mubr.f32.gmra.mrb[0].mxu0 %v3970
      %v4105 = vpop.f32.mrb[0].mxu0
      %v4106 = vadd.f32 0.0, %v4105
      %v4107 = vpop.f32.mrb[0].mxu0
      %4108 = vmatprep.mubr.f32.mxu0 0.0
      %4109 = vmatmul.mubr.f32.gmra.mrb[0].mxu0 %v3973
      %v4110 = vpop.f32.mrb[0].mxu0
      %v4111 = vadd.f32 0.0, %v4110
      %v4112 = vpop.f32.mrb[0].mxu0
      %4113 = vmatprep.mubr.f32.mxu0 0.0
      %4114 = vmatmul.mubr.f32.gmra.mrb[0].mxu0 %v3976
      %v4115 = vpop.f32.mrb[0].mxu0
      %v4116 = vadd.f32 0.0, %v4115
      %v4117 = vpop.f32.mrb[0].mxu0
      %4118 = vmatprep.mubr.f32.mxu0 0.0
      %4119 = vmatmul.mubr.f32.gmra.mrb[0].mxu0 %v3979
      %v4120 = vpop.f32.mrb[0].mxu0
      %v4121 = vadd.f32 0.0, %v4120
      %v4122 = vpop.f32.mrb[0].mxu0
      %4123 = vmatprep.mubr.f32.mxu0 0.0
      %4124 = vmatmul.mubr.f32.gmra.mrb[0].mxu0 %v3982
      %v4125 = vpop.f32.mrb[0].mxu0
      %v4126 = vadd.f32 0.0, %v4125
      %v4127 = vpop.f32.mrb[0].mxu0
      %4128 = vdwg.mxu0
      %4129 = vmatprep.subr.mxu0 0.0
      %4130 = vmatpush1.msra.mxu0 %v2939
      %4131 = vmatprep.subr.mxu0 0.0
      %4132 = vmatpush1.msra.mxu0 %v2941
      %4133 = vmatprep.subr.mxu0 0.0
      %4134 = vmatpush1.msra.mxu0 %v2943
      %4135 = vmatprep.subr.mxu0 0.0
      %4136 = vmatpush1.msra.mxu0 %v2945
      %4137 = vmatprep.subr.mxu0 0.0
      %4138 = vmatpush1.msra.mxu0 %v2947
      %4139 = vmatprep.subr.mxu0 0.0
      %4140 = vmatpush1.msra.mxu0 %v2949
      %4141 = vmatprep.subr.mxu0 0.0
      %4142 = vmatpush1.msra.mxu0 %v2951
      %4143 = vmatprep.subr.mxu0 0.0
      %4144 = vmatpush1.msra.mxu0 %v2953
      %4145 = vmatprep.subr.mxu0 0.0
      %4146 = vmatpush1.msra.mxu0 %v2955
      %4147 = vmatprep.subr.mxu0 0.0
      %4148 = vmatpush1.msra.mxu0 %v2957
      %4149 = vmatprep.subr.mxu0 0.0
      %4150 = vmatpush1.msra.mxu0 %v2959
      %4151 = vmatprep.subr.mxu0 0.0
      %4152 = vmatpush1.msra.mxu0 %v2961
      %4153 = vmatprep.subr.mxu0 0.0
      %4154 = vmatpush1.msra.mxu0 %v2963
      %4155 = vmatprep.subr.mxu0 0.0
      %4156 = vmatpush1.msra.mxu0 %v2965
      %4157 = vmatprep.subr.mxu0 0.0
      %4158 = vmatpush1.msra.mxu0 %v2967
      %4159 = vmatprep.subr.mxu0 0.0
      %4160 = vmatpush1.msra.mxu0 %v2969
      %4161 = vmatprep.subr.mxu0 0.0
      %4162 = vmatpush1.msra.mxu0 0.0
      %4163 = vmatprep.subr.mxu0 0.0
      %4164 = vmatpush1.msra.mxu0 0.0
      %4165 = vmatprep.subr.mxu0 0.0
      %4166 = vmatpush1.msra.mxu0 0.0
      %4167 = vmatprep.subr.mxu0 0.0
      %4168 = vmatpush1.msra.mxu0 0.0
      %4169 = vmatprep.subr.mxu0 0.0
      %4170 = vmatpush1.msra.mxu0 0.0
      %4171 = vmatprep.subr.mxu0 0.0
      %4172 = vmatpush1.msra.mxu0 0.0
      %4173 = vmatprep.subr.mxu0 0.0
      %4174 = vmatpush1.msra.mxu0 0.0
      %4175 = vmatprep.subr.mxu0 0.0
      %4176 = vmatpush1.msra.mxu0 0.0
      %4177 = vmatprep.subr.mxu0 0.0
      %4178 = vmatpush1.msra.mxu0 0.0
      %4179 = vmatprep.subr.mxu0 0.0
      %4180 = vmatpush1.msra.mxu0 0.0
      %4181 = vmatprep.subr.mxu0 0.0
      %4182 = vmatpush1.msra.mxu0 0.0
      %4183 = vmatprep.subr.mxu0 0.0
      %4184 = vmatpush1.msra.mxu0 0.0
      %4185 = vmatprep.subr.mxu0 0.0
      %4186 = vmatpush1.msra.mxu0 0.0
      %4187 = vmatprep.subr.mxu0 0.0
      %4188 = vmatpush1.msra.mxu0 0.0
      %4189 = vmatprep.subr.mxu0 0.0
      %4190 = vmatpush1.msra.mxu0 0.0
      %4191 = vmatprep.subr.mxu0 0.0
      %4192 = vmatpush1.msra.mxu0 0.0
      %4193 = vmatprep.mubr.f32.mxu0 0.0
      %4194 = vmatmul.mubr.f32.gmra.mrb[0].mxu0 %v415
      %v4195 = vpop.f32.mrb[0].mxu0
      %v4196 = vadd.f32 %v2939, %v4195
      %v4197 = vpop.f32.mrb[0].mxu0
      %4198 = vmatprep.mubr.f32.mxu0 0.0
      %4199 = vmatmul.mubr.f32.gmra.mrb[0].mxu0 %v416
      %v4200 = vpop.f32.mrb[0].mxu0
      %v4201 = vadd.f32 %v2941, %v4200
      %v4202 = vpop.f32.mrb[0].mxu0
      %4203 = vmatprep.mubr.f32.mxu0 0.0
      %4204 = vmatmul.mubr.f32.gmra.mrb[0].mxu0 %v417
      %v4205 = vpop.f32.mrb[0].mxu0
      %v4206 = vadd.f32 %v2943, %v4205
      %v4207 = vpop.f32.mrb[0].mxu0
      %4208 = vmatprep.mubr.f32.mxu0 0.0
      %4209 = vmatmul.mubr.f32.gmra.mrb[0].mxu0 %v418
      %v4210 = vpop.f32.mrb[0].mxu0
      %v4211 = vadd.f32 %v2945, %v4210
      %v4212 = vpop.f32.mrb[0].mxu0
      %4213 = vmatprep.mubr.f32.mxu0 0.0
      %4214 = vmatmul.mubr.f32.gmra.mrb[0].mxu0 %v419
      %v4215 = vpop.f32.mrb[0].mxu0
      %v4216 = vadd.f32 %v2947, %v4215
      %v4217 = vpop.f32.mrb[0].mxu0
      %4218 = vmatprep.mubr.f32.mxu0 0.0
      %4219 = vmatmul.mubr.f32.gmra.mrb[0].mxu0 %v420
      %v4220 = vpop.f32.mrb[0].mxu0
      %v4221 = vadd.f32 %v2949, %v4220
      %v4222 = vpop.f32.mrb[0].mxu0
      %4223 = vmatprep.mubr.f32.mxu0 0.0
      %4224 = vmatmul.mubr.f32.gmra.mrb[0].mxu0 %v421
      %v4225 = vpop.f32.mrb[0].mxu0
      %v4226 = vadd.f32 %v2951, %v4225
      %v4227 = vpop.f32.mrb[0].mxu0
      %4228 = vmatprep.mubr.f32.mxu0 0.0
      %4229 = vmatmul.mubr.f32.gmra.mrb[0].mxu0 %v422
      %v4230 = vpop.f32.mrb[0].mxu0
      %v4231 = vadd.f32 %v2953, %v4230
      %v4232 = vpop.f32.mrb[0].mxu0
      %4233 = vmatprep.mubr.f32.mxu0 0.0
      %4234 = vmatmul.mubr.f32.gmra.mrb[0].mxu0 %v423
      %v4235 = vpop.f32.mrb[0].mxu0
      %v4236 = vadd.f32 %v2955, %v4235
      %v4237 = vpop.f32.mrb[0].mxu0
      %4238 = vmatprep.mubr.f32.mxu0 0.0
      %4239 = vmatmul.mubr.f32.gmra.mrb[0].mxu0 %v424
      %v4240 = vpop.f32.mrb[0].mxu0
      %v4241 = vadd.f32 %v2957, %v4240
      %v4242 = vpop.f32.mrb[0].mxu0
      %4243 = vmatprep.mubr.f32.mxu0 0.0
      %4244 = vmatmul.mubr.f32.gmra.mrb[0].mxu0 %v425
      %v4245 = vpop.f32.mrb[0].mxu0
      %v4246 = vadd.f32 %v2959, %v4245
      %v4247 = vpop.f32.mrb[0].mxu0
      %4248 = vmatprep.mubr.f32.mxu0 0.0
      %4249 = vmatmul.mubr.f32.gmra.mrb[0].mxu0 %v426
      %v4250 = vpop.f32.mrb[0].mxu0
      %v4251 = vadd.f32 %v2961, %v4250
      %v4252 = vpop.f32.mrb[0].mxu0
      %4253 = vmatprep.mubr.f32.mxu0 0.0
      %4254 = vmatmul.mubr.f32.gmra.mrb[0].mxu0 %v427
      %v4255 = vpop.f32.mrb[0].mxu0
      %v4256 = vadd.f32 %v2963, %v4255
      %v4257 = vpop.f32.mrb[0].mxu0
      %4258 = vmatprep.mubr.f32.mxu0 0.0
      %4259 = vmatmul.mubr.f32.gmra.mrb[0].mxu0 %v428
      %v4260 = vpop.f32.mrb[0].mxu0
      %v4261 = vadd.f32 %v2965, %v4260
      %v4262 = vpop.f32.mrb[0].mxu0
      %4263 = vmatprep.mubr.f32.mxu0 0.0
      %4264 = vmatmul.mubr.f32.gmra.mrb[0].mxu0 %v429
      %v4265 = vpop.f32.mrb[0].mxu0
      %v4266 = vadd.f32 %v2967, %v4265
      %v4267 = vpop.f32.mrb[0].mxu0
      %4268 = vmatprep.mubr.f32.mxu0 0.0
      %4269 = vmatmul.mubr.f32.gmra.mrb[0].mxu0 %v430
      %v4270 = vpop.f32.mrb[0].mxu0
      %v4271 = vadd.f32 %v2969, %v4270
      %v4272 = vpop.f32.mrb[0].mxu0
      %4273 = vdwg.mxu0
      %vm4274 = vcmp.gt.f32.partialorder %v4196, 0.0
      %vm4275 = vcmp.gt.f32.partialorder %v4201, 0.0
      %vm4276 = vcmp.gt.f32.partialorder %v4206, 0.0
      %vm4277 = vcmp.gt.f32.partialorder %v4211, 0.0
      %vm4278 = vcmp.gt.f32.partialorder %v4216, 0.0
      %vm4279 = vcmp.gt.f32.partialorder %v4221, 0.0
      %vm4280 = vcmp.gt.f32.partialorder %v4226, 0.0
      %vm4281 = vcmp.gt.f32.partialorder %v4231, 0.0
      %vm4282 = vcmp.gt.f32.partialorder %v4236, 0.0
      %vm4283 = vcmp.gt.f32.partialorder %v4241, 0.0
      %vm4284 = vcmp.gt.f32.partialorder %v4246, 0.0
      %vm4285 = vcmp.gt.f32.partialorder %v4251, 0.0
      %vm4286 = vcmp.gt.f32.partialorder %v4256, 0.0
      %vm4287 = vcmp.gt.f32.partialorder %v4261, 0.0
      %vm4288 = vcmp.gt.f32.partialorder %v4266, 0.0
      %vm4289 = vcmp.gt.f32.partialorder %v4271, 0.0
      %v4290 = vrsqrt.pop %v4196
      %v4291 = vrsqrt.pop %v4201
      %v4292 = vrsqrt.pop %v4206
      %v4293 = vrsqrt.pop %v4211
      %v4294 = vrsqrt.pop %v4216
      %v4295 = vrsqrt.pop %v4221
      %v4296 = vrsqrt.pop %v4226
      %v4297 = vrsqrt.pop %v4231
      %v4298 = vrsqrt.pop %v4236
      %v4299 = vrsqrt.pop %v4241
      %v4300 = vrsqrt.pop %v4246
      %v4301 = vrsqrt.pop %v4251
      %v4302 = vrsqrt.pop %v4256
      %v4303 = vrsqrt.pop %v4261
      %v4304 = vrsqrt.pop %v4266
      %v4305 = vrsqrt.pop %v4271
      %v4306 = vsel %vm4274, %v4290, 0.0
      %v4307 = vsel %vm4275, %v4291, 0.0
      %v4308 = vsel %vm4276, %v4292, 0.0
      %v4309 = vsel %vm4277, %v4293, 0.0
      %v4310 = vsel %vm4278, %v4294, 0.0
      %v4311 = vsel %vm4279, %v4295, 0.0
      %v4312 = vsel %vm4280, %v4296, 0.0
      %v4313 = vsel %vm4281, %v4297, 0.0
      %v4314 = vsel %vm4282, %v4298, 0.0
      %v4315 = vsel %vm4283, %v4299, 0.0
      %v4316 = vsel %vm4284, %v4300, 0.0
      %v4317 = vsel %vm4285, %v4301, 0.0
      %v4318 = vsel %vm4286, %v4302, 0.0
      %v4319 = vsel %vm4287, %v4303, 0.0
      %v4320 = vsel %vm4288, %v4304, 0.0
      %v4321 = vsel %vm4289, %v4305, 0.0
      %4323 = vset.pattern.permute.xlu0 0
      %4324 = vperm.xlu0 %4323, %v4306
      %v4325 = vpop.permute.xlu0 %4324
      %4328 = vset.pattern.permute.xlu0 0
      %4329 = vperm.xlu0 %4328, %v4307
      %v4330 = vpop.permute.xlu0 %4329
      %4333 = vset.pattern.permute.xlu0 0
      %4334 = vperm.xlu0 %4333, %v4308
      %v4335 = vpop.permute.xlu0 %4334
      %4338 = vset.pattern.permute.xlu0 0
      %4339 = vperm.xlu0 %4338, %v4309
      %v4340 = vpop.permute.xlu0 %4339
      %4343 = vset.pattern.permute.xlu0 0
      %4344 = vperm.xlu0 %4343, %v4310
      %v4345 = vpop.permute.xlu0 %4344
      %4348 = vset.pattern.permute.xlu0 0
      %4349 = vperm.xlu0 %4348, %v4311
      %v4350 = vpop.permute.xlu0 %4349
      %4353 = vset.pattern.permute.xlu0 0
      %4354 = vperm.xlu0 %4353, %v4312
      %v4355 = vpop.permute.xlu0 %4354
      %4358 = vset.pattern.permute.xlu0 0
      %4359 = vperm.xlu0 %4358, %v4313
      %v4360 = vpop.permute.xlu0 %4359
      %4363 = vset.pattern.permute.xlu0 0
      %4364 = vperm.xlu0 %4363, %v4314
      %v4365 = vpop.permute.xlu0 %4364
      %4368 = vset.pattern.permute.xlu0 0
      %4369 = vperm.xlu0 %4368, %v4315
      %v4370 = vpop.permute.xlu0 %4369
      %4373 = vset.pattern.permute.xlu0 0
      %4374 = vperm.xlu0 %4373, %v4316
      %v4375 = vpop.permute.xlu0 %4374
      %4378 = vset.pattern.permute.xlu0 0
      %4379 = vperm.xlu0 %4378, %v4317
      %v4380 = vpop.permute.xlu0 %4379
      %4383 = vset.pattern.permute.xlu0 0
      %4384 = vperm.xlu0 %4383, %v4318
      %v4385 = vpop.permute.xlu0 %4384
      %4388 = vset.pattern.permute.xlu0 0
      %4389 = vperm.xlu0 %4388, %v4319
      %v4390 = vpop.permute.xlu0 %4389
      %4393 = vset.pattern.permute.xlu0 0
      %4394 = vperm.xlu0 %4393, %v4320
      %v4395 = vpop.permute.xlu0 %4394
      %4398 = vset.pattern.permute.xlu0 0
      %4399 = vperm.xlu0 %4398, %v4321
      %v4400 = vpop.permute.xlu0 %4399
      %v4402 = vmul.f32 %v4325, %v4051
      %v4403 = vmul.f32 %v4330, %v4056
      %v4404 = vmul.f32 %v4335, %v4061
      %v4405 = vmul.f32 %v4340, %v4066
      %v4406 = vmul.f32 %v4345, %v4071
      %v4407 = vmul.f32 %v4350, %v4076
      %v4408 = vmul.f32 %v4355, %v4081
      %v4409 = vmul.f32 %v4360, %v4086
      %v4410 = vmul.f32 %v4365, %v4091
      %v4411 = vmul.f32 %v4370, %v4096
      %v4412 = vmul.f32 %v4375, %v4101
      %v4413 = vmul.f32 %v4380, %v4106
      %v4414 = vmul.f32 %v4385, %v4111
      %v4415 = vmul.f32 %v4390, %v4116
      %v4416 = vmul.f32 %v4395, %v4121
      %v4417 = vmul.f32 %v4400, %v4126
      %4418 = vset.pattern.permute.xlu0 1
      %4419 = vperm.xlu0 %4418, %v2906
      %v4420 = vpop.permute.xlu0 %4419
      %4422 = vset.pattern.permute.xlu0 1
      %4423 = vperm.xlu0 %4422, %v2907
      %v4424 = vpop.permute.xlu0 %4423
      %4426 = vset.pattern.permute.xlu0 1
      %4427 = vperm.xlu0 %4426, %v2908
      %v4428 = vpop.permute.xlu0 %4427
      %4430 = vset.pattern.permute.xlu0 1
      %4431 = vperm.xlu0 %4430, %v2909
      %v4432 = vpop.permute.xlu0 %4431
      %4434 = vset.pattern.permute.xlu0 1
      %4435 = vperm.xlu0 %4434, %v2910
      %v4436 = vpop.permute.xlu0 %4435
      %4438 = vset.pattern.permute.xlu0 1
      %4439 = vperm.xlu0 %4438, %v2911
      %v4440 = vpop.permute.xlu0 %4439
      %4442 = vset.pattern.permute.xlu0 1
      %4443 = vperm.xlu0 %4442, %v2912
      %v4444 = vpop.permute.xlu0 %4443
      %4446 = vset.pattern.permute.xlu0 1
      %4447 = vperm.xlu0 %4446, %v2913
      %v4448 = vpop.permute.xlu0 %4447
      %4450 = vset.pattern.permute.xlu0 1
      %4451 = vperm.xlu0 %4450, %v2914
      %v4452 = vpop.permute.xlu0 %4451
      %4454 = vset.pattern.permute.xlu0 1
      %4455 = vperm.xlu0 %4454, %v2915
      %v4456 = vpop.permute.xlu0 %4455
      %4458 = vset.pattern.permute.xlu0 1
      %4459 = vperm.xlu0 %4458, %v2916
      %v4460 = vpop.permute.xlu0 %4459
      %4462 = vset.pattern.permute.xlu0 1
      %4463 = vperm.xlu0 %4462, %v2917
      %v4464 = vpop.permute.xlu0 %4463
      %4466 = vset.pattern.permute.xlu0 1
      %4467 = vperm.xlu0 %4466, %v2918
      %v4468 = vpop.permute.xlu0 %4467
      %4470 = vset.pattern.permute.xlu0 1
      %4471 = vperm.xlu0 %4470, %v2919
      %v4472 = vpop.permute.xlu0 %4471
      %4474 = vset.pattern.permute.xlu0 1
      %4475 = vperm.xlu0 %4474, %v2920
      %v4476 = vpop.permute.xlu0 %4475
      %4478 = vset.pattern.permute.xlu0 1
      %4479 = vperm.xlu0 %4478, %v2921
      %v4480 = vpop.permute.xlu0 %4479
      %v4482 = vmul.f32 %v4420, %v4402
      %v4483 = vmul.f32 %v4424, %v4403
      %v4484 = vmul.f32 %v4428, %v4404
      %v4485 = vmul.f32 %v4432, %v4405
      %v4486 = vmul.f32 %v4436, %v4406
      %v4487 = vmul.f32 %v4440, %v4407
      %v4488 = vmul.f32 %v4444, %v4408
      %v4489 = vmul.f32 %v4448, %v4409
      %v4490 = vmul.f32 %v4452, %v4410
      %v4491 = vmul.f32 %v4456, %v4411
      %v4492 = vmul.f32 %v4460, %v4412
      %v4493 = vmul.f32 %v4464, %v4413
      %v4494 = vmul.f32 %v4468, %v4414
      %v4495 = vmul.f32 %v4472, %v4415
      %v4496 = vmul.f32 %v4476, %v4416
      %v4497 = vmul.f32 %v4480, %v4417
      %4498 = vmatprep.subr.mxu0 0.0
      %4499 = vmatpush1.msra.mxu0 %v4402
      %4500 = vmatprep.subr.mxu0 0.0
      %4501 = vmatpush1.msra.mxu0 %v4403
      %4502 = vmatprep.subr.mxu0 0.0
      %4503 = vmatpush1.msra.mxu0 %v4404
      %4504 = vmatprep.subr.mxu0 0.0
      %4505 = vmatpush1.msra.mxu0 %v4405
      %4506 = vmatprep.subr.mxu0 0.0
      %4507 = vmatpush1.msra.mxu0 %v4406
      %4508 = vmatprep.subr.mxu0 0.0
      %4509 = vmatpush1.msra.mxu0 %v4407
      %4510 = vmatprep.subr.mxu0 0.0
      %4511 = vmatpush1.msra.mxu0 %v4408
      %4512 = vmatprep.subr.mxu0 0.0
      %4513 = vmatpush1.msra.mxu0 %v4409
      %4514 = vmatprep.subr.mxu0 0.0
      %4515 = vmatpush1.msra.mxu0 %v4410
      %4516 = vmatprep.subr.mxu0 0.0
      %4517 = vmatpush1.msra.mxu0 %v4411
      %4518 = vmatprep.subr.mxu0 0.0
      %4519 = vmatpush1.msra.mxu0 %v4412
      %4520 = vmatprep.subr.mxu0 0.0
      %4521 = vmatpush1.msra.mxu0 %v4413
      %4522 = vmatprep.subr.mxu0 0.0
      %4523 = vmatpush1.msra.mxu0 %v4414
      %4524 = vmatprep.subr.mxu0 0.0
      %4525 = vmatpush1.msra.mxu0 %v4415
      %4526 = vmatprep.subr.mxu0 0.0
      %4527 = vmatpush1.msra.mxu0 %v4416
      %4528 = vmatprep.subr.mxu0 0.0
      %4529 = vmatpush1.msra.mxu0 %v4417
      %4530 = vmatprep.subr.mxu0 0.0
      %4531 = vmatpush1.msra.mxu0 0.0
      %4532 = vmatprep.subr.mxu0 0.0
      %4533 = vmatpush1.msra.mxu0 0.0
      %4534 = vmatprep.subr.mxu0 0.0
      %4535 = vmatpush1.msra.mxu0 0.0
      %4536 = vmatprep.subr.mxu0 0.0
      %4537 = vmatpush1.msra.mxu0 0.0
      %4538 = vmatprep.subr.mxu0 0.0
      %4539 = vmatpush1.msra.mxu0 0.0
      %4540 = vmatprep.subr.mxu0 0.0
      %4541 = vmatpush1.msra.mxu0 0.0
      %4542 = vmatprep.subr.mxu0 0.0
      %4543 = vmatpush1.msra.mxu0 0.0
      %4544 = vmatprep.subr.mxu0 0.0
      %4545 = vmatpush1.msra.mxu0 0.0
      %4546 = vmatprep.subr.mxu0 0.0
      %4547 = vmatpush1.msra.mxu0 0.0
      %4548 = vmatprep.subr.mxu0 0.0
      %4549 = vmatpush1.msra.mxu0 0.0
      %4550 = vmatprep.subr.mxu0 0.0
      %4551 = vmatpush1.msra.mxu0 0.0
      %4552 = vmatprep.subr.mxu0 0.0
      %4553 = vmatpush1.msra.mxu0 0.0
      %4554 = vmatprep.subr.mxu0 0.0
      %4555 = vmatpush1.msra.mxu0 0.0
      %4556 = vmatprep.subr.mxu0 0.0
      %4557 = vmatpush1.msra.mxu0 0.0
      %4558 = vmatprep.subr.mxu0 0.0
      %4559 = vmatpush1.msra.mxu0 0.0
      %4560 = vmatprep.subr.mxu0 0.0
      %4561 = vmatpush1.msra.mxu0 0.0
      %4562 = vmatprep.mubr.f32.mxu0 0.0
      %4563 = vmatmul.mubr.f32.gmra.mrb[0].mxu0 %v415
      %v4564 = vpop.f32.mrb[0].mxu0
      %v4565 = vadd.f32 %v4482, %v4564
      %v4566 = vpop.f32.mrb[0].mxu0
      %4567 = vmatprep.mubr.f32.mxu0 0.0
      %4568 = vmatmul.mubr.f32.gmra.mrb[0].mxu0 %v416
      %v4569 = vpop.f32.mrb[0].mxu0
      %v4570 = vadd.f32 %v4483, %v4569
      %v4571 = vpop.f32.mrb[0].mxu0
      %4572 = vmatprep.mubr.f32.mxu0 0.0
      %4573 = vmatmul.mubr.f32.gmra.mrb[0].mxu0 %v417
      %v4574 = vpop.f32.mrb[0].mxu0
      %v4575 = vadd.f32 %v4484, %v4574
      %v4576 = vpop.f32.mrb[0].mxu0
      %4577 = vmatprep.mubr.f32.mxu0 0.0
      %4578 = vmatmul.mubr.f32.gmra.mrb[0].mxu0 %v418
      %v4579 = vpop.f32.mrb[0].mxu0
      %v4580 = vadd.f32 %v4485, %v4579
      %v4581 = vpop.f32.mrb[0].mxu0
      %4582 = vmatprep.mubr.f32.mxu0 0.0
      %4583 = vmatmul.mubr.f32.gmra.mrb[0].mxu0 %v419
      %v4584 = vpop.f32.mrb[0].mxu0
      %v4585 = vadd.f32 %v4486, %v4584
      %v4586 = vpop.f32.mrb[0].mxu0
      %4587 = vmatprep.mubr.f32.mxu0 0.0
      %4588 = vmatmul.mubr.f32.gmra.mrb[0].mxu0 %v420
      %v4589 = vpop.f32.mrb[0].mxu0
      %v4590 = vadd.f32 %v4487, %v4589
      %v4591 = vpop.f32.mrb[0].mxu0
      %4592 = vmatprep.mubr.f32.mxu0 0.0
      %4593 = vmatmul.mubr.f32.gmra.mrb[0].mxu0 %v421
      %v4594 = vpop.f32.mrb[0].mxu0
      %v4595 = vadd.f32 %v4488, %v4594
      %v4596 = vpop.f32.mrb[0].mxu0
      %4597 = vmatprep.mubr.f32.mxu0 0.0
      %4598 = vmatmul.mubr.f32.gmra.mrb[0].mxu0 %v422
      %v4599 = vpop.f32.mrb[0].mxu0
      %v4600 = vadd.f32 %v4489, %v4599
      %v4601 = vpop.f32.mrb[0].mxu0
      %4602 = vmatprep.mubr.f32.mxu0 0.0
      %4603 = vmatmul.mubr.f32.gmra.mrb[0].mxu0 %v423
      %v4604 = vpop.f32.mrb[0].mxu0
      %v4605 = vadd.f32 %v4490, %v4604
      %v4606 = vpop.f32.mrb[0].mxu0
      %4607 = vmatprep.mubr.f32.mxu0 0.0
      %4608 = vmatmul.mubr.f32.gmra.mrb[0].mxu0 %v424
      %v4609 = vpop.f32.mrb[0].mxu0
      %v4610 = vadd.f32 %v4491, %v4609
      %v4611 = vpop.f32.mrb[0].mxu0
      %4612 = vmatprep.mubr.f32.mxu0 0.0
      %4613 = vmatmul.mubr.f32.gmra.mrb[0].mxu0 %v425
      %v4614 = vpop.f32.mrb[0].mxu0
      %v4615 = vadd.f32 %v4492, %v4614
      %v4616 = vpop.f32.mrb[0].mxu0
      %4617 = vmatprep.mubr.f32.mxu0 0.0
      %4618 = vmatmul.mubr.f32.gmra.mrb[0].mxu0 %v426
      %v4619 = vpop.f32.mrb[0].mxu0
      %v4620 = vadd.f32 %v4493, %v4619
      %v4621 = vpop.f32.mrb[0].mxu0
      %4622 = vmatprep.mubr.f32.mxu0 0.0
      %4623 = vmatmul.mubr.f32.gmra.mrb[0].mxu0 %v427
      %v4624 = vpop.f32.mrb[0].mxu0
      %v4625 = vadd.f32 %v4494, %v4624
      %v4626 = vpop.f32.mrb[0].mxu0
      %4627 = vmatprep.mubr.f32.mxu0 0.0
      %4628 = vmatmul.mubr.f32.gmra.mrb[0].mxu0 %v428
      %v4629 = vpop.f32.mrb[0].mxu0
      %v4630 = vadd.f32 %v4495, %v4629
      %v4631 = vpop.f32.mrb[0].mxu0
      %4632 = vmatprep.mubr.f32.mxu0 0.0
      %4633 = vmatmul.mubr.f32.gmra.mrb[0].mxu0 %v429
      %v4634 = vpop.f32.mrb[0].mxu0
      %v4635 = vadd.f32 %v4496, %v4634
      %v4636 = vpop.f32.mrb[0].mxu0
      %4637 = vmatprep.mubr.f32.mxu0 0.0
      %4638 = vmatmul.mubr.f32.gmra.mrb[0].mxu0 %v430
      %v4639 = vpop.f32.mrb[0].mxu0
      %v4640 = vadd.f32 %v4497, %v4639
      %v4641 = vpop.f32.mrb[0].mxu0
      %4642 = vdwg.mxu0
      %v4643 = vmul.f32 %v4325, %v4565
      %v4644 = vmul.f32 %v4330, %v4570
      %v4645 = vmul.f32 %v4335, %v4575
      %v4646 = vmul.f32 %v4340, %v4580
      %v4647 = vmul.f32 %v4345, %v4585
      %v4648 = vmul.f32 %v4350, %v4590
      %v4649 = vmul.f32 %v4355, %v4595
      %v4650 = vmul.f32 %v4360, %v4600
      %v4651 = vmul.f32 %v4365, %v4605
      %v4652 = vmul.f32 %v4370, %v4610
      %v4653 = vmul.f32 %v4375, %v4615
      %v4654 = vmul.f32 %v4380, %v4620
      %v4655 = vmul.f32 %v4385, %v4625
      %v4656 = vmul.f32 %v4390, %v4630
      %v4657 = vmul.f32 %v4395, %v4635
      %v4658 = vmul.f32 %v4400, %v4640
      %v4659 = vlaneseq
      %v4660 = vshrl.u32 %v4659, 7
      %v4661 = vsub.s32 0, %v4660
      %v4662 = vrot.slane %v3930, %v4661
      %v4663 = vadd.f32 %v4643, %v4662
      %v4664 = vadd.f32 %v4644, %v4662
      %v4665 = vadd.f32 %v4645, %v4662
      %v4666 = vadd.f32 %v4646, %v4662
      %v4667 = vadd.f32 %v4647, %v4662
      %v4668 = vadd.f32 %v4648, %v4662
      %v4669 = vadd.f32 %v4649, %v4662
      %v4670 = vadd.f32 %v4650, %v4662
      %v4671 = vadd.f32 %v4651, %v4662
      %v4672 = vadd.f32 %v4652, %v4662
      %v4673 = vadd.f32 %v4653, %v4662
      %v4674 = vadd.f32 %v4654, %v4662
      %v4675 = vadd.f32 %v4655, %v4662
      %v4676 = vadd.f32 %v4656, %v4662
      %v4677 = vadd.f32 %v4657, %v4662
      %v4678 = vadd.f32 %v4658, %v4662
      %v4679 = vmax.f32 %v4663, 0.0
      %v4680 = vmax.f32 %v4664, 0.0
      %v4681 = vmax.f32 %v4665, 0.0
      %v4682 = vmax.f32 %v4666, 0.0
      %v4683 = vmax.f32 %v4667, 0.0
      %v4684 = vmax.f32 %v4668, 0.0
      %v4685 = vmax.f32 %v4669, 0.0
      %v4686 = vmax.f32 %v4670, 0.0
      %v4687 = vmax.f32 %v4671, 0.0
      %v4688 = vmax.f32 %v4672, 0.0
      %v4689 = vmax.f32 %v4673, 0.0
      %v4690 = vmax.f32 %v4674, 0.0
      %v4691 = vmax.f32 %v4675, 0.0
      %v4692 = vmax.f32 %v4676, 0.0
      %v4693 = vmax.f32 %v4677, 0.0
      %v4694 = vmax.f32 %v4678, 0.0
      %v4695 = vmul.f32 %v4679, %v4420
      %v4696 = vmul.f32 %v4680, %v4424
      %v4697 = vmul.f32 %v4681, %v4428
      %v4698 = vmul.f32 %v4682, %v4432
      %v4699 = vmul.f32 %v4683, %v4436
      %v4700 = vmul.f32 %v4684, %v4440
      %v4701 = vmul.f32 %v4685, %v4444
      %v4702 = vmul.f32 %v4686, %v4448
      %v4703 = vmul.f32 %v4687, %v4452
      %v4704 = vmul.f32 %v4688, %v4456
      %v4705 = vmul.f32 %v4689, %v4460
      %v4706 = vmul.f32 %v4690, %v4464
      %v4707 = vmul.f32 %v4691, %v4468
      %v4708 = vmul.f32 %v4692, %v4472
      %v4709 = vmul.f32 %v4693, %v4476
      %v4710 = vmul.f32 %v4694, %v4480
      %4711 = vmatprep.subr.mxu0 0.0
      %4712 = vmatpush1.msra.mxu0 %v4695
      %4713 = vmatprep.subr.mxu0 0.0
      %4714 = vmatpush1.msra.mxu0 %v4696
      %4715 = vmatprep.subr.mxu0 0.0
      %4716 = vmatpush1.msra.mxu0 %v4697
      %4717 = vmatprep.subr.mxu0 0.0
      %4718 = vmatpush1.msra.mxu0 %v4698
      %4719 = vmatprep.subr.mxu0 0.0
      %4720 = vmatpush1.msra.mxu0 %v4699
      %4721 = vmatprep.subr.mxu0 0.0
      %4722 = vmatpush1.msra.mxu0 %v4700
      %4723 = vmatprep.subr.mxu0 0.0
      %4724 = vmatpush1.msra.mxu0 %v4701
      %4725 = vmatprep.subr.mxu0 0.0
      %4726 = vmatpush1.msra.mxu0 %v4702
      %4727 = vmatprep.subr.mxu0 0.0
      %4728 = vmatpush1.msra.mxu0 %v4703
      %4729 = vmatprep.subr.mxu0 0.0
      %4730 = vmatpush1.msra.mxu0 %v4704
      %4731 = vmatprep.subr.mxu0 0.0
      %4732 = vmatpush1.msra.mxu0 %v4705
      %4733 = vmatprep.subr.mxu0 0.0
      %4734 = vmatpush1.msra.mxu0 %v4706
      %4735 = vmatprep.subr.mxu0 0.0
      %4736 = vmatpush1.msra.mxu0 %v4707
      %4737 = vmatprep.subr.mxu0 0.0
      %4738 = vmatpush1.msra.mxu0 %v4708
      %4739 = vmatprep.subr.mxu0 0.0
      %4740 = vmatpush1.msra.mxu0 %v4709
      %4741 = vmatprep.subr.mxu0 0.0
      %4742 = vmatpush1.msra.mxu0 %v4710
      %4743 = vmatprep.subr.mxu0 0.0
      %4744 = vmatpush1.msra.mxu0 0.0
      %4745 = vmatprep.subr.mxu0 0.0
      %4746 = vmatpush1.msra.mxu0 0.0
      %4747 = vmatprep.subr.mxu0 0.0
      %4748 = vmatpush1.msra.mxu0 0.0
      %4749 = vmatprep.subr.mxu0 0.0
      %4750 = vmatpush1.msra.mxu0 0.0
      %4751 = vmatprep.subr.mxu0 0.0
      %4752 = vmatpush1.msra.mxu0 0.0
      %4753 = vmatprep.subr.mxu0 0.0
      %4754 = vmatpush1.msra.mxu0 0.0
      %4755 = vmatprep.subr.mxu0 0.0
      %4756 = vmatpush1.msra.mxu0 0.0
      %4757 = vmatprep.subr.mxu0 0.0
      %4758 = vmatpush1.msra.mxu0 0.0
      %4759 = vmatprep.subr.mxu0 0.0
      %4760 = vmatpush1.msra.mxu0 0.0
      %4761 = vmatprep.subr.mxu0 0.0
      %4762 = vmatpush1.msra.mxu0 0.0
      %4763 = vmatprep.subr.mxu0 0.0
      %4764 = vmatpush1.msra.mxu0 0.0
      %4765 = vmatprep.subr.mxu0 0.0
      %4766 = vmatpush1.msra.mxu0 0.0
      %4767 = vmatprep.subr.mxu0 0.0
      %4768 = vmatpush1.msra.mxu0 0.0
      %4769 = vmatprep.subr.mxu0 0.0
      %4770 = vmatpush1.msra.mxu0 0.0
      %4771 = vmatprep.subr.mxu0 0.0
      %4772 = vmatpush1.msra.mxu0 0.0
      %4773 = vmatprep.subr.mxu0 0.0
      %4774 = vmatpush1.msra.mxu0 0.0
      %4775 = vmatprep.mubr.f32.mxu0 0.0
      %4776 = vmatmul.mubr.f32.gmra.mrb[0].mxu0 %v415
      %v4777 = vpop.f32.mrb[0].mxu0
      %v4778 = vadd.f32 0.0, %v4777
      %v4779 = vpop.f32.mrb[0].mxu0
      %4780 = vmatprep.mubr.f32.mxu0 0.0
      %4781 = vmatmul.mubr.f32.gmra.mrb[0].mxu0 %v416
      %v4782 = vpop.f32.mrb[0].mxu0
      %v4783 = vadd.f32 0.0, %v4782
      %v4784 = vpop.f32.mrb[0].mxu0
      %4785 = vmatprep.mubr.f32.mxu0 0.0
      %4786 = vmatmul.mubr.f32.gmra.mrb[0].mxu0 %v417
      %v4787 = vpop.f32.mrb[0].mxu0
      %v4788 = vadd.f32 0.0, %v4787
      %v4789 = vpop.f32.mrb[0].mxu0
      %4790 = vmatprep.mubr.f32.mxu0 0.0
      %4791 = vmatmul.mubr.f32.gmra.mrb[0].mxu0 %v418
      %v4792 = vpop.f32.mrb[0].mxu0
      %v4793 = vadd.f32 0.0, %v4792
      %v4794 = vpop.f32.mrb[0].mxu0
      %4795 = vmatprep.mubr.f32.mxu0 0.0
      %4796 = vmatmul.mubr.f32.gmra.mrb[0].mxu0 %v419
      %v4797 = vpop.f32.mrb[0].mxu0
      %v4798 = vadd.f32 0.0, %v4797
      %v4799 = vpop.f32.mrb[0].mxu0
      %4800 = vmatprep.mubr.f32.mxu0 0.0
      %4801 = vmatmul.mubr.f32.gmra.mrb[0].mxu0 %v420
      %v4802 = vpop.f32.mrb[0].mxu0
      %v4803 = vadd.f32 0.0, %v4802
      %v4804 = vpop.f32.mrb[0].mxu0
      %4805 = vmatprep.mubr.f32.mxu0 0.0
      %4806 = vmatmul.mubr.f32.gmra.mrb[0].mxu0 %v421
      %v4807 = vpop.f32.mrb[0].mxu0
      %v4808 = vadd.f32 0.0, %v4807
      %v4809 = vpop.f32.mrb[0].mxu0
      %4810 = vmatprep.mubr.f32.mxu0 0.0
      %4811 = vmatmul.mubr.f32.gmra.mrb[0].mxu0 %v422
      %v4812 = vpop.f32.mrb[0].mxu0
      %v4813 = vadd.f32 0.0, %v4812
      %v4814 = vpop.f32.mrb[0].mxu0
      %4815 = vmatprep.mubr.f32.mxu0 0.0
      %4816 = vmatmul.mubr.f32.gmra.mrb[0].mxu0 %v423
      %v4817 = vpop.f32.mrb[0].mxu0
      %v4818 = vadd.f32 0.0, %v4817
      %v4819 = vpop.f32.mrb[0].mxu0
      %4820 = vmatprep.mubr.f32.mxu0 0.0
      %4821 = vmatmul.mubr.f32.gmra.mrb[0].mxu0 %v424
      %v4822 = vpop.f32.mrb[0].mxu0
      %v4823 = vadd.f32 0.0, %v4822
      %v4824 = vpop.f32.mrb[0].mxu0
      %4825 = vmatprep.mubr.f32.mxu0 0.0
      %4826 = vmatmul.mubr.f32.gmra.mrb[0].mxu0 %v425
      %v4827 = vpop.f32.mrb[0].mxu0
      %v4828 = vadd.f32 0.0, %v4827
      %v4829 = vpop.f32.mrb[0].mxu0
      %4830 = vmatprep.mubr.f32.mxu0 0.0
      %4831 = vmatmul.mubr.f32.gmra.mrb[0].mxu0 %v426
      %v4832 = vpop.f32.mrb[0].mxu0
      %v4833 = vadd.f32 0.0, %v4832
      %v4834 = vpop.f32.mrb[0].mxu0
      %4835 = vmatprep.mubr.f32.mxu0 0.0
      %4836 = vmatmul.mubr.f32.gmra.mrb[0].mxu0 %v427
      %v4837 = vpop.f32.mrb[0].mxu0
      %v4838 = vadd.f32 0.0, %v4837
      %v4839 = vpop.f32.mrb[0].mxu0
      %4840 = vmatprep.mubr.f32.mxu0 0.0
      %4841 = vmatmul.mubr.f32.gmra.mrb[0].mxu0 %v428
      %v4842 = vpop.f32.mrb[0].mxu0
      %v4843 = vadd.f32 0.0, %v4842
      %v4844 = vpop.f32.mrb[0].mxu0
      %4845 = vmatprep.mubr.f32.mxu0 0.0
      %4846 = vmatmul.mubr.f32.gmra.mrb[0].mxu0 %v429
      %v4847 = vpop.f32.mrb[0].mxu0
      %v4848 = vadd.f32 0.0, %v4847
      %v4849 = vpop.f32.mrb[0].mxu0
      %4850 = vmatprep.mubr.f32.mxu0 0.0
      %4851 = vmatmul.mubr.f32.gmra.mrb[0].mxu0 %v430
      %v4852 = vpop.f32.mrb[0].mxu0
      %v4853 = vadd.f32 0.0, %v4852
      %v4854 = vpop.f32.mrb[0].mxu0
      %4855 = vdwg.mxu0
      %4860 = vrot.lane.b32.xlu0 %v3932, 127
      %v4861 = vpop.permute.xlu0 %4860
      %4862 = vrot.lane.b32.xlu0 %v3933, 127
      %v4863 = vpop.permute.xlu0 %4862
      %4864 = vrot.lane.b32.xlu0 %v3934, 127
      %v4865 = vpop.permute.xlu0 %4864
      %4866 = vrot.lane.b32.xlu0 %v3935, 127
      %v4867 = vpop.permute.xlu0 %4866
      %v4873 = vsel %vm757, %v4695, 0
      %v4876 = vsel %vm757, %v4696, 0
      %v4879 = vsel %vm757, %v4697, 0
      %v4882 = vsel %vm757, %v4698, 0
      %v4885 = vsel %vm757, %v4699, 0
      %v4888 = vsel %vm757, %v4700, 0
      %v4891 = vsel %vm757, %v4701, 0
      %v4894 = vsel %vm757, %v4702, 0
      %v4897 = vsel %vm757, %v4703, 0
      %v4900 = vsel %vm757, %v4704, 0
      %v4903 = vsel %vm757, %v4705, 0
      %v4906 = vsel %vm757, %v4706, 0
      %v4909 = vsel %vm757, %v4707, 0
      %v4912 = vsel %vm757, %v4708, 0
      %v4915 = vsel %vm757, %v4709, 0
      %v4918 = vsel %vm757, %v4710, 0
      %4920 = vmatprep.subr.mxu0 0.0
      %4921 = vmatpush1.msra.mxu0 %v4861
      %4922 = vmatprep.subr.mxu0 0.0
      %4923 = vmatpush1.msra.mxu0 %v4863
      %4924 = vmatprep.subr.mxu0 0.0
      %4925 = vmatpush1.msra.mxu0 %v4865
      %4926 = vmatprep.subr.mxu0 0.0
      %4927 = vmatpush1.msra.mxu0 %v4867
      %4928 = vmatprep.subr.mxu0 0.0
      %4929 = vmatpush1.msra.mxu0 0.0
      %4930 = vmatprep.subr.mxu0 0.0
      %4931 = vmatpush1.msra.mxu0 0.0
      %4932 = vmatprep.subr.mxu0 0.0
      %4933 = vmatpush1.msra.mxu0 0.0
      %4934 = vmatprep.subr.mxu0 0.0
      %4935 = vmatpush1.msra.mxu0 0.0
      %4936 = vmatprep.subr.mxu0 0.0
      %4937 = vmatpush1.msra.mxu0 0.0
      %4938 = vmatprep.subr.mxu0 0.0
      %4939 = vmatpush1.msra.mxu0 0.0
      %4940 = vmatprep.subr.mxu0 0.0
      %4941 = vmatpush1.msra.mxu0 0.0
      %4942 = vmatprep.subr.mxu0 0.0
      %4943 = vmatpush1.msra.mxu0 0.0
      %4944 = vmatprep.subr.mxu0 0.0
      %4945 = vmatpush1.msra.mxu0 0.0
      %4946 = vmatprep.subr.mxu0 0.0
      %4947 = vmatpush1.msra.mxu0 0.0
      %4948 = vmatprep.subr.mxu0 0.0
      %4949 = vmatpush1.msra.mxu0 0.0
      %4950 = vmatprep.subr.mxu0 0.0
      %4951 = vmatpush1.msra.mxu0 0.0
      %4952 = vmatprep.subr.mxu0 0.0
      %4953 = vmatpush1.msra.mxu0 0.0
      %4954 = vmatprep.subr.mxu0 0.0
      %4955 = vmatpush1.msra.mxu0 0.0
      %4956 = vmatprep.subr.mxu0 0.0
      %4957 = vmatpush1.msra.mxu0 0.0
      %4958 = vmatprep.subr.mxu0 0.0
      %4959 = vmatpush1.msra.mxu0 0.0
      %4960 = vmatprep.subr.mxu0 0.0
      %4961 = vmatpush1.msra.mxu0 0.0
      %4962 = vmatprep.subr.mxu0 0.0
      %4963 = vmatpush1.msra.mxu0 0.0
      %4964 = vmatprep.subr.mxu0 0.0
      %4965 = vmatpush1.msra.mxu0 0.0
      %4966 = vmatprep.subr.mxu0 0.0
      %4967 = vmatpush1.msra.mxu0 0.0
      %4968 = vmatprep.subr.mxu0 0.0
      %4969 = vmatpush1.msra.mxu0 0.0
      %4970 = vmatprep.subr.mxu0 0.0
      %4971 = vmatpush1.msra.mxu0 0.0
      %4972 = vmatprep.subr.mxu0 0.0
      %4973 = vmatpush1.msra.mxu0 0.0
      %4974 = vmatprep.subr.mxu0 0.0
      %4975 = vmatpush1.msra.mxu0 0.0
      %4976 = vmatprep.subr.mxu0 0.0
      %4977 = vmatpush1.msra.mxu0 0.0
      %4978 = vmatprep.subr.mxu0 0.0
      %4979 = vmatpush1.msra.mxu0 0.0
      %4980 = vmatprep.subr.mxu0 0.0
      %4981 = vmatpush1.msra.mxu0 0.0
      %4982 = vmatprep.subr.mxu0 0.0
      %4983 = vmatpush1.msra.mxu0 0.0
      %4984 = vmatprep.mubr.f32.mxu0 0.0
      %4985 = vmatmul.mubr.f32.gmra.mrb[0].mxu0 %v4873
      %v4986 = vpop.f32.mrb[0].mxu0
      %v4987 = vadd.f32 0.0, %v4986
      %v4988 = vpop.f32.mrb[0].mxu0
      %4989 = vmatprep.mubr.f32.mxu0 0.0
      %4990 = vmatmul.mubr.f32.gmra.mrb[0].mxu0 %v4876
      %v4991 = vpop.f32.mrb[0].mxu0
      %v4992 = vadd.f32 0.0, %v4991
      %v4993 = vpop.f32.mrb[0].mxu0
      %4994 = vmatprep.mubr.f32.mxu0 0.0
      %4995 = vmatmul.mubr.f32.gmra.mrb[0].mxu0 %v4879
      %v4996 = vpop.f32.mrb[0].mxu0
      %v4997 = vadd.f32 0.0, %v4996
      %v4998 = vpop.f32.mrb[0].mxu0
      %4999 = vmatprep.mubr.f32.mxu0 0.0
      %5000 = vmatmul.mubr.f32.gmra.mrb[0].mxu0 %v4882
      %v5001 = vpop.f32.mrb[0].mxu0
      %v5002 = vadd.f32 0.0, %v5001
      %v5003 = vpop.f32.mrb[0].mxu0
      %5004 = vmatprep.mubr.f32.mxu0 0.0
      %5005 = vmatmul.mubr.f32.gmra.mrb[0].mxu0 %v4885
      %v5006 = vpop.f32.mrb[0].mxu0
      %v5007 = vadd.f32 0.0, %v5006
      %v5008 = vpop.f32.mrb[0].mxu0
      %5009 = vmatprep.mubr.f32.mxu0 0.0
      %5010 = vmatmul.mubr.f32.gmra.mrb[0].mxu0 %v4888
      %v5011 = vpop.f32.mrb[0].mxu0
      %v5012 = vadd.f32 0.0, %v5011
      %v5013 = vpop.f32.mrb[0].mxu0
      %5014 = vmatprep.mubr.f32.mxu0 0.0
      %5015 = vmatmul.mubr.f32.gmra.mrb[0].mxu0 %v4891
      %v5016 = vpop.f32.mrb[0].mxu0
      %v5017 = vadd.f32 0.0, %v5016
      %v5018 = vpop.f32.mrb[0].mxu0
      %5019 = vmatprep.mubr.f32.mxu0 0.0
      %5020 = vmatmul.mubr.f32.gmra.mrb[0].mxu0 %v4894
      %v5021 = vpop.f32.mrb[0].mxu0
      %v5022 = vadd.f32 0.0, %v5021
      %v5023 = vpop.f32.mrb[0].mxu0
      %5024 = vmatprep.mubr.f32.mxu0 0.0
      %5025 = vmatmul.mubr.f32.gmra.mrb[0].mxu0 %v4897
      %v5026 = vpop.f32.mrb[0].mxu0
      %v5027 = vadd.f32 0.0, %v5026
      %v5028 = vpop.f32.mrb[0].mxu0
      %5029 = vmatprep.mubr.f32.mxu0 0.0
      %5030 = vmatmul.mubr.f32.gmra.mrb[0].mxu0 %v4900
      %v5031 = vpop.f32.mrb[0].mxu0
      %v5032 = vadd.f32 0.0, %v5031
      %v5033 = vpop.f32.mrb[0].mxu0
      %5034 = vmatprep.mubr.f32.mxu0 0.0
      %5035 = vmatmul.mubr.f32.gmra.mrb[0].mxu0 %v4903
      %v5036 = vpop.f32.mrb[0].mxu0
      %v5037 = vadd.f32 0.0, %v5036
      %v5038 = vpop.f32.mrb[0].mxu0
      %5039 = vmatprep.mubr.f32.mxu0 0.0
      %5040 = vmatmul.mubr.f32.gmra.mrb[0].mxu0 %v4906
      %v5041 = vpop.f32.mrb[0].mxu0
      %v5042 = vadd.f32 0.0, %v5041
      %v5043 = vpop.f32.mrb[0].mxu0
      %5044 = vmatprep.mubr.f32.mxu0 0.0
      %5045 = vmatmul.mubr.f32.gmra.mrb[0].mxu0 %v4909
      %v5046 = vpop.f32.mrb[0].mxu0
      %v5047 = vadd.f32 0.0, %v5046
      %v5048 = vpop.f32.mrb[0].mxu0
      %5049 = vmatprep.mubr.f32.mxu0 0.0
      %5050 = vmatmul.mubr.f32.gmra.mrb[0].mxu0 %v4912
      %v5051 = vpop.f32.mrb[0].mxu0
      %v5052 = vadd.f32 0.0, %v5051
      %v5053 = vpop.f32.mrb[0].mxu0
      %5054 = vmatprep.mubr.f32.mxu0 0.0
      %5055 = vmatmul.mubr.f32.gmra.mrb[0].mxu0 %v4915
      %v5056 = vpop.f32.mrb[0].mxu0
      %v5057 = vadd.f32 0.0, %v5056
      %v5058 = vpop.f32.mrb[0].mxu0
      %5059 = vmatprep.mubr.f32.mxu0 0.0
      %5060 = vmatmul.mubr.f32.gmra.mrb[0].mxu0 %v4918
      %v5061 = vpop.f32.mrb[0].mxu0
      %v5062 = vadd.f32 0.0, %v5061
      %v5063 = vpop.f32.mrb[0].mxu0
      %5064 = vdwg.mxu0
      %v5066 = vsel %vm757, %v4778, 0
      %v5069 = vsel %vm757, %v4783, 0
      %v5072 = vsel %vm757, %v4788, 0
      %v5075 = vsel %vm757, %v4793, 0
      %v5078 = vsel %vm757, %v4798, 0
      %v5081 = vsel %vm757, %v4803, 0
      %v5084 = vsel %vm757, %v4808, 0
      %v5087 = vsel %vm757, %v4813, 0
      %v5090 = vsel %vm757, %v4818, 0
      %v5093 = vsel %vm757, %v4823, 0
      %v5096 = vsel %vm757, %v4828, 0
      %v5099 = vsel %vm757, %v4833, 0
      %v5102 = vsel %vm757, %v4838, 0
      %v5105 = vsel %vm757, %v4843, 0
      %v5108 = vsel %vm757, %v4848, 0
      %v5111 = vsel %vm757, %v4853, 0
      %5113 = vmatprep.subr.mxu0 0.0
      %5114 = vmatpush1.msra.mxu0 %v3932
      %5115 = vmatprep.subr.mxu0 0.0
      %5116 = vmatpush1.msra.mxu0 %v3933
      %5117 = vmatprep.subr.mxu0 0.0
      %5118 = vmatpush1.msra.mxu0 %v3934
      %5119 = vmatprep.subr.mxu0 0.0
      %5120 = vmatpush1.msra.mxu0 %v3935
      %5121 = vmatprep.subr.mxu0 0.0
      %5122 = vmatpush1.msra.mxu0 0.0
      %5123 = vmatprep.subr.mxu0 0.0
      %5124 = vmatpush1.msra.mxu0 0.0
      %5125 = vmatprep.subr.mxu0 0.0
      %5126 = vmatpush1.msra.mxu0 0.0
      %5127 = vmatprep.subr.mxu0 0.0
      %5128 = vmatpush1.msra.mxu0 0.0
      %5129 = vmatprep.subr.mxu0 0.0
      %5130 = vmatpush1.msra.mxu0 0.0
      %5131 = vmatprep.subr.mxu0 0.0
      %5132 = vmatpush1.msra.mxu0 0.0
      %5133 = vmatprep.subr.mxu0 0.0
      %5134 = vmatpush1.msra.mxu0 0.0
      %5135 = vmatprep.subr.mxu0 0.0
      %5136 = vmatpush1.msra.mxu0 0.0
      %5137 = vmatprep.subr.mxu0 0.0
      %5138 = vmatpush1.msra.mxu0 0.0
      %5139 = vmatprep.subr.mxu0 0.0
      %5140 = vmatpush1.msra.mxu0 0.0
      %5141 = vmatprep.subr.mxu0 0.0
      %5142 = vmatpush1.msra.mxu0 0.0
      %5143 = vmatprep.subr.mxu0 0.0
      %5144 = vmatpush1.msra.mxu0 0.0
      %5145 = vmatprep.subr.mxu0 0.0
      %5146 = vmatpush1.msra.mxu0 0.0
      %5147 = vmatprep.subr.mxu0 0.0
      %5148 = vmatpush1.msra.mxu0 0.0
      %5149 = vmatprep.subr.mxu0 0.0
      %5150 = vmatpush1.msra.mxu0 0.0
      %5151 = vmatprep.subr.mxu0 0.0
      %5152 = vmatpush1.msra.mxu0 0.0
      %5153 = vmatprep.subr.mxu0 0.0
      %5154 = vmatpush1.msra.mxu0 0.0
      %5155 = vmatprep.subr.mxu0 0.0
      %5156 = vmatpush1.msra.mxu0 0.0
      %5157 = vmatprep.subr.mxu0 0.0
      %5158 = vmatpush1.msra.mxu0 0.0
      %5159 = vmatprep.subr.mxu0 0.0
      %5160 = vmatpush1.msra.mxu0 0.0
      %5161 = vmatprep.subr.mxu0 0.0
      %5162 = vmatpush1.msra.mxu0 0.0
      %5163 = vmatprep.subr.mxu0 0.0
      %5164 = vmatpush1.msra.mxu0 0.0
      %5165 = vmatprep.subr.mxu0 0.0
      %5166 = vmatpush1.msra.mxu0 0.0
      %5167 = vmatprep.subr.mxu0 0.0
      %5168 = vmatpush1.msra.mxu0 0.0
      %5169 = vmatprep.subr.mxu0 0.0
      %5170 = vmatpush1.msra.mxu0 0.0
      %5171 = vmatprep.subr.mxu0 0.0
      %5172 = vmatpush1.msra.mxu0 0.0
      %5173 = vmatprep.subr.mxu0 0.0
      %5174 = vmatpush1.msra.mxu0 0.0
      %5175 = vmatprep.subr.mxu0 0.0
      %5176 = vmatpush1.msra.mxu0 0.0
      %5177 = vmatprep.mubr.f32.mxu0 0.0
      %5178 = vmatmul.mubr.f32.gmra.mrb[0].mxu0 %v5066
      %v5179 = vpop.f32.mrb[0].mxu0
      %v5180 = vadd.f32 %v4987, %v5179
      %v5181 = vpop.f32.mrb[0].mxu0
      %5182 = vmatprep.mubr.f32.mxu0 0.0
      %5183 = vmatmul.mubr.f32.gmra.mrb[0].mxu0 %v5069
      %v5184 = vpop.f32.mrb[0].mxu0
      %v5185 = vadd.f32 %v4992, %v5184
      %v5186 = vpop.f32.mrb[0].mxu0
      %5187 = vmatprep.mubr.f32.mxu0 0.0
      %5188 = vmatmul.mubr.f32.gmra.mrb[0].mxu0 %v5072
      %v5189 = vpop.f32.mrb[0].mxu0
      %v5190 = vadd.f32 %v4997, %v5189
      %v5191 = vpop.f32.mrb[0].mxu0
      %5192 = vmatprep.mubr.f32.mxu0 0.0
      %5193 = vmatmul.mubr.f32.gmra.mrb[0].mxu0 %v5075
      %v5194 = vpop.f32.mrb[0].mxu0
      %v5195 = vadd.f32 %v5002, %v5194
      %v5196 = vpop.f32.mrb[0].mxu0
      %5197 = vmatprep.mubr.f32.mxu0 0.0
      %5198 = vmatmul.mubr.f32.gmra.mrb[0].mxu0 %v5078
      %v5199 = vpop.f32.mrb[0].mxu0
      %v5200 = vadd.f32 %v5007, %v5199
      %v5201 = vpop.f32.mrb[0].mxu0
      %5202 = vmatprep.mubr.f32.mxu0 0.0
      %5203 = vmatmul.mubr.f32.gmra.mrb[0].mxu0 %v5081
      %v5204 = vpop.f32.mrb[0].mxu0
      %v5205 = vadd.f32 %v5012, %v5204
      %v5206 = vpop.f32.mrb[0].mxu0
      %5207 = vmatprep.mubr.f32.mxu0 0.0
      %5208 = vmatmul.mubr.f32.gmra.mrb[0].mxu0 %v5084
      %v5209 = vpop.f32.mrb[0].mxu0
      %v5210 = vadd.f32 %v5017, %v5209
      %v5211 = vpop.f32.mrb[0].mxu0
      %5212 = vmatprep.mubr.f32.mxu0 0.0
      %5213 = vmatmul.mubr.f32.gmra.mrb[0].mxu0 %v5087
      %v5214 = vpop.f32.mrb[0].mxu0
      %v5215 = vadd.f32 %v5022, %v5214
      %v5216 = vpop.f32.mrb[0].mxu0
      %5217 = vmatprep.mubr.f32.mxu0 0.0
      %5218 = vmatmul.mubr.f32.gmra.mrb[0].mxu0 %v5090
      %v5219 = vpop.f32.mrb[0].mxu0
      %v5220 = vadd.f32 %v5027, %v5219
      %v5221 = vpop.f32.mrb[0].mxu0
      %5222 = vmatprep.mubr.f32.mxu0 0.0
      %5223 = vmatmul.mubr.f32.gmra.mrb[0].mxu0 %v5093
      %v5224 = vpop.f32.mrb[0].mxu0
      %v5225 = vadd.f32 %v5032, %v5224
      %v5226 = vpop.f32.mrb[0].mxu0
      %5227 = vmatprep.mubr.f32.mxu0 0.0
      %5228 = vmatmul.mubr.f32.gmra.mrb[0].mxu0 %v5096
      %v5229 = vpop.f32.mrb[0].mxu0
      %v5230 = vadd.f32 %v5037, %v5229
      %v5231 = vpop.f32.mrb[0].mxu0
      %5232 = vmatprep.mubr.f32.mxu0 0.0
      %5233 = vmatmul.mubr.f32.gmra.mrb[0].mxu0 %v5099
      %v5234 = vpop.f32.mrb[0].mxu0
      %v5235 = vadd.f32 %v5042, %v5234
      %v5236 = vpop.f32.mrb[0].mxu0
      %5237 = vmatprep.mubr.f32.mxu0 0.0
      %5238 = vmatmul.mubr.f32.gmra.mrb[0].mxu0 %v5102
      %v5239 = vpop.f32.mrb[0].mxu0
      %v5240 = vadd.f32 %v5047, %v5239
      %v5241 = vpop.f32.mrb[0].mxu0
      %5242 = vmatprep.mubr.f32.mxu0 0.0
      %5243 = vmatmul.mubr.f32.gmra.mrb[0].mxu0 %v5105
      %v5244 = vpop.f32.mrb[0].mxu0
      %v5245 = vadd.f32 %v5052, %v5244
      %v5246 = vpop.f32.mrb[0].mxu0
      %5247 = vmatprep.mubr.f32.mxu0 0.0
      %5248 = vmatmul.mubr.f32.gmra.mrb[0].mxu0 %v5108
      %v5249 = vpop.f32.mrb[0].mxu0
      %v5250 = vadd.f32 %v5057, %v5249
      %v5251 = vpop.f32.mrb[0].mxu0
      %5252 = vmatprep.mubr.f32.mxu0 0.0
      %5253 = vmatmul.mubr.f32.gmra.mrb[0].mxu0 %v5111
      %v5254 = vpop.f32.mrb[0].mxu0
      %v5255 = vadd.f32 %v5062, %v5254
      %v5256 = vpop.f32.mrb[0].mxu0
      %5257 = vdwg.mxu0
      %v5258 = vlaneseq
      %v5259 = vshrl.u32 %v5258, 7
      %v5260 = vsub.s32 1, %v5259
      %v5261 = vrot.slane %v3930, %v5260
      %v5262 = vadd.f32 %v5180, %v5261
      %v5263 = vadd.f32 %v5185, %v5261
      %v5264 = vadd.f32 %v5190, %v5261
      %v5265 = vadd.f32 %v5195, %v5261
      %v5266 = vadd.f32 %v5200, %v5261
      %v5267 = vadd.f32 %v5205, %v5261
      %v5268 = vadd.f32 %v5210, %v5261
      %v5269 = vadd.f32 %v5215, %v5261
      %v5270 = vadd.f32 %v5220, %v5261
      %v5271 = vadd.f32 %v5225, %v5261
      %v5272 = vadd.f32 %v5230, %v5261
      %v5273 = vadd.f32 %v5235, %v5261
      %v5274 = vadd.f32 %v5240, %v5261
      %v5275 = vadd.f32 %v5245, %v5261
      %v5276 = vadd.f32 %v5250, %v5261
      %v5277 = vadd.f32 %v5255, %v5261
      %v5278 = vtanh.pop %v5262
      %v5279 = vtanh.pop %v5263
      %v5280 = vtanh.pop %v5264
      %v5281 = vtanh.pop %v5265
      %v5282 = vtanh.pop %v5266
      %v5283 = vtanh.pop %v5267
      %v5284 = vtanh.pop %v5268
      %v5285 = vtanh.pop %v5269
      %v5286 = vtanh.pop %v5270
      %v5287 = vtanh.pop %v5271
      %v5288 = vtanh.pop %v5272
      %v5289 = vtanh.pop %v5273
      %v5290 = vtanh.pop %v5274
      %v5291 = vtanh.pop %v5275
      %v5292 = vtanh.pop %v5276
      %v5293 = vtanh.pop %v5277
      %vm5294 = vcmp.gt.f32.partialorder %v2906, 0.5
      %vm5295 = vcmp.gt.f32.partialorder %v2907, 0.5
      %vm5296 = vcmp.gt.f32.partialorder %v2908, 0.5
      %vm5297 = vcmp.gt.f32.partialorder %v2909, 0.5
      %vm5298 = vcmp.gt.f32.partialorder %v2910, 0.5
      %vm5299 = vcmp.gt.f32.partialorder %v2911, 0.5
      %vm5300 = vcmp.gt.f32.partialorder %v2912, 0.5
      %vm5301 = vcmp.gt.f32.partialorder %v2913, 0.5
      %vm5302 = vcmp.gt.f32.partialorder %v2914, 0.5
      %vm5303 = vcmp.gt.f32.partialorder %v2915, 0.5
      %vm5304 = vcmp.gt.f32.partialorder %v2916, 0.5
      %vm5305 = vcmp.gt.f32.partialorder %v2917, 0.5
      %vm5306 = vcmp.gt.f32.partialorder %v2918, 0.5
      %vm5307 = vcmp.gt.f32.partialorder %v2919, 0.5
      %vm5308 = vcmp.gt.f32.partialorder %v2920, 0.5
      %vm5309 = vcmp.gt.f32.partialorder %v2921, 0.5
      %5326 = vrot.lane.b32.xlu0 %v5278, 1
      %v5327 = vpop.permute.xlu0 %5326
      %5328 = vrot.lane.b32.xlu0 %v5279, 1
      %v5329 = vpop.permute.xlu0 %5328
      %5330 = vrot.lane.b32.xlu0 %v5280, 1
      %v5331 = vpop.permute.xlu0 %5330
      %5332 = vrot.lane.b32.xlu0 %v5281, 1
      %v5333 = vpop.permute.xlu0 %5332
      %5334 = vrot.lane.b32.xlu0 %v5282, 1
      %v5335 = vpop.permute.xlu0 %5334
      %5336 = vrot.lane.b32.xlu0 %v5283, 1
      %v5337 = vpop.permute.xlu0 %5336
      %5338 = vrot.lane.b32.xlu0 %v5284, 1
      %v5339 = vpop.permute.xlu0 %5338
      %5340 = vrot.lane.b32.xlu0 %v5285, 1
      %v5341 = vpop.permute.xlu0 %5340
      %5342 = vrot.lane.b32.xlu0 %v5286, 1
      %v5343 = vpop.permute.xlu0 %5342
      %5344 = vrot.lane.b32.xlu0 %v5287, 1
      %v5345 = vpop.permute.xlu0 %5344
      %5346 = vrot.lane.b32.xlu0 %v5288, 1
      %v5347 = vpop.permute.xlu0 %5346
      %5348 = vrot.lane.b32.xlu0 %v5289, 1
      %v5349 = vpop.permute.xlu0 %5348
      %5350 = vrot.lane.b32.xlu0 %v5290, 1
      %v5351 = vpop.permute.xlu0 %5350
      %5352 = vrot.lane.b32.xlu0 %v5291, 1
      %v5353 = vpop.permute.xlu0 %5352
      %5354 = vrot.lane.b32.xlu0 %v5292, 1
      %v5355 = vpop.permute.xlu0 %5354
      %5356 = vrot.lane.b32.xlu0 %v5293, 1
      %v5357 = vpop.permute.xlu0 %5356
      %v5374 = vsel %vm5294, %v5327, -1e+30
      %v5375 = vsel %vm5295, %v5329, -1e+30
      %v5376 = vsel %vm5296, %v5331, -1e+30
      %v5377 = vsel %vm5297, %v5333, -1e+30
      %v5378 = vsel %vm5298, %v5335, -1e+30
      %v5379 = vsel %vm5299, %v5337, -1e+30
      %v5380 = vsel %vm5300, %v5339, -1e+30
      %v5381 = vsel %vm5301, %v5341, -1e+30
      %v5382 = vsel %vm5302, %v5343, -1e+30
      %v5383 = vsel %vm5303, %v5345, -1e+30
      %v5384 = vsel %vm5304, %v5347, -1e+30
      %v5385 = vsel %vm5305, %v5349, -1e+30
      %v5386 = vsel %vm5306, %v5351, -1e+30
      %v5387 = vsel %vm5307, %v5353, -1e+30
      %v5388 = vsel %vm5308, %v5355, -1e+30
      %v5389 = vsel %vm5309, %v5357, -1e+30
      %5406 = vrot.lane.b32.xlu0 %v5374, 127
      %v5407 = vpop.permute.xlu0 %5406
      %5408 = vrot.lane.b32.xlu0 %v5375, 127
      %v5409 = vpop.permute.xlu0 %5408
      %5410 = vrot.lane.b32.xlu0 %v5376, 127
      %v5411 = vpop.permute.xlu0 %5410
      %5412 = vrot.lane.b32.xlu0 %v5377, 127
      %v5413 = vpop.permute.xlu0 %5412
      %5414 = vrot.lane.b32.xlu0 %v5378, 127
      %v5415 = vpop.permute.xlu0 %5414
      %5416 = vrot.lane.b32.xlu0 %v5379, 127
      %v5417 = vpop.permute.xlu0 %5416
      %5418 = vrot.lane.b32.xlu0 %v5380, 127
      %v5419 = vpop.permute.xlu0 %5418
      %5420 = vrot.lane.b32.xlu0 %v5381, 127
      %v5421 = vpop.permute.xlu0 %5420
      %5422 = vrot.lane.b32.xlu0 %v5382, 127
      %v5423 = vpop.permute.xlu0 %5422
      %5424 = vrot.lane.b32.xlu0 %v5383, 127
      %v5425 = vpop.permute.xlu0 %5424
      %5426 = vrot.lane.b32.xlu0 %v5384, 127
      %v5427 = vpop.permute.xlu0 %5426
      %5428 = vrot.lane.b32.xlu0 %v5385, 127
      %v5429 = vpop.permute.xlu0 %5428
      %5430 = vrot.lane.b32.xlu0 %v5386, 127
      %v5431 = vpop.permute.xlu0 %5430
      %5432 = vrot.lane.b32.xlu0 %v5387, 127
      %v5433 = vpop.permute.xlu0 %5432
      %5434 = vrot.lane.b32.xlu0 %v5388, 127
      %v5435 = vpop.permute.xlu0 %5434
      %5436 = vrot.lane.b32.xlu0 %v5389, 127
      %v5437 = vpop.permute.xlu0 %5436
      %5454 = vxpose.xlu0.b32.start [1/16] %v5407, 128
      %5455 = vxpose.xlu0.b32.cont [2/16] %v5409, 128
      %5456 = vxpose.xlu0.b32.cont [3/16] %v5411, 128
      %5457 = vxpose.xlu0.b32.cont [4/16] %v5413, 128
      %5458 = vxpose.xlu0.b32.cont [5/16] %v5415, 128
      %5459 = vxpose.xlu0.b32.cont [6/16] %v5417, 128
      %5460 = vxpose.xlu0.b32.cont [7/16] %v5419, 128
      %5461 = vxpose.xlu0.b32.cont [8/16] %v5421, 128
      %5462 = vxpose.xlu0.b32.cont [9/16] %v5423, 128
      %5463 = vxpose.xlu0.b32.cont [10/16] %v5425, 128
      %5464 = vxpose.xlu0.b32.cont [11/16] %v5427, 128
      %5465 = vxpose.xlu0.b32.cont [12/16] %v5429, 128
      %5466 = vxpose.xlu0.b32.cont [13/16] %v5431, 128
      %5467 = vxpose.xlu0.b32.cont [14/16] %v5433, 128
      %5468 = vxpose.xlu0.b32.cont [15/16] %v5435, 128
      %5469 = vxpose.xlu0.b32.end [16/16] %v5437, 128
      %v5470 = vpop.trf.xlu0
      %v5471 = vpop.trf.xlu0
      %v5472 = vpop.trf.xlu0
      %v5473 = vpop.trf.xlu0
      %v5474 = vpop.trf.xlu0
      %v5475 = vpop.trf.xlu0
      %v5476 = vpop.trf.xlu0
      %v5477 = vpop.trf.xlu0
      %v5478 = vpop.trf.xlu0
      %v5479 = vpop.trf.xlu0
      %v5480 = vpop.trf.xlu0
      %v5481 = vpop.trf.xlu0
      %v5482 = vpop.trf.xlu0
      %v5483 = vpop.trf.xlu0
      %v5484 = vpop.trf.xlu0
      %v5485 = vpop.trf.xlu0
      %v5486 = vlaneseq
      %v5487 = vshrl.u32 %v5486, 7
      %v5488 = vsub.s32 0, %v5487
      %v5489 = vrot.slane %v5470, %v5488
      %5490 = vset.pattern.permute.xlu0 1
      %5491 = vperm.xlu0 %5490, %v5374
      %v5492 = vpop.permute.xlu0 %5491
      %5494 = vset.pattern.permute.xlu0 1
      %5495 = vperm.xlu0 %5494, %v5375
      %v5496 = vpop.permute.xlu0 %5495
      %5498 = vset.pattern.permute.xlu0 1
      %5499 = vperm.xlu0 %5498, %v5376
      %v5500 = vpop.permute.xlu0 %5499
      %5502 = vset.pattern.permute.xlu0 1
      %5503 = vperm.xlu0 %5502, %v5377
      %v5504 = vpop.permute.xlu0 %5503
      %5506 = vset.pattern.permute.xlu0 1
      %5507 = vperm.xlu0 %5506, %v5378
      %v5508 = vpop.permute.xlu0 %5507
      %5510 = vset.pattern.permute.xlu0 1
      %5511 = vperm.xlu0 %5510, %v5379
      %v5512 = vpop.permute.xlu0 %5511
      %5514 = vset.pattern.permute.xlu0 1
      %5515 = vperm.xlu0 %5514, %v5380
      %v5516 = vpop.permute.xlu0 %5515
      %5518 = vset.pattern.permute.xlu0 1
      %5519 = vperm.xlu0 %5518, %v5381
      %v5520 = vpop.permute.xlu0 %5519
      %5522 = vset.pattern.permute.xlu0 1
      %5523 = vperm.xlu0 %5522, %v5382
      %v5524 = vpop.permute.xlu0 %5523
      %5526 = vset.pattern.permute.xlu0 1
      %5527 = vperm.xlu0 %5526, %v5383
      %v5528 = vpop.permute.xlu0 %5527
      %5530 = vset.pattern.permute.xlu0 1
      %5531 = vperm.xlu0 %5530, %v5384
      %v5532 = vpop.permute.xlu0 %5531
      %5534 = vset.pattern.permute.xlu0 1
      %5535 = vperm.xlu0 %5534, %v5385
      %v5536 = vpop.permute.xlu0 %5535
      %5538 = vset.pattern.permute.xlu0 1
      %5539 = vperm.xlu0 %5538, %v5386
      %v5540 = vpop.permute.xlu0 %5539
      %5542 = vset.pattern.permute.xlu0 1
      %5543 = vperm.xlu0 %5542, %v5387
      %v5544 = vpop.permute.xlu0 %5543
      %5546 = vset.pattern.permute.xlu0 1
      %5547 = vperm.xlu0 %5546, %v5388
      %v5548 = vpop.permute.xlu0 %5547
      %5550 = vset.pattern.permute.xlu0 1
      %5551 = vperm.xlu0 %5550, %v5389
      %v5552 = vpop.permute.xlu0 %5551
      %vm5554 = vcmp.gt.f32.partialorder %v5489, %v5492
      %vm5555 = vcmp.gt.f32.partialorder %v5489, %v5496
      %vm5556 = vcmp.gt.f32.partialorder %v5489, %v5500
      %vm5557 = vcmp.gt.f32.partialorder %v5489, %v5504
      %vm5558 = vcmp.gt.f32.partialorder %v5489, %v5508
      %vm5559 = vcmp.gt.f32.partialorder %v5489, %v5512
      %vm5560 = vcmp.gt.f32.partialorder %v5489, %v5516
      %vm5561 = vcmp.gt.f32.partialorder %v5489, %v5520
      %vm5562 = vcmp.gt.f32.partialorder %v5489, %v5524
      %vm5563 = vcmp.gt.f32.partialorder %v5489, %v5528
      %vm5564 = vcmp.gt.f32.partialorder %v5489, %v5532
      %vm5565 = vcmp.gt.f32.partialorder %v5489, %v5536
      %vm5566 = vcmp.gt.f32.partialorder %v5489, %v5540
      %vm5567 = vcmp.gt.f32.partialorder %v5489, %v5544
      %vm5568 = vcmp.gt.f32.partialorder %v5489, %v5548
      %vm5569 = vcmp.gt.f32.partialorder %v5489, %v5552
      %vm5570 = vcmp.eq.f32.partialorder %v5489, %v5492
      %vm5571 = vcmp.eq.f32.partialorder %v5489, %v5496
      %vm5572 = vcmp.eq.f32.partialorder %v5489, %v5500
      %vm5573 = vcmp.eq.f32.partialorder %v5489, %v5504
      %vm5574 = vcmp.eq.f32.partialorder %v5489, %v5508
      %vm5575 = vcmp.eq.f32.partialorder %v5489, %v5512
      %vm5576 = vcmp.eq.f32.partialorder %v5489, %v5516
      %vm5577 = vcmp.eq.f32.partialorder %v5489, %v5520
      %vm5578 = vcmp.eq.f32.partialorder %v5489, %v5524
      %vm5579 = vcmp.eq.f32.partialorder %v5489, %v5528
      %vm5580 = vcmp.eq.f32.partialorder %v5489, %v5532
      %vm5581 = vcmp.eq.f32.partialorder %v5489, %v5536
      %vm5582 = vcmp.eq.f32.partialorder %v5489, %v5540
      %vm5583 = vcmp.eq.f32.partialorder %v5489, %v5544
      %vm5584 = vcmp.eq.f32.partialorder %v5489, %v5548
      %vm5585 = vcmp.eq.f32.partialorder %v5489, %v5552
      %vm5586 = vmand %vm5570, %vm730
      %vm5587 = vmand %vm5571, %vm731
      %vm5588 = vmand %vm5572, %vm732
      %vm5589 = vmand %vm5573, %vm733
      %vm5590 = vmand %vm5574, %vm734
      %vm5591 = vmand %vm5575, %vm735
      %vm5592 = vmand %vm5576, %vm736
      %vm5593 = vmand %vm5577, %vm737
      %vm5594 = vmand %vm5578, %vm738
      %vm5595 = vmand %vm5579, %vm739
      %vm5596 = vmand %vm5580, %vm740
      %vm5597 = vmand %vm5581, %vm741
      %vm5598 = vmand %vm5582, %vm742
      %vm5599 = vmand %vm5583, %vm743
      %vm5600 = vmand %vm5584, %vm744
      %vm5601 = vmand %vm5585, %vm745
      %vm5602 = vmor %vm5554, %vm5586
      %vm5603 = vmor %vm5555, %vm5587
      %vm5604 = vmor %vm5556, %vm5588
      %vm5605 = vmor %vm5557, %vm5589
      %vm5606 = vmor %vm5558, %vm5590
      %vm5607 = vmor %vm5559, %vm5591
      %vm5608 = vmor %vm5560, %vm5592
      %vm5609 = vmor %vm5561, %vm5593
      %vm5610 = vmor %vm5562, %vm5594
      %vm5611 = vmor %vm5563, %vm5595
      %vm5612 = vmor %vm5564, %vm5596
      %vm5613 = vmor %vm5565, %vm5597
      %vm5614 = vmor %vm5566, %vm5598
      %vm5615 = vmor %vm5567, %vm5599
      %vm5616 = vmor %vm5568, %vm5600
      %vm5617 = vmor %vm5569, %vm5601
      %v5618 = vsel %vm5602, 1, 0
      %v5619 = vsel %vm5603, 1, 0
      %v5620 = vsel %vm5604, 1, 0
      %v5621 = vsel %vm5605, 1, 0
      %v5622 = vsel %vm5606, 1, 0
      %v5623 = vsel %vm5607, 1, 0
      %v5624 = vsel %vm5608, 1, 0
      %v5625 = vsel %vm5609, 1, 0
      %v5626 = vsel %vm5610, 1, 0
      %v5627 = vsel %vm5611, 1, 0
      %v5628 = vsel %vm5612, 1, 0
      %v5629 = vsel %vm5613, 1, 0
      %v5630 = vsel %vm5614, 1, 0
      %v5631 = vsel %vm5615, 1, 0
      %v5632 = vsel %vm5616, 1, 0
      %v5633 = vsel %vm5617, 1, 0
      %v5634 = vcvt.s32.f32 %v5618
      %v5635 = vcvt.s32.f32 %v5619
      %v5636 = vcvt.s32.f32 %v5620
      %v5637 = vcvt.s32.f32 %v5621
      %v5638 = vcvt.s32.f32 %v5622
      %v5639 = vcvt.s32.f32 %v5623
      %v5640 = vcvt.s32.f32 %v5624
      %v5641 = vcvt.s32.f32 %v5625
      %v5642 = vcvt.s32.f32 %v5626
      %v5643 = vcvt.s32.f32 %v5627
      %v5644 = vcvt.s32.f32 %v5628
      %v5645 = vcvt.s32.f32 %v5629
      %v5646 = vcvt.s32.f32 %v5630
      %v5647 = vcvt.s32.f32 %v5631
      %v5648 = vcvt.s32.f32 %v5632
      %v5649 = vcvt.s32.f32 %v5633
      %v5650 = vmul.f32 %v691, %v5634
      %v5651 = vmul.f32 %v692, %v5635
      %v5652 = vmul.f32 %v693, %v5636
      %v5653 = vmul.f32 %v694, %v5637
      %v5654 = vmul.f32 %v695, %v5638
      %v5655 = vmul.f32 %v696, %v5639
      %v5656 = vmul.f32 %v697, %v5640
      %v5657 = vmul.f32 %v698, %v5641
      %v5658 = vmul.f32 %v699, %v5642
      %v5659 = vmul.f32 %v700, %v5643
      %v5660 = vmul.f32 %v701, %v5644
      %v5661 = vmul.f32 %v702, %v5645
      %v5662 = vmul.f32 %v703, %v5646
      %v5663 = vmul.f32 %v704, %v5647
      %v5664 = vmul.f32 %v705, %v5648
      %v5665 = vmul.f32 %v706, %v5649
      %5666 = vmatprep.subr.mxu0 0.0
      %5667 = vmatpush1.msra.mxu0 1.0
      %5668 = vmatprep.subr.mxu0 0.0
      %5669 = vmatpush1.msra.mxu0 1.0
      %5670 = vmatprep.subr.mxu0 0.0
      %5671 = vmatpush1.msra.mxu0 1.0
      %5672 = vmatprep.subr.mxu0 0.0
      %5673 = vmatpush1.msra.mxu0 1.0
      %5674 = vmatprep.subr.mxu0 0.0
      %5675 = vmatpush1.msra.mxu0 1.0
      %5676 = vmatprep.subr.mxu0 0.0
      %5677 = vmatpush1.msra.mxu0 1.0
      %5678 = vmatprep.subr.mxu0 0.0
      %5679 = vmatpush1.msra.mxu0 1.0
      %5680 = vmatprep.subr.mxu0 0.0
      %5681 = vmatpush1.msra.mxu0 1.0
      %5682 = vmatprep.subr.mxu0 0.0
      %5683 = vmatpush1.msra.mxu0 1.0
      %5684 = vmatprep.subr.mxu0 0.0
      %5685 = vmatpush1.msra.mxu0 1.0
      %5686 = vmatprep.subr.mxu0 0.0
      %5687 = vmatpush1.msra.mxu0 1.0
      %5688 = vmatprep.subr.mxu0 0.0
      %5689 = vmatpush1.msra.mxu0 1.0
      %5690 = vmatprep.subr.mxu0 0.0
      %5691 = vmatpush1.msra.mxu0 1.0
      %5692 = vmatprep.subr.mxu0 0.0
      %5693 = vmatpush1.msra.mxu0 1.0
      %5694 = vmatprep.subr.mxu0 0.0
      %5695 = vmatpush1.msra.mxu0 1.0
      %5696 = vmatprep.subr.mxu0 0.0
      %5697 = vmatpush1.msra.mxu0 1.0
      %5698 = vmatprep.subr.mxu0 0.0
      %5699 = vmatpush1.msra.mxu0 0.0
      %5700 = vmatprep.subr.mxu0 0.0
      %5701 = vmatpush1.msra.mxu0 0.0
      %5702 = vmatprep.subr.mxu0 0.0
      %5703 = vmatpush1.msra.mxu0 0.0
      %5704 = vmatprep.subr.mxu0 0.0
      %5705 = vmatpush1.msra.mxu0 0.0
      %5706 = vmatprep.subr.mxu0 0.0
      %5707 = vmatpush1.msra.mxu0 0.0
      %5708 = vmatprep.subr.mxu0 0.0
      %5709 = vmatpush1.msra.mxu0 0.0
      %5710 = vmatprep.subr.mxu0 0.0
      %5711 = vmatpush1.msra.mxu0 0.0
      %5712 = vmatprep.subr.mxu0 0.0
      %5713 = vmatpush1.msra.mxu0 0.0
      %5714 = vmatprep.subr.mxu0 0.0
      %5715 = vmatpush1.msra.mxu0 0.0
      %5716 = vmatprep.subr.mxu0 0.0
      %5717 = vmatpush1.msra.mxu0 0.0
      %5718 = vmatprep.subr.mxu0 0.0
      %5719 = vmatpush1.msra.mxu0 0.0
      %5720 = vmatprep.subr.mxu0 0.0
      %5721 = vmatpush1.msra.mxu0 0.0
      %5722 = vmatprep.subr.mxu0 0.0
      %5723 = vmatpush1.msra.mxu0 0.0
      %5724 = vmatprep.subr.mxu0 0.0
      %5725 = vmatpush1.msra.mxu0 0.0
      %5726 = vmatprep.subr.mxu0 0.0
      %5727 = vmatpush1.msra.mxu0 0.0
      %5728 = vmatprep.subr.mxu0 0.0
      %5729 = vmatpush1.msra.mxu0 0.0
      %5730 = vmatprep.mubr.f32.mxu0 0.0
      %5731 = vmatmul.mubr.f32.gmra.mrb[0].mxu0 %v5650
      %v5732 = vpop.f32.mrb[0].mxu0
      %v5733 = vadd.f32 0.0, %v5732
      %v5734 = vpop.f32.mrb[0].mxu0
      %5735 = vmatprep.mubr.f32.mxu0 0.0
      %5736 = vmatmul.mubr.f32.gmra.mrb[0].mxu0 %v5651
      %v5737 = vpop.f32.mrb[0].mxu0
      %v5738 = vadd.f32 0.0, %v5737
      %v5739 = vpop.f32.mrb[0].mxu0
      %5740 = vmatprep.mubr.f32.mxu0 0.0
      %5741 = vmatmul.mubr.f32.gmra.mrb[0].mxu0 %v5652
      %v5742 = vpop.f32.mrb[0].mxu0
      %v5743 = vadd.f32 0.0, %v5742
      %v5744 = vpop.f32.mrb[0].mxu0
      %5745 = vmatprep.mubr.f32.mxu0 0.0
      %5746 = vmatmul.mubr.f32.gmra.mrb[0].mxu0 %v5653
      %v5747 = vpop.f32.mrb[0].mxu0
      %v5748 = vadd.f32 0.0, %v5747
      %v5749 = vpop.f32.mrb[0].mxu0
      %5750 = vmatprep.mubr.f32.mxu0 0.0
      %5751 = vmatmul.mubr.f32.gmra.mrb[0].mxu0 %v5654
      %v5752 = vpop.f32.mrb[0].mxu0
      %v5753 = vadd.f32 0.0, %v5752
      %v5754 = vpop.f32.mrb[0].mxu0
      %5755 = vmatprep.mubr.f32.mxu0 0.0
      %5756 = vmatmul.mubr.f32.gmra.mrb[0].mxu0 %v5655
      %v5757 = vpop.f32.mrb[0].mxu0
      %v5758 = vadd.f32 0.0, %v5757
      %v5759 = vpop.f32.mrb[0].mxu0
      %5760 = vmatprep.mubr.f32.mxu0 0.0
      %5761 = vmatmul.mubr.f32.gmra.mrb[0].mxu0 %v5656
      %v5762 = vpop.f32.mrb[0].mxu0
      %v5763 = vadd.f32 0.0, %v5762
      %v5764 = vpop.f32.mrb[0].mxu0
      %5765 = vmatprep.mubr.f32.mxu0 0.0
      %5766 = vmatmul.mubr.f32.gmra.mrb[0].mxu0 %v5657
      %v5767 = vpop.f32.mrb[0].mxu0
      %v5768 = vadd.f32 0.0, %v5767
      %v5769 = vpop.f32.mrb[0].mxu0
      %5770 = vmatprep.mubr.f32.mxu0 0.0
      %5771 = vmatmul.mubr.f32.gmra.mrb[0].mxu0 %v5658
      %v5772 = vpop.f32.mrb[0].mxu0
      %v5773 = vadd.f32 0.0, %v5772
      %v5774 = vpop.f32.mrb[0].mxu0
      %5775 = vmatprep.mubr.f32.mxu0 0.0
      %5776 = vmatmul.mubr.f32.gmra.mrb[0].mxu0 %v5659
      %v5777 = vpop.f32.mrb[0].mxu0
      %v5778 = vadd.f32 0.0, %v5777
      %v5779 = vpop.f32.mrb[0].mxu0
      %5780 = vmatprep.mubr.f32.mxu0 0.0
      %5781 = vmatmul.mubr.f32.gmra.mrb[0].mxu0 %v5660
      %v5782 = vpop.f32.mrb[0].mxu0
      %v5783 = vadd.f32 0.0, %v5782
      %v5784 = vpop.f32.mrb[0].mxu0
      %5785 = vmatprep.mubr.f32.mxu0 0.0
      %5786 = vmatmul.mubr.f32.gmra.mrb[0].mxu0 %v5661
      %v5787 = vpop.f32.mrb[0].mxu0
      %v5788 = vadd.f32 0.0, %v5787
      %v5789 = vpop.f32.mrb[0].mxu0
      %5790 = vmatprep.mubr.f32.mxu0 0.0
      %5791 = vmatmul.mubr.f32.gmra.mrb[0].mxu0 %v5662
      %v5792 = vpop.f32.mrb[0].mxu0
      %v5793 = vadd.f32 0.0, %v5792
      %v5794 = vpop.f32.mrb[0].mxu0
      %5795 = vmatprep.mubr.f32.mxu0 0.0
      %5796 = vmatmul.mubr.f32.gmra.mrb[0].mxu0 %v5663
      %v5797 = vpop.f32.mrb[0].mxu0
      %v5798 = vadd.f32 0.0, %v5797
      %v5799 = vpop.f32.mrb[0].mxu0
      %5800 = vmatprep.mubr.f32.mxu0 0.0
      %5801 = vmatmul.mubr.f32.gmra.mrb[0].mxu0 %v5664
      %v5802 = vpop.f32.mrb[0].mxu0
      %v5803 = vadd.f32 0.0, %v5802
      %v5804 = vpop.f32.mrb[0].mxu0
      %5805 = vmatprep.mubr.f32.mxu0 0.0
      %5806 = vmatmul.mubr.f32.gmra.mrb[0].mxu0 %v5665
      %v5807 = vpop.f32.mrb[0].mxu0
      %v5808 = vadd.f32 0.0, %v5807
      %v5809 = vpop.f32.mrb[0].mxu0
      %5810 = vdwg.mxu0
      %5811 = vmatprep.subr.mxu0 0.0
      %5812 = vmatpush1.msra.mxu0 %v2939
      %5813 = vmatprep.subr.mxu0 0.0
      %5814 = vmatpush1.msra.mxu0 %v2941
      %5815 = vmatprep.subr.mxu0 0.0
      %5816 = vmatpush1.msra.mxu0 %v2943
      %5817 = vmatprep.subr.mxu0 0.0
      %5818 = vmatpush1.msra.mxu0 %v2945
      %5819 = vmatprep.subr.mxu0 0.0
      %5820 = vmatpush1.msra.mxu0 %v2947
      %5821 = vmatprep.subr.mxu0 0.0
      %5822 = vmatpush1.msra.mxu0 %v2949
      %5823 = vmatprep.subr.mxu0 0.0
      %5824 = vmatpush1.msra.mxu0 %v2951
      %5825 = vmatprep.subr.mxu0 0.0
      %5826 = vmatpush1.msra.mxu0 %v2953
      %5827 = vmatprep.subr.mxu0 0.0
      %5828 = vmatpush1.msra.mxu0 %v2955
      %5829 = vmatprep.subr.mxu0 0.0
      %5830 = vmatpush1.msra.mxu0 %v2957
      %5831 = vmatprep.subr.mxu0 0.0
      %5832 = vmatpush1.msra.mxu0 %v2959
      %5833 = vmatprep.subr.mxu0 0.0
      %5834 = vmatpush1.msra.mxu0 %v2961
      %5835 = vmatprep.subr.mxu0 0.0
      %5836 = vmatpush1.msra.mxu0 %v2963
      %5837 = vmatprep.subr.mxu0 0.0
      %5838 = vmatpush1.msra.mxu0 %v2965
      %5839 = vmatprep.subr.mxu0 0.0
      %5840 = vmatpush1.msra.mxu0 %v2967
      %5841 = vmatprep.subr.mxu0 0.0
      %5842 = vmatpush1.msra.mxu0 %v2969
      %5843 = vmatprep.subr.mxu0 0.0
      %5844 = vmatpush1.msra.mxu0 0.0
      %5845 = vmatprep.subr.mxu0 0.0
      %5846 = vmatpush1.msra.mxu0 0.0
      %5847 = vmatprep.subr.mxu0 0.0
      %5848 = vmatpush1.msra.mxu0 0.0
      %5849 = vmatprep.subr.mxu0 0.0
      %5850 = vmatpush1.msra.mxu0 0.0
      %5851 = vmatprep.subr.mxu0 0.0
      %5852 = vmatpush1.msra.mxu0 0.0
      %5853 = vmatprep.subr.mxu0 0.0
      %5854 = vmatpush1.msra.mxu0 0.0
      %5855 = vmatprep.subr.mxu0 0.0
      %5856 = vmatpush1.msra.mxu0 0.0
      %5857 = vmatprep.subr.mxu0 0.0
      %5858 = vmatpush1.msra.mxu0 0.0
      %5859 = vmatprep.subr.mxu0 0.0
      %5860 = vmatpush1.msra.mxu0 0.0
      %5861 = vmatprep.subr.mxu0 0.0
      %5862 = vmatpush1.msra.mxu0 0.0
      %5863 = vmatprep.subr.mxu0 0.0
      %5864 = vmatpush1.msra.mxu0 0.0
      %5865 = vmatprep.subr.mxu0 0.0
      %5866 = vmatpush1.msra.mxu0 0.0
      %5867 = vmatprep.subr.mxu0 0.0
      %5868 = vmatpush1.msra.mxu0 0.0
      %5869 = vmatprep.subr.mxu0 0.0
      %5870 = vmatpush1.msra.mxu0 0.0
      %5871 = vmatprep.subr.mxu0 0.0
      %5872 = vmatpush1.msra.mxu0 0.0
      %5873 = vmatprep.subr.mxu0 0.0
      %5874 = vmatpush1.msra.mxu0 0.0
      %5875 = vmatprep.mubr.f32.mxu0 0.0
      %5876 = vmatmul.mubr.f32.gmra.mrb[0].mxu0 %v691
      %v5877 = vpop.f32.mrb[0].mxu0
      %v5878 = vadd.f32 0.0, %v5877
      %v5879 = vpop.f32.mrb[0].mxu0
      %5880 = vmatprep.mubr.f32.mxu0 0.0
      %5881 = vmatmul.mubr.f32.gmra.mrb[0].mxu0 %v692
      %v5882 = vpop.f32.mrb[0].mxu0
      %v5883 = vadd.f32 0.0, %v5882
      %v5884 = vpop.f32.mrb[0].mxu0
      %5885 = vmatprep.mubr.f32.mxu0 0.0
      %5886 = vmatmul.mubr.f32.gmra.mrb[0].mxu0 %v693
      %v5887 = vpop.f32.mrb[0].mxu0
      %v5888 = vadd.f32 0.0, %v5887
      %v5889 = vpop.f32.mrb[0].mxu0
      %5890 = vmatprep.mubr.f32.mxu0 0.0
      %5891 = vmatmul.mubr.f32.gmra.mrb[0].mxu0 %v694
      %v5892 = vpop.f32.mrb[0].mxu0
      %v5893 = vadd.f32 0.0, %v5892
      %v5894 = vpop.f32.mrb[0].mxu0
      %5895 = vmatprep.mubr.f32.mxu0 0.0
      %5896 = vmatmul.mubr.f32.gmra.mrb[0].mxu0 %v695
      %v5897 = vpop.f32.mrb[0].mxu0
      %v5898 = vadd.f32 0.0, %v5897
      %v5899 = vpop.f32.mrb[0].mxu0
      %5900 = vmatprep.mubr.f32.mxu0 0.0
      %5901 = vmatmul.mubr.f32.gmra.mrb[0].mxu0 %v696
      %v5902 = vpop.f32.mrb[0].mxu0
      %v5903 = vadd.f32 0.0, %v5902
      %v5904 = vpop.f32.mrb[0].mxu0
      %5905 = vmatprep.mubr.f32.mxu0 0.0
      %5906 = vmatmul.mubr.f32.gmra.mrb[0].mxu0 %v697
      %v5907 = vpop.f32.mrb[0].mxu0
      %v5908 = vadd.f32 0.0, %v5907
      %v5909 = vpop.f32.mrb[0].mxu0
      %5910 = vmatprep.mubr.f32.mxu0 0.0
      %5911 = vmatmul.mubr.f32.gmra.mrb[0].mxu0 %v698
      %v5912 = vpop.f32.mrb[0].mxu0
      %v5913 = vadd.f32 0.0, %v5912
      %v5914 = vpop.f32.mrb[0].mxu0
      %5915 = vmatprep.mubr.f32.mxu0 0.0
      %5916 = vmatmul.mubr.f32.gmra.mrb[0].mxu0 %v699
      %v5917 = vpop.f32.mrb[0].mxu0
      %v5918 = vadd.f32 0.0, %v5917
      %v5919 = vpop.f32.mrb[0].mxu0
      %5920 = vmatprep.mubr.f32.mxu0 0.0
      %5921 = vmatmul.mubr.f32.gmra.mrb[0].mxu0 %v700
      %v5922 = vpop.f32.mrb[0].mxu0
      %v5923 = vadd.f32 0.0, %v5922
      %v5924 = vpop.f32.mrb[0].mxu0
      %5925 = vmatprep.mubr.f32.mxu0 0.0
      %5926 = vmatmul.mubr.f32.gmra.mrb[0].mxu0 %v701
      %v5927 = vpop.f32.mrb[0].mxu0
      %v5928 = vadd.f32 0.0, %v5927
      %v5929 = vpop.f32.mrb[0].mxu0
      %5930 = vmatprep.mubr.f32.mxu0 0.0
      %5931 = vmatmul.mubr.f32.gmra.mrb[0].mxu0 %v702
      %v5932 = vpop.f32.mrb[0].mxu0
      %v5933 = vadd.f32 0.0, %v5932
      %v5934 = vpop.f32.mrb[0].mxu0
      %5935 = vmatprep.mubr.f32.mxu0 0.0
      %5936 = vmatmul.mubr.f32.gmra.mrb[0].mxu0 %v703
      %v5937 = vpop.f32.mrb[0].mxu0
      %v5938 = vadd.f32 0.0, %v5937
      %v5939 = vpop.f32.mrb[0].mxu0
      %5940 = vmatprep.mubr.f32.mxu0 0.0
      %5941 = vmatmul.mubr.f32.gmra.mrb[0].mxu0 %v704
      %v5942 = vpop.f32.mrb[0].mxu0
      %v5943 = vadd.f32 0.0, %v5942
      %v5944 = vpop.f32.mrb[0].mxu0
      %5945 = vmatprep.mubr.f32.mxu0 0.0
      %5946 = vmatmul.mubr.f32.gmra.mrb[0].mxu0 %v705
      %v5947 = vpop.f32.mrb[0].mxu0
      %v5948 = vadd.f32 0.0, %v5947
      %v5949 = vpop.f32.mrb[0].mxu0
      %5950 = vmatprep.mubr.f32.mxu0 0.0
      %5951 = vmatmul.mubr.f32.gmra.mrb[0].mxu0 %v706
      %v5952 = vpop.f32.mrb[0].mxu0
      %v5953 = vadd.f32 0.0, %v5952
      %v5954 = vpop.f32.mrb[0].mxu0
      %5955 = vdwg.mxu0
      %v5956 = vmul.f32 %v5878, 0.5
      %v5957 = vmul.f32 %v5883, 0.5
      %v5958 = vmul.f32 %v5888, 0.5
      %v5959 = vmul.f32 %v5893, 0.5
      %v5960 = vmul.f32 %v5898, 0.5
      %v5961 = vmul.f32 %v5903, 0.5
      %v5962 = vmul.f32 %v5908, 0.5
      %v5963 = vmul.f32 %v5913, 0.5
      %v5964 = vmul.f32 %v5918, 0.5
      %v5965 = vmul.f32 %v5923, 0.5
      %v5966 = vmul.f32 %v5928, 0.5
      %v5967 = vmul.f32 %v5933, 0.5
      %v5968 = vmul.f32 %v5938, 0.5
      %v5969 = vmul.f32 %v5943, 0.5
      %v5970 = vmul.f32 %v5948, 0.5
      %v5971 = vmul.f32 %v5953, 0.5
      %v5972 = vceil.f32 %v5956
      %v5973 = vceil.f32 %v5957
      %v5974 = vceil.f32 %v5958
      %v5975 = vceil.f32 %v5959
      %v5976 = vceil.f32 %v5960
      %v5977 = vceil.f32 %v5961
      %v5978 = vceil.f32 %v5962
      %v5979 = vceil.f32 %v5963
      %v5980 = vceil.f32 %v5964
      %v5981 = vceil.f32 %v5965
      %v5982 = vceil.f32 %v5966
      %v5983 = vceil.f32 %v5967
      %v5984 = vceil.f32 %v5968
      %v5985 = vceil.f32 %v5969
      %v5986 = vceil.f32 %v5970
      %v5987 = vceil.f32 %v5971
      %vm5988 = vcmp.lt.f32.partialorder %v5733, %v5972
      %vm5989 = vcmp.lt.f32.partialorder %v5738, %v5973
      %vm5990 = vcmp.lt.f32.partialorder %v5743, %v5974
      %vm5991 = vcmp.lt.f32.partialorder %v5748, %v5975
      %vm5992 = vcmp.lt.f32.partialorder %v5753, %v5976
      %vm5993 = vcmp.lt.f32.partialorder %v5758, %v5977
      %vm5994 = vcmp.lt.f32.partialorder %v5763, %v5978
      %vm5995 = vcmp.lt.f32.partialorder %v5768, %v5979
      %vm5996 = vcmp.lt.f32.partialorder %v5773, %v5980
      %vm5997 = vcmp.lt.f32.partialorder %v5778, %v5981
      %vm5998 = vcmp.lt.f32.partialorder %v5783, %v5982
      %vm5999 = vcmp.lt.f32.partialorder %v5788, %v5983
      %vm6000 = vcmp.lt.f32.partialorder %v5793, %v5984
      %vm6001 = vcmp.lt.f32.partialorder %v5798, %v5985
      %vm6002 = vcmp.lt.f32.partialorder %v5803, %v5986
      %vm6003 = vcmp.lt.f32.partialorder %v5808, %v5987
      %v6004 = vsel %vm5988, 1, 0
      %v6005 = vsel %vm5989, 1, 0
      %v6006 = vsel %vm5990, 1, 0
      %v6007 = vsel %vm5991, 1, 0
      %v6008 = vsel %vm5992, 1, 0
      %v6009 = vsel %vm5993, 1, 0
      %v6010 = vsel %vm5994, 1, 0
      %v6011 = vsel %vm5995, 1, 0
      %v6012 = vsel %vm5996, 1, 0
      %v6013 = vsel %vm5997, 1, 0
      %v6014 = vsel %vm5998, 1, 0
      %v6015 = vsel %vm5999, 1, 0
      %v6016 = vsel %vm6000, 1, 0
      %v6017 = vsel %vm6001, 1, 0
      %v6018 = vsel %vm6002, 1, 0
      %v6019 = vsel %vm6003, 1, 0
      %v6020 = vcvt.s32.f32 %v6004
      %v6021 = vcvt.s32.f32 %v6005
      %v6022 = vcvt.s32.f32 %v6006
      %v6023 = vcvt.s32.f32 %v6007
      %v6024 = vcvt.s32.f32 %v6008
      %v6025 = vcvt.s32.f32 %v6009
      %v6026 = vcvt.s32.f32 %v6010
      %v6027 = vcvt.s32.f32 %v6011
      %v6028 = vcvt.s32.f32 %v6012
      %v6029 = vcvt.s32.f32 %v6013
      %v6030 = vcvt.s32.f32 %v6014
      %v6031 = vcvt.s32.f32 %v6015
      %v6032 = vcvt.s32.f32 %v6016
      %v6033 = vcvt.s32.f32 %v6017
      %v6034 = vcvt.s32.f32 %v6018
      %v6035 = vcvt.s32.f32 %v6019
      %6052 = vrot.lane.b32.xlu0 %v6020, 1
      %v6053 = vpop.permute.xlu0 %6052
      %6054 = vrot.lane.b32.xlu0 %v6021, 1
      %v6055 = vpop.permute.xlu0 %6054
      %6056 = vrot.lane.b32.xlu0 %v6022, 1
      %v6057 = vpop.permute.xlu0 %6056
      %6058 = vrot.lane.b32.xlu0 %v6023, 1
      %v6059 = vpop.permute.xlu0 %6058
      %6060 = vrot.lane.b32.xlu0 %v6024, 1
      %v6061 = vpop.permute.xlu0 %6060
      %6062 = vrot.lane.b32.xlu0 %v6025, 1
      %v6063 = vpop.permute.xlu0 %6062
      %6064 = vrot.lane.b32.xlu0 %v6026, 1
      %v6065 = vpop.permute.xlu0 %6064
      %6066 = vrot.lane.b32.xlu0 %v6027, 1
      %v6067 = vpop.permute.xlu0 %6066
      %6068 = vrot.lane.b32.xlu0 %v6028, 1
      %v6069 = vpop.permute.xlu0 %6068
      %6070 = vrot.lane.b32.xlu0 %v6029, 1
      %v6071 = vpop.permute.xlu0 %6070
      %6072 = vrot.lane.b32.xlu0 %v6030, 1
      %v6073 = vpop.permute.xlu0 %6072
      %6074 = vrot.lane.b32.xlu0 %v6031, 1
      %v6075 = vpop.permute.xlu0 %6074
      %6076 = vrot.lane.b32.xlu0 %v6032, 1
      %v6077 = vpop.permute.xlu0 %6076
      %6078 = vrot.lane.b32.xlu0 %v6033, 1
      %v6079 = vpop.permute.xlu0 %6078
      %6080 = vrot.lane.b32.xlu0 %v6034, 1
      %v6081 = vpop.permute.xlu0 %6080
      %6082 = vrot.lane.b32.xlu0 %v6035, 1
      %v6083 = vpop.permute.xlu0 %6082
      %v6100 = vmul.f32 %v2906, %v6053
      %v6101 = vmul.f32 %v2907, %v6055
      %v6102 = vmul.f32 %v2908, %v6057
      %v6103 = vmul.f32 %v2909, %v6059
      %v6104 = vmul.f32 %v2910, %v6061
      %v6105 = vmul.f32 %v2911, %v6063
      %v6106 = vmul.f32 %v2912, %v6065
      %v6107 = vmul.f32 %v2913, %v6067
      %v6108 = vmul.f32 %v2914, %v6069
      %v6109 = vmul.f32 %v2915, %v6071
      %v6110 = vmul.f32 %v2916, %v6073
      %v6111 = vmul.f32 %v2917, %v6075
      %v6112 = vmul.f32 %v2918, %v6077
      %v6113 = vmul.f32 %v2919, %v6079
      %v6114 = vmul.f32 %v2920, %v6081
      %v6115 = vmul.f32 %v2921, %v6083
      %6132 = vrot.lane.b32.xlu0 %v6100, 127
      %v6133 = vpop.permute.xlu0 %6132
      %6134 = vrot.lane.b32.xlu0 %v6101, 127
      %v6135 = vpop.permute.xlu0 %6134
      %6136 = vrot.lane.b32.xlu0 %v6102, 127
      %v6137 = vpop.permute.xlu0 %6136
      %6138 = vrot.lane.b32.xlu0 %v6103, 127
      %v6139 = vpop.permute.xlu0 %6138
      %6140 = vrot.lane.b32.xlu0 %v6104, 127
      %v6141 = vpop.permute.xlu0 %6140
      %6142 = vrot.lane.b32.xlu0 %v6105, 127
      %v6143 = vpop.permute.xlu0 %6142
      %6144 = vrot.lane.b32.xlu0 %v6106, 127
      %v6145 = vpop.permute.xlu0 %6144
      %6146 = vrot.lane.b32.xlu0 %v6107, 127
      %v6147 = vpop.permute.xlu0 %6146
      %6148 = vrot.lane.b32.xlu0 %v6108, 127
      %v6149 = vpop.permute.xlu0 %6148
      %6150 = vrot.lane.b32.xlu0 %v6109, 127
      %v6151 = vpop.permute.xlu0 %6150
      %6152 = vrot.lane.b32.xlu0 %v6110, 127
      %v6153 = vpop.permute.xlu0 %6152
      %6154 = vrot.lane.b32.xlu0 %v6111, 127
      %v6155 = vpop.permute.xlu0 %6154
      %6156 = vrot.lane.b32.xlu0 %v6112, 127
      %v6157 = vpop.permute.xlu0 %6156
      %6158 = vrot.lane.b32.xlu0 %v6113, 127
      %v6159 = vpop.permute.xlu0 %6158
      %6160 = vrot.lane.b32.xlu0 %v6114, 127
      %v6161 = vpop.permute.xlu0 %6160
      %6162 = vrot.lane.b32.xlu0 %v6115, 127
      %v6163 = vpop.permute.xlu0 %6162
      %v6180 = vmul.f32 %v5278, %v6133
      %v6181 = vmul.f32 %v5279, %v6135
      %v6182 = vmul.f32 %v5280, %v6137
      %v6183 = vmul.f32 %v5281, %v6139
      %v6184 = vmul.f32 %v5282, %v6141
      %v6185 = vmul.f32 %v5283, %v6143
      %v6186 = vmul.f32 %v5284, %v6145
      %v6187 = vmul.f32 %v5285, %v6147
      %v6188 = vmul.f32 %v5286, %v6149
      %v6189 = vmul.f32 %v5287, %v6151
      %v6190 = vmul.f32 %v5288, %v6153
      %v6191 = vmul.f32 %v5289, %v6155
      %v6192 = vmul.f32 %v5290, %v6157
      %v6193 = vmul.f32 %v5291, %v6159
      %v6194 = vmul.f32 %v5292, %v6161
      %v6195 = vmul.f32 %v5293, %v6163
      %6197 = vset.pattern.permute.xlu0 0
      %6198 = vperm.xlu0 %6197, %v6180
      %v6199 = vpop.permute.xlu0 %6198
      %6202 = vset.pattern.permute.xlu0 0
      %6203 = vperm.xlu0 %6202, %v6181
      %v6204 = vpop.permute.xlu0 %6203
      %6207 = vset.pattern.permute.xlu0 0
      %6208 = vperm.xlu0 %6207, %v6182
      %v6209 = vpop.permute.xlu0 %6208
      %6212 = vset.pattern.permute.xlu0 0
      %6213 = vperm.xlu0 %6212, %v6183
      %v6214 = vpop.permute.xlu0 %6213
      %6217 = vset.pattern.permute.xlu0 0
      %6218 = vperm.xlu0 %6217, %v6184
      %v6219 = vpop.permute.xlu0 %6218
      %6222 = vset.pattern.permute.xlu0 0
      %6223 = vperm.xlu0 %6222, %v6185
      %v6224 = vpop.permute.xlu0 %6223
      %6227 = vset.pattern.permute.xlu0 0
      %6228 = vperm.xlu0 %6227, %v6186
      %v6229 = vpop.permute.xlu0 %6228
      %6232 = vset.pattern.permute.xlu0 0
      %6233 = vperm.xlu0 %6232, %v6187
      %v6234 = vpop.permute.xlu0 %6233
      %6237 = vset.pattern.permute.xlu0 0
      %6238 = vperm.xlu0 %6237, %v6188
      %v6239 = vpop.permute.xlu0 %6238
      %6242 = vset.pattern.permute.xlu0 0
      %6243 = vperm.xlu0 %6242, %v6189
      %v6244 = vpop.permute.xlu0 %6243
      %6247 = vset.pattern.permute.xlu0 0
      %6248 = vperm.xlu0 %6247, %v6190
      %v6249 = vpop.permute.xlu0 %6248
      %6252 = vset.pattern.permute.xlu0 0
      %6253 = vperm.xlu0 %6252, %v6191
      %v6254 = vpop.permute.xlu0 %6253
      %6257 = vset.pattern.permute.xlu0 0
      %6258 = vperm.xlu0 %6257, %v6192
      %v6259 = vpop.permute.xlu0 %6258
      %6262 = vset.pattern.permute.xlu0 0
      %6263 = vperm.xlu0 %6262, %v6193
      %v6264 = vpop.permute.xlu0 %6263
      %6267 = vset.pattern.permute.xlu0 0
      %6268 = vperm.xlu0 %6267, %v6194
      %v6269 = vpop.permute.xlu0 %6268
      %6272 = vset.pattern.permute.xlu0 0
      %6273 = vperm.xlu0 %6272, %v6195
      %v6274 = vpop.permute.xlu0 %6273
      %v6276 = vmul.f32 %v4695, %v6199
      %v6277 = vmul.f32 %v4696, %v6204
      %v6278 = vmul.f32 %v4697, %v6209
      %v6279 = vmul.f32 %v4698, %v6214
      %v6280 = vmul.f32 %v4699, %v6219
      %v6281 = vmul.f32 %v4700, %v6224
      %v6282 = vmul.f32 %v4701, %v6229
      %v6283 = vmul.f32 %v4702, %v6234
      %v6284 = vmul.f32 %v4703, %v6239
      %v6285 = vmul.f32 %v4704, %v6244
      %v6286 = vmul.f32 %v4705, %v6249
      %v6287 = vmul.f32 %v4706, %v6254
      %v6288 = vmul.f32 %v4707, %v6259
      %v6289 = vmul.f32 %v4708, %v6264
      %v6290 = vmul.f32 %v4709, %v6269
      %v6291 = vmul.f32 %v4710, %v6274
      %6292 = vmatprep.subr.mxu0 0.0
      %6293 = vmatpush1.msra.mxu0 %v6276
      %6294 = vmatprep.subr.mxu0 0.0
      %6295 = vmatpush1.msra.mxu0 %v6277
      %6296 = vmatprep.subr.mxu0 0.0
      %6297 = vmatpush1.msra.mxu0 %v6278
      %6298 = vmatprep.subr.mxu0 0.0
      %6299 = vmatpush1.msra.mxu0 %v6279
      %6300 = vmatprep.subr.mxu0 0.0
      %6301 = vmatpush1.msra.mxu0 %v6280
      %6302 = vmatprep.subr.mxu0 0.0
      %6303 = vmatpush1.msra.mxu0 %v6281
      %6304 = vmatprep.subr.mxu0 0.0
      %6305 = vmatpush1.msra.mxu0 %v6282
      %6306 = vmatprep.subr.mxu0 0.0
      %6307 = vmatpush1.msra.mxu0 %v6283
      %6308 = vmatprep.subr.mxu0 0.0
      %6309 = vmatpush1.msra.mxu0 %v6284
      %6310 = vmatprep.subr.mxu0 0.0
      %6311 = vmatpush1.msra.mxu0 %v6285
      %6312 = vmatprep.subr.mxu0 0.0
      %6313 = vmatpush1.msra.mxu0 %v6286
      %6314 = vmatprep.subr.mxu0 0.0
      %6315 = vmatpush1.msra.mxu0 %v6287
      %6316 = vmatprep.subr.mxu0 0.0
      %6317 = vmatpush1.msra.mxu0 %v6288
      %6318 = vmatprep.subr.mxu0 0.0
      %6319 = vmatpush1.msra.mxu0 %v6289
      %6320 = vmatprep.subr.mxu0 0.0
      %6321 = vmatpush1.msra.mxu0 %v6290
      %6322 = vmatprep.subr.mxu0 0.0
      %6323 = vmatpush1.msra.mxu0 %v6291
      %6324 = vmatprep.subr.mxu0 0.0
      %6325 = vmatpush1.msra.mxu0 0.0
      %6326 = vmatprep.subr.mxu0 0.0
      %6327 = vmatpush1.msra.mxu0 0.0
      %6328 = vmatprep.subr.mxu0 0.0
      %6329 = vmatpush1.msra.mxu0 0.0
      %6330 = vmatprep.subr.mxu0 0.0
      %6331 = vmatpush1.msra.mxu0 0.0
      %6332 = vmatprep.subr.mxu0 0.0
      %6333 = vmatpush1.msra.mxu0 0.0
      %6334 = vmatprep.subr.mxu0 0.0
      %6335 = vmatpush1.msra.mxu0 0.0
      %6336 = vmatprep.subr.mxu0 0.0
      %6337 = vmatpush1.msra.mxu0 0.0
      %6338 = vmatprep.subr.mxu0 0.0
      %6339 = vmatpush1.msra.mxu0 0.0
      %6340 = vmatprep.subr.mxu0 0.0
      %6341 = vmatpush1.msra.mxu0 0.0
      %6342 = vmatprep.subr.mxu0 0.0
      %6343 = vmatpush1.msra.mxu0 0.0
      %6344 = vmatprep.subr.mxu0 0.0
      %6345 = vmatpush1.msra.mxu0 0.0
      %6346 = vmatprep.subr.mxu0 0.0
      %6347 = vmatpush1.msra.mxu0 0.0
      %6348 = vmatprep.subr.mxu0 0.0
      %6349 = vmatpush1.msra.mxu0 0.0
      %6350 = vmatprep.subr.mxu0 0.0
      %6351 = vmatpush1.msra.mxu0 0.0
      %6352 = vmatprep.subr.mxu0 0.0
      %6353 = vmatpush1.msra.mxu0 0.0
      %6354 = vmatprep.subr.mxu0 0.0
      %6355 = vmatpush1.msra.mxu0 0.0
      %6356 = vmatprep.mubr.f32.mxu0 0.0
      %6357 = vmatmul.mubr.f32.gmra.mrb[0].mxu0 %v712
      %v6358 = vpop.f32.mrb[0].mxu0
      %v6359 = vadd.f32 0.0, %v6358
      %v6360 = vpop.f32.mrb[0].mxu0
      %6361 = vdwg.mxu0
      %6362 = vmatprep.subr.mxu0 0.0
      %6363 = vmatpush1.msra.mxu0 %v3082
      %6364 = vmatprep.subr.mxu0 0.0
      %6365 = vmatpush1.msra.mxu0 %v3083
      %6366 = vmatprep.subr.mxu0 0.0
      %6367 = vmatpush1.msra.mxu0 %v3084
      %6368 = vmatprep.subr.mxu0 0.0
      %6369 = vmatpush1.msra.mxu0 %v3085
      %6370 = vmatprep.subr.mxu0 0.0
      %6371 = vmatpush1.msra.mxu0 %v3086
      %6372 = vmatprep.subr.mxu0 0.0
      %6373 = vmatpush1.msra.mxu0 %v3087
      %6374 = vmatprep.subr.mxu0 0.0
      %6375 = vmatpush1.msra.mxu0 %v3088
      %6376 = vmatprep.subr.mxu0 0.0
      %6377 = vmatpush1.msra.mxu0 %v3089
      %6378 = vmatprep.subr.mxu0 0.0
      %6379 = vmatpush1.msra.mxu0 %v3090
      %6380 = vmatprep.subr.mxu0 0.0
      %6381 = vmatpush1.msra.mxu0 %v3091
      %6382 = vmatprep.subr.mxu0 0.0
      %6383 = vmatpush1.msra.mxu0 %v3092
      %6384 = vmatprep.subr.mxu0 0.0
      %6385 = vmatpush1.msra.mxu0 %v3093
      %6386 = vmatprep.subr.mxu0 0.0
      %6387 = vmatpush1.msra.mxu0 %v3094
      %6388 = vmatprep.subr.mxu0 0.0
      %6389 = vmatpush1.msra.mxu0 %v3095
      %6390 = vmatprep.subr.mxu0 0.0
      %6391 = vmatpush1.msra.mxu0 %v3096
      %6392 = vmatprep.subr.mxu0 0.0
      %6393 = vmatpush1.msra.mxu0 %v3097
      %6394 = vmatprep.subr.mxu0 0.0
      %6395 = vmatpush1.msra.mxu0 0.0
      %6396 = vmatprep.subr.mxu0 0.0
      %6397 = vmatpush1.msra.mxu0 0.0
      %6398 = vmatprep.subr.mxu0 0.0
      %6399 = vmatpush1.msra.mxu0 0.0
      %6400 = vmatprep.subr.mxu0 0.0
      %6401 = vmatpush1.msra.mxu0 0.0
      %6402 = vmatprep.subr.mxu0 0.0
      %6403 = vmatpush1.msra.mxu0 0.0
      %6404 = vmatprep.subr.mxu0 0.0
      %6405 = vmatpush1.msra.mxu0 0.0
      %6406 = vmatprep.subr.mxu0 0.0
      %6407 = vmatpush1.msra.mxu0 0.0
      %6408 = vmatprep.subr.mxu0 0.0
      %6409 = vmatpush1.msra.mxu0 0.0
      %6410 = vmatprep.subr.mxu0 0.0
      %6411 = vmatpush1.msra.mxu0 0.0
      %6412 = vmatprep.subr.mxu0 0.0
      %6413 = vmatpush1.msra.mxu0 0.0
      %6414 = vmatprep.subr.mxu0 0.0
      %6415 = vmatpush1.msra.mxu0 0.0
      %6416 = vmatprep.subr.mxu0 0.0
      %6417 = vmatpush1.msra.mxu0 0.0
      %6418 = vmatprep.subr.mxu0 0.0
      %6419 = vmatpush1.msra.mxu0 0.0
      %6420 = vmatprep.subr.mxu0 0.0
      %6421 = vmatpush1.msra.mxu0 0.0
      %6422 = vmatprep.subr.mxu0 0.0
      %6423 = vmatpush1.msra.mxu0 0.0
      %6424 = vmatprep.subr.mxu0 0.0
      %6425 = vmatpush1.msra.mxu0 0.0
      %6426 = vmatprep.mubr.f32.mxu0 0.0
      %6427 = vmatmul.mubr.f32.gmra.mrb[0].mxu0 %v712
      %v6428 = vpop.f32.mrb[0].mxu0
      %v6429 = vadd.f32 %v6359, %v6428
      %v6430 = vpop.f32.mrb[0].mxu0
      %6431 = vdwg.mxu0
      %6432 = vmatprep.subr.mxu0 0.0
      %6433 = vmatpush1.msra.mxu0 %v6133
      %6434 = vmatprep.subr.mxu0 0.0
      %6435 = vmatpush1.msra.mxu0 %v6135
      %6436 = vmatprep.subr.mxu0 0.0
      %6437 = vmatpush1.msra.mxu0 %v6137
      %6438 = vmatprep.subr.mxu0 0.0
      %6439 = vmatpush1.msra.mxu0 %v6139
      %6440 = vmatprep.subr.mxu0 0.0
      %6441 = vmatpush1.msra.mxu0 %v6141
      %6442 = vmatprep.subr.mxu0 0.0
      %6443 = vmatpush1.msra.mxu0 %v6143
      %6444 = vmatprep.subr.mxu0 0.0
      %6445 = vmatpush1.msra.mxu0 %v6145
      %6446 = vmatprep.subr.mxu0 0.0
      %6447 = vmatpush1.msra.mxu0 %v6147
      %6448 = vmatprep.subr.mxu0 0.0
      %6449 = vmatpush1.msra.mxu0 %v6149
      %6450 = vmatprep.subr.mxu0 0.0
      %6451 = vmatpush1.msra.mxu0 %v6151
      %6452 = vmatprep.subr.mxu0 0.0
      %6453 = vmatpush1.msra.mxu0 %v6153
      %6454 = vmatprep.subr.mxu0 0.0
      %6455 = vmatpush1.msra.mxu0 %v6155
      %6456 = vmatprep.subr.mxu0 0.0
      %6457 = vmatpush1.msra.mxu0 %v6157
      %6458 = vmatprep.subr.mxu0 0.0
      %6459 = vmatpush1.msra.mxu0 %v6159
      %6460 = vmatprep.subr.mxu0 0.0
      %6461 = vmatpush1.msra.mxu0 %v6161
      %6462 = vmatprep.subr.mxu0 0.0
      %6463 = vmatpush1.msra.mxu0 %v6163
      %6464 = vmatprep.subr.mxu0 0.0
      %6465 = vmatpush1.msra.mxu0 0.0
      %6466 = vmatprep.subr.mxu0 0.0
      %6467 = vmatpush1.msra.mxu0 0.0
      %6468 = vmatprep.subr.mxu0 0.0
      %6469 = vmatpush1.msra.mxu0 0.0
      %6470 = vmatprep.subr.mxu0 0.0
      %6471 = vmatpush1.msra.mxu0 0.0
      %6472 = vmatprep.subr.mxu0 0.0
      %6473 = vmatpush1.msra.mxu0 0.0
      %6474 = vmatprep.subr.mxu0 0.0
      %6475 = vmatpush1.msra.mxu0 0.0
      %6476 = vmatprep.subr.mxu0 0.0
      %6477 = vmatpush1.msra.mxu0 0.0
      %6478 = vmatprep.subr.mxu0 0.0
      %6479 = vmatpush1.msra.mxu0 0.0
      %6480 = vmatprep.subr.mxu0 0.0
      %6481 = vmatpush1.msra.mxu0 0.0
      %6482 = vmatprep.subr.mxu0 0.0
      %6483 = vmatpush1.msra.mxu0 0.0
      %6484 = vmatprep.subr.mxu0 0.0
      %6485 = vmatpush1.msra.mxu0 0.0
      %6486 = vmatprep.subr.mxu0 0.0
      %6487 = vmatpush1.msra.mxu0 0.0
      %6488 = vmatprep.subr.mxu0 0.0
      %6489 = vmatpush1.msra.mxu0 0.0
      %6490 = vmatprep.subr.mxu0 0.0
      %6491 = vmatpush1.msra.mxu0 0.0
      %6492 = vmatprep.subr.mxu0 0.0
      %6493 = vmatpush1.msra.mxu0 0.0
      %6494 = vmatprep.subr.mxu0 0.0
      %6495 = vmatpush1.msra.mxu0 0.0
      %6496 = vmatprep.mubr.f32.mxu0 0.0
      %6497 = vmatmul.mubr.f32.gmra.mrb[0].mxu0 %v712
      %v6498 = vpop.f32.mrb[0].mxu0
      %v6499 = vadd.f32 0.0, %v6498
      %v6500 = vpop.f32.mrb[0].mxu0
      %6501 = vdwg.mxu0
      %v6502 = vsel %vm3168, %v6133, 0.0
      %v6503 = vsel %vm3169, %v6135, 0.0
      %v6504 = vsel %vm3170, %v6137, 0.0
      %v6505 = vsel %vm3171, %v6139, 0.0
      %v6506 = vsel %vm3172, %v6141, 0.0
      %v6507 = vsel %vm3173, %v6143, 0.0
      %v6508 = vsel %vm3174, %v6145, 0.0
      %v6509 = vsel %vm3175, %v6147, 0.0
      %v6510 = vsel %vm3176, %v6149, 0.0
      %v6511 = vsel %vm3177, %v6151, 0.0
      %v6512 = vsel %vm3178, %v6153, 0.0
      %v6513 = vsel %vm3179, %v6155, 0.0
      %v6514 = vsel %vm3180, %v6157, 0.0
      %v6515 = vsel %vm3181, %v6159, 0.0
      %v6516 = vsel %vm3182, %v6161, 0.0
      %v6517 = vsel %vm3183, %v6163, 0.0
      %vm6518 = vcmp.gt.f32.partialorder %v6502, 0.5
      %vm6519 = vcmp.gt.f32.partialorder %v6503, 0.5
      %vm6520 = vcmp.gt.f32.partialorder %v6504, 0.5
      %vm6521 = vcmp.gt.f32.partialorder %v6505, 0.5
      %vm6522 = vcmp.gt.f32.partialorder %v6506, 0.5
      %vm6523 = vcmp.gt.f32.partialorder %v6507, 0.5
      %vm6524 = vcmp.gt.f32.partialorder %v6508, 0.5
      %vm6525 = vcmp.gt.f32.partialorder %v6509, 0.5
      %vm6526 = vcmp.gt.f32.partialorder %v6510, 0.5
      %vm6527 = vcmp.gt.f32.partialorder %v6511, 0.5
      %vm6528 = vcmp.gt.f32.partialorder %v6512, 0.5
      %vm6529 = vcmp.gt.f32.partialorder %v6513, 0.5
      %vm6530 = vcmp.gt.f32.partialorder %v6514, 0.5
      %vm6531 = vcmp.gt.f32.partialorder %v6515, 0.5
      %vm6532 = vcmp.gt.f32.partialorder %v6516, 0.5
      %vm6533 = vcmp.gt.f32.partialorder %v6517, 0.5
      %v6534 = vsel %vm6518, 1, 0
      %v6535 = vsel %vm6519, 1, 0
      %v6536 = vsel %vm6520, 1, 0
      %v6537 = vsel %vm6521, 1, 0
      %v6538 = vsel %vm6522, 1, 0
      %v6539 = vsel %vm6523, 1, 0
      %v6540 = vsel %vm6524, 1, 0
      %v6541 = vsel %vm6525, 1, 0
      %v6542 = vsel %vm6526, 1, 0
      %v6543 = vsel %vm6527, 1, 0
      %v6544 = vsel %vm6528, 1, 0
      %v6545 = vsel %vm6529, 1, 0
      %v6546 = vsel %vm6530, 1, 0
      %v6547 = vsel %vm6531, 1, 0
      %v6548 = vsel %vm6532, 1, 0
      %v6549 = vsel %vm6533, 1, 0
      %6550 = vset.pattern.permute.xlu0 0
      %6551 = vperm.xlu0 %6550, %v6534
      %v6552 = vpop.permute.xlu0 %6551
      %6553 = vset.pattern.permute.xlu0 0
      %6554 = vperm.xlu0 %6553, %v6535
      %v6555 = vpop.permute.xlu0 %6554
      %6556 = vset.pattern.permute.xlu0 0
      %6557 = vperm.xlu0 %6556, %v6536
      %v6558 = vpop.permute.xlu0 %6557
      %6559 = vset.pattern.permute.xlu0 0
      %6560 = vperm.xlu0 %6559, %v6537
      %v6561 = vpop.permute.xlu0 %6560
      %6562 = vset.pattern.permute.xlu0 0
      %6563 = vperm.xlu0 %6562, %v6538
      %v6564 = vpop.permute.xlu0 %6563
      %6565 = vset.pattern.permute.xlu0 0
      %6566 = vperm.xlu0 %6565, %v6539
      %v6567 = vpop.permute.xlu0 %6566
      %6568 = vset.pattern.permute.xlu0 0
      %6569 = vperm.xlu0 %6568, %v6540
      %v6570 = vpop.permute.xlu0 %6569
      %6571 = vset.pattern.permute.xlu0 0
      %6572 = vperm.xlu0 %6571, %v6541
      %v6573 = vpop.permute.xlu0 %6572
      %6574 = vset.pattern.permute.xlu0 0
      %6575 = vperm.xlu0 %6574, %v6542
      %v6576 = vpop.permute.xlu0 %6575
      %6577 = vset.pattern.permute.xlu0 0
      %6578 = vperm.xlu0 %6577, %v6543
      %v6579 = vpop.permute.xlu0 %6578
      %6580 = vset.pattern.permute.xlu0 0
      %6581 = vperm.xlu0 %6580, %v6544
      %v6582 = vpop.permute.xlu0 %6581
      %6583 = vset.pattern.permute.xlu0 0
      %6584 = vperm.xlu0 %6583, %v6545
      %v6585 = vpop.permute.xlu0 %6584
      %6586 = vset.pattern.permute.xlu0 0
      %6587 = vperm.xlu0 %6586, %v6546
      %v6588 = vpop.permute.xlu0 %6587
      %6589 = vset.pattern.permute.xlu0 0
      %6590 = vperm.xlu0 %6589, %v6547
      %v6591 = vpop.permute.xlu0 %6590
      %6592 = vset.pattern.permute.xlu0 0
      %6593 = vperm.xlu0 %6592, %v6548
      %v6594 = vpop.permute.xlu0 %6593
      %6595 = vset.pattern.permute.xlu0 0
      %6596 = vperm.xlu0 %6595, %v6549
      %v6597 = vpop.permute.xlu0 %6596
      %vm6598 = vcmp.eq.s32.totalorder %v6552, 1
      %vm6599 = vcmp.eq.s32.totalorder %v6555, 1
      %vm6600 = vcmp.eq.s32.totalorder %v6558, 1
      %vm6601 = vcmp.eq.s32.totalorder %v6561, 1
      %vm6602 = vcmp.eq.s32.totalorder %v6564, 1
      %vm6603 = vcmp.eq.s32.totalorder %v6567, 1
      %vm6604 = vcmp.eq.s32.totalorder %v6570, 1
      %vm6605 = vcmp.eq.s32.totalorder %v6573, 1
      %vm6606 = vcmp.eq.s32.totalorder %v6576, 1
      %vm6607 = vcmp.eq.s32.totalorder %v6579, 1
      %vm6608 = vcmp.eq.s32.totalorder %v6582, 1
      %vm6609 = vcmp.eq.s32.totalorder %v6585, 1
      %vm6610 = vcmp.eq.s32.totalorder %v6588, 1
      %vm6611 = vcmp.eq.s32.totalorder %v6591, 1
      %vm6612 = vcmp.eq.s32.totalorder %v6594, 1
      %vm6613 = vcmp.eq.s32.totalorder %v6597, 1
      %v6614 = vsel %vm6598, %v6276, -1e+30
      %v6615 = vsel %vm6599, %v6277, -1e+30
      %v6616 = vsel %vm6600, %v6278, -1e+30
      %v6617 = vsel %vm6601, %v6279, -1e+30
      %v6618 = vsel %vm6602, %v6280, -1e+30
      %v6619 = vsel %vm6603, %v6281, -1e+30
      %v6620 = vsel %vm6604, %v6282, -1e+30
      %v6621 = vsel %vm6605, %v6283, -1e+30
      %v6622 = vsel %vm6606, %v6284, -1e+30
      %v6623 = vsel %vm6607, %v6285, -1e+30
      %v6624 = vsel %vm6608, %v6286, -1e+30
      %v6625 = vsel %vm6609, %v6287, -1e+30
      %v6626 = vsel %vm6610, %v6288, -1e+30
      %v6627 = vsel %vm6611, %v6289, -1e+30
      %v6628 = vsel %vm6612, %v6290, -1e+30
      %v6629 = vsel %vm6613, %v6291, -1e+30
      %v6630 = vsel %vm757, %v6614, -inf
      %v6631 = vsel %vm757, %v6615, -inf
      %v6632 = vsel %vm757, %v6616, -inf
      %v6633 = vsel %vm757, %v6617, -inf
      %v6634 = vsel %vm757, %v6618, -inf
      %v6635 = vmax.f32 %v6630, %v6634
      %v6636 = vsel %vm757, %v6619, -inf
      %v6637 = vmax.f32 %v6631, %v6636
      %v6638 = vsel %vm757, %v6620, -inf
      %v6639 = vmax.f32 %v6632, %v6638
      %v6640 = vsel %vm757, %v6621, -inf
      %v6641 = vmax.f32 %v6633, %v6640
      %v6642 = vsel %vm757, %v6622, -inf
      %v6643 = vmax.f32 %v6635, %v6642
      %v6644 = vsel %vm757, %v6623, -inf
      %v6645 = vmax.f32 %v6637, %v6644
      %v6646 = vsel %vm757, %v6624, -inf
      %v6647 = vmax.f32 %v6639, %v6646
      %v6648 = vsel %vm757, %v6625, -inf
      %v6649 = vmax.f32 %v6641, %v6648
      %v6650 = vsel %vm757, %v6626, -inf
      %v6651 = vmax.f32 %v6643, %v6650
      %v6652 = vsel %vm757, %v6627, -inf
      %v6653 = vmax.f32 %v6645, %v6652
      %v6654 = vsel %vm757, %v6628, -inf
      %v6655 = vmax.f32 %v6647, %v6654
      %v6656 = vsel %vm757, %v6629, -inf
      %v6657 = vmax.f32 %v6649, %v6656
      %v6658 = vmax.f32 %v6651, %v6653
      %v6659 = vmax.f32 %v6655, %v6657
      %v6660 = vmax.f32 %v6658, %v6659
      %v6661 = vrot.slane %v6660, 4
      %v6662 = vmax.f32 %v6660, %v6661
      %v6663 = vrot.slane %v6662, 2
      %v6664 = vmax.f32 %v6662, %v6663
      %v6665 = vrot.slane %v6664, 1
      %v6666 = vmax.f32 %v6664, %v6665
      %vm6667 = vcmp.gt.f32.partialorder %v6499, 0.5
      %v6668 = vsel %vm6667, 1, 0
      %6669 = vset.pattern.permute.xlu0 0
      %6670 = vperm.xlu0 %6669, %v6668
      %v6671 = vpop.permute.xlu0 %6670
      %vm6672 = vcmp.eq.s32.totalorder %v6671, 1
      %v6673 = vsel %vm6672, %v6666, 0.0
      %v6674 = vld [vmem:[#allocation2] sm:$0x1]
      %v6675 = vadd.f32 %v6674, %v6673
      %6676 = vst.msk [vmem:[#allocation2] sm:$0x1] %vm3358, %v6675
      %v6677 = vsel %vm3360, %v6133, 0.0
      %v6678 = vsel %vm3361, %v6135, 0.0
      %v6679 = vsel %vm3362, %v6137, 0.0
      %v6680 = vsel %vm3363, %v6139, 0.0
      %v6681 = vsel %vm3364, %v6141, 0.0
      %v6682 = vsel %vm3365, %v6143, 0.0
      %v6683 = vsel %vm3366, %v6145, 0.0
      %v6684 = vsel %vm3367, %v6147, 0.0
      %v6685 = vsel %vm3368, %v6149, 0.0
      %v6686 = vsel %vm3369, %v6151, 0.0
      %v6687 = vsel %vm3370, %v6153, 0.0
      %v6688 = vsel %vm3371, %v6155, 0.0
      %v6689 = vsel %vm3372, %v6157, 0.0
      %v6690 = vsel %vm3373, %v6159, 0.0
      %v6691 = vsel %vm3374, %v6161, 0.0
      %v6692 = vsel %vm3375, %v6163, 0.0
      %vm6693 = vcmp.gt.f32.partialorder %v6677, 0.5
      %vm6694 = vcmp.gt.f32.partialorder %v6678, 0.5
      %vm6695 = vcmp.gt.f32.partialorder %v6679, 0.5
      %vm6696 = vcmp.gt.f32.partialorder %v6680, 0.5
      %vm6697 = vcmp.gt.f32.partialorder %v6681, 0.5
      %vm6698 = vcmp.gt.f32.partialorder %v6682, 0.5
      %vm6699 = vcmp.gt.f32.partialorder %v6683, 0.5
      %vm6700 = vcmp.gt.f32.partialorder %v6684, 0.5
      %vm6701 = vcmp.gt.f32.partialorder %v6685, 0.5
      %vm6702 = vcmp.gt.f32.partialorder %v6686, 0.5
      %vm6703 = vcmp.gt.f32.partialorder %v6687, 0.5
      %vm6704 = vcmp.gt.f32.partialorder %v6688, 0.5
      %vm6705 = vcmp.gt.f32.partialorder %v6689, 0.5
      %vm6706 = vcmp.gt.f32.partialorder %v6690, 0.5
      %vm6707 = vcmp.gt.f32.partialorder %v6691, 0.5
      %vm6708 = vcmp.gt.f32.partialorder %v6692, 0.5
      %v6709 = vsel %vm6693, 1, 0
      %v6710 = vsel %vm6694, 1, 0
      %v6711 = vsel %vm6695, 1, 0
      %v6712 = vsel %vm6696, 1, 0
      %v6713 = vsel %vm6697, 1, 0
      %v6714 = vsel %vm6698, 1, 0
      %v6715 = vsel %vm6699, 1, 0
      %v6716 = vsel %vm6700, 1, 0
      %v6717 = vsel %vm6701, 1, 0
      %v6718 = vsel %vm6702, 1, 0
      %v6719 = vsel %vm6703, 1, 0
      %v6720 = vsel %vm6704, 1, 0
      %v6721 = vsel %vm6705, 1, 0
      %v6722 = vsel %vm6706, 1, 0
      %v6723 = vsel %vm6707, 1, 0
      %v6724 = vsel %vm6708, 1, 0
      %6725 = vset.pattern.permute.xlu0 0
      %6726 = vperm.xlu0 %6725, %v6709
      %v6727 = vpop.permute.xlu0 %6726
      %6728 = vset.pattern.permute.xlu0 0
      %6729 = vperm.xlu0 %6728, %v6710
      %v6730 = vpop.permute.xlu0 %6729
      %6731 = vset.pattern.permute.xlu0 0
      %6732 = vperm.xlu0 %6731, %v6711
      %v6733 = vpop.permute.xlu0 %6732
      %6734 = vset.pattern.permute.xlu0 0
      %6735 = vperm.xlu0 %6734, %v6712
      %v6736 = vpop.permute.xlu0 %6735
      %6737 = vset.pattern.permute.xlu0 0
      %6738 = vperm.xlu0 %6737, %v6713
      %v6739 = vpop.permute.xlu0 %6738
      %6740 = vset.pattern.permute.xlu0 0
      %6741 = vperm.xlu0 %6740, %v6714
      %v6742 = vpop.permute.xlu0 %6741
      %6743 = vset.pattern.permute.xlu0 0
      %6744 = vperm.xlu0 %6743, %v6715
      %v6745 = vpop.permute.xlu0 %6744
      %6746 = vset.pattern.permute.xlu0 0
      %6747 = vperm.xlu0 %6746, %v6716
      %v6748 = vpop.permute.xlu0 %6747
      %6749 = vset.pattern.permute.xlu0 0
      %6750 = vperm.xlu0 %6749, %v6717
      %v6751 = vpop.permute.xlu0 %6750
      %6752 = vset.pattern.permute.xlu0 0
      %6753 = vperm.xlu0 %6752, %v6718
      %v6754 = vpop.permute.xlu0 %6753
      %6755 = vset.pattern.permute.xlu0 0
      %6756 = vperm.xlu0 %6755, %v6719
      %v6757 = vpop.permute.xlu0 %6756
      %6758 = vset.pattern.permute.xlu0 0
      %6759 = vperm.xlu0 %6758, %v6720
      %v6760 = vpop.permute.xlu0 %6759
      %6761 = vset.pattern.permute.xlu0 0
      %6762 = vperm.xlu0 %6761, %v6721
      %v6763 = vpop.permute.xlu0 %6762
      %6764 = vset.pattern.permute.xlu0 0
      %6765 = vperm.xlu0 %6764, %v6722
      %v6766 = vpop.permute.xlu0 %6765
      %6767 = vset.pattern.permute.xlu0 0
      %6768 = vperm.xlu0 %6767, %v6723
      %v6769 = vpop.permute.xlu0 %6768
      %6770 = vset.pattern.permute.xlu0 0
      %6771 = vperm.xlu0 %6770, %v6724
      %v6772 = vpop.permute.xlu0 %6771
      %vm6773 = vcmp.eq.s32.totalorder %v6727, 1
      %vm6774 = vcmp.eq.s32.totalorder %v6730, 1
      %vm6775 = vcmp.eq.s32.totalorder %v6733, 1
      %vm6776 = vcmp.eq.s32.totalorder %v6736, 1
      %vm6777 = vcmp.eq.s32.totalorder %v6739, 1
      %vm6778 = vcmp.eq.s32.totalorder %v6742, 1
      %vm6779 = vcmp.eq.s32.totalorder %v6745, 1
      %vm6780 = vcmp.eq.s32.totalorder %v6748, 1
      %vm6781 = vcmp.eq.s32.totalorder %v6751, 1
      %vm6782 = vcmp.eq.s32.totalorder %v6754, 1
      %vm6783 = vcmp.eq.s32.totalorder %v6757, 1
      %vm6784 = vcmp.eq.s32.totalorder %v6760, 1
      %vm6785 = vcmp.eq.s32.totalorder %v6763, 1
      %vm6786 = vcmp.eq.s32.totalorder %v6766, 1
      %vm6787 = vcmp.eq.s32.totalorder %v6769, 1
      %vm6788 = vcmp.eq.s32.totalorder %v6772, 1
      %v6789 = vsel %vm6773, %v6276, -1e+30
      %v6790 = vsel %vm6774, %v6277, -1e+30
      %v6791 = vsel %vm6775, %v6278, -1e+30
      %v6792 = vsel %vm6776, %v6279, -1e+30
      %v6793 = vsel %vm6777, %v6280, -1e+30
      %v6794 = vsel %vm6778, %v6281, -1e+30
      %v6795 = vsel %vm6779, %v6282, -1e+30
      %v6796 = vsel %vm6780, %v6283, -1e+30
      %v6797 = vsel %vm6781, %v6284, -1e+30
      %v6798 = vsel %vm6782, %v6285, -1e+30
      %v6799 = vsel %vm6783, %v6286, -1e+30
      %v6800 = vsel %vm6784, %v6287, -1e+30
      %v6801 = vsel %vm6785, %v6288, -1e+30
      %v6802 = vsel %vm6786, %v6289, -1e+30
      %v6803 = vsel %vm6787, %v6290, -1e+30
      %v6804 = vsel %vm6788, %v6291, -1e+30
      %v6805 = vsel %vm757, %v6789, -inf
      %v6806 = vsel %vm757, %v6790, -inf
      %v6807 = vsel %vm757, %v6791, -inf
      %v6808 = vsel %vm757, %v6792, -inf
      %v6809 = vsel %vm757, %v6793, -inf
      %v6810 = vmax.f32 %v6805, %v6809
      %v6811 = vsel %vm757, %v6794, -inf
      %v6812 = vmax.f32 %v6806, %v6811
      %v6813 = vsel %vm757, %v6795, -inf
      %v6814 = vmax.f32 %v6807, %v6813
      %v6815 = vsel %vm757, %v6796, -inf
      %v6816 = vmax.f32 %v6808, %v6815
      %v6817 = vsel %vm757, %v6797, -inf
      %v6818 = vmax.f32 %v6810, %v6817
      %v6819 = vsel %vm757, %v6798, -inf
      %v6820 = vmax.f32 %v6812, %v6819
      %v6821 = vsel %vm757, %v6799, -inf
      %v6822 = vmax.f32 %v6814, %v6821
      %v6823 = vsel %vm757, %v6800, -inf
      %v6824 = vmax.f32 %v6816, %v6823
      %v6825 = vsel %vm757, %v6801, -inf
      %v6826 = vmax.f32 %v6818, %v6825
      %v6827 = vsel %vm757, %v6802, -inf
      %v6828 = vmax.f32 %v6820, %v6827
      %v6829 = vsel %vm757, %v6803, -inf
      %v6830 = vmax.f32 %v6822, %v6829
      %v6831 = vsel %vm757, %v6804, -inf
      %v6832 = vmax.f32 %v6824, %v6831
      %v6833 = vmax.f32 %v6826, %v6828
      %v6834 = vmax.f32 %v6830, %v6832
      %v6835 = vmax.f32 %v6833, %v6834
      %v6836 = vrot.slane %v6835, 4
      %v6837 = vmax.f32 %v6835, %v6836
      %v6838 = vrot.slane %v6837, 2
      %v6839 = vmax.f32 %v6837, %v6838
      %v6840 = vrot.slane %v6839, 1
      %v6841 = vmax.f32 %v6839, %v6840
      %v6842 = vsel %vm6672, %v6841, 0.0
      %v6843 = vld [vmem:[#allocation2 + $0x1] sm:$0x1]
      %v6845 = vrot.slane %v6842, 1
      %v6847 = vadd.f32 %v6843, %v6845
      %6848 = vst.msk [vmem:[#allocation2 + $0x1] sm:$0x1] %vm3358, %v6847
      %v6849 = vsel %vm3548, %v6133, 0.0
      %v6850 = vsel %vm3549, %v6135, 0.0
      %v6851 = vsel %vm3550, %v6137, 0.0
      %v6852 = vsel %vm3551, %v6139, 0.0
      %v6853 = vsel %vm3552, %v6141, 0.0
      %v6854 = vsel %vm3553, %v6143, 0.0
      %v6855 = vsel %vm3554, %v6145, 0.0
      %v6856 = vsel %vm3555, %v6147, 0.0
      %v6857 = vsel %vm3556, %v6149, 0.0
      %v6858 = vsel %vm3557, %v6151, 0.0
      %v6859 = vsel %vm3558, %v6153, 0.0
      %v6860 = vsel %vm3559, %v6155, 0.0
      %v6861 = vsel %vm3560, %v6157, 0.0
      %v6862 = vsel %vm3561, %v6159, 0.0
      %v6863 = vsel %vm3562, %v6161, 0.0
      %v6864 = vsel %vm3563, %v6163, 0.0
      %vm6865 = vcmp.gt.f32.partialorder %v6849, 0.5
      %vm6866 = vcmp.gt.f32.partialorder %v6850, 0.5
      %vm6867 = vcmp.gt.f32.partialorder %v6851, 0.5
      %vm6868 = vcmp.gt.f32.partialorder %v6852, 0.5
      %vm6869 = vcmp.gt.f32.partialorder %v6853, 0.5
      %vm6870 = vcmp.gt.f32.partialorder %v6854, 0.5
      %vm6871 = vcmp.gt.f32.partialorder %v6855, 0.5
      %vm6872 = vcmp.gt.f32.partialorder %v6856, 0.5
      %vm6873 = vcmp.gt.f32.partialorder %v6857, 0.5
      %vm6874 = vcmp.gt.f32.partialorder %v6858, 0.5
      %vm6875 = vcmp.gt.f32.partialorder %v6859, 0.5
      %vm6876 = vcmp.gt.f32.partialorder %v6860, 0.5
      %vm6877 = vcmp.gt.f32.partialorder %v6861, 0.5
      %vm6878 = vcmp.gt.f32.partialorder %v6862, 0.5
      %vm6879 = vcmp.gt.f32.partialorder %v6863, 0.5
      %vm6880 = vcmp.gt.f32.partialorder %v6864, 0.5
      %v6881 = vsel %vm6865, 1, 0
      %v6882 = vsel %vm6866, 1, 0
      %v6883 = vsel %vm6867, 1, 0
      %v6884 = vsel %vm6868, 1, 0
      %v6885 = vsel %vm6869, 1, 0
      %v6886 = vsel %vm6870, 1, 0
      %v6887 = vsel %vm6871, 1, 0
      %v6888 = vsel %vm6872, 1, 0
      %v6889 = vsel %vm6873, 1, 0
      %v6890 = vsel %vm6874, 1, 0
      %v6891 = vsel %vm6875, 1, 0
      %v6892 = vsel %vm6876, 1, 0
      %v6893 = vsel %vm6877, 1, 0
      %v6894 = vsel %vm6878, 1, 0
      %v6895 = vsel %vm6879, 1, 0
      %v6896 = vsel %vm6880, 1, 0
      %6897 = vset.pattern.permute.xlu0 0
      %6898 = vperm.xlu0 %6897, %v6881
      %v6899 = vpop.permute.xlu0 %6898
      %6900 = vset.pattern.permute.xlu0 0
      %6901 = vperm.xlu0 %6900, %v6882
      %v6902 = vpop.permute.xlu0 %6901
      %6903 = vset.pattern.permute.xlu0 0
      %6904 = vperm.xlu0 %6903, %v6883
      %v6905 = vpop.permute.xlu0 %6904
      %6906 = vset.pattern.permute.xlu0 0
      %6907 = vperm.xlu0 %6906, %v6884
      %v6908 = vpop.permute.xlu0 %6907
      %6909 = vset.pattern.permute.xlu0 0
      %6910 = vperm.xlu0 %6909, %v6885
      %v6911 = vpop.permute.xlu0 %6910
      %6912 = vset.pattern.permute.xlu0 0
      %6913 = vperm.xlu0 %6912, %v6886
      %v6914 = vpop.permute.xlu0 %6913
      %6915 = vset.pattern.permute.xlu0 0
      %6916 = vperm.xlu0 %6915, %v6887
      %v6917 = vpop.permute.xlu0 %6916
      %6918 = vset.pattern.permute.xlu0 0
      %6919 = vperm.xlu0 %6918, %v6888
      %v6920 = vpop.permute.xlu0 %6919
      %6921 = vset.pattern.permute.xlu0 0
      %6922 = vperm.xlu0 %6921, %v6889
      %v6923 = vpop.permute.xlu0 %6922
      %6924 = vset.pattern.permute.xlu0 0
      %6925 = vperm.xlu0 %6924, %v6890
      %v6926 = vpop.permute.xlu0 %6925
      %6927 = vset.pattern.permute.xlu0 0
      %6928 = vperm.xlu0 %6927, %v6891
      %v6929 = vpop.permute.xlu0 %6928
      %6930 = vset.pattern.permute.xlu0 0
      %6931 = vperm.xlu0 %6930, %v6892
      %v6932 = vpop.permute.xlu0 %6931
      %6933 = vset.pattern.permute.xlu0 0
      %6934 = vperm.xlu0 %6933, %v6893
      %v6935 = vpop.permute.xlu0 %6934
      %6936 = vset.pattern.permute.xlu0 0
      %6937 = vperm.xlu0 %6936, %v6894
      %v6938 = vpop.permute.xlu0 %6937
      %6939 = vset.pattern.permute.xlu0 0
      %6940 = vperm.xlu0 %6939, %v6895
      %v6941 = vpop.permute.xlu0 %6940
      %6942 = vset.pattern.permute.xlu0 0
      %6943 = vperm.xlu0 %6942, %v6896
      %v6944 = vpop.permute.xlu0 %6943
      %vm6945 = vcmp.eq.s32.totalorder %v6899, 1
      %vm6946 = vcmp.eq.s32.totalorder %v6902, 1
      %vm6947 = vcmp.eq.s32.totalorder %v6905, 1
      %vm6948 = vcmp.eq.s32.totalorder %v6908, 1
      %vm6949 = vcmp.eq.s32.totalorder %v6911, 1
      %vm6950 = vcmp.eq.s32.totalorder %v6914, 1
      %vm6951 = vcmp.eq.s32.totalorder %v6917, 1
      %vm6952 = vcmp.eq.s32.totalorder %v6920, 1
      %vm6953 = vcmp.eq.s32.totalorder %v6923, 1
      %vm6954 = vcmp.eq.s32.totalorder %v6926, 1
      %vm6955 = vcmp.eq.s32.totalorder %v6929, 1
      %vm6956 = vcmp.eq.s32.totalorder %v6932, 1
      %vm6957 = vcmp.eq.s32.totalorder %v6935, 1
      %vm6958 = vcmp.eq.s32.totalorder %v6938, 1
      %vm6959 = vcmp.eq.s32.totalorder %v6941, 1
      %vm6960 = vcmp.eq.s32.totalorder %v6944, 1
      %v6961 = vsel %vm6945, %v6276, -1e+30
      %v6962 = vsel %vm6946, %v6277, -1e+30
      %v6963 = vsel %vm6947, %v6278, -1e+30
      %v6964 = vsel %vm6948, %v6279, -1e+30
      %v6965 = vsel %vm6949, %v6280, -1e+30
      %v6966 = vsel %vm6950, %v6281, -1e+30
      %v6967 = vsel %vm6951, %v6282, -1e+30
      %v6968 = vsel %vm6952, %v6283, -1e+30
      %v6969 = vsel %vm6953, %v6284, -1e+30
      %v6970 = vsel %vm6954, %v6285, -1e+30
      %v6971 = vsel %vm6955, %v6286, -1e+30
      %v6972 = vsel %vm6956, %v6287, -1e+30
      %v6973 = vsel %vm6957, %v6288, -1e+30
      %v6974 = vsel %vm6958, %v6289, -1e+30
      %v6975 = vsel %vm6959, %v6290, -1e+30
      %v6976 = vsel %vm6960, %v6291, -1e+30
      %v6977 = vsel %vm757, %v6961, -inf
      %v6978 = vsel %vm757, %v6962, -inf
      %v6979 = vsel %vm757, %v6963, -inf
      %v6980 = vsel %vm757, %v6964, -inf
      %v6981 = vsel %vm757, %v6965, -inf
      %v6982 = vmax.f32 %v6977, %v6981
      %v6983 = vsel %vm757, %v6966, -inf
      %v6984 = vmax.f32 %v6978, %v6983
      %v6985 = vsel %vm757, %v6967, -inf
      %v6986 = vmax.f32 %v6979, %v6985
      %v6987 = vsel %vm757, %v6968, -inf
      %v6988 = vmax.f32 %v6980, %v6987
      %v6989 = vsel %vm757, %v6969, -inf
      %v6990 = vmax.f32 %v6982, %v6989
      %v6991 = vsel %vm757, %v6970, -inf
      %v6992 = vmax.f32 %v6984, %v6991
      %v6993 = vsel %vm757, %v6971, -inf
      %v6994 = vmax.f32 %v6986, %v6993
      %v6995 = vsel %vm757, %v6972, -inf
      %v6996 = vmax.f32 %v6988, %v6995
      %v6997 = vsel %vm757, %v6973, -inf
      %v6998 = vmax.f32 %v6990, %v6997
      %v6999 = vsel %vm757, %v6974, -inf
      %v7000 = vmax.f32 %v6992, %v6999
      %v7001 = vsel %vm757, %v6975, -inf
      %v7002 = vmax.f32 %v6994, %v7001
      %v7003 = vsel %vm757, %v6976, -inf
      %v7004 = vmax.f32 %v6996, %v7003
      %v7005 = vmax.f32 %v6998, %v7000
      %v7006 = vmax.f32 %v7002, %v7004
      %v7007 = vmax.f32 %v7005, %v7006
      %v7008 = vrot.slane %v7007, 4
      %v7009 = vmax.f32 %v7007, %v7008
      %v7010 = vrot.slane %v7009, 2
      %v7011 = vmax.f32 %v7009, %v7010
      %v7012 = vrot.slane %v7011, 1
      %v7013 = vmax.f32 %v7011, %v7012
      %v7014 = vsel %vm6672, %v7013, 0.0
      %v7015 = vld [vmem:[#allocation2 + $0x2] sm:$0x1]
      %v7017 = vrot.slane %v7014, 2
      %v7019 = vadd.f32 %v7015, %v7017
      %7020 = vst.msk [vmem:[#allocation2 + $0x2] sm:$0x1] %vm3358, %v7019
      %v7021 = vsel %vm3736, %v6133, 0.0
      %v7022 = vsel %vm3737, %v6135, 0.0
      %v7023 = vsel %vm3738, %v6137, 0.0
      %v7024 = vsel %vm3739, %v6139, 0.0
      %v7025 = vsel %vm3740, %v6141, 0.0
      %v7026 = vsel %vm3741, %v6143, 0.0
      %v7027 = vsel %vm3742, %v6145, 0.0
      %v7028 = vsel %vm3743, %v6147, 0.0
      %v7029 = vsel %vm3744, %v6149, 0.0
      %v7030 = vsel %vm3745, %v6151, 0.0
      %v7031 = vsel %vm3746, %v6153, 0.0
      %v7032 = vsel %vm3747, %v6155, 0.0
      %v7033 = vsel %vm3748, %v6157, 0.0
      %v7034 = vsel %vm3749, %v6159, 0.0
      %v7035 = vsel %vm3750, %v6161, 0.0
      %v7036 = vsel %vm3751, %v6163, 0.0
      %vm7037 = vcmp.gt.f32.partialorder %v7021, 0.5
      %vm7038 = vcmp.gt.f32.partialorder %v7022, 0.5
      %vm7039 = vcmp.gt.f32.partialorder %v7023, 0.5
      %vm7040 = vcmp.gt.f32.partialorder %v7024, 0.5
      %vm7041 = vcmp.gt.f32.partialorder %v7025, 0.5
      %vm7042 = vcmp.gt.f32.partialorder %v7026, 0.5
      %vm7043 = vcmp.gt.f32.partialorder %v7027, 0.5
      %vm7044 = vcmp.gt.f32.partialorder %v7028, 0.5
      %vm7045 = vcmp.gt.f32.partialorder %v7029, 0.5
      %vm7046 = vcmp.gt.f32.partialorder %v7030, 0.5
      %vm7047 = vcmp.gt.f32.partialorder %v7031, 0.5
      %vm7048 = vcmp.gt.f32.partialorder %v7032, 0.5
      %vm7049 = vcmp.gt.f32.partialorder %v7033, 0.5
      %vm7050 = vcmp.gt.f32.partialorder %v7034, 0.5
      %vm7051 = vcmp.gt.f32.partialorder %v7035, 0.5
      %vm7052 = vcmp.gt.f32.partialorder %v7036, 0.5
      %v7053 = vsel %vm7037, 1, 0
      %v7054 = vsel %vm7038, 1, 0
      %v7055 = vsel %vm7039, 1, 0
      %v7056 = vsel %vm7040, 1, 0
      %v7057 = vsel %vm7041, 1, 0
      %v7058 = vsel %vm7042, 1, 0
      %v7059 = vsel %vm7043, 1, 0
      %v7060 = vsel %vm7044, 1, 0
      %v7061 = vsel %vm7045, 1, 0
      %v7062 = vsel %vm7046, 1, 0
      %v7063 = vsel %vm7047, 1, 0
      %v7064 = vsel %vm7048, 1, 0
      %v7065 = vsel %vm7049, 1, 0
      %v7066 = vsel %vm7050, 1, 0
      %v7067 = vsel %vm7051, 1, 0
      %v7068 = vsel %vm7052, 1, 0
      %7069 = vset.pattern.permute.xlu0 0
      %7070 = vperm.xlu0 %7069, %v7053
      %v7071 = vpop.permute.xlu0 %7070
      %7072 = vset.pattern.permute.xlu0 0
      %7073 = vperm.xlu0 %7072, %v7054
      %v7074 = vpop.permute.xlu0 %7073
      %7075 = vset.pattern.permute.xlu0 0
      %7076 = vperm.xlu0 %7075, %v7055
      %v7077 = vpop.permute.xlu0 %7076
      %7078 = vset.pattern.permute.xlu0 0
      %7079 = vperm.xlu0 %7078, %v7056
      %v7080 = vpop.permute.xlu0 %7079
      %7081 = vset.pattern.permute.xlu0 0
      %7082 = vperm.xlu0 %7081, %v7057
      %v7083 = vpop.permute.xlu0 %7082
      %7084 = vset.pattern.permute.xlu0 0
      %7085 = vperm.xlu0 %7084, %v7058
      %v7086 = vpop.permute.xlu0 %7085
      %7087 = vset.pattern.permute.xlu0 0
      %7088 = vperm.xlu0 %7087, %v7059
      %v7089 = vpop.permute.xlu0 %7088
      %7090 = vset.pattern.permute.xlu0 0
      %7091 = vperm.xlu0 %7090, %v7060
      %v7092 = vpop.permute.xlu0 %7091
      %7093 = vset.pattern.permute.xlu0 0
      %7094 = vperm.xlu0 %7093, %v7061
      %v7095 = vpop.permute.xlu0 %7094
      %7096 = vset.pattern.permute.xlu0 0
      %7097 = vperm.xlu0 %7096, %v7062
      %v7098 = vpop.permute.xlu0 %7097
      %7099 = vset.pattern.permute.xlu0 0
      %7100 = vperm.xlu0 %7099, %v7063
      %v7101 = vpop.permute.xlu0 %7100
      %7102 = vset.pattern.permute.xlu0 0
      %7103 = vperm.xlu0 %7102, %v7064
      %v7104 = vpop.permute.xlu0 %7103
      %7105 = vset.pattern.permute.xlu0 0
      %7106 = vperm.xlu0 %7105, %v7065
      %v7107 = vpop.permute.xlu0 %7106
      %7108 = vset.pattern.permute.xlu0 0
      %7109 = vperm.xlu0 %7108, %v7066
      %v7110 = vpop.permute.xlu0 %7109
      %7111 = vset.pattern.permute.xlu0 0
      %7112 = vperm.xlu0 %7111, %v7067
      %v7113 = vpop.permute.xlu0 %7112
      %7114 = vset.pattern.permute.xlu0 0
      %7115 = vperm.xlu0 %7114, %v7068
      %v7116 = vpop.permute.xlu0 %7115
      %vm7117 = vcmp.eq.s32.totalorder %v7071, 1
      %vm7118 = vcmp.eq.s32.totalorder %v7074, 1
      %vm7119 = vcmp.eq.s32.totalorder %v7077, 1
      %vm7120 = vcmp.eq.s32.totalorder %v7080, 1
      %vm7121 = vcmp.eq.s32.totalorder %v7083, 1
      %vm7122 = vcmp.eq.s32.totalorder %v7086, 1
      %vm7123 = vcmp.eq.s32.totalorder %v7089, 1
      %vm7124 = vcmp.eq.s32.totalorder %v7092, 1
      %vm7125 = vcmp.eq.s32.totalorder %v7095, 1
      %vm7126 = vcmp.eq.s32.totalorder %v7098, 1
      %vm7127 = vcmp.eq.s32.totalorder %v7101, 1
      %vm7128 = vcmp.eq.s32.totalorder %v7104, 1
      %vm7129 = vcmp.eq.s32.totalorder %v7107, 1
      %vm7130 = vcmp.eq.s32.totalorder %v7110, 1
      %vm7131 = vcmp.eq.s32.totalorder %v7113, 1
      %vm7132 = vcmp.eq.s32.totalorder %v7116, 1
      %v7133 = vsel %vm7117, %v6276, -1e+30
      %v7134 = vsel %vm7118, %v6277, -1e+30
      %v7135 = vsel %vm7119, %v6278, -1e+30
      %v7136 = vsel %vm7120, %v6279, -1e+30
      %v7137 = vsel %vm7121, %v6280, -1e+30
      %v7138 = vsel %vm7122, %v6281, -1e+30
      %v7139 = vsel %vm7123, %v6282, -1e+30
      %v7140 = vsel %vm7124, %v6283, -1e+30
      %v7141 = vsel %vm7125, %v6284, -1e+30
      %v7142 = vsel %vm7126, %v6285, -1e+30
      %v7143 = vsel %vm7127, %v6286, -1e+30
      %v7144 = vsel %vm7128, %v6287, -1e+30
      %v7145 = vsel %vm7129, %v6288, -1e+30
      %v7146 = vsel %vm7130, %v6289, -1e+30
      %v7147 = vsel %vm7131, %v6290, -1e+30
      %v7148 = vsel %vm7132, %v6291, -1e+30
      %v7149 = vsel %vm757, %v7133, -inf
      %v7150 = vsel %vm757, %v7134, -inf
      %v7151 = vsel %vm757, %v7135, -inf
      %v7152 = vsel %vm757, %v7136, -inf
      %v7153 = vsel %vm757, %v7137, -inf
      %v7154 = vmax.f32 %v7149, %v7153
      %v7155 = vsel %vm757, %v7138, -inf
      %v7156 = vmax.f32 %v7150, %v7155
      %v7157 = vsel %vm757, %v7139, -inf
      %v7158 = vmax.f32 %v7151, %v7157
      %v7159 = vsel %vm757, %v7140, -inf
      %v7160 = vmax.f32 %v7152, %v7159
      %v7161 = vsel %vm757, %v7141, -inf
      %v7162 = vmax.f32 %v7154, %v7161
      %v7163 = vsel %vm757, %v7142, -inf
      %v7164 = vmax.f32 %v7156, %v7163
      %v7165 = vsel %vm757, %v7143, -inf
      %v7166 = vmax.f32 %v7158, %v7165
      %v7167 = vsel %vm757, %v7144, -inf
      %v7168 = vmax.f32 %v7160, %v7167
      %v7169 = vsel %vm757, %v7145, -inf
      %v7170 = vmax.f32 %v7162, %v7169
      %v7171 = vsel %vm757, %v7146, -inf
      %v7172 = vmax.f32 %v7164, %v7171
      %v7173 = vsel %vm757, %v7147, -inf
      %v7174 = vmax.f32 %v7166, %v7173
      %v7175 = vsel %vm757, %v7148, -inf
      %v7176 = vmax.f32 %v7168, %v7175
      %v7177 = vmax.f32 %v7170, %v7172
      %v7178 = vmax.f32 %v7174, %v7176
      %v7179 = vmax.f32 %v7177, %v7178
      %v7180 = vrot.slane %v7179, 4
      %v7181 = vmax.f32 %v7179, %v7180
      %v7182 = vrot.slane %v7181, 2
      %v7183 = vmax.f32 %v7181, %v7182
      %v7184 = vrot.slane %v7183, 1
      %v7185 = vmax.f32 %v7183, %v7184
      %v7186 = vsel %vm6672, %v7185, 0.0
      %v7187 = vld [vmem:[#allocation2 + $0x3] sm:$0x1]
      %v7189 = vrot.slane %v7186, 3
      %v7191 = vadd.f32 %v7187, %v7189
      %7192 = vst.msk [vmem:[#allocation2 + $0x3] sm:$0x1] %vm3358, %v7191
      %s7193 = scalar_lea.vmem %s4, 64
      %v7194 = vld [vmem:[%s7193] sm:$0xff]
      %v7195 = vld [vmem:[%s7193 + $0x8] sm:$0xff]
      %v7196 = vld [vmem:[%s7193 + $0x10] sm:$0xff]
      %v7197 = vld [vmem:[%s7193 + $0x18] sm:$0xff]
      %s7198 = scalar_lea.vmem %s6, 4
      %v7199 = vld [vmem:[%s7198] sm:$0x3]
      %s7200 = scalar_lea.vmem %s5, 64
      %v7201 = vld [vmem:[%s7200] sm:$0xff]
      %v7202 = vld [vmem:[%s7200 + $0x8] sm:$0xff]
      %v7203 = vld [vmem:[%s7200 + $0x10] sm:$0xff]
      %v7204 = vld [vmem:[%s7200 + $0x18] sm:$0xff]
      %v7206 = vsel %vm757, %v6276, 0
      %v7209 = vsel %vm757, %v6277, 0
      %v7212 = vsel %vm757, %v6278, 0
      %v7215 = vsel %vm757, %v6279, 0
      %v7218 = vsel %vm757, %v6280, 0
      %v7221 = vsel %vm757, %v6281, 0
      %v7224 = vsel %vm757, %v6282, 0
      %v7227 = vsel %vm757, %v6283, 0
      %v7230 = vsel %vm757, %v6284, 0
      %v7233 = vsel %vm757, %v6285, 0
      %v7236 = vsel %vm757, %v6286, 0
      %v7239 = vsel %vm757, %v6287, 0
      %v7242 = vsel %vm757, %v6288, 0
      %v7245 = vsel %vm757, %v6289, 0
      %v7248 = vsel %vm757, %v6290, 0
      %v7251 = vsel %vm757, %v6291, 0
      %7253 = vmatprep.subr.mxu0 0.0
      %7254 = vmatpush1.msra.mxu0 %v7194
      %7255 = vmatprep.subr.mxu0 0.0
      %7256 = vmatpush1.msra.mxu0 %v7195
      %7257 = vmatprep.subr.mxu0 0.0
      %7258 = vmatpush1.msra.mxu0 %v7196
      %7259 = vmatprep.subr.mxu0 0.0
      %7260 = vmatpush1.msra.mxu0 %v7197
      %7261 = vmatprep.subr.mxu0 0.0
      %7262 = vmatpush1.msra.mxu0 0.0
      %7263 = vmatprep.subr.mxu0 0.0
      %7264 = vmatpush1.msra.mxu0 0.0
      %7265 = vmatprep.subr.mxu0 0.0
      %7266 = vmatpush1.msra.mxu0 0.0
      %7267 = vmatprep.subr.mxu0 0.0
      %7268 = vmatpush1.msra.mxu0 0.0
      %7269 = vmatprep.subr.mxu0 0.0
      %7270 = vmatpush1.msra.mxu0 0.0
      %7271 = vmatprep.subr.mxu0 0.0
      %7272 = vmatpush1.msra.mxu0 0.0
      %7273 = vmatprep.subr.mxu0 0.0
      %7274 = vmatpush1.msra.mxu0 0.0
      %7275 = vmatprep.subr.mxu0 0.0
      %7276 = vmatpush1.msra.mxu0 0.0
      %7277 = vmatprep.subr.mxu0 0.0
      %7278 = vmatpush1.msra.mxu0 0.0
      %7279 = vmatprep.subr.mxu0 0.0
      %7280 = vmatpush1.msra.mxu0 0.0
      %7281 = vmatprep.subr.mxu0 0.0
      %7282 = vmatpush1.msra.mxu0 0.0
      %7283 = vmatprep.subr.mxu0 0.0
      %7284 = vmatpush1.msra.mxu0 0.0
      %7285 = vmatprep.subr.mxu0 0.0
      %7286 = vmatpush1.msra.mxu0 0.0
      %7287 = vmatprep.subr.mxu0 0.0
      %7288 = vmatpush1.msra.mxu0 0.0
      %7289 = vmatprep.subr.mxu0 0.0
      %7290 = vmatpush1.msra.mxu0 0.0
      %7291 = vmatprep.subr.mxu0 0.0
      %7292 = vmatpush1.msra.mxu0 0.0
      %7293 = vmatprep.subr.mxu0 0.0
      %7294 = vmatpush1.msra.mxu0 0.0
      %7295 = vmatprep.subr.mxu0 0.0
      %7296 = vmatpush1.msra.mxu0 0.0
      %7297 = vmatprep.subr.mxu0 0.0
      %7298 = vmatpush1.msra.mxu0 0.0
      %7299 = vmatprep.subr.mxu0 0.0
      %7300 = vmatpush1.msra.mxu0 0.0
      %7301 = vmatprep.subr.mxu0 0.0
      %7302 = vmatpush1.msra.mxu0 0.0
      %7303 = vmatprep.subr.mxu0 0.0
      %7304 = vmatpush1.msra.mxu0 0.0
      %7305 = vmatprep.subr.mxu0 0.0
      %7306 = vmatpush1.msra.mxu0 0.0
      %7307 = vmatprep.subr.mxu0 0.0
      %7308 = vmatpush1.msra.mxu0 0.0
      %7309 = vmatprep.subr.mxu0 0.0
      %7310 = vmatpush1.msra.mxu0 0.0
      %7311 = vmatprep.subr.mxu0 0.0
      %7312 = vmatpush1.msra.mxu0 0.0
      %7313 = vmatprep.subr.mxu0 0.0
      %7314 = vmatpush1.msra.mxu0 0.0
      %7315 = vmatprep.subr.mxu0 0.0
      %7316 = vmatpush1.msra.mxu0 0.0
      %7317 = vmatprep.mubr.f32.mxu0 0.0
      %7318 = vmatmul.mubr.f32.gmra.mrb[0].mxu0 %v7206
      %v7319 = vpop.f32.mrb[0].mxu0
      %v7320 = vadd.f32 0.0, %v7319
      %v7321 = vpop.f32.mrb[0].mxu0
      %7322 = vmatprep.mubr.f32.mxu0 0.0
      %7323 = vmatmul.mubr.f32.gmra.mrb[0].mxu0 %v7209
      %v7324 = vpop.f32.mrb[0].mxu0
      %v7325 = vadd.f32 0.0, %v7324
      %v7326 = vpop.f32.mrb[0].mxu0
      %7327 = vmatprep.mubr.f32.mxu0 0.0
      %7328 = vmatmul.mubr.f32.gmra.mrb[0].mxu0 %v7212
      %v7329 = vpop.f32.mrb[0].mxu0
      %v7330 = vadd.f32 0.0, %v7329
      %v7331 = vpop.f32.mrb[0].mxu0
      %7332 = vmatprep.mubr.f32.mxu0 0.0
      %7333 = vmatmul.mubr.f32.gmra.mrb[0].mxu0 %v7215
      %v7334 = vpop.f32.mrb[0].mxu0
      %v7335 = vadd.f32 0.0, %v7334
      %v7336 = vpop.f32.mrb[0].mxu0
      %7337 = vmatprep.mubr.f32.mxu0 0.0
      %7338 = vmatmul.mubr.f32.gmra.mrb[0].mxu0 %v7218
      %v7339 = vpop.f32.mrb[0].mxu0
      %v7340 = vadd.f32 0.0, %v7339
      %v7341 = vpop.f32.mrb[0].mxu0
      %7342 = vmatprep.mubr.f32.mxu0 0.0
      %7343 = vmatmul.mubr.f32.gmra.mrb[0].mxu0 %v7221
      %v7344 = vpop.f32.mrb[0].mxu0
      %v7345 = vadd.f32 0.0, %v7344
      %v7346 = vpop.f32.mrb[0].mxu0
      %7347 = vmatprep.mubr.f32.mxu0 0.0
      %7348 = vmatmul.mubr.f32.gmra.mrb[0].mxu0 %v7224
      %v7349 = vpop.f32.mrb[0].mxu0
      %v7350 = vadd.f32 0.0, %v7349
      %v7351 = vpop.f32.mrb[0].mxu0
      %7352 = vmatprep.mubr.f32.mxu0 0.0
      %7353 = vmatmul.mubr.f32.gmra.mrb[0].mxu0 %v7227
      %v7354 = vpop.f32.mrb[0].mxu0
      %v7355 = vadd.f32 0.0, %v7354
      %v7356 = vpop.f32.mrb[0].mxu0
      %7357 = vmatprep.mubr.f32.mxu0 0.0
      %7358 = vmatmul.mubr.f32.gmra.mrb[0].mxu0 %v7230
      %v7359 = vpop.f32.mrb[0].mxu0
      %v7360 = vadd.f32 0.0, %v7359
      %v7361 = vpop.f32.mrb[0].mxu0
      %7362 = vmatprep.mubr.f32.mxu0 0.0
      %7363 = vmatmul.mubr.f32.gmra.mrb[0].mxu0 %v7233
      %v7364 = vpop.f32.mrb[0].mxu0
      %v7365 = vadd.f32 0.0, %v7364
      %v7366 = vpop.f32.mrb[0].mxu0
      %7367 = vmatprep.mubr.f32.mxu0 0.0
      %7368 = vmatmul.mubr.f32.gmra.mrb[0].mxu0 %v7236
      %v7369 = vpop.f32.mrb[0].mxu0
      %v7370 = vadd.f32 0.0, %v7369
      %v7371 = vpop.f32.mrb[0].mxu0
      %7372 = vmatprep.mubr.f32.mxu0 0.0
      %7373 = vmatmul.mubr.f32.gmra.mrb[0].mxu0 %v7239
      %v7374 = vpop.f32.mrb[0].mxu0
      %v7375 = vadd.f32 0.0, %v7374
      %v7376 = vpop.f32.mrb[0].mxu0
      %7377 = vmatprep.mubr.f32.mxu0 0.0
      %7378 = vmatmul.mubr.f32.gmra.mrb[0].mxu0 %v7242
      %v7379 = vpop.f32.mrb[0].mxu0
      %v7380 = vadd.f32 0.0, %v7379
      %v7381 = vpop.f32.mrb[0].mxu0
      %7382 = vmatprep.mubr.f32.mxu0 0.0
      %7383 = vmatmul.mubr.f32.gmra.mrb[0].mxu0 %v7245
      %v7384 = vpop.f32.mrb[0].mxu0
      %v7385 = vadd.f32 0.0, %v7384
      %v7386 = vpop.f32.mrb[0].mxu0
      %7387 = vmatprep.mubr.f32.mxu0 0.0
      %7388 = vmatmul.mubr.f32.gmra.mrb[0].mxu0 %v7248
      %v7389 = vpop.f32.mrb[0].mxu0
      %v7390 = vadd.f32 0.0, %v7389
      %v7391 = vpop.f32.mrb[0].mxu0
      %7392 = vmatprep.mubr.f32.mxu0 0.0
      %7393 = vmatmul.mubr.f32.gmra.mrb[0].mxu0 %v7251
      %v7394 = vpop.f32.mrb[0].mxu0
      %v7395 = vadd.f32 0.0, %v7394
      %v7396 = vpop.f32.mrb[0].mxu0
      %7397 = vdwg.mxu0
      %7398 = vmatprep.subr.mxu0 0.0
      %7399 = vmatpush1.msra.mxu0 %v6133
      %7400 = vmatprep.subr.mxu0 0.0
      %7401 = vmatpush1.msra.mxu0 %v6135
      %7402 = vmatprep.subr.mxu0 0.0
      %7403 = vmatpush1.msra.mxu0 %v6137
      %7404 = vmatprep.subr.mxu0 0.0
      %7405 = vmatpush1.msra.mxu0 %v6139
      %7406 = vmatprep.subr.mxu0 0.0
      %7407 = vmatpush1.msra.mxu0 %v6141
      %7408 = vmatprep.subr.mxu0 0.0
      %7409 = vmatpush1.msra.mxu0 %v6143
      %7410 = vmatprep.subr.mxu0 0.0
      %7411 = vmatpush1.msra.mxu0 %v6145
      %7412 = vmatprep.subr.mxu0 0.0
      %7413 = vmatpush1.msra.mxu0 %v6147
      %7414 = vmatprep.subr.mxu0 0.0
      %7415 = vmatpush1.msra.mxu0 %v6149
      %7416 = vmatprep.subr.mxu0 0.0
      %7417 = vmatpush1.msra.mxu0 %v6151
      %7418 = vmatprep.subr.mxu0 0.0
      %7419 = vmatpush1.msra.mxu0 %v6153
      %7420 = vmatprep.subr.mxu0 0.0
      %7421 = vmatpush1.msra.mxu0 %v6155
      %7422 = vmatprep.subr.mxu0 0.0
      %7423 = vmatpush1.msra.mxu0 %v6157
      %7424 = vmatprep.subr.mxu0 0.0
      %7425 = vmatpush1.msra.mxu0 %v6159
      %7426 = vmatprep.subr.mxu0 0.0
      %7427 = vmatpush1.msra.mxu0 %v6161
      %7428 = vmatprep.subr.mxu0 0.0
      %7429 = vmatpush1.msra.mxu0 %v6163
      %7430 = vmatprep.subr.mxu0 0.0
      %7431 = vmatpush1.msra.mxu0 0.0
      %7432 = vmatprep.subr.mxu0 0.0
      %7433 = vmatpush1.msra.mxu0 0.0
      %7434 = vmatprep.subr.mxu0 0.0
      %7435 = vmatpush1.msra.mxu0 0.0
      %7436 = vmatprep.subr.mxu0 0.0
      %7437 = vmatpush1.msra.mxu0 0.0
      %7438 = vmatprep.subr.mxu0 0.0
      %7439 = vmatpush1.msra.mxu0 0.0
      %7440 = vmatprep.subr.mxu0 0.0
      %7441 = vmatpush1.msra.mxu0 0.0
      %7442 = vmatprep.subr.mxu0 0.0
      %7443 = vmatpush1.msra.mxu0 0.0
      %7444 = vmatprep.subr.mxu0 0.0
      %7445 = vmatpush1.msra.mxu0 0.0
      %7446 = vmatprep.subr.mxu0 0.0
      %7447 = vmatpush1.msra.mxu0 0.0
      %7448 = vmatprep.subr.mxu0 0.0
      %7449 = vmatpush1.msra.mxu0 0.0
      %7450 = vmatprep.subr.mxu0 0.0
      %7451 = vmatpush1.msra.mxu0 0.0
      %7452 = vmatprep.subr.mxu0 0.0
      %7453 = vmatpush1.msra.mxu0 0.0
      %7454 = vmatprep.subr.mxu0 0.0
      %7455 = vmatpush1.msra.mxu0 0.0
      %7456 = vmatprep.subr.mxu0 0.0
      %7457 = vmatpush1.msra.mxu0 0.0
      %7458 = vmatprep.subr.mxu0 0.0
      %7459 = vmatpush1.msra.mxu0 0.0
      %7460 = vmatprep.subr.mxu0 0.0
      %7461 = vmatpush1.msra.mxu0 0.0
      %7462 = vmatprep.mubr.f32.mxu0 0.0
      %7463 = vmatmul.mubr.f32.gmra.mrb[0].mxu0 %v415
      %v7464 = vpop.f32.mrb[0].mxu0
      %v7465 = vadd.f32 %v6133, %v7464
      %v7466 = vpop.f32.mrb[0].mxu0
      %7467 = vmatprep.mubr.f32.mxu0 0.0
      %7468 = vmatmul.mubr.f32.gmra.mrb[0].mxu0 %v416
      %v7469 = vpop.f32.mrb[0].mxu0
      %v7470 = vadd.f32 %v6135, %v7469
      %v7471 = vpop.f32.mrb[0].mxu0
      %7472 = vmatprep.mubr.f32.mxu0 0.0
      %7473 = vmatmul.mubr.f32.gmra.mrb[0].mxu0 %v417
      %v7474 = vpop.f32.mrb[0].mxu0
      %v7475 = vadd.f32 %v6137, %v7474
      %v7476 = vpop.f32.mrb[0].mxu0
      %7477 = vmatprep.mubr.f32.mxu0 0.0
      %7478 = vmatmul.mubr.f32.gmra.mrb[0].mxu0 %v418
      %v7479 = vpop.f32.mrb[0].mxu0
      %v7480 = vadd.f32 %v6139, %v7479
      %v7481 = vpop.f32.mrb[0].mxu0
      %7482 = vmatprep.mubr.f32.mxu0 0.0
      %7483 = vmatmul.mubr.f32.gmra.mrb[0].mxu0 %v419
      %v7484 = vpop.f32.mrb[0].mxu0
      %v7485 = vadd.f32 %v6141, %v7484
      %v7486 = vpop.f32.mrb[0].mxu0
      %7487 = vmatprep.mubr.f32.mxu0 0.0
      %7488 = vmatmul.mubr.f32.gmra.mrb[0].mxu0 %v420
      %v7489 = vpop.f32.mrb[0].mxu0
      %v7490 = vadd.f32 %v6143, %v7489
      %v7491 = vpop.f32.mrb[0].mxu0
      %7492 = vmatprep.mubr.f32.mxu0 0.0
      %7493 = vmatmul.mubr.f32.gmra.mrb[0].mxu0 %v421
      %v7494 = vpop.f32.mrb[0].mxu0
      %v7495 = vadd.f32 %v6145, %v7494
      %v7496 = vpop.f32.mrb[0].mxu0
      %7497 = vmatprep.mubr.f32.mxu0 0.0
      %7498 = vmatmul.mubr.f32.gmra.mrb[0].mxu0 %v422
      %v7499 = vpop.f32.mrb[0].mxu0
      %v7500 = vadd.f32 %v6147, %v7499
      %v7501 = vpop.f32.mrb[0].mxu0
      %7502 = vmatprep.mubr.f32.mxu0 0.0
      %7503 = vmatmul.mubr.f32.gmra.mrb[0].mxu0 %v423
      %v7504 = vpop.f32.mrb[0].mxu0
      %v7505 = vadd.f32 %v6149, %v7504
      %v7506 = vpop.f32.mrb[0].mxu0
      %7507 = vmatprep.mubr.f32.mxu0 0.0
      %7508 = vmatmul.mubr.f32.gmra.mrb[0].mxu0 %v424
      %v7509 = vpop.f32.mrb[0].mxu0
      %v7510 = vadd.f32 %v6151, %v7509
      %v7511 = vpop.f32.mrb[0].mxu0
      %7512 = vmatprep.mubr.f32.mxu0 0.0
      %7513 = vmatmul.mubr.f32.gmra.mrb[0].mxu0 %v425
      %v7514 = vpop.f32.mrb[0].mxu0
      %v7515 = vadd.f32 %v6153, %v7514
      %v7516 = vpop.f32.mrb[0].mxu0
      %7517 = vmatprep.mubr.f32.mxu0 0.0
      %7518 = vmatmul.mubr.f32.gmra.mrb[0].mxu0 %v426
      %v7519 = vpop.f32.mrb[0].mxu0
      %v7520 = vadd.f32 %v6155, %v7519
      %v7521 = vpop.f32.mrb[0].mxu0
      %7522 = vmatprep.mubr.f32.mxu0 0.0
      %7523 = vmatmul.mubr.f32.gmra.mrb[0].mxu0 %v427
      %v7524 = vpop.f32.mrb[0].mxu0
      %v7525 = vadd.f32 %v6157, %v7524
      %v7526 = vpop.f32.mrb[0].mxu0
      %7527 = vmatprep.mubr.f32.mxu0 0.0
      %7528 = vmatmul.mubr.f32.gmra.mrb[0].mxu0 %v428
      %v7529 = vpop.f32.mrb[0].mxu0
      %v7530 = vadd.f32 %v6159, %v7529
      %v7531 = vpop.f32.mrb[0].mxu0
      %7532 = vmatprep.mubr.f32.mxu0 0.0
      %7533 = vmatmul.mubr.f32.gmra.mrb[0].mxu0 %v429
      %v7534 = vpop.f32.mrb[0].mxu0
      %v7535 = vadd.f32 %v6161, %v7534
      %v7536 = vpop.f32.mrb[0].mxu0
      %7537 = vmatprep.mubr.f32.mxu0 0.0
      %7538 = vmatmul.mubr.f32.gmra.mrb[0].mxu0 %v430
      %v7539 = vpop.f32.mrb[0].mxu0
      %v7540 = vadd.f32 %v6163, %v7539
      %v7541 = vpop.f32.mrb[0].mxu0
      %7542 = vdwg.mxu0
      %vm7543 = vcmp.gt.f32.partialorder %v7465, 0.0
      %vm7544 = vcmp.gt.f32.partialorder %v7470, 0.0
      %vm7545 = vcmp.gt.f32.partialorder %v7475, 0.0
      %vm7546 = vcmp.gt.f32.partialorder %v7480, 0.0
      %vm7547 = vcmp.gt.f32.partialorder %v7485, 0.0
      %vm7548 = vcmp.gt.f32.partialorder %v7490, 0.0
      %vm7549 = vcmp.gt.f32.partialorder %v7495, 0.0
      %vm7550 = vcmp.gt.f32.partialorder %v7500, 0.0
      %vm7551 = vcmp.gt.f32.partialorder %v7505, 0.0
      %vm7552 = vcmp.gt.f32.partialorder %v7510, 0.0
      %vm7553 = vcmp.gt.f32.partialorder %v7515, 0.0
      %vm7554 = vcmp.gt.f32.partialorder %v7520, 0.0
      %vm7555 = vcmp.gt.f32.partialorder %v7525, 0.0
      %vm7556 = vcmp.gt.f32.partialorder %v7530, 0.0
      %vm7557 = vcmp.gt.f32.partialorder %v7535, 0.0
      %vm7558 = vcmp.gt.f32.partialorder %v7540, 0.0
      %v7559 = vrsqrt.pop %v7465
      %v7560 = vrsqrt.pop %v7470
      %v7561 = vrsqrt.pop %v7475
      %v7562 = vrsqrt.pop %v7480
      %v7563 = vrsqrt.pop %v7485
      %v7564 = vrsqrt.pop %v7490
      %v7565 = vrsqrt.pop %v7495
      %v7566 = vrsqrt.pop %v7500
      %v7567 = vrsqrt.pop %v7505
      %v7568 = vrsqrt.pop %v7510
      %v7569 = vrsqrt.pop %v7515
      %v7570 = vrsqrt.pop %v7520
      %v7571 = vrsqrt.pop %v7525
      %v7572 = vrsqrt.pop %v7530
      %v7573 = vrsqrt.pop %v7535
      %v7574 = vrsqrt.pop %v7540
      %v7575 = vsel %vm7543, %v7559, 0.0
      %v7576 = vsel %vm7544, %v7560, 0.0
      %v7577 = vsel %vm7545, %v7561, 0.0
      %v7578 = vsel %vm7546, %v7562, 0.0
      %v7579 = vsel %vm7547, %v7563, 0.0
      %v7580 = vsel %vm7548, %v7564, 0.0
      %v7581 = vsel %vm7549, %v7565, 0.0
      %v7582 = vsel %vm7550, %v7566, 0.0
      %v7583 = vsel %vm7551, %v7567, 0.0
      %v7584 = vsel %vm7552, %v7568, 0.0
      %v7585 = vsel %vm7553, %v7569, 0.0
      %v7586 = vsel %vm7554, %v7570, 0.0
      %v7587 = vsel %vm7555, %v7571, 0.0
      %v7588 = vsel %vm7556, %v7572, 0.0
      %v7589 = vsel %vm7557, %v7573, 0.0
      %v7590 = vsel %vm7558, %v7574, 0.0
      %7592 = vset.pattern.permute.xlu0 0
      %7593 = vperm.xlu0 %7592, %v7575
      %v7594 = vpop.permute.xlu0 %7593
      %7597 = vset.pattern.permute.xlu0 0
      %7598 = vperm.xlu0 %7597, %v7576
      %v7599 = vpop.permute.xlu0 %7598
      %7602 = vset.pattern.permute.xlu0 0
      %7603 = vperm.xlu0 %7602, %v7577
      %v7604 = vpop.permute.xlu0 %7603
      %7607 = vset.pattern.permute.xlu0 0
      %7608 = vperm.xlu0 %7607, %v7578
      %v7609 = vpop.permute.xlu0 %7608
      %7612 = vset.pattern.permute.xlu0 0
      %7613 = vperm.xlu0 %7612, %v7579
      %v7614 = vpop.permute.xlu0 %7613
      %7617 = vset.pattern.permute.xlu0 0
      %7618 = vperm.xlu0 %7617, %v7580
      %v7619 = vpop.permute.xlu0 %7618
      %7622 = vset.pattern.permute.xlu0 0
      %7623 = vperm.xlu0 %7622, %v7581
      %v7624 = vpop.permute.xlu0 %7623
      %7627 = vset.pattern.permute.xlu0 0
      %7628 = vperm.xlu0 %7627, %v7582
      %v7629 = vpop.permute.xlu0 %7628
      %7632 = vset.pattern.permute.xlu0 0
      %7633 = vperm.xlu0 %7632, %v7583
      %v7634 = vpop.permute.xlu0 %7633
      %7637 = vset.pattern.permute.xlu0 0
      %7638 = vperm.xlu0 %7637, %v7584
      %v7639 = vpop.permute.xlu0 %7638
      %7642 = vset.pattern.permute.xlu0 0
      %7643 = vperm.xlu0 %7642, %v7585
      %v7644 = vpop.permute.xlu0 %7643
      %7647 = vset.pattern.permute.xlu0 0
      %7648 = vperm.xlu0 %7647, %v7586
      %v7649 = vpop.permute.xlu0 %7648
      %7652 = vset.pattern.permute.xlu0 0
      %7653 = vperm.xlu0 %7652, %v7587
      %v7654 = vpop.permute.xlu0 %7653
      %7657 = vset.pattern.permute.xlu0 0
      %7658 = vperm.xlu0 %7657, %v7588
      %v7659 = vpop.permute.xlu0 %7658
      %7662 = vset.pattern.permute.xlu0 0
      %7663 = vperm.xlu0 %7662, %v7589
      %v7664 = vpop.permute.xlu0 %7663
      %7667 = vset.pattern.permute.xlu0 0
      %7668 = vperm.xlu0 %7667, %v7590
      %v7669 = vpop.permute.xlu0 %7668
      %v7671 = vmul.f32 %v7594, %v7320
      %v7672 = vmul.f32 %v7599, %v7325
      %v7673 = vmul.f32 %v7604, %v7330
      %v7674 = vmul.f32 %v7609, %v7335
      %v7675 = vmul.f32 %v7614, %v7340
      %v7676 = vmul.f32 %v7619, %v7345
      %v7677 = vmul.f32 %v7624, %v7350
      %v7678 = vmul.f32 %v7629, %v7355
      %v7679 = vmul.f32 %v7634, %v7360
      %v7680 = vmul.f32 %v7639, %v7365
      %v7681 = vmul.f32 %v7644, %v7370
      %v7682 = vmul.f32 %v7649, %v7375
      %v7683 = vmul.f32 %v7654, %v7380
      %v7684 = vmul.f32 %v7659, %v7385
      %v7685 = vmul.f32 %v7664, %v7390
      %v7686 = vmul.f32 %v7669, %v7395
      %7687 = vset.pattern.permute.xlu0 1
      %7688 = vperm.xlu0 %7687, %v6100
      %v7689 = vpop.permute.xlu0 %7688
      %7691 = vset.pattern.permute.xlu0 1
      %7692 = vperm.xlu0 %7691, %v6101
      %v7693 = vpop.permute.xlu0 %7692
      %7695 = vset.pattern.permute.xlu0 1
      %7696 = vperm.xlu0 %7695, %v6102
      %v7697 = vpop.permute.xlu0 %7696
      %7699 = vset.pattern.permute.xlu0 1
      %7700 = vperm.xlu0 %7699, %v6103
      %v7701 = vpop.permute.xlu0 %7700
      %7703 = vset.pattern.permute.xlu0 1
      %7704 = vperm.xlu0 %7703, %v6104
      %v7705 = vpop.permute.xlu0 %7704
      %7707 = vset.pattern.permute.xlu0 1
      %7708 = vperm.xlu0 %7707, %v6105
      %v7709 = vpop.permute.xlu0 %7708
      %7711 = vset.pattern.permute.xlu0 1
      %7712 = vperm.xlu0 %7711, %v6106
      %v7713 = vpop.permute.xlu0 %7712
      %7715 = vset.pattern.permute.xlu0 1
      %7716 = vperm.xlu0 %7715, %v6107
      %v7717 = vpop.permute.xlu0 %7716
      %7719 = vset.pattern.permute.xlu0 1
      %7720 = vperm.xlu0 %7719, %v6108
      %v7721 = vpop.permute.xlu0 %7720
      %7723 = vset.pattern.permute.xlu0 1
      %7724 = vperm.xlu0 %7723, %v6109
      %v7725 = vpop.permute.xlu0 %7724
      %7727 = vset.pattern.permute.xlu0 1
      %7728 = vperm.xlu0 %7727, %v6110
      %v7729 = vpop.permute.xlu0 %7728
      %7731 = vset.pattern.permute.xlu0 1
      %7732 = vperm.xlu0 %7731, %v6111
      %v7733 = vpop.permute.xlu0 %7732
      %7735 = vset.pattern.permute.xlu0 1
      %7736 = vperm.xlu0 %7735, %v6112
      %v7737 = vpop.permute.xlu0 %7736
      %7739 = vset.pattern.permute.xlu0 1
      %7740 = vperm.xlu0 %7739, %v6113
      %v7741 = vpop.permute.xlu0 %7740
      %7743 = vset.pattern.permute.xlu0 1
      %7744 = vperm.xlu0 %7743, %v6114
      %v7745 = vpop.permute.xlu0 %7744
      %7747 = vset.pattern.permute.xlu0 1
      %7748 = vperm.xlu0 %7747, %v6115
      %v7749 = vpop.permute.xlu0 %7748
      %v7751 = vmul.f32 %v7689, %v7671
      %v7752 = vmul.f32 %v7693, %v7672
      %v7753 = vmul.f32 %v7697, %v7673
      %v7754 = vmul.f32 %v7701, %v7674
      %v7755 = vmul.f32 %v7705, %v7675
      %v7756 = vmul.f32 %v7709, %v7676
      %v7757 = vmul.f32 %v7713, %v7677
      %v7758 = vmul.f32 %v7717, %v7678
      %v7759 = vmul.f32 %v7721, %v7679
      %v7760 = vmul.f32 %v7725, %v7680
      %v7761 = vmul.f32 %v7729, %v7681
      %v7762 = vmul.f32 %v7733, %v7682
      %v7763 = vmul.f32 %v7737, %v7683
      %v7764 = vmul.f32 %v7741, %v7684
      %v7765 = vmul.f32 %v7745, %v7685
      %v7766 = vmul.f32 %v7749, %v7686
      %7767 = vmatprep.subr.mxu0 0.0
      %7768 = vmatpush1.msra.mxu0 %v7671
      %7769 = vmatprep.subr.mxu0 0.0
      %7770 = vmatpush1.msra.mxu0 %v7672
      %7771 = vmatprep.subr.mxu0 0.0
      %7772 = vmatpush1.msra.mxu0 %v7673
      %7773 = vmatprep.subr.mxu0 0.0
      %7774 = vmatpush1.msra.mxu0 %v7674
      %7775 = vmatprep.subr.mxu0 0.0
      %7776 = vmatpush1.msra.mxu0 %v7675
      %7777 = vmatprep.subr.mxu0 0.0
      %7778 = vmatpush1.msra.mxu0 %v7676
      %7779 = vmatprep.subr.mxu0 0.0
      %7780 = vmatpush1.msra.mxu0 %v7677
      %7781 = vmatprep.subr.mxu0 0.0
      %7782 = vmatpush1.msra.mxu0 %v7678
      %7783 = vmatprep.subr.mxu0 0.0
      %7784 = vmatpush1.msra.mxu0 %v7679
      %7785 = vmatprep.subr.mxu0 0.0
      %7786 = vmatpush1.msra.mxu0 %v7680
      %7787 = vmatprep.subr.mxu0 0.0
      %7788 = vmatpush1.msra.mxu0 %v7681
      %7789 = vmatprep.subr.mxu0 0.0
      %7790 = vmatpush1.msra.mxu0 %v7682
      %7791 = vmatprep.subr.mxu0 0.0
      %7792 = vmatpush1.msra.mxu0 %v7683
      %7793 = vmatprep.subr.mxu0 0.0
      %7794 = vmatpush1.msra.mxu0 %v7684
      %7795 = vmatprep.subr.mxu0 0.0
      %7796 = vmatpush1.msra.mxu0 %v7685
      %7797 = vmatprep.subr.mxu0 0.0
      %7798 = vmatpush1.msra.mxu0 %v7686
      %7799 = vmatprep.subr.mxu0 0.0
      %7800 = vmatpush1.msra.mxu0 0.0
      %7801 = vmatprep.subr.mxu0 0.0
      %7802 = vmatpush1.msra.mxu0 0.0
      %7803 = vmatprep.subr.mxu0 0.0
      %7804 = vmatpush1.msra.mxu0 0.0
      %7805 = vmatprep.subr.mxu0 0.0
      %7806 = vmatpush1.msra.mxu0 0.0
      %7807 = vmatprep.subr.mxu0 0.0
      %7808 = vmatpush1.msra.mxu0 0.0
      %7809 = vmatprep.subr.mxu0 0.0
      %7810 = vmatpush1.msra.mxu0 0.0
      %7811 = vmatprep.subr.mxu0 0.0
      %7812 = vmatpush1.msra.mxu0 0.0
      %7813 = vmatprep.subr.mxu0 0.0
      %7814 = vmatpush1.msra.mxu0 0.0
      %7815 = vmatprep.subr.mxu0 0.0
      %7816 = vmatpush1.msra.mxu0 0.0
      %7817 = vmatprep.subr.mxu0 0.0
      %7818 = vmatpush1.msra.mxu0 0.0
      %7819 = vmatprep.subr.mxu0 0.0
      %7820 = vmatpush1.msra.mxu0 0.0
      %7821 = vmatprep.subr.mxu0 0.0
      %7822 = vmatpush1.msra.mxu0 0.0
      %7823 = vmatprep.subr.mxu0 0.0
      %7824 = vmatpush1.msra.mxu0 0.0
      %7825 = vmatprep.subr.mxu0 0.0
      %7826 = vmatpush1.msra.mxu0 0.0
      %7827 = vmatprep.subr.mxu0 0.0
      %7828 = vmatpush1.msra.mxu0 0.0
      %7829 = vmatprep.subr.mxu0 0.0
      %7830 = vmatpush1.msra.mxu0 0.0
      %7831 = vmatprep.mubr.f32.mxu0 0.0
      %7832 = vmatmul.mubr.f32.gmra.mrb[0].mxu0 %v415
      %v7833 = vpop.f32.mrb[0].mxu0
      %v7834 = vadd.f32 %v7751, %v7833
      %v7835 = vpop.f32.mrb[0].mxu0
      %7836 = vmatprep.mubr.f32.mxu0 0.0
      %7837 = vmatmul.mubr.f32.gmra.mrb[0].mxu0 %v416
      %v7838 = vpop.f32.mrb[0].mxu0
      %v7839 = vadd.f32 %v7752, %v7838
      %v7840 = vpop.f32.mrb[0].mxu0
      %7841 = vmatprep.mubr.f32.mxu0 0.0
      %7842 = vmatmul.mubr.f32.gmra.mrb[0].mxu0 %v417
      %v7843 = vpop.f32.mrb[0].mxu0
      %v7844 = vadd.f32 %v7753, %v7843
      %v7845 = vpop.f32.mrb[0].mxu0
      %7846 = vmatprep.mubr.f32.mxu0 0.0
      %7847 = vmatmul.mubr.f32.gmra.mrb[0].mxu0 %v418
      %v7848 = vpop.f32.mrb[0].mxu0
      %v7849 = vadd.f32 %v7754, %v7848
      %v7850 = vpop.f32.mrb[0].mxu0
      %7851 = vmatprep.mubr.f32.mxu0 0.0
      %7852 = vmatmul.mubr.f32.gmra.mrb[0].mxu0 %v419
      %v7853 = vpop.f32.mrb[0].mxu0
      %v7854 = vadd.f32 %v7755, %v7853
      %v7855 = vpop.f32.mrb[0].mxu0
      %7856 = vmatprep.mubr.f32.mxu0 0.0
      %7857 = vmatmul.mubr.f32.gmra.mrb[0].mxu0 %v420
      %v7858 = vpop.f32.mrb[0].mxu0
      %v7859 = vadd.f32 %v7756, %v7858
      %v7860 = vpop.f32.mrb[0].mxu0
      %7861 = vmatprep.mubr.f32.mxu0 0.0
      %7862 = vmatmul.mubr.f32.gmra.mrb[0].mxu0 %v421
      %v7863 = vpop.f32.mrb[0].mxu0
      %v7864 = vadd.f32 %v7757, %v7863
      %v7865 = vpop.f32.mrb[0].mxu0
      %7866 = vmatprep.mubr.f32.mxu0 0.0
      %7867 = vmatmul.mubr.f32.gmra.mrb[0].mxu0 %v422
      %v7868 = vpop.f32.mrb[0].mxu0
      %v7869 = vadd.f32 %v7758, %v7868
      %v7870 = vpop.f32.mrb[0].mxu0
      %7871 = vmatprep.mubr.f32.mxu0 0.0
      %7872 = vmatmul.mubr.f32.gmra.mrb[0].mxu0 %v423
      %v7873 = vpop.f32.mrb[0].mxu0
      %v7874 = vadd.f32 %v7759, %v7873
      %v7875 = vpop.f32.mrb[0].mxu0
      %7876 = vmatprep.mubr.f32.mxu0 0.0
      %7877 = vmatmul.mubr.f32.gmra.mrb[0].mxu0 %v424
      %v7878 = vpop.f32.mrb[0].mxu0
      %v7879 = vadd.f32 %v7760, %v7878
      %v7880 = vpop.f32.mrb[0].mxu0
      %7881 = vmatprep.mubr.f32.mxu0 0.0
      %7882 = vmatmul.mubr.f32.gmra.mrb[0].mxu0 %v425
      %v7883 = vpop.f32.mrb[0].mxu0
      %v7884 = vadd.f32 %v7761, %v7883
      %v7885 = vpop.f32.mrb[0].mxu0
      %7886 = vmatprep.mubr.f32.mxu0 0.0
      %7887 = vmatmul.mubr.f32.gmra.mrb[0].mxu0 %v426
      %v7888 = vpop.f32.mrb[0].mxu0
      %v7889 = vadd.f32 %v7762, %v7888
      %v7890 = vpop.f32.mrb[0].mxu0
      %7891 = vmatprep.mubr.f32.mxu0 0.0
      %7892 = vmatmul.mubr.f32.gmra.mrb[0].mxu0 %v427
      %v7893 = vpop.f32.mrb[0].mxu0
      %v7894 = vadd.f32 %v7763, %v7893
      %v7895 = vpop.f32.mrb[0].mxu0
      %7896 = vmatprep.mubr.f32.mxu0 0.0
      %7897 = vmatmul.mubr.f32.gmra.mrb[0].mxu0 %v428
      %v7898 = vpop.f32.mrb[0].mxu0
      %v7899 = vadd.f32 %v7764, %v7898
      %v7900 = vpop.f32.mrb[0].mxu0
      %7901 = vmatprep.mubr.f32.mxu0 0.0
      %7902 = vmatmul.mubr.f32.gmra.mrb[0].mxu0 %v429
      %v7903 = vpop.f32.mrb[0].mxu0
      %v7904 = vadd.f32 %v7765, %v7903
      %v7905 = vpop.f32.mrb[0].mxu0
      %7906 = vmatprep.mubr.f32.mxu0 0.0
      %7907 = vmatmul.mubr.f32.gmra.mrb[0].mxu0 %v430
      %v7908 = vpop.f32.mrb[0].mxu0
      %v7909 = vadd.f32 %v7766, %v7908
      %v7910 = vpop.f32.mrb[0].mxu0
      %7911 = vdwg.mxu0
      %v7912 = vmul.f32 %v7594, %v7834
      %v7913 = vmul.f32 %v7599, %v7839
      %v7914 = vmul.f32 %v7604, %v7844
      %v7915 = vmul.f32 %v7609, %v7849
      %v7916 = vmul.f32 %v7614, %v7854
      %v7917 = vmul.f32 %v7619, %v7859
      %v7918 = vmul.f32 %v7624, %v7864
      %v7919 = vmul.f32 %v7629, %v7869
      %v7920 = vmul.f32 %v7634, %v7874
      %v7921 = vmul.f32 %v7639, %v7879
      %v7922 = vmul.f32 %v7644, %v7884
      %v7923 = vmul.f32 %v7649, %v7889
      %v7924 = vmul.f32 %v7654, %v7894
      %v7925 = vmul.f32 %v7659, %v7899
      %v7926 = vmul.f32 %v7664, %v7904
      %v7927 = vmul.f32 %v7669, %v7909
      %v7928 = vlaneseq
      %v7929 = vshrl.u32 %v7928, 7
      %v7930 = vsub.s32 0, %v7929
      %v7931 = vrot.slane %v7199, %v7930
      %v7932 = vadd.f32 %v7912, %v7931
      %v7933 = vadd.f32 %v7913, %v7931
      %v7934 = vadd.f32 %v7914, %v7931
      %v7935 = vadd.f32 %v7915, %v7931
      %v7936 = vadd.f32 %v7916, %v7931
      %v7937 = vadd.f32 %v7917, %v7931
      %v7938 = vadd.f32 %v7918, %v7931
      %v7939 = vadd.f32 %v7919, %v7931
      %v7940 = vadd.f32 %v7920, %v7931
      %v7941 = vadd.f32 %v7921, %v7931
      %v7942 = vadd.f32 %v7922, %v7931
      %v7943 = vadd.f32 %v7923, %v7931
      %v7944 = vadd.f32 %v7924, %v7931
      %v7945 = vadd.f32 %v7925, %v7931
      %v7946 = vadd.f32 %v7926, %v7931
      %v7947 = vadd.f32 %v7927, %v7931
      %v7948 = vmax.f32 %v7932, 0.0
      %v7949 = vmax.f32 %v7933, 0.0
      %v7950 = vmax.f32 %v7934, 0.0
      %v7951 = vmax.f32 %v7935, 0.0
      %v7952 = vmax.f32 %v7936, 0.0
      %v7953 = vmax.f32 %v7937, 0.0
      %v7954 = vmax.f32 %v7938, 0.0
      %v7955 = vmax.f32 %v7939, 0.0
      %v7956 = vmax.f32 %v7940, 0.0
      %v7957 = vmax.f32 %v7941, 0.0
      %v7958 = vmax.f32 %v7942, 0.0
      %v7959 = vmax.f32 %v7943, 0.0
      %v7960 = vmax.f32 %v7944, 0.0
      %v7961 = vmax.f32 %v7945, 0.0
      %v7962 = vmax.f32 %v7946, 0.0
      %v7963 = vmax.f32 %v7947, 0.0
      %v7964 = vmul.f32 %v7948, %v7689
      %v7965 = vmul.f32 %v7949, %v7693
      %v7966 = vmul.f32 %v7950, %v7697
      %v7967 = vmul.f32 %v7951, %v7701
      %v7968 = vmul.f32 %v7952, %v7705
      %v7969 = vmul.f32 %v7953, %v7709
      %v7970 = vmul.f32 %v7954, %v7713
      %v7971 = vmul.f32 %v7955, %v7717
      %v7972 = vmul.f32 %v7956, %v7721
      %v7973 = vmul.f32 %v7957, %v7725
      %v7974 = vmul.f32 %v7958, %v7729
      %v7975 = vmul.f32 %v7959, %v7733
      %v7976 = vmul.f32 %v7960, %v7737
      %v7977 = vmul.f32 %v7961, %v7741
      %v7978 = vmul.f32 %v7962, %v7745
      %v7979 = vmul.f32 %v7963, %v7749
      %7980 = vmatprep.subr.mxu0 0.0
      %7981 = vmatpush1.msra.mxu0 %v7964
      %7982 = vmatprep.subr.mxu0 0.0
      %7983 = vmatpush1.msra.mxu0 %v7965
      %7984 = vmatprep.subr.mxu0 0.0
      %7985 = vmatpush1.msra.mxu0 %v7966
      %7986 = vmatprep.subr.mxu0 0.0
      %7987 = vmatpush1.msra.mxu0 %v7967
      %7988 = vmatprep.subr.mxu0 0.0
      %7989 = vmatpush1.msra.mxu0 %v7968
      %7990 = vmatprep.subr.mxu0 0.0
      %7991 = vmatpush1.msra.mxu0 %v7969
      %7992 = vmatprep.subr.mxu0 0.0
      %7993 = vmatpush1.msra.mxu0 %v7970
      %7994 = vmatprep.subr.mxu0 0.0
      %7995 = vmatpush1.msra.mxu0 %v7971
      %7996 = vmatprep.subr.mxu0 0.0
      %7997 = vmatpush1.msra.mxu0 %v7972
      %7998 = vmatprep.subr.mxu0 0.0
      %7999 = vmatpush1.msra.mxu0 %v7973
      %8000 = vmatprep.subr.mxu0 0.0
      %8001 = vmatpush1.msra.mxu0 %v7974
      %8002 = vmatprep.subr.mxu0 0.0
      %8003 = vmatpush1.msra.mxu0 %v7975
      %8004 = vmatprep.subr.mxu0 0.0
      %8005 = vmatpush1.msra.mxu0 %v7976
      %8006 = vmatprep.subr.mxu0 0.0
      %8007 = vmatpush1.msra.mxu0 %v7977
      %8008 = vmatprep.subr.mxu0 0.0
      %8009 = vmatpush1.msra.mxu0 %v7978
      %8010 = vmatprep.subr.mxu0 0.0
      %8011 = vmatpush1.msra.mxu0 %v7979
      %8012 = vmatprep.subr.mxu0 0.0
      %8013 = vmatpush1.msra.mxu0 0.0
      %8014 = vmatprep.subr.mxu0 0.0
      %8015 = vmatpush1.msra.mxu0 0.0
      %8016 = vmatprep.subr.mxu0 0.0
      %8017 = vmatpush1.msra.mxu0 0.0
      %8018 = vmatprep.subr.mxu0 0.0
      %8019 = vmatpush1.msra.mxu0 0.0
      %8020 = vmatprep.subr.mxu0 0.0
      %8021 = vmatpush1.msra.mxu0 0.0
      %8022 = vmatprep.subr.mxu0 0.0
      %8023 = vmatpush1.msra.mxu0 0.0
      %8024 = vmatprep.subr.mxu0 0.0
      %8025 = vmatpush1.msra.mxu0 0.0
      %8026 = vmatprep.subr.mxu0 0.0
      %8027 = vmatpush1.msra.mxu0 0.0
      %8028 = vmatprep.subr.mxu0 0.0
      %8029 = vmatpush1.msra.mxu0 0.0
      %8030 = vmatprep.subr.mxu0 0.0
      %8031 = vmatpush1.msra.mxu0 0.0
      %8032 = vmatprep.subr.mxu0 0.0
      %8033 = vmatpush1.msra.mxu0 0.0
      %8034 = vmatprep.subr.mxu0 0.0
      %8035 = vmatpush1.msra.mxu0 0.0
      %8036 = vmatprep.subr.mxu0 0.0
      %8037 = vmatpush1.msra.mxu0 0.0
      %8038 = vmatprep.subr.mxu0 0.0
      %8039 = vmatpush1.msra.mxu0 0.0
      %8040 = vmatprep.subr.mxu0 0.0
      %8041 = vmatpush1.msra.mxu0 0.0
      %8042 = vmatprep.subr.mxu0 0.0
      %8043 = vmatpush1.msra.mxu0 0.0
      %8044 = vmatprep.mubr.f32.mxu0 0.0
      %8045 = vmatmul.mubr.f32.gmra.mrb[0].mxu0 %v415
      %v8046 = vpop.f32.mrb[0].mxu0
      %v8047 = vadd.f32 0.0, %v8046
      %v8048 = vpop.f32.mrb[0].mxu0
      %8049 = vmatprep.mubr.f32.mxu0 0.0
      %8050 = vmatmul.mubr.f32.gmra.mrb[0].mxu0 %v416
      %v8051 = vpop.f32.mrb[0].mxu0
      %v8052 = vadd.f32 0.0, %v8051
      %v8053 = vpop.f32.mrb[0].mxu0
      %8054 = vmatprep.mubr.f32.mxu0 0.0
      %8055 = vmatmul.mubr.f32.gmra.mrb[0].mxu0 %v417
      %v8056 = vpop.f32.mrb[0].mxu0
      %v8057 = vadd.f32 0.0, %v8056
      %v8058 = vpop.f32.mrb[0].mxu0
      %8059 = vmatprep.mubr.f32.mxu0 0.0
      %8060 = vmatmul.mubr.f32.gmra.mrb[0].mxu0 %v418
      %v8061 = vpop.f32.mrb[0].mxu0
      %v8062 = vadd.f32 0.0, %v8061
      %v8063 = vpop.f32.mrb[0].mxu0
      %8064 = vmatprep.mubr.f32.mxu0 0.0
      %8065 = vmatmul.mubr.f32.gmra.mrb[0].mxu0 %v419
      %v8066 = vpop.f32.mrb[0].mxu0
      %v8067 = vadd.f32 0.0, %v8066
      %v8068 = vpop.f32.mrb[0].mxu0
      %8069 = vmatprep.mubr.f32.mxu0 0.0
      %8070 = vmatmul.mubr.f32.gmra.mrb[0].mxu0 %v420
      %v8071 = vpop.f32.mrb[0].mxu0
      %v8072 = vadd.f32 0.0, %v8071
      %v8073 = vpop.f32.mrb[0].mxu0
      %8074 = vmatprep.mubr.f32.mxu0 0.0
      %8075 = vmatmul.mubr.f32.gmra.mrb[0].mxu0 %v421
      %v8076 = vpop.f32.mrb[0].mxu0
      %v8077 = vadd.f32 0.0, %v8076
      %v8078 = vpop.f32.mrb[0].mxu0
      %8079 = vmatprep.mubr.f32.mxu0 0.0
      %8080 = vmatmul.mubr.f32.gmra.mrb[0].mxu0 %v422
      %v8081 = vpop.f32.mrb[0].mxu0
      %v8082 = vadd.f32 0.0, %v8081
      %v8083 = vpop.f32.mrb[0].mxu0
      %8084 = vmatprep.mubr.f32.mxu0 0.0
      %8085 = vmatmul.mubr.f32.gmra.mrb[0].mxu0 %v423
      %v8086 = vpop.f32.mrb[0].mxu0
      %v8087 = vadd.f32 0.0, %v8086
      %v8088 = vpop.f32.mrb[0].mxu0
      %8089 = vmatprep.mubr.f32.mxu0 0.0
      %8090 = vmatmul.mubr.f32.gmra.mrb[0].mxu0 %v424
      %v8091 = vpop.f32.mrb[0].mxu0
      %v8092 = vadd.f32 0.0, %v8091
      %v8093 = vpop.f32.mrb[0].mxu0
      %8094 = vmatprep.mubr.f32.mxu0 0.0
      %8095 = vmatmul.mubr.f32.gmra.mrb[0].mxu0 %v425
      %v8096 = vpop.f32.mrb[0].mxu0
      %v8097 = vadd.f32 0.0, %v8096
      %v8098 = vpop.f32.mrb[0].mxu0
      %8099 = vmatprep.mubr.f32.mxu0 0.0
      %8100 = vmatmul.mubr.f32.gmra.mrb[0].mxu0 %v426
      %v8101 = vpop.f32.mrb[0].mxu0
      %v8102 = vadd.f32 0.0, %v8101
      %v8103 = vpop.f32.mrb[0].mxu0
      %8104 = vmatprep.mubr.f32.mxu0 0.0
      %8105 = vmatmul.mubr.f32.gmra.mrb[0].mxu0 %v427
      %v8106 = vpop.f32.mrb[0].mxu0
      %v8107 = vadd.f32 0.0, %v8106
      %v8108 = vpop.f32.mrb[0].mxu0
      %8109 = vmatprep.mubr.f32.mxu0 0.0
      %8110 = vmatmul.mubr.f32.gmra.mrb[0].mxu0 %v428
      %v8111 = vpop.f32.mrb[0].mxu0
      %v8112 = vadd.f32 0.0, %v8111
      %v8113 = vpop.f32.mrb[0].mxu0
      %8114 = vmatprep.mubr.f32.mxu0 0.0
      %8115 = vmatmul.mubr.f32.gmra.mrb[0].mxu0 %v429
      %v8116 = vpop.f32.mrb[0].mxu0
      %v8117 = vadd.f32 0.0, %v8116
      %v8118 = vpop.f32.mrb[0].mxu0
      %8119 = vmatprep.mubr.f32.mxu0 0.0
      %8120 = vmatmul.mubr.f32.gmra.mrb[0].mxu0 %v430
      %v8121 = vpop.f32.mrb[0].mxu0
      %v8122 = vadd.f32 0.0, %v8121
      %v8123 = vpop.f32.mrb[0].mxu0
      %8124 = vdwg.mxu0
      %8129 = vrot.lane.b32.xlu0 %v7201, 127
      %v8130 = vpop.permute.xlu0 %8129
      %8131 = vrot.lane.b32.xlu0 %v7202, 127
      %v8132 = vpop.permute.xlu0 %8131
      %8133 = vrot.lane.b32.xlu0 %v7203, 127
      %v8134 = vpop.permute.xlu0 %8133
      %8135 = vrot.lane.b32.xlu0 %v7204, 127
      %v8136 = vpop.permute.xlu0 %8135
      %v8142 = vsel %vm757, %v7964, 0
      %v8145 = vsel %vm757, %v7965, 0
      %v8148 = vsel %vm757, %v7966, 0
      %v8151 = vsel %vm757, %v7967, 0
      %v8154 = vsel %vm757, %v7968, 0
      %v8157 = vsel %vm757, %v7969, 0
      %v8160 = vsel %vm757, %v7970, 0
      %v8163 = vsel %vm757, %v7971, 0
      %v8166 = vsel %vm757, %v7972, 0
      %v8169 = vsel %vm757, %v7973, 0
      %v8172 = vsel %vm757, %v7974, 0
      %v8175 = vsel %vm757, %v7975, 0
      %v8178 = vsel %vm757, %v7976, 0
      %v8181 = vsel %vm757, %v7977, 0
      %v8184 = vsel %vm757, %v7978, 0
      %v8187 = vsel %vm757, %v7979, 0
      %8189 = vmatprep.subr.mxu0 0.0
      %8190 = vmatpush1.msra.mxu0 %v8130
      %8191 = vmatprep.subr.mxu0 0.0
      %8192 = vmatpush1.msra.mxu0 %v8132
      %8193 = vmatprep.subr.mxu0 0.0
      %8194 = vmatpush1.msra.mxu0 %v8134
      %8195 = vmatprep.subr.mxu0 0.0
      %8196 = vmatpush1.msra.mxu0 %v8136
      %8197 = vmatprep.subr.mxu0 0.0
      %8198 = vmatpush1.msra.mxu0 0.0
      %8199 = vmatprep.subr.mxu0 0.0
      %8200 = vmatpush1.msra.mxu0 0.0
      %8201 = vmatprep.subr.mxu0 0.0
      %8202 = vmatpush1.msra.mxu0 0.0
      %8203 = vmatprep.subr.mxu0 0.0
      %8204 = vmatpush1.msra.mxu0 0.0
      %8205 = vmatprep.subr.mxu0 0.0
      %8206 = vmatpush1.msra.mxu0 0.0
      %8207 = vmatprep.subr.mxu0 0.0
      %8208 = vmatpush1.msra.mxu0 0.0
      %8209 = vmatprep.subr.mxu0 0.0
      %8210 = vmatpush1.msra.mxu0 0.0
      %8211 = vmatprep.subr.mxu0 0.0
      %8212 = vmatpush1.msra.mxu0 0.0
      %8213 = vmatprep.subr.mxu0 0.0
      %8214 = vmatpush1.msra.mxu0 0.0
      %8215 = vmatprep.subr.mxu0 0.0
      %8216 = vmatpush1.msra.mxu0 0.0
      %8217 = vmatprep.subr.mxu0 0.0
      %8218 = vmatpush1.msra.mxu0 0.0
      %8219 = vmatprep.subr.mxu0 0.0
      %8220 = vmatpush1.msra.mxu0 0.0
      %8221 = vmatprep.subr.mxu0 0.0
      %8222 = vmatpush1.msra.mxu0 0.0
      %8223 = vmatprep.subr.mxu0 0.0
      %8224 = vmatpush1.msra.mxu0 0.0
      %8225 = vmatprep.subr.mxu0 0.0
      %8226 = vmatpush1.msra.mxu0 0.0
      %8227 = vmatprep.subr.mxu0 0.0
      %8228 = vmatpush1.msra.mxu0 0.0
      %8229 = vmatprep.subr.mxu0 0.0
      %8230 = vmatpush1.msra.mxu0 0.0
      %8231 = vmatprep.subr.mxu0 0.0
      %8232 = vmatpush1.msra.mxu0 0.0
      %8233 = vmatprep.subr.mxu0 0.0
      %8234 = vmatpush1.msra.mxu0 0.0
      %8235 = vmatprep.subr.mxu0 0.0
      %8236 = vmatpush1.msra.mxu0 0.0
      %8237 = vmatprep.subr.mxu0 0.0
      %8238 = vmatpush1.msra.mxu0 0.0
      %8239 = vmatprep.subr.mxu0 0.0
      %8240 = vmatpush1.msra.mxu0 0.0
      %8241 = vmatprep.subr.mxu0 0.0
      %8242 = vmatpush1.msra.mxu0 0.0
      %8243 = vmatprep.subr.mxu0 0.0
      %8244 = vmatpush1.msra.mxu0 0.0
      %8245 = vmatprep.subr.mxu0 0.0
      %8246 = vmatpush1.msra.mxu0 0.0
      %8247 = vmatprep.subr.mxu0 0.0
      %8248 = vmatpush1.msra.mxu0 0.0
      %8249 = vmatprep.subr.mxu0 0.0
      %8250 = vmatpush1.msra.mxu0 0.0
      %8251 = vmatprep.subr.mxu0 0.0
      %8252 = vmatpush1.msra.mxu0 0.0
      %8253 = vmatprep.mubr.f32.mxu0 0.0
      %8254 = vmatmul.mubr.f32.gmra.mrb[0].mxu0 %v8142
      %v8255 = vpop.f32.mrb[0].mxu0
      %v8256 = vadd.f32 0.0, %v8255
      %v8257 = vpop.f32.mrb[0].mxu0
      %8258 = vmatprep.mubr.f32.mxu0 0.0
      %8259 = vmatmul.mubr.f32.gmra.mrb[0].mxu0 %v8145
      %v8260 = vpop.f32.mrb[0].mxu0
      %v8261 = vadd.f32 0.0, %v8260
      %v8262 = vpop.f32.mrb[0].mxu0
      %8263 = vmatprep.mubr.f32.mxu0 0.0
      %8264 = vmatmul.mubr.f32.gmra.mrb[0].mxu0 %v8148
      %v8265 = vpop.f32.mrb[0].mxu0
      %v8266 = vadd.f32 0.0, %v8265
      %v8267 = vpop.f32.mrb[0].mxu0
      %8268 = vmatprep.mubr.f32.mxu0 0.0
      %8269 = vmatmul.mubr.f32.gmra.mrb[0].mxu0 %v8151
      %v8270 = vpop.f32.mrb[0].mxu0
      %v8271 = vadd.f32 0.0, %v8270
      %v8272 = vpop.f32.mrb[0].mxu0
      %8273 = vmatprep.mubr.f32.mxu0 0.0
      %8274 = vmatmul.mubr.f32.gmra.mrb[0].mxu0 %v8154
      %v8275 = vpop.f32.mrb[0].mxu0
      %v8276 = vadd.f32 0.0, %v8275
      %v8277 = vpop.f32.mrb[0].mxu0
      %8278 = vmatprep.mubr.f32.mxu0 0.0
      %8279 = vmatmul.mubr.f32.gmra.mrb[0].mxu0 %v8157
      %v8280 = vpop.f32.mrb[0].mxu0
      %v8281 = vadd.f32 0.0, %v8280
      %v8282 = vpop.f32.mrb[0].mxu0
      %8283 = vmatprep.mubr.f32.mxu0 0.0
      %8284 = vmatmul.mubr.f32.gmra.mrb[0].mxu0 %v8160
      %v8285 = vpop.f32.mrb[0].mxu0
      %v8286 = vadd.f32 0.0, %v8285
      %v8287 = vpop.f32.mrb[0].mxu0
      %8288 = vmatprep.mubr.f32.mxu0 0.0
      %8289 = vmatmul.mubr.f32.gmra.mrb[0].mxu0 %v8163
      %v8290 = vpop.f32.mrb[0].mxu0
      %v8291 = vadd.f32 0.0, %v8290
      %v8292 = vpop.f32.mrb[0].mxu0
      %8293 = vmatprep.mubr.f32.mxu0 0.0
      %8294 = vmatmul.mubr.f32.gmra.mrb[0].mxu0 %v8166
      %v8295 = vpop.f32.mrb[0].mxu0
      %v8296 = vadd.f32 0.0, %v8295
      %v8297 = vpop.f32.mrb[0].mxu0
      %8298 = vmatprep.mubr.f32.mxu0 0.0
      %8299 = vmatmul.mubr.f32.gmra.mrb[0].mxu0 %v8169
      %v8300 = vpop.f32.mrb[0].mxu0
      %v8301 = vadd.f32 0.0, %v8300
      %v8302 = vpop.f32.mrb[0].mxu0
      %8303 = vmatprep.mubr.f32.mxu0 0.0
      %8304 = vmatmul.mubr.f32.gmra.mrb[0].mxu0 %v8172
      %v8305 = vpop.f32.mrb[0].mxu0
      %v8306 = vadd.f32 0.0, %v8305
      %v8307 = vpop.f32.mrb[0].mxu0
      %8308 = vmatprep.mubr.f32.mxu0 0.0
      %8309 = vmatmul.mubr.f32.gmra.mrb[0].mxu0 %v8175
      %v8310 = vpop.f32.mrb[0].mxu0
      %v8311 = vadd.f32 0.0, %v8310
      %v8312 = vpop.f32.mrb[0].mxu0
      %8313 = vmatprep.mubr.f32.mxu0 0.0
      %8314 = vmatmul.mubr.f32.gmra.mrb[0].mxu0 %v8178
      %v8315 = vpop.f32.mrb[0].mxu0
      %v8316 = vadd.f32 0.0, %v8315
      %v8317 = vpop.f32.mrb[0].mxu0
      %8318 = vmatprep.mubr.f32.mxu0 0.0
      %8319 = vmatmul.mubr.f32.gmra.mrb[0].mxu0 %v8181
      %v8320 = vpop.f32.mrb[0].mxu0
      %v8321 = vadd.f32 0.0, %v8320
      %v8322 = vpop.f32.mrb[0].mxu0
      %8323 = vmatprep.mubr.f32.mxu0 0.0
      %8324 = vmatmul.mubr.f32.gmra.mrb[0].mxu0 %v8184
      %v8325 = vpop.f32.mrb[0].mxu0
      %v8326 = vadd.f32 0.0, %v8325
      %v8327 = vpop.f32.mrb[0].mxu0
      %8328 = vmatprep.mubr.f32.mxu0 0.0
      %8329 = vmatmul.mubr.f32.gmra.mrb[0].mxu0 %v8187
      %v8330 = vpop.f32.mrb[0].mxu0
      %v8331 = vadd.f32 0.0, %v8330
      %v8332 = vpop.f32.mrb[0].mxu0
      %8333 = vdwg.mxu0
      %v8335 = vsel %vm757, %v8047, 0
      %v8338 = vsel %vm757, %v8052, 0
      %v8341 = vsel %vm757, %v8057, 0
      %v8344 = vsel %vm757, %v8062, 0
      %v8347 = vsel %vm757, %v8067, 0
      %v8350 = vsel %vm757, %v8072, 0
      %v8353 = vsel %vm757, %v8077, 0
      %v8356 = vsel %vm757, %v8082, 0
      %v8359 = vsel %vm757, %v8087, 0
      %v8362 = vsel %vm757, %v8092, 0
      %v8365 = vsel %vm757, %v8097, 0
      %v8368 = vsel %vm757, %v8102, 0
      %v8371 = vsel %vm757, %v8107, 0
      %v8374 = vsel %vm757, %v8112, 0
      %v8377 = vsel %vm757, %v8117, 0
      %v8380 = vsel %vm757, %v8122, 0
      %8382 = vmatprep.subr.mxu0 0.0
      %8383 = vmatpush1.msra.mxu0 %v7201
      %8384 = vmatprep.subr.mxu0 0.0
      %8385 = vmatpush1.msra.mxu0 %v7202
      %8386 = vmatprep.subr.mxu0 0.0
      %8387 = vmatpush1.msra.mxu0 %v7203
      %8388 = vmatprep.subr.mxu0 0.0
      %8389 = vmatpush1.msra.mxu0 %v7204
      %8390 = vmatprep.subr.mxu0 0.0
      %8391 = vmatpush1.msra.mxu0 0.0
      %8392 = vmatprep.subr.mxu0 0.0
      %8393 = vmatpush1.msra.mxu0 0.0
      %8394 = vmatprep.subr.mxu0 0.0
      %8395 = vmatpush1.msra.mxu0 0.0
      %8396 = vmatprep.subr.mxu0 0.0
      %8397 = vmatpush1.msra.mxu0 0.0
      %8398 = vmatprep.subr.mxu0 0.0
      %8399 = vmatpush1.msra.mxu0 0.0
      %8400 = vmatprep.subr.mxu0 0.0
      %8401 = vmatpush1.msra.mxu0 0.0
      %8402 = vmatprep.subr.mxu0 0.0
      %8403 = vmatpush1.msra.mxu0 0.0
      %8404 = vmatprep.subr.mxu0 0.0
      %8405 = vmatpush1.msra.mxu0 0.0
      %8406 = vmatprep.subr.mxu0 0.0
      %8407 = vmatpush1.msra.mxu0 0.0
      %8408 = vmatprep.subr.mxu0 0.0
      %8409 = vmatpush1.msra.mxu0 0.0
      %8410 = vmatprep.subr.mxu0 0.0
      %8411 = vmatpush1.msra.mxu0 0.0
      %8412 = vmatprep.subr.mxu0 0.0
      %8413 = vmatpush1.msra.mxu0 0.0
      %8414 = vmatprep.subr.mxu0 0.0
      %8415 = vmatpush1.msra.mxu0 0.0
      %8416 = vmatprep.subr.mxu0 0.0
      %8417 = vmatpush1.msra.mxu0 0.0
      %8418 = vmatprep.subr.mxu0 0.0
      %8419 = vmatpush1.msra.mxu0 0.0
      %8420 = vmatprep.subr.mxu0 0.0
      %8421 = vmatpush1.msra.mxu0 0.0
      %8422 = vmatprep.subr.mxu0 0.0
      %8423 = vmatpush1.msra.mxu0 0.0
      %8424 = vmatprep.subr.mxu0 0.0
      %8425 = vmatpush1.msra.mxu0 0.0
      %8426 = vmatprep.subr.mxu0 0.0
      %8427 = vmatpush1.msra.mxu0 0.0
      %8428 = vmatprep.subr.mxu0 0.0
      %8429 = vmatpush1.msra.mxu0 0.0
      %8430 = vmatprep.subr.mxu0 0.0
      %8431 = vmatpush1.msra.mxu0 0.0
      %8432 = vmatprep.subr.mxu0 0.0
      %8433 = vmatpush1.msra.mxu0 0.0
      %8434 = vmatprep.subr.mxu0 0.0
      %8435 = vmatpush1.msra.mxu0 0.0
      %8436 = vmatprep.subr.mxu0 0.0
      %8437 = vmatpush1.msra.mxu0 0.0
      %8438 = vmatprep.subr.mxu0 0.0
      %8439 = vmatpush1.msra.mxu0 0.0
      %8440 = vmatprep.subr.mxu0 0.0
      %8441 = vmatpush1.msra.mxu0 0.0
      %8442 = vmatprep.subr.mxu0 0.0
      %8443 = vmatpush1.msra.mxu0 0.0
      %8444 = vmatprep.subr.mxu0 0.0
      %8445 = vmatpush1.msra.mxu0 0.0
      %8446 = vmatprep.mubr.f32.mxu0 0.0
      %8447 = vmatmul.mubr.f32.gmra.mrb[0].mxu0 %v8335
      %v8448 = vpop.f32.mrb[0].mxu0
      %v8449 = vadd.f32 %v8256, %v8448
      %v8450 = vpop.f32.mrb[0].mxu0
      %8451 = vmatprep.mubr.f32.mxu0 0.0
      %8452 = vmatmul.mubr.f32.gmra.mrb[0].mxu0 %v8338
      %v8453 = vpop.f32.mrb[0].mxu0
      %v8454 = vadd.f32 %v8261, %v8453
      %v8455 = vpop.f32.mrb[0].mxu0
      %8456 = vmatprep.mubr.f32.mxu0 0.0
      %8457 = vmatmul.mubr.f32.gmra.mrb[0].mxu0 %v8341
      %v8458 = vpop.f32.mrb[0].mxu0
      %v8459 = vadd.f32 %v8266, %v8458
      %v8460 = vpop.f32.mrb[0].mxu0
      %8461 = vmatprep.mubr.f32.mxu0 0.0
      %8462 = vmatmul.mubr.f32.gmra.mrb[0].mxu0 %v8344
      %v8463 = vpop.f32.mrb[0].mxu0
      %v8464 = vadd.f32 %v8271, %v8463
      %v8465 = vpop.f32.mrb[0].mxu0
      %8466 = vmatprep.mubr.f32.mxu0 0.0
      %8467 = vmatmul.mubr.f32.gmra.mrb[0].mxu0 %v8347
      %v8468 = vpop.f32.mrb[0].mxu0
      %v8469 = vadd.f32 %v8276, %v8468
      %v8470 = vpop.f32.mrb[0].mxu0
      %8471 = vmatprep.mubr.f32.mxu0 0.0
      %8472 = vmatmul.mubr.f32.gmra.mrb[0].mxu0 %v8350
      %v8473 = vpop.f32.mrb[0].mxu0
      %v8474 = vadd.f32 %v8281, %v8473
      %v8475 = vpop.f32.mrb[0].mxu0
      %8476 = vmatprep.mubr.f32.mxu0 0.0
      %8477 = vmatmul.mubr.f32.gmra.mrb[0].mxu0 %v8353
      %v8478 = vpop.f32.mrb[0].mxu0
      %v8479 = vadd.f32 %v8286, %v8478
      %v8480 = vpop.f32.mrb[0].mxu0
      %8481 = vmatprep.mubr.f32.mxu0 0.0
      %8482 = vmatmul.mubr.f32.gmra.mrb[0].mxu0 %v8356
      %v8483 = vpop.f32.mrb[0].mxu0
      %v8484 = vadd.f32 %v8291, %v8483
      %v8485 = vpop.f32.mrb[0].mxu0
      %8486 = vmatprep.mubr.f32.mxu0 0.0
      %8487 = vmatmul.mubr.f32.gmra.mrb[0].mxu0 %v8359
      %v8488 = vpop.f32.mrb[0].mxu0
      %v8489 = vadd.f32 %v8296, %v8488
      %v8490 = vpop.f32.mrb[0].mxu0
      %8491 = vmatprep.mubr.f32.mxu0 0.0
      %8492 = vmatmul.mubr.f32.gmra.mrb[0].mxu0 %v8362
      %v8493 = vpop.f32.mrb[0].mxu0
      %v8494 = vadd.f32 %v8301, %v8493
      %v8495 = vpop.f32.mrb[0].mxu0
      %8496 = vmatprep.mubr.f32.mxu0 0.0
      %8497 = vmatmul.mubr.f32.gmra.mrb[0].mxu0 %v8365
      %v8498 = vpop.f32.mrb[0].mxu0
      %v8499 = vadd.f32 %v8306, %v8498
      %v8500 = vpop.f32.mrb[0].mxu0
      %8501 = vmatprep.mubr.f32.mxu0 0.0
      %8502 = vmatmul.mubr.f32.gmra.mrb[0].mxu0 %v8368
      %v8503 = vpop.f32.mrb[0].mxu0
      %v8504 = vadd.f32 %v8311, %v8503
      %v8505 = vpop.f32.mrb[0].mxu0
      %8506 = vmatprep.mubr.f32.mxu0 0.0
      %8507 = vmatmul.mubr.f32.gmra.mrb[0].mxu0 %v8371
      %v8508 = vpop.f32.mrb[0].mxu0
      %v8509 = vadd.f32 %v8316, %v8508
      %v8510 = vpop.f32.mrb[0].mxu0
      %8511 = vmatprep.mubr.f32.mxu0 0.0
      %8512 = vmatmul.mubr.f32.gmra.mrb[0].mxu0 %v8374
      %v8513 = vpop.f32.mrb[0].mxu0
      %v8514 = vadd.f32 %v8321, %v8513
      %v8515 = vpop.f32.mrb[0].mxu0
      %8516 = vmatprep.mubr.f32.mxu0 0.0
      %8517 = vmatmul.mubr.f32.gmra.mrb[0].mxu0 %v8377
      %v8518 = vpop.f32.mrb[0].mxu0
      %v8519 = vadd.f32 %v8326, %v8518
      %v8520 = vpop.f32.mrb[0].mxu0
      %8521 = vmatprep.mubr.f32.mxu0 0.0
      %8522 = vmatmul.mubr.f32.gmra.mrb[0].mxu0 %v8380
      %v8523 = vpop.f32.mrb[0].mxu0
      %v8524 = vadd.f32 %v8331, %v8523
      %v8525 = vpop.f32.mrb[0].mxu0
      %8526 = vdwg.mxu0
      %v8527 = vlaneseq
      %v8528 = vshrl.u32 %v8527, 7
      %v8529 = vsub.s32 1, %v8528
      %v8530 = vrot.slane %v7199, %v8529
      %v8531 = vadd.f32 %v8449, %v8530
      %v8532 = vadd.f32 %v8454, %v8530
      %v8533 = vadd.f32 %v8459, %v8530
      %v8534 = vadd.f32 %v8464, %v8530
      %v8535 = vadd.f32 %v8469, %v8530
      %v8536 = vadd.f32 %v8474, %v8530
      %v8537 = vadd.f32 %v8479, %v8530
      %v8538 = vadd.f32 %v8484, %v8530
      %v8539 = vadd.f32 %v8489, %v8530
      %v8540 = vadd.f32 %v8494, %v8530
      %v8541 = vadd.f32 %v8499, %v8530
      %v8542 = vadd.f32 %v8504, %v8530
      %v8543 = vadd.f32 %v8509, %v8530
      %v8544 = vadd.f32 %v8514, %v8530
      %v8545 = vadd.f32 %v8519, %v8530
      %v8546 = vadd.f32 %v8524, %v8530
      %v8547 = vtanh.pop %v8531
      %v8548 = vtanh.pop %v8532
      %v8549 = vtanh.pop %v8533
      %v8550 = vtanh.pop %v8534
      %v8551 = vtanh.pop %v8535
      %v8552 = vtanh.pop %v8536
      %v8553 = vtanh.pop %v8537
      %v8554 = vtanh.pop %v8538
      %v8555 = vtanh.pop %v8539
      %v8556 = vtanh.pop %v8540
      %v8557 = vtanh.pop %v8541
      %v8558 = vtanh.pop %v8542
      %v8559 = vtanh.pop %v8543
      %v8560 = vtanh.pop %v8544
      %v8561 = vtanh.pop %v8545
      %v8562 = vtanh.pop %v8546
      %vm8563 = vcmp.gt.f32.partialorder %v6100, 0.5
      %vm8564 = vcmp.gt.f32.partialorder %v6101, 0.5
      %vm8565 = vcmp.gt.f32.partialorder %v6102, 0.5
      %vm8566 = vcmp.gt.f32.partialorder %v6103, 0.5
      %vm8567 = vcmp.gt.f32.partialorder %v6104, 0.5
      %vm8568 = vcmp.gt.f32.partialorder %v6105, 0.5
      %vm8569 = vcmp.gt.f32.partialorder %v6106, 0.5
      %vm8570 = vcmp.gt.f32.partialorder %v6107, 0.5
      %vm8571 = vcmp.gt.f32.partialorder %v6108, 0.5
      %vm8572 = vcmp.gt.f32.partialorder %v6109, 0.5
      %vm8573 = vcmp.gt.f32.partialorder %v6110, 0.5
      %vm8574 = vcmp.gt.f32.partialorder %v6111, 0.5
      %vm8575 = vcmp.gt.f32.partialorder %v6112, 0.5
      %vm8576 = vcmp.gt.f32.partialorder %v6113, 0.5
      %vm8577 = vcmp.gt.f32.partialorder %v6114, 0.5
      %vm8578 = vcmp.gt.f32.partialorder %v6115, 0.5
      %8595 = vrot.lane.b32.xlu0 %v8547, 1
      %v8596 = vpop.permute.xlu0 %8595
      %8597 = vrot.lane.b32.xlu0 %v8548, 1
      %v8598 = vpop.permute.xlu0 %8597
      %8599 = vrot.lane.b32.xlu0 %v8549, 1
      %v8600 = vpop.permute.xlu0 %8599
      %8601 = vrot.lane.b32.xlu0 %v8550, 1
      %v8602 = vpop.permute.xlu0 %8601
      %8603 = vrot.lane.b32.xlu0 %v8551, 1
      %v8604 = vpop.permute.xlu0 %8603
      %8605 = vrot.lane.b32.xlu0 %v8552, 1
      %v8606 = vpop.permute.xlu0 %8605
      %8607 = vrot.lane.b32.xlu0 %v8553, 1
      %v8608 = vpop.permute.xlu0 %8607
      %8609 = vrot.lane.b32.xlu0 %v8554, 1
      %v8610 = vpop.permute.xlu0 %8609
      %8611 = vrot.lane.b32.xlu0 %v8555, 1
      %v8612 = vpop.permute.xlu0 %8611
      %8613 = vrot.lane.b32.xlu0 %v8556, 1
      %v8614 = vpop.permute.xlu0 %8613
      %8615 = vrot.lane.b32.xlu0 %v8557, 1
      %v8616 = vpop.permute.xlu0 %8615
      %8617 = vrot.lane.b32.xlu0 %v8558, 1
      %v8618 = vpop.permute.xlu0 %8617
      %8619 = vrot.lane.b32.xlu0 %v8559, 1
      %v8620 = vpop.permute.xlu0 %8619
      %8621 = vrot.lane.b32.xlu0 %v8560, 1
      %v8622 = vpop.permute.xlu0 %8621
      %8623 = vrot.lane.b32.xlu0 %v8561, 1
      %v8624 = vpop.permute.xlu0 %8623
      %8625 = vrot.lane.b32.xlu0 %v8562, 1
      %v8626 = vpop.permute.xlu0 %8625
      %v8643 = vsel %vm8563, %v8596, -1e+30
      %v8644 = vsel %vm8564, %v8598, -1e+30
      %v8645 = vsel %vm8565, %v8600, -1e+30
      %v8646 = vsel %vm8566, %v8602, -1e+30
      %v8647 = vsel %vm8567, %v8604, -1e+30
      %v8648 = vsel %vm8568, %v8606, -1e+30
      %v8649 = vsel %vm8569, %v8608, -1e+30
      %v8650 = vsel %vm8570, %v8610, -1e+30
      %v8651 = vsel %vm8571, %v8612, -1e+30
      %v8652 = vsel %vm8572, %v8614, -1e+30
      %v8653 = vsel %vm8573, %v8616, -1e+30
      %v8654 = vsel %vm8574, %v8618, -1e+30
      %v8655 = vsel %vm8575, %v8620, -1e+30
      %v8656 = vsel %vm8576, %v8622, -1e+30
      %v8657 = vsel %vm8577, %v8624, -1e+30
      %v8658 = vsel %vm8578, %v8626, -1e+30
      %8675 = vrot.lane.b32.xlu0 %v8643, 127
      %v8676 = vpop.permute.xlu0 %8675
      %8677 = vrot.lane.b32.xlu0 %v8644, 127
      %v8678 = vpop.permute.xlu0 %8677
      %8679 = vrot.lane.b32.xlu0 %v8645, 127
      %v8680 = vpop.permute.xlu0 %8679
      %8681 = vrot.lane.b32.xlu0 %v8646, 127
      %v8682 = vpop.permute.xlu0 %8681
      %8683 = vrot.lane.b32.xlu0 %v8647, 127
      %v8684 = vpop.permute.xlu0 %8683
      %8685 = vrot.lane.b32.xlu0 %v8648, 127
      %v8686 = vpop.permute.xlu0 %8685
      %8687 = vrot.lane.b32.xlu0 %v8649, 127
      %v8688 = vpop.permute.xlu0 %8687
      %8689 = vrot.lane.b32.xlu0 %v8650, 127
      %v8690 = vpop.permute.xlu0 %8689
      %8691 = vrot.lane.b32.xlu0 %v8651, 127
      %v8692 = vpop.permute.xlu0 %8691
      %8693 = vrot.lane.b32.xlu0 %v8652, 127
      %v8694 = vpop.permute.xlu0 %8693
      %8695 = vrot.lane.b32.xlu0 %v8653, 127
      %v8696 = vpop.permute.xlu0 %8695
      %8697 = vrot.lane.b32.xlu0 %v8654, 127
      %v8698 = vpop.permute.xlu0 %8697
      %8699 = vrot.lane.b32.xlu0 %v8655, 127
      %v8700 = vpop.permute.xlu0 %8699
      %8701 = vrot.lane.b32.xlu0 %v8656, 127
      %v8702 = vpop.permute.xlu0 %8701
      %8703 = vrot.lane.b32.xlu0 %v8657, 127
      %v8704 = vpop.permute.xlu0 %8703
      %8705 = vrot.lane.b32.xlu0 %v8658, 127
      %v8706 = vpop.permute.xlu0 %8705
      %8723 = vxpose.xlu0.b32.start [1/16] %v8676, 128
      %8724 = vxpose.xlu0.b32.cont [2/16] %v8678, 128
      %8725 = vxpose.xlu0.b32.cont [3/16] %v8680, 128
      %8726 = vxpose.xlu0.b32.cont [4/16] %v8682, 128
      %8727 = vxpose.xlu0.b32.cont [5/16] %v8684, 128
      %8728 = vxpose.xlu0.b32.cont [6/16] %v8686, 128
      %8729 = vxpose.xlu0.b32.cont [7/16] %v8688, 128
      %8730 = vxpose.xlu0.b32.cont [8/16] %v8690, 128
      %8731 = vxpose.xlu0.b32.cont [9/16] %v8692, 128
      %8732 = vxpose.xlu0.b32.cont [10/16] %v8694, 128
      %8733 = vxpose.xlu0.b32.cont [11/16] %v8696, 128
      %8734 = vxpose.xlu0.b32.cont [12/16] %v8698, 128
      %8735 = vxpose.xlu0.b32.cont [13/16] %v8700, 128
      %8736 = vxpose.xlu0.b32.cont [14/16] %v8702, 128
      %8737 = vxpose.xlu0.b32.cont [15/16] %v8704, 128
      %8738 = vxpose.xlu0.b32.end [16/16] %v8706, 128
      %v8739 = vpop.trf.xlu0
      %v8740 = vpop.trf.xlu0
      %v8741 = vpop.trf.xlu0
      %v8742 = vpop.trf.xlu0
      %v8743 = vpop.trf.xlu0
      %v8744 = vpop.trf.xlu0
      %v8745 = vpop.trf.xlu0
      %v8746 = vpop.trf.xlu0
      %v8747 = vpop.trf.xlu0
      %v8748 = vpop.trf.xlu0
      %v8749 = vpop.trf.xlu0
      %v8750 = vpop.trf.xlu0
      %v8751 = vpop.trf.xlu0
      %v8752 = vpop.trf.xlu0
      %v8753 = vpop.trf.xlu0
      %v8754 = vpop.trf.xlu0
      %v8755 = vlaneseq
      %v8756 = vshrl.u32 %v8755, 7
      %v8757 = vsub.s32 0, %v8756
      %v8758 = vrot.slane %v8739, %v8757
      %8759 = vset.pattern.permute.xlu0 1
      %8760 = vperm.xlu0 %8759, %v8643
      %v8761 = vpop.permute.xlu0 %8760
      %8763 = vset.pattern.permute.xlu0 1
      %8764 = vperm.xlu0 %8763, %v8644
      %v8765 = vpop.permute.xlu0 %8764
      %8767 = vset.pattern.permute.xlu0 1
      %8768 = vperm.xlu0 %8767, %v8645
      %v8769 = vpop.permute.xlu0 %8768
      %8771 = vset.pattern.permute.xlu0 1
      %8772 = vperm.xlu0 %8771, %v8646
      %v8773 = vpop.permute.xlu0 %8772
      %8775 = vset.pattern.permute.xlu0 1
      %8776 = vperm.xlu0 %8775, %v8647
      %v8777 = vpop.permute.xlu0 %8776
      %8779 = vset.pattern.permute.xlu0 1
      %8780 = vperm.xlu0 %8779, %v8648
      %v8781 = vpop.permute.xlu0 %8780
      %8783 = vset.pattern.permute.xlu0 1
      %8784 = vperm.xlu0 %8783, %v8649
      %v8785 = vpop.permute.xlu0 %8784
      %8787 = vset.pattern.permute.xlu0 1
      %8788 = vperm.xlu0 %8787, %v8650
      %v8789 = vpop.permute.xlu0 %8788
      %8791 = vset.pattern.permute.xlu0 1
      %8792 = vperm.xlu0 %8791, %v8651
      %v8793 = vpop.permute.xlu0 %8792
      %8795 = vset.pattern.permute.xlu0 1
      %8796 = vperm.xlu0 %8795, %v8652
      %v8797 = vpop.permute.xlu0 %8796
      %8799 = vset.pattern.permute.xlu0 1
      %8800 = vperm.xlu0 %8799, %v8653
      %v8801 = vpop.permute.xlu0 %8800
      %8803 = vset.pattern.permute.xlu0 1
      %8804 = vperm.xlu0 %8803, %v8654
      %v8805 = vpop.permute.xlu0 %8804
      %8807 = vset.pattern.permute.xlu0 1
      %8808 = vperm.xlu0 %8807, %v8655
      %v8809 = vpop.permute.xlu0 %8808
      %8811 = vset.pattern.permute.xlu0 1
      %8812 = vperm.xlu0 %8811, %v8656
      %v8813 = vpop.permute.xlu0 %8812
      %8815 = vset.pattern.permute.xlu0 1
      %8816 = vperm.xlu0 %8815, %v8657
      %v8817 = vpop.permute.xlu0 %8816
      %8819 = vset.pattern.permute.xlu0 1
      %8820 = vperm.xlu0 %8819, %v8658
      %v8821 = vpop.permute.xlu0 %8820
      %vm8823 = vcmp.gt.f32.partialorder %v8758, %v8761
      %vm8824 = vcmp.gt.f32.partialorder %v8758, %v8765
      %vm8825 = vcmp.gt.f32.partialorder %v8758, %v8769
      %vm8826 = vcmp.gt.f32.partialorder %v8758, %v8773
      %vm8827 = vcmp.gt.f32.partialorder %v8758, %v8777
      %vm8828 = vcmp.gt.f32.partialorder %v8758, %v8781
      %vm8829 = vcmp.gt.f32.partialorder %v8758, %v8785
      %vm8830 = vcmp.gt.f32.partialorder %v8758, %v8789
      %vm8831 = vcmp.gt.f32.partialorder %v8758, %v8793
      %vm8832 = vcmp.gt.f32.partialorder %v8758, %v8797
      %vm8833 = vcmp.gt.f32.partialorder %v8758, %v8801
      %vm8834 = vcmp.gt.f32.partialorder %v8758, %v8805
      %vm8835 = vcmp.gt.f32.partialorder %v8758, %v8809
      %vm8836 = vcmp.gt.f32.partialorder %v8758, %v8813
      %vm8837 = vcmp.gt.f32.partialorder %v8758, %v8817
      %vm8838 = vcmp.gt.f32.partialorder %v8758, %v8821
      %vm8839 = vcmp.eq.f32.partialorder %v8758, %v8761
      %vm8840 = vcmp.eq.f32.partialorder %v8758, %v8765
      %vm8841 = vcmp.eq.f32.partialorder %v8758, %v8769
      %vm8842 = vcmp.eq.f32.partialorder %v8758, %v8773
      %vm8843 = vcmp.eq.f32.partialorder %v8758, %v8777
      %vm8844 = vcmp.eq.f32.partialorder %v8758, %v8781
      %vm8845 = vcmp.eq.f32.partialorder %v8758, %v8785
      %vm8846 = vcmp.eq.f32.partialorder %v8758, %v8789
      %vm8847 = vcmp.eq.f32.partialorder %v8758, %v8793
      %vm8848 = vcmp.eq.f32.partialorder %v8758, %v8797
      %vm8849 = vcmp.eq.f32.partialorder %v8758, %v8801
      %vm8850 = vcmp.eq.f32.partialorder %v8758, %v8805
      %vm8851 = vcmp.eq.f32.partialorder %v8758, %v8809
      %vm8852 = vcmp.eq.f32.partialorder %v8758, %v8813
      %vm8853 = vcmp.eq.f32.partialorder %v8758, %v8817
      %vm8854 = vcmp.eq.f32.partialorder %v8758, %v8821
      %vm8855 = vmand %vm8839, %vm730
      %vm8856 = vmand %vm8840, %vm731
      %vm8857 = vmand %vm8841, %vm732
      %vm8858 = vmand %vm8842, %vm733
      %vm8859 = vmand %vm8843, %vm734
      %vm8860 = vmand %vm8844, %vm735
      %vm8861 = vmand %vm8845, %vm736
      %vm8862 = vmand %vm8846, %vm737
      %vm8863 = vmand %vm8847, %vm738
      %vm8864 = vmand %vm8848, %vm739
      %vm8865 = vmand %vm8849, %vm740
      %vm8866 = vmand %vm8850, %vm741
      %vm8867 = vmand %vm8851, %vm742
      %vm8868 = vmand %vm8852, %vm743
      %vm8869 = vmand %vm8853, %vm744
      %vm8870 = vmand %vm8854, %vm745
      %vm8871 = vmor %vm8823, %vm8855
      %vm8872 = vmor %vm8824, %vm8856
      %vm8873 = vmor %vm8825, %vm8857
      %vm8874 = vmor %vm8826, %vm8858
      %vm8875 = vmor %vm8827, %vm8859
      %vm8876 = vmor %vm8828, %vm8860
      %vm8877 = vmor %vm8829, %vm8861
      %vm8878 = vmor %vm8830, %vm8862
      %vm8879 = vmor %vm8831, %vm8863
      %vm8880 = vmor %vm8832, %vm8864
      %vm8881 = vmor %vm8833, %vm8865
      %vm8882 = vmor %vm8834, %vm8866
      %vm8883 = vmor %vm8835, %vm8867
      %vm8884 = vmor %vm8836, %vm8868
      %vm8885 = vmor %vm8837, %vm8869
      %vm8886 = vmor %vm8838, %vm8870
      %v8887 = vsel %vm8871, 1, 0
      %v8888 = vsel %vm8872, 1, 0
      %v8889 = vsel %vm8873, 1, 0
      %v8890 = vsel %vm8874, 1, 0
      %v8891 = vsel %vm8875, 1, 0
      %v8892 = vsel %vm8876, 1, 0
      %v8893 = vsel %vm8877, 1, 0
      %v8894 = vsel %vm8878, 1, 0
      %v8895 = vsel %vm8879, 1, 0
      %v8896 = vsel %vm8880, 1, 0
      %v8897 = vsel %vm8881, 1, 0
      %v8898 = vsel %vm8882, 1, 0
      %v8899 = vsel %vm8883, 1, 0
      %v8900 = vsel %vm8884, 1, 0
      %v8901 = vsel %vm8885, 1, 0
      %v8902 = vsel %vm8886, 1, 0
      %v8903 = vcvt.s32.f32 %v8887
      %v8904 = vcvt.s32.f32 %v8888
      %v8905 = vcvt.s32.f32 %v8889
      %v8906 = vcvt.s32.f32 %v8890
      %v8907 = vcvt.s32.f32 %v8891
      %v8908 = vcvt.s32.f32 %v8892
      %v8909 = vcvt.s32.f32 %v8893
      %v8910 = vcvt.s32.f32 %v8894
      %v8911 = vcvt.s32.f32 %v8895
      %v8912 = vcvt.s32.f32 %v8896
      %v8913 = vcvt.s32.f32 %v8897
      %v8914 = vcvt.s32.f32 %v8898
      %v8915 = vcvt.s32.f32 %v8899
      %v8916 = vcvt.s32.f32 %v8900
      %v8917 = vcvt.s32.f32 %v8901
      %v8918 = vcvt.s32.f32 %v8902
      %v8919 = vmul.f32 %v691, %v8903
      %v8920 = vmul.f32 %v692, %v8904
      %v8921 = vmul.f32 %v693, %v8905
      %v8922 = vmul.f32 %v694, %v8906
      %v8923 = vmul.f32 %v695, %v8907
      %v8924 = vmul.f32 %v696, %v8908
      %v8925 = vmul.f32 %v697, %v8909
      %v8926 = vmul.f32 %v698, %v8910
      %v8927 = vmul.f32 %v699, %v8911
      %v8928 = vmul.f32 %v700, %v8912
      %v8929 = vmul.f32 %v701, %v8913
      %v8930 = vmul.f32 %v702, %v8914
      %v8931 = vmul.f32 %v703, %v8915
      %v8932 = vmul.f32 %v704, %v8916
      %v8933 = vmul.f32 %v705, %v8917
      %v8934 = vmul.f32 %v706, %v8918
      %8935 = vmatprep.subr.mxu0 0.0
      %8936 = vmatpush1.msra.mxu0 1.0
      %8937 = vmatprep.subr.mxu0 0.0
      %8938 = vmatpush1.msra.mxu0 1.0
      %8939 = vmatprep.subr.mxu0 0.0
      %8940 = vmatpush1.msra.mxu0 1.0
      %8941 = vmatprep.subr.mxu0 0.0
      %8942 = vmatpush1.msra.mxu0 1.0
      %8943 = vmatprep.subr.mxu0 0.0
      %8944 = vmatpush1.msra.mxu0 1.0
      %8945 = vmatprep.subr.mxu0 0.0
      %8946 = vmatpush1.msra.mxu0 1.0
      %8947 = vmatprep.subr.mxu0 0.0
      %8948 = vmatpush1.msra.mxu0 1.0
      %8949 = vmatprep.subr.mxu0 0.0
      %8950 = vmatpush1.msra.mxu0 1.0
      %8951 = vmatprep.subr.mxu0 0.0
      %8952 = vmatpush1.msra.mxu0 1.0
      %8953 = vmatprep.subr.mxu0 0.0
      %8954 = vmatpush1.msra.mxu0 1.0
      %8955 = vmatprep.subr.mxu0 0.0
      %8956 = vmatpush1.msra.mxu0 1.0
      %8957 = vmatprep.subr.mxu0 0.0
      %8958 = vmatpush1.msra.mxu0 1.0
      %8959 = vmatprep.subr.mxu0 0.0
      %8960 = vmatpush1.msra.mxu0 1.0
      %8961 = vmatprep.subr.mxu0 0.0
      %8962 = vmatpush1.msra.mxu0 1.0
      %8963 = vmatprep.subr.mxu0 0.0
      %8964 = vmatpush1.msra.mxu0 1.0
      %8965 = vmatprep.subr.mxu0 0.0
      %8966 = vmatpush1.msra.mxu0 1.0
      %8967 = vmatprep.subr.mxu0 0.0
      %8968 = vmatpush1.msra.mxu0 0.0
      %8969 = vmatprep.subr.mxu0 0.0
      %8970 = vmatpush1.msra.mxu0 0.0
      %8971 = vmatprep.subr.mxu0 0.0
      %8972 = vmatpush1.msra.mxu0 0.0
      %8973 = vmatprep.subr.mxu0 0.0
      %8974 = vmatpush1.msra.mxu0 0.0
      %8975 = vmatprep.subr.mxu0 0.0
      %8976 = vmatpush1.msra.mxu0 0.0
      %8977 = vmatprep.subr.mxu0 0.0
      %8978 = vmatpush1.msra.mxu0 0.0
      %8979 = vmatprep.subr.mxu0 0.0
      %8980 = vmatpush1.msra.mxu0 0.0
      %8981 = vmatprep.subr.mxu0 0.0
      %8982 = vmatpush1.msra.mxu0 0.0
      %8983 = vmatprep.subr.mxu0 0.0
      %8984 = vmatpush1.msra.mxu0 0.0
      %8985 = vmatprep.subr.mxu0 0.0
      %8986 = vmatpush1.msra.mxu0 0.0
      %8987 = vmatprep.subr.mxu0 0.0
      %8988 = vmatpush1.msra.mxu0 0.0
      %8989 = vmatprep.subr.mxu0 0.0
      %8990 = vmatpush1.msra.mxu0 0.0
      %8991 = vmatprep.subr.mxu0 0.0
      %8992 = vmatpush1.msra.mxu0 0.0
      %8993 = vmatprep.subr.mxu0 0.0
      %8994 = vmatpush1.msra.mxu0 0.0
      %8995 = vmatprep.subr.mxu0 0.0
      %8996 = vmatpush1.msra.mxu0 0.0
      %8997 = vmatprep.subr.mxu0 0.0
      %8998 = vmatpush1.msra.mxu0 0.0
      %8999 = vmatprep.mubr.f32.mxu0 0.0
      %9000 = vmatmul.mubr.f32.gmra.mrb[0].mxu0 %v8919
      %v9001 = vpop.f32.mrb[0].mxu0
      %v9002 = vadd.f32 0.0, %v9001
      %v9003 = vpop.f32.mrb[0].mxu0
      %9004 = vmatprep.mubr.f32.mxu0 0.0
      %9005 = vmatmul.mubr.f32.gmra.mrb[0].mxu0 %v8920
      %v9006 = vpop.f32.mrb[0].mxu0
      %v9007 = vadd.f32 0.0, %v9006
      %v9008 = vpop.f32.mrb[0].mxu0
      %9009 = vmatprep.mubr.f32.mxu0 0.0
      %9010 = vmatmul.mubr.f32.gmra.mrb[0].mxu0 %v8921
      %v9011 = vpop.f32.mrb[0].mxu0
      %v9012 = vadd.f32 0.0, %v9011
      %v9013 = vpop.f32.mrb[0].mxu0
      %9014 = vmatprep.mubr.f32.mxu0 0.0
      %9015 = vmatmul.mubr.f32.gmra.mrb[0].mxu0 %v8922
      %v9016 = vpop.f32.mrb[0].mxu0
      %v9017 = vadd.f32 0.0, %v9016
      %v9018 = vpop.f32.mrb[0].mxu0
      %9019 = vmatprep.mubr.f32.mxu0 0.0
      %9020 = vmatmul.mubr.f32.gmra.mrb[0].mxu0 %v8923
      %v9021 = vpop.f32.mrb[0].mxu0
      %v9022 = vadd.f32 0.0, %v9021
      %v9023 = vpop.f32.mrb[0].mxu0
      %9024 = vmatprep.mubr.f32.mxu0 0.0
      %9025 = vmatmul.mubr.f32.gmra.mrb[0].mxu0 %v8924
      %v9026 = vpop.f32.mrb[0].mxu0
      %v9027 = vadd.f32 0.0, %v9026
      %v9028 = vpop.f32.mrb[0].mxu0
      %9029 = vmatprep.mubr.f32.mxu0 0.0
      %9030 = vmatmul.mubr.f32.gmra.mrb[0].mxu0 %v8925
      %v9031 = vpop.f32.mrb[0].mxu0
      %v9032 = vadd.f32 0.0, %v9031
      %v9033 = vpop.f32.mrb[0].mxu0
      %9034 = vmatprep.mubr.f32.mxu0 0.0
      %9035 = vmatmul.mubr.f32.gmra.mrb[0].mxu0 %v8926
      %v9036 = vpop.f32.mrb[0].mxu0
      %v9037 = vadd.f32 0.0, %v9036
      %v9038 = vpop.f32.mrb[0].mxu0
      %9039 = vmatprep.mubr.f32.mxu0 0.0
      %9040 = vmatmul.mubr.f32.gmra.mrb[0].mxu0 %v8927
      %v9041 = vpop.f32.mrb[0].mxu0
      %v9042 = vadd.f32 0.0, %v9041
      %v9043 = vpop.f32.mrb[0].mxu0
      %9044 = vmatprep.mubr.f32.mxu0 0.0
      %9045 = vmatmul.mubr.f32.gmra.mrb[0].mxu0 %v8928
      %v9046 = vpop.f32.mrb[0].mxu0
      %v9047 = vadd.f32 0.0, %v9046
      %v9048 = vpop.f32.mrb[0].mxu0
      %9049 = vmatprep.mubr.f32.mxu0 0.0
      %9050 = vmatmul.mubr.f32.gmra.mrb[0].mxu0 %v8929
      %v9051 = vpop.f32.mrb[0].mxu0
      %v9052 = vadd.f32 0.0, %v9051
      %v9053 = vpop.f32.mrb[0].mxu0
      %9054 = vmatprep.mubr.f32.mxu0 0.0
      %9055 = vmatmul.mubr.f32.gmra.mrb[0].mxu0 %v8930
      %v9056 = vpop.f32.mrb[0].mxu0
      %v9057 = vadd.f32 0.0, %v9056
      %v9058 = vpop.f32.mrb[0].mxu0
      %9059 = vmatprep.mubr.f32.mxu0 0.0
      %9060 = vmatmul.mubr.f32.gmra.mrb[0].mxu0 %v8931
      %v9061 = vpop.f32.mrb[0].mxu0
      %v9062 = vadd.f32 0.0, %v9061
      %v9063 = vpop.f32.mrb[0].mxu0
      %9064 = vmatprep.mubr.f32.mxu0 0.0
      %9065 = vmatmul.mubr.f32.gmra.mrb[0].mxu0 %v8932
      %v9066 = vpop.f32.mrb[0].mxu0
      %v9067 = vadd.f32 0.0, %v9066
      %v9068 = vpop.f32.mrb[0].mxu0
      %9069 = vmatprep.mubr.f32.mxu0 0.0
      %9070 = vmatmul.mubr.f32.gmra.mrb[0].mxu0 %v8933
      %v9071 = vpop.f32.mrb[0].mxu0
      %v9072 = vadd.f32 0.0, %v9071
      %v9073 = vpop.f32.mrb[0].mxu0
      %9074 = vmatprep.mubr.f32.mxu0 0.0
      %9075 = vmatmul.mubr.f32.gmra.mrb[0].mxu0 %v8934
      %v9076 = vpop.f32.mrb[0].mxu0
      %v9077 = vadd.f32 0.0, %v9076
      %v9078 = vpop.f32.mrb[0].mxu0
      %9079 = vdwg.mxu0
      %9080 = vmatprep.subr.mxu0 0.0
      %9081 = vmatpush1.msra.mxu0 %v6133
      %9082 = vmatprep.subr.mxu0 0.0
      %9083 = vmatpush1.msra.mxu0 %v6135
      %9084 = vmatprep.subr.mxu0 0.0
      %9085 = vmatpush1.msra.mxu0 %v6137
      %9086 = vmatprep.subr.mxu0 0.0
      %9087 = vmatpush1.msra.mxu0 %v6139
      %9088 = vmatprep.subr.mxu0 0.0
      %9089 = vmatpush1.msra.mxu0 %v6141
      %9090 = vmatprep.subr.mxu0 0.0
      %9091 = vmatpush1.msra.mxu0 %v6143
      %9092 = vmatprep.subr.mxu0 0.0
      %9093 = vmatpush1.msra.mxu0 %v6145
      %9094 = vmatprep.subr.mxu0 0.0
      %9095 = vmatpush1.msra.mxu0 %v6147
      %9096 = vmatprep.subr.mxu0 0.0
      %9097 = vmatpush1.msra.mxu0 %v6149
      %9098 = vmatprep.subr.mxu0 0.0
      %9099 = vmatpush1.msra.mxu0 %v6151
      %9100 = vmatprep.subr.mxu0 0.0
      %9101 = vmatpush1.msra.mxu0 %v6153
      %9102 = vmatprep.subr.mxu0 0.0
      %9103 = vmatpush1.msra.mxu0 %v6155
      %9104 = vmatprep.subr.mxu0 0.0
      %9105 = vmatpush1.msra.mxu0 %v6157
      %9106 = vmatprep.subr.mxu0 0.0
      %9107 = vmatpush1.msra.mxu0 %v6159
      %9108 = vmatprep.subr.mxu0 0.0
      %9109 = vmatpush1.msra.mxu0 %v6161
      %9110 = vmatprep.subr.mxu0 0.0
      %9111 = vmatpush1.msra.mxu0 %v6163
      %9112 = vmatprep.subr.mxu0 0.0
      %9113 = vmatpush1.msra.mxu0 0.0
      %9114 = vmatprep.subr.mxu0 0.0
      %9115 = vmatpush1.msra.mxu0 0.0
      %9116 = vmatprep.subr.mxu0 0.0
      %9117 = vmatpush1.msra.mxu0 0.0
      %9118 = vmatprep.subr.mxu0 0.0
      %9119 = vmatpush1.msra.mxu0 0.0
      %9120 = vmatprep.subr.mxu0 0.0
      %9121 = vmatpush1.msra.mxu0 0.0
      %9122 = vmatprep.subr.mxu0 0.0
      %9123 = vmatpush1.msra.mxu0 0.0
      %9124 = vmatprep.subr.mxu0 0.0
      %9125 = vmatpush1.msra.mxu0 0.0
      %9126 = vmatprep.subr.mxu0 0.0
      %9127 = vmatpush1.msra.mxu0 0.0
      %9128 = vmatprep.subr.mxu0 0.0
      %9129 = vmatpush1.msra.mxu0 0.0
      %9130 = vmatprep.subr.mxu0 0.0
      %9131 = vmatpush1.msra.mxu0 0.0
      %9132 = vmatprep.subr.mxu0 0.0
      %9133 = vmatpush1.msra.mxu0 0.0
      %9134 = vmatprep.subr.mxu0 0.0
      %9135 = vmatpush1.msra.mxu0 0.0
      %9136 = vmatprep.subr.mxu0 0.0
      %9137 = vmatpush1.msra.mxu0 0.0
      %9138 = vmatprep.subr.mxu0 0.0
      %9139 = vmatpush1.msra.mxu0 0.0
      %9140 = vmatprep.subr.mxu0 0.0
      %9141 = vmatpush1.msra.mxu0 0.0
      %9142 = vmatprep.subr.mxu0 0.0
      %9143 = vmatpush1.msra.mxu0 0.0
      %9144 = vmatprep.mubr.f32.mxu0 0.0
      %9145 = vmatmul.mubr.f32.gmra.mrb[0].mxu0 %v691
      %v9146 = vpop.f32.mrb[0].mxu0
      %v9147 = vadd.f32 0.0, %v9146
      %v9148 = vpop.f32.mrb[0].mxu0
      %9149 = vmatprep.mubr.f32.mxu0 0.0
      %9150 = vmatmul.mubr.f32.gmra.mrb[0].mxu0 %v692
      %v9151 = vpop.f32.mrb[0].mxu0
      %v9152 = vadd.f32 0.0, %v9151
      %v9153 = vpop.f32.mrb[0].mxu0
      %9154 = vmatprep.mubr.f32.mxu0 0.0
      %9155 = vmatmul.mubr.f32.gmra.mrb[0].mxu0 %v693
      %v9156 = vpop.f32.mrb[0].mxu0
      %v9157 = vadd.f32 0.0, %v9156
      %v9158 = vpop.f32.mrb[0].mxu0
      %9159 = vmatprep.mubr.f32.mxu0 0.0
      %9160 = vmatmul.mubr.f32.gmra.mrb[0].mxu0 %v694
      %v9161 = vpop.f32.mrb[0].mxu0
      %v9162 = vadd.f32 0.0, %v9161
      %v9163 = vpop.f32.mrb[0].mxu0
      %9164 = vmatprep.mubr.f32.mxu0 0.0
      %9165 = vmatmul.mubr.f32.gmra.mrb[0].mxu0 %v695
      %v9166 = vpop.f32.mrb[0].mxu0
      %v9167 = vadd.f32 0.0, %v9166
      %v9168 = vpop.f32.mrb[0].mxu0
      %9169 = vmatprep.mubr.f32.mxu0 0.0
      %9170 = vmatmul.mubr.f32.gmra.mrb[0].mxu0 %v696
      %v9171 = vpop.f32.mrb[0].mxu0
      %v9172 = vadd.f32 0.0, %v9171
      %v9173 = vpop.f32.mrb[0].mxu0
      %9174 = vmatprep.mubr.f32.mxu0 0.0
      %9175 = vmatmul.mubr.f32.gmra.mrb[0].mxu0 %v697
      %v9176 = vpop.f32.mrb[0].mxu0
      %v9177 = vadd.f32 0.0, %v9176
      %v9178 = vpop.f32.mrb[0].mxu0
      %9179 = vmatprep.mubr.f32.mxu0 0.0
      %9180 = vmatmul.mubr.f32.gmra.mrb[0].mxu0 %v698
      %v9181 = vpop.f32.mrb[0].mxu0
      %v9182 = vadd.f32 0.0, %v9181
      %v9183 = vpop.f32.mrb[0].mxu0
      %9184 = vmatprep.mubr.f32.mxu0 0.0
      %9185 = vmatmul.mubr.f32.gmra.mrb[0].mxu0 %v699
      %v9186 = vpop.f32.mrb[0].mxu0
      %v9187 = vadd.f32 0.0, %v9186
      %v9188 = vpop.f32.mrb[0].mxu0
      %9189 = vmatprep.mubr.f32.mxu0 0.0
      %9190 = vmatmul.mubr.f32.gmra.mrb[0].mxu0 %v700
      %v9191 = vpop.f32.mrb[0].mxu0
      %v9192 = vadd.f32 0.0, %v9191
      %v9193 = vpop.f32.mrb[0].mxu0
      %9194 = vmatprep.mubr.f32.mxu0 0.0
      %9195 = vmatmul.mubr.f32.gmra.mrb[0].mxu0 %v701
      %v9196 = vpop.f32.mrb[0].mxu0
      %v9197 = vadd.f32 0.0, %v9196
      %v9198 = vpop.f32.mrb[0].mxu0
      %9199 = vmatprep.mubr.f32.mxu0 0.0
      %9200 = vmatmul.mubr.f32.gmra.mrb[0].mxu0 %v702
      %v9201 = vpop.f32.mrb[0].mxu0
      %v9202 = vadd.f32 0.0, %v9201
      %v9203 = vpop.f32.mrb[0].mxu0
      %9204 = vmatprep.mubr.f32.mxu0 0.0
      %9205 = vmatmul.mubr.f32.gmra.mrb[0].mxu0 %v703
      %v9206 = vpop.f32.mrb[0].mxu0
      %v9207 = vadd.f32 0.0, %v9206
      %v9208 = vpop.f32.mrb[0].mxu0
      %9209 = vmatprep.mubr.f32.mxu0 0.0
      %9210 = vmatmul.mubr.f32.gmra.mrb[0].mxu0 %v704
      %v9211 = vpop.f32.mrb[0].mxu0
      %v9212 = vadd.f32 0.0, %v9211
      %v9213 = vpop.f32.mrb[0].mxu0
      %9214 = vmatprep.mubr.f32.mxu0 0.0
      %9215 = vmatmul.mubr.f32.gmra.mrb[0].mxu0 %v705
      %v9216 = vpop.f32.mrb[0].mxu0
      %v9217 = vadd.f32 0.0, %v9216
      %v9218 = vpop.f32.mrb[0].mxu0
      %9219 = vmatprep.mubr.f32.mxu0 0.0
      %9220 = vmatmul.mubr.f32.gmra.mrb[0].mxu0 %v706
      %v9221 = vpop.f32.mrb[0].mxu0
      %v9222 = vadd.f32 0.0, %v9221
      %v9223 = vpop.f32.mrb[0].mxu0
      %9224 = vdwg.mxu0
      %v9225 = vmul.f32 %v9147, 0.5
      %v9226 = vmul.f32 %v9152, 0.5
      %v9227 = vmul.f32 %v9157, 0.5
      %v9228 = vmul.f32 %v9162, 0.5
      %v9229 = vmul.f32 %v9167, 0.5
      %v9230 = vmul.f32 %v9172, 0.5
      %v9231 = vmul.f32 %v9177, 0.5
      %v9232 = vmul.f32 %v9182, 0.5
      %v9233 = vmul.f32 %v9187, 0.5
      %v9234 = vmul.f32 %v9192, 0.5
      %v9235 = vmul.f32 %v9197, 0.5
      %v9236 = vmul.f32 %v9202, 0.5
      %v9237 = vmul.f32 %v9207, 0.5
      %v9238 = vmul.f32 %v9212, 0.5
      %v9239 = vmul.f32 %v9217, 0.5
      %v9240 = vmul.f32 %v9222, 0.5
      %v9241 = vceil.f32 %v9225
      %v9242 = vceil.f32 %v9226
      %v9243 = vceil.f32 %v9227
      %v9244 = vceil.f32 %v9228
      %v9245 = vceil.f32 %v9229
      %v9246 = vceil.f32 %v9230
      %v9247 = vceil.f32 %v9231
      %v9248 = vceil.f32 %v9232
      %v9249 = vceil.f32 %v9233
      %v9250 = vceil.f32 %v9234
      %v9251 = vceil.f32 %v9235
      %v9252 = vceil.f32 %v9236
      %v9253 = vceil.f32 %v9237
      %v9254 = vceil.f32 %v9238
      %v9255 = vceil.f32 %v9239
      %v9256 = vceil.f32 %v9240
      %vm9257 = vcmp.lt.f32.partialorder %v9002, %v9241
      %vm9258 = vcmp.lt.f32.partialorder %v9007, %v9242
      %vm9259 = vcmp.lt.f32.partialorder %v9012, %v9243
      %vm9260 = vcmp.lt.f32.partialorder %v9017, %v9244
      %vm9261 = vcmp.lt.f32.partialorder %v9022, %v9245
      %vm9262 = vcmp.lt.f32.partialorder %v9027, %v9246
      %vm9263 = vcmp.lt.f32.partialorder %v9032, %v9247
      %vm9264 = vcmp.lt.f32.partialorder %v9037, %v9248
      %vm9265 = vcmp.lt.f32.partialorder %v9042, %v9249
      %vm9266 = vcmp.lt.f32.partialorder %v9047, %v9250
      %vm9267 = vcmp.lt.f32.partialorder %v9052, %v9251
      %vm9268 = vcmp.lt.f32.partialorder %v9057, %v9252
      %vm9269 = vcmp.lt.f32.partialorder %v9062, %v9253
      %vm9270 = vcmp.lt.f32.partialorder %v9067, %v9254
      %vm9271 = vcmp.lt.f32.partialorder %v9072, %v9255
      %vm9272 = vcmp.lt.f32.partialorder %v9077, %v9256
      %v9273 = vsel %vm9257, 1, 0
      %v9274 = vsel %vm9258, 1, 0
      %v9275 = vsel %vm9259, 1, 0
      %v9276 = vsel %vm9260, 1, 0
      %v9277 = vsel %vm9261, 1, 0
      %v9278 = vsel %vm9262, 1, 0
      %v9279 = vsel %vm9263, 1, 0
      %v9280 = vsel %vm9264, 1, 0
      %v9281 = vsel %vm9265, 1, 0
      %v9282 = vsel %vm9266, 1, 0
      %v9283 = vsel %vm9267, 1, 0
      %v9284 = vsel %vm9268, 1, 0
      %v9285 = vsel %vm9269, 1, 0
      %v9286 = vsel %vm9270, 1, 0
      %v9287 = vsel %vm9271, 1, 0
      %v9288 = vsel %vm9272, 1, 0
      %v9289 = vcvt.s32.f32 %v9273
      %v9290 = vcvt.s32.f32 %v9274
      %v9291 = vcvt.s32.f32 %v9275
      %v9292 = vcvt.s32.f32 %v9276
      %v9293 = vcvt.s32.f32 %v9277
      %v9294 = vcvt.s32.f32 %v9278
      %v9295 = vcvt.s32.f32 %v9279
      %v9296 = vcvt.s32.f32 %v9280
      %v9297 = vcvt.s32.f32 %v9281
      %v9298 = vcvt.s32.f32 %v9282
      %v9299 = vcvt.s32.f32 %v9283
      %v9300 = vcvt.s32.f32 %v9284
      %v9301 = vcvt.s32.f32 %v9285
      %v9302 = vcvt.s32.f32 %v9286
      %v9303 = vcvt.s32.f32 %v9287
      %v9304 = vcvt.s32.f32 %v9288
      %9321 = vrot.lane.b32.xlu0 %v9289, 1
      %v9322 = vpop.permute.xlu0 %9321
      %9323 = vrot.lane.b32.xlu0 %v9290, 1
      %v9324 = vpop.permute.xlu0 %9323
      %9325 = vrot.lane.b32.xlu0 %v9291, 1
      %v9326 = vpop.permute.xlu0 %9325
      %9327 = vrot.lane.b32.xlu0 %v9292, 1
      %v9328 = vpop.permute.xlu0 %9327
      %9329 = vrot.lane.b32.xlu0 %v9293, 1
      %v9330 = vpop.permute.xlu0 %9329
      %9331 = vrot.lane.b32.xlu0 %v9294, 1
      %v9332 = vpop.permute.xlu0 %9331
      %9333 = vrot.lane.b32.xlu0 %v9295, 1
      %v9334 = vpop.permute.xlu0 %9333
      %9335 = vrot.lane.b32.xlu0 %v9296, 1
      %v9336 = vpop.permute.xlu0 %9335
      %9337 = vrot.lane.b32.xlu0 %v9297, 1
      %v9338 = vpop.permute.xlu0 %9337
      %9339 = vrot.lane.b32.xlu0 %v9298, 1
      %v9340 = vpop.permute.xlu0 %9339
      %9341 = vrot.lane.b32.xlu0 %v9299, 1
      %v9342 = vpop.permute.xlu0 %9341
      %9343 = vrot.lane.b32.xlu0 %v9300, 1
      %v9344 = vpop.permute.xlu0 %9343
      %9345 = vrot.lane.b32.xlu0 %v9301, 1
      %v9346 = vpop.permute.xlu0 %9345
      %9347 = vrot.lane.b32.xlu0 %v9302, 1
      %v9348 = vpop.permute.xlu0 %9347
      %9349 = vrot.lane.b32.xlu0 %v9303, 1
      %v9350 = vpop.permute.xlu0 %9349
      %9351 = vrot.lane.b32.xlu0 %v9304, 1
      %v9352 = vpop.permute.xlu0 %9351
      %v9369 = vmul.f32 %v6100, %v9322
      %v9370 = vmul.f32 %v6101, %v9324
      %v9371 = vmul.f32 %v6102, %v9326
      %v9372 = vmul.f32 %v6103, %v9328
      %v9373 = vmul.f32 %v6104, %v9330
      %v9374 = vmul.f32 %v6105, %v9332
      %v9375 = vmul.f32 %v6106, %v9334
      %v9376 = vmul.f32 %v6107, %v9336
      %v9377 = vmul.f32 %v6108, %v9338
      %v9378 = vmul.f32 %v6109, %v9340
      %v9379 = vmul.f32 %v6110, %v9342
      %v9380 = vmul.f32 %v6111, %v9344
      %v9381 = vmul.f32 %v6112, %v9346
      %v9382 = vmul.f32 %v6113, %v9348
      %v9383 = vmul.f32 %v6114, %v9350
      %v9384 = vmul.f32 %v6115, %v9352
      %9401 = vrot.lane.b32.xlu0 %v9369, 127
      %v9402 = vpop.permute.xlu0 %9401
      %9403 = vrot.lane.b32.xlu0 %v9370, 127
      %v9404 = vpop.permute.xlu0 %9403
      %9405 = vrot.lane.b32.xlu0 %v9371, 127
      %v9406 = vpop.permute.xlu0 %9405
      %9407 = vrot.lane.b32.xlu0 %v9372, 127
      %v9408 = vpop.permute.xlu0 %9407
      %9409 = vrot.lane.b32.xlu0 %v9373, 127
      %v9410 = vpop.permute.xlu0 %9409
      %9411 = vrot.lane.b32.xlu0 %v9374, 127
      %v9412 = vpop.permute.xlu0 %9411
      %9413 = vrot.lane.b32.xlu0 %v9375, 127
      %v9414 = vpop.permute.xlu0 %9413
      %9415 = vrot.lane.b32.xlu0 %v9376, 127
      %v9416 = vpop.permute.xlu0 %9415
      %9417 = vrot.lane.b32.xlu0 %v9377, 127
      %v9418 = vpop.permute.xlu0 %9417
      %9419 = vrot.lane.b32.xlu0 %v9378, 127
      %v9420 = vpop.permute.xlu0 %9419
      %9421 = vrot.lane.b32.xlu0 %v9379, 127
      %v9422 = vpop.permute.xlu0 %9421
      %9423 = vrot.lane.b32.xlu0 %v9380, 127
      %v9424 = vpop.permute.xlu0 %9423
      %9425 = vrot.lane.b32.xlu0 %v9381, 127
      %v9426 = vpop.permute.xlu0 %9425
      %9427 = vrot.lane.b32.xlu0 %v9382, 127
      %v9428 = vpop.permute.xlu0 %9427
      %9429 = vrot.lane.b32.xlu0 %v9383, 127
      %v9430 = vpop.permute.xlu0 %9429
      %9431 = vrot.lane.b32.xlu0 %v9384, 127
      %v9432 = vpop.permute.xlu0 %9431
      %v9449 = vmul.f32 %v8547, %v9402
      %v9450 = vmul.f32 %v8548, %v9404
      %v9451 = vmul.f32 %v8549, %v9406
      %v9452 = vmul.f32 %v8550, %v9408
      %v9453 = vmul.f32 %v8551, %v9410
      %v9454 = vmul.f32 %v8552, %v9412
      %v9455 = vmul.f32 %v8553, %v9414
      %v9456 = vmul.f32 %v8554, %v9416
      %v9457 = vmul.f32 %v8555, %v9418
      %v9458 = vmul.f32 %v8556, %v9420
      %v9459 = vmul.f32 %v8557, %v9422
      %v9460 = vmul.f32 %v8558, %v9424
      %v9461 = vmul.f32 %v8559, %v9426
      %v9462 = vmul.f32 %v8560, %v9428
      %v9463 = vmul.f32 %v8561, %v9430
      %v9464 = vmul.f32 %v8562, %v9432
      %9466 = vset.pattern.permute.xlu0 0
      %9467 = vperm.xlu0 %9466, %v9449
      %v9468 = vpop.permute.xlu0 %9467
      %9471 = vset.pattern.permute.xlu0 0
      %9472 = vperm.xlu0 %9471, %v9450
      %v9473 = vpop.permute.xlu0 %9472
      %9476 = vset.pattern.permute.xlu0 0
      %9477 = vperm.xlu0 %9476, %v9451
      %v9478 = vpop.permute.xlu0 %9477
      %9481 = vset.pattern.permute.xlu0 0
      %9482 = vperm.xlu0 %9481, %v9452
      %v9483 = vpop.permute.xlu0 %9482
      %9486 = vset.pattern.permute.xlu0 0
      %9487 = vperm.xlu0 %9486, %v9453
      %v9488 = vpop.permute.xlu0 %9487
      %9491 = vset.pattern.permute.xlu0 0
      %9492 = vperm.xlu0 %9491, %v9454
      %v9493 = vpop.permute.xlu0 %9492
      %9496 = vset.pattern.permute.xlu0 0
      %9497 = vperm.xlu0 %9496, %v9455
      %v9498 = vpop.permute.xlu0 %9497
      %9501 = vset.pattern.permute.xlu0 0
      %9502 = vperm.xlu0 %9501, %v9456
      %v9503 = vpop.permute.xlu0 %9502
      %9506 = vset.pattern.permute.xlu0 0
      %9507 = vperm.xlu0 %9506, %v9457
      %v9508 = vpop.permute.xlu0 %9507
      %9511 = vset.pattern.permute.xlu0 0
      %9512 = vperm.xlu0 %9511, %v9458
      %v9513 = vpop.permute.xlu0 %9512
      %9516 = vset.pattern.permute.xlu0 0
      %9517 = vperm.xlu0 %9516, %v9459
      %v9518 = vpop.permute.xlu0 %9517
      %9521 = vset.pattern.permute.xlu0 0
      %9522 = vperm.xlu0 %9521, %v9460
      %v9523 = vpop.permute.xlu0 %9522
      %9526 = vset.pattern.permute.xlu0 0
      %9527 = vperm.xlu0 %9526, %v9461
      %v9528 = vpop.permute.xlu0 %9527
      %9531 = vset.pattern.permute.xlu0 0
      %9532 = vperm.xlu0 %9531, %v9462
      %v9533 = vpop.permute.xlu0 %9532
      %9536 = vset.pattern.permute.xlu0 0
      %9537 = vperm.xlu0 %9536, %v9463
      %v9538 = vpop.permute.xlu0 %9537
      %9541 = vset.pattern.permute.xlu0 0
      %9542 = vperm.xlu0 %9541, %v9464
      %v9543 = vpop.permute.xlu0 %9542
      %v9545 = vmul.f32 %v7964, %v9468
      %v9546 = vmul.f32 %v7965, %v9473
      %v9547 = vmul.f32 %v7966, %v9478
      %v9548 = vmul.f32 %v7967, %v9483
      %v9549 = vmul.f32 %v7968, %v9488
      %v9550 = vmul.f32 %v7969, %v9493
      %v9551 = vmul.f32 %v7970, %v9498
      %v9552 = vmul.f32 %v7971, %v9503
      %v9553 = vmul.f32 %v7972, %v9508
      %v9554 = vmul.f32 %v7973, %v9513
      %v9555 = vmul.f32 %v7974, %v9518
      %v9556 = vmul.f32 %v7975, %v9523
      %v9557 = vmul.f32 %v7976, %v9528
      %v9558 = vmul.f32 %v7977, %v9533
      %v9559 = vmul.f32 %v7978, %v9538
      %v9560 = vmul.f32 %v7979, %v9543
      %9561 = vmatprep.subr.mxu0 0.0
      %9562 = vmatpush1.msra.mxu0 %v9545
      %9563 = vmatprep.subr.mxu0 0.0
      %9564 = vmatpush1.msra.mxu0 %v9546
      %9565 = vmatprep.subr.mxu0 0.0
      %9566 = vmatpush1.msra.mxu0 %v9547
      %9567 = vmatprep.subr.mxu0 0.0
      %9568 = vmatpush1.msra.mxu0 %v9548
      %9569 = vmatprep.subr.mxu0 0.0
      %9570 = vmatpush1.msra.mxu0 %v9549
      %9571 = vmatprep.subr.mxu0 0.0
      %9572 = vmatpush1.msra.mxu0 %v9550
      %9573 = vmatprep.subr.mxu0 0.0
      %9574 = vmatpush1.msra.mxu0 %v9551
      %9575 = vmatprep.subr.mxu0 0.0
      %9576 = vmatpush1.msra.mxu0 %v9552
      %9577 = vmatprep.subr.mxu0 0.0
      %9578 = vmatpush1.msra.mxu0 %v9553
      %9579 = vmatprep.subr.mxu0 0.0
      %9580 = vmatpush1.msra.mxu0 %v9554
      %9581 = vmatprep.subr.mxu0 0.0
      %9582 = vmatpush1.msra.mxu0 %v9555
      %9583 = vmatprep.subr.mxu0 0.0
      %9584 = vmatpush1.msra.mxu0 %v9556
      %9585 = vmatprep.subr.mxu0 0.0
      %9586 = vmatpush1.msra.mxu0 %v9557
      %9587 = vmatprep.subr.mxu0 0.0
      %9588 = vmatpush1.msra.mxu0 %v9558
      %9589 = vmatprep.subr.mxu0 0.0
      %9590 = vmatpush1.msra.mxu0 %v9559
      %9591 = vmatprep.subr.mxu0 0.0
      %9592 = vmatpush1.msra.mxu0 %v9560
      %9593 = vmatprep.subr.mxu0 0.0
      %9594 = vmatpush1.msra.mxu0 0.0
      %9595 = vmatprep.subr.mxu0 0.0
      %9596 = vmatpush1.msra.mxu0 0.0
      %9597 = vmatprep.subr.mxu0 0.0
      %9598 = vmatpush1.msra.mxu0 0.0
      %9599 = vmatprep.subr.mxu0 0.0
      %9600 = vmatpush1.msra.mxu0 0.0
      %9601 = vmatprep.subr.mxu0 0.0
      %9602 = vmatpush1.msra.mxu0 0.0
      %9603 = vmatprep.subr.mxu0 0.0
      %9604 = vmatpush1.msra.mxu0 0.0
      %9605 = vmatprep.subr.mxu0 0.0
      %9606 = vmatpush1.msra.mxu0 0.0
      %9607 = vmatprep.subr.mxu0 0.0
      %9608 = vmatpush1.msra.mxu0 0.0
      %9609 = vmatprep.subr.mxu0 0.0
      %9610 = vmatpush1.msra.mxu0 0.0
      %9611 = vmatprep.subr.mxu0 0.0
      %9612 = vmatpush1.msra.mxu0 0.0
      %9613 = vmatprep.subr.mxu0 0.0
      %9614 = vmatpush1.msra.mxu0 0.0
      %9615 = vmatprep.subr.mxu0 0.0
      %9616 = vmatpush1.msra.mxu0 0.0
      %9617 = vmatprep.subr.mxu0 0.0
      %9618 = vmatpush1.msra.mxu0 0.0
      %9619 = vmatprep.subr.mxu0 0.0
      %9620 = vmatpush1.msra.mxu0 0.0
      %9621 = vmatprep.subr.mxu0 0.0
      %9622 = vmatpush1.msra.mxu0 0.0
      %9623 = vmatprep.subr.mxu0 0.0
      %9624 = vmatpush1.msra.mxu0 0.0
      %9625 = vmatprep.mubr.f32.mxu0 0.0
      %9626 = vmatmul.mubr.f32.gmra.mrb[0].mxu0 %v712
      %v9627 = vpop.f32.mrb[0].mxu0
      %v9628 = vadd.f32 0.0, %v9627
      %v9629 = vpop.f32.mrb[0].mxu0
      %9630 = vdwg.mxu0
      %v9631 = vadd.f32 %v6429, %v9628
      %9632 = vmatprep.subr.mxu0 0.0
      %9633 = vmatpush1.msra.mxu0 %v9402
      %9634 = vmatprep.subr.mxu0 0.0
      %9635 = vmatpush1.msra.mxu0 %v9404
      %9636 = vmatprep.subr.mxu0 0.0
      %9637 = vmatpush1.msra.mxu0 %v9406
      %9638 = vmatprep.subr.mxu0 0.0
      %9639 = vmatpush1.msra.mxu0 %v9408
      %9640 = vmatprep.subr.mxu0 0.0
      %9641 = vmatpush1.msra.mxu0 %v9410
      %9642 = vmatprep.subr.mxu0 0.0
      %9643 = vmatpush1.msra.mxu0 %v9412
      %9644 = vmatprep.subr.mxu0 0.0
      %9645 = vmatpush1.msra.mxu0 %v9414
      %9646 = vmatprep.subr.mxu0 0.0
      %9647 = vmatpush1.msra.mxu0 %v9416
      %9648 = vmatprep.subr.mxu0 0.0
      %9649 = vmatpush1.msra.mxu0 %v9418
      %9650 = vmatprep.subr.mxu0 0.0
      %9651 = vmatpush1.msra.mxu0 %v9420
      %9652 = vmatprep.subr.mxu0 0.0
      %9653 = vmatpush1.msra.mxu0 %v9422
      %9654 = vmatprep.subr.mxu0 0.0
      %9655 = vmatpush1.msra.mxu0 %v9424
      %9656 = vmatprep.subr.mxu0 0.0
      %9657 = vmatpush1.msra.mxu0 %v9426
      %9658 = vmatprep.subr.mxu0 0.0
      %9659 = vmatpush1.msra.mxu0 %v9428
      %9660 = vmatprep.subr.mxu0 0.0
      %9661 = vmatpush1.msra.mxu0 %v9430
      %9662 = vmatprep.subr.mxu0 0.0
      %9663 = vmatpush1.msra.mxu0 %v9432
      %9664 = vmatprep.subr.mxu0 0.0
      %9665 = vmatpush1.msra.mxu0 0.0
      %9666 = vmatprep.subr.mxu0 0.0
      %9667 = vmatpush1.msra.mxu0 0.0
      %9668 = vmatprep.subr.mxu0 0.0
      %9669 = vmatpush1.msra.mxu0 0.0
      %9670 = vmatprep.subr.mxu0 0.0
      %9671 = vmatpush1.msra.mxu0 0.0
      %9672 = vmatprep.subr.mxu0 0.0
      %9673 = vmatpush1.msra.mxu0 0.0
      %9674 = vmatprep.subr.mxu0 0.0
      %9675 = vmatpush1.msra.mxu0 0.0
      %9676 = vmatprep.subr.mxu0 0.0
      %9677 = vmatpush1.msra.mxu0 0.0
      %9678 = vmatprep.subr.mxu0 0.0
      %9679 = vmatpush1.msra.mxu0 0.0
      %9680 = vmatprep.subr.mxu0 0.0
      %9681 = vmatpush1.msra.mxu0 0.0
      %9682 = vmatprep.subr.mxu0 0.0
      %9683 = vmatpush1.msra.mxu0 0.0
      %9684 = vmatprep.subr.mxu0 0.0
      %9685 = vmatpush1.msra.mxu0 0.0
      %9686 = vmatprep.subr.mxu0 0.0
      %9687 = vmatpush1.msra.mxu0 0.0
      %9688 = vmatprep.subr.mxu0 0.0
      %9689 = vmatpush1.msra.mxu0 0.0
      %9690 = vmatprep.subr.mxu0 0.0
      %9691 = vmatpush1.msra.mxu0 0.0
      %9692 = vmatprep.subr.mxu0 0.0
      %9693 = vmatpush1.msra.mxu0 0.0
      %9694 = vmatprep.subr.mxu0 0.0
      %9695 = vmatpush1.msra.mxu0 0.0
      %9696 = vmatprep.mubr.f32.mxu0 0.0
      %9697 = vmatmul.mubr.f32.gmra.mrb[0].mxu0 %v712
      %v9698 = vpop.f32.mrb[0].mxu0
      %v9699 = vadd.f32 0.0, %v9698
      %v9700 = vpop.f32.mrb[0].mxu0
      %9701 = vdwg.mxu0
      %v9702 = vsel %vm3168, %v9402, 0.0
      %v9703 = vsel %vm3169, %v9404, 0.0
      %v9704 = vsel %vm3170, %v9406, 0.0
      %v9705 = vsel %vm3171, %v9408, 0.0
      %v9706 = vsel %vm3172, %v9410, 0.0
      %v9707 = vsel %vm3173, %v9412, 0.0
      %v9708 = vsel %vm3174, %v9414, 0.0
      %v9709 = vsel %vm3175, %v9416, 0.0
      %v9710 = vsel %vm3176, %v9418, 0.0
      %v9711 = vsel %vm3177, %v9420, 0.0
      %v9712 = vsel %vm3178, %v9422, 0.0
      %v9713 = vsel %vm3179, %v9424, 0.0
      %v9714 = vsel %vm3180, %v9426, 0.0
      %v9715 = vsel %vm3181, %v9428, 0.0
      %v9716 = vsel %vm3182, %v9430, 0.0
      %v9717 = vsel %vm3183, %v9432, 0.0
      %vm9718 = vcmp.gt.f32.partialorder %v9702, 0.5
      %vm9719 = vcmp.gt.f32.partialorder %v9703, 0.5
      %vm9720 = vcmp.gt.f32.partialorder %v9704, 0.5
      %vm9721 = vcmp.gt.f32.partialorder %v9705, 0.5
      %vm9722 = vcmp.gt.f32.partialorder %v9706, 0.5
      %vm9723 = vcmp.gt.f32.partialorder %v9707, 0.5
      %vm9724 = vcmp.gt.f32.partialorder %v9708, 0.5
      %vm9725 = vcmp.gt.f32.partialorder %v9709, 0.5
      %vm9726 = vcmp.gt.f32.partialorder %v9710, 0.5
      %vm9727 = vcmp.gt.f32.partialorder %v9711, 0.5
      %vm9728 = vcmp.gt.f32.partialorder %v9712, 0.5
      %vm9729 = vcmp.gt.f32.partialorder %v9713, 0.5
      %vm9730 = vcmp.gt.f32.partialorder %v9714, 0.5
      %vm9731 = vcmp.gt.f32.partialorder %v9715, 0.5
      %vm9732 = vcmp.gt.f32.partialorder %v9716, 0.5
      %vm9733 = vcmp.gt.f32.partialorder %v9717, 0.5
      %v9734 = vsel %vm9718, 1, 0
      %v9735 = vsel %vm9719, 1, 0
      %v9736 = vsel %vm9720, 1, 0
      %v9737 = vsel %vm9721, 1, 0
      %v9738 = vsel %vm9722, 1, 0
      %v9739 = vsel %vm9723, 1, 0
      %v9740 = vsel %vm9724, 1, 0
      %v9741 = vsel %vm9725, 1, 0
      %v9742 = vsel %vm9726, 1, 0
      %v9743 = vsel %vm9727, 1, 0
      %v9744 = vsel %vm9728, 1, 0
      %v9745 = vsel %vm9729, 1, 0
      %v9746 = vsel %vm9730, 1, 0
      %v9747 = vsel %vm9731, 1, 0
      %v9748 = vsel %vm9732, 1, 0
      %v9749 = vsel %vm9733, 1, 0
      %9750 = vset.pattern.permute.xlu0 0
      %9751 = vperm.xlu0 %9750, %v9734
      %v9752 = vpop.permute.xlu0 %9751
      %9753 = vset.pattern.permute.xlu0 0
      %9754 = vperm.xlu0 %9753, %v9735
      %v9755 = vpop.permute.xlu0 %9754
      %9756 = vset.pattern.permute.xlu0 0
      %9757 = vperm.xlu0 %9756, %v9736
      %v9758 = vpop.permute.xlu0 %9757
      %9759 = vset.pattern.permute.xlu0 0
      %9760 = vperm.xlu0 %9759, %v9737
      %v9761 = vpop.permute.xlu0 %9760
      %9762 = vset.pattern.permute.xlu0 0
      %9763 = vperm.xlu0 %9762, %v9738
      %v9764 = vpop.permute.xlu0 %9763
      %9765 = vset.pattern.permute.xlu0 0
      %9766 = vperm.xlu0 %9765, %v9739
      %v9767 = vpop.permute.xlu0 %9766
      %9768 = vset.pattern.permute.xlu0 0
      %9769 = vperm.xlu0 %9768, %v9740
      %v9770 = vpop.permute.xlu0 %9769
      %9771 = vset.pattern.permute.xlu0 0
      %9772 = vperm.xlu0 %9771, %v9741
      %v9773 = vpop.permute.xlu0 %9772
      %9774 = vset.pattern.permute.xlu0 0
      %9775 = vperm.xlu0 %9774, %v9742
      %v9776 = vpop.permute.xlu0 %9775
      %9777 = vset.pattern.permute.xlu0 0
      %9778 = vperm.xlu0 %9777, %v9743
      %v9779 = vpop.permute.xlu0 %9778
      %9780 = vset.pattern.permute.xlu0 0
      %9781 = vperm.xlu0 %9780, %v9744
      %v9782 = vpop.permute.xlu0 %9781
      %9783 = vset.pattern.permute.xlu0 0
      %9784 = vperm.xlu0 %9783, %v9745
      %v9785 = vpop.permute.xlu0 %9784
      %9786 = vset.pattern.permute.xlu0 0
      %9787 = vperm.xlu0 %9786, %v9746
      %v9788 = vpop.permute.xlu0 %9787
      %9789 = vset.pattern.permute.xlu0 0
      %9790 = vperm.xlu0 %9789, %v9747
      %v9791 = vpop.permute.xlu0 %9790
      %9792 = vset.pattern.permute.xlu0 0
      %9793 = vperm.xlu0 %9792, %v9748
      %v9794 = vpop.permute.xlu0 %9793
      %9795 = vset.pattern.permute.xlu0 0
      %9796 = vperm.xlu0 %9795, %v9749
      %v9797 = vpop.permute.xlu0 %9796
      %vm9798 = vcmp.eq.s32.totalorder %v9752, 1
      %vm9799 = vcmp.eq.s32.totalorder %v9755, 1
      %vm9800 = vcmp.eq.s32.totalorder %v9758, 1
      %vm9801 = vcmp.eq.s32.totalorder %v9761, 1
      %vm9802 = vcmp.eq.s32.totalorder %v9764, 1
      %vm9803 = vcmp.eq.s32.totalorder %v9767, 1
      %vm9804 = vcmp.eq.s32.totalorder %v9770, 1
      %vm9805 = vcmp.eq.s32.totalorder %v9773, 1
      %vm9806 = vcmp.eq.s32.totalorder %v9776, 1
      %vm9807 = vcmp.eq.s32.totalorder %v9779, 1
      %vm9808 = vcmp.eq.s32.totalorder %v9782, 1
      %vm9809 = vcmp.eq.s32.totalorder %v9785, 1
      %vm9810 = vcmp.eq.s32.totalorder %v9788, 1
      %vm9811 = vcmp.eq.s32.totalorder %v9791, 1
      %vm9812 = vcmp.eq.s32.totalorder %v9794, 1
      %vm9813 = vcmp.eq.s32.totalorder %v9797, 1
      %v9814 = vsel %vm9798, %v9545, -1e+30
      %v9815 = vsel %vm9799, %v9546, -1e+30
      %v9816 = vsel %vm9800, %v9547, -1e+30
      %v9817 = vsel %vm9801, %v9548, -1e+30
      %v9818 = vsel %vm9802, %v9549, -1e+30
      %v9819 = vsel %vm9803, %v9550, -1e+30
      %v9820 = vsel %vm9804, %v9551, -1e+30
      %v9821 = vsel %vm9805, %v9552, -1e+30
      %v9822 = vsel %vm9806, %v9553, -1e+30
      %v9823 = vsel %vm9807, %v9554, -1e+30
      %v9824 = vsel %vm9808, %v9555, -1e+30
      %v9825 = vsel %vm9809, %v9556, -1e+30
      %v9826 = vsel %vm9810, %v9557, -1e+30
      %v9827 = vsel %vm9811, %v9558, -1e+30
      %v9828 = vsel %vm9812, %v9559, -1e+30
      %v9829 = vsel %vm9813, %v9560, -1e+30
      %v9830 = vsel %vm757, %v9814, -inf
      %v9831 = vsel %vm757, %v9815, -inf
      %v9832 = vsel %vm757, %v9816, -inf
      %v9833 = vsel %vm757, %v9817, -inf
      %v9834 = vsel %vm757, %v9818, -inf
      %v9835 = vmax.f32 %v9830, %v9834
      %v9836 = vsel %vm757, %v9819, -inf
      %v9837 = vmax.f32 %v9831, %v9836
      %v9838 = vsel %vm757, %v9820, -inf
      %v9839 = vmax.f32 %v9832, %v9838
      %v9840 = vsel %vm757, %v9821, -inf
      %v9841 = vmax.f32 %v9833, %v9840
      %v9842 = vsel %vm757, %v9822, -inf
      %v9843 = vmax.f32 %v9835, %v9842
      %v9844 = vsel %vm757, %v9823, -inf
      %v9845 = vmax.f32 %v9837, %v9844
      %v9846 = vsel %vm757, %v9824, -inf
      %v9847 = vmax.f32 %v9839, %v9846
      %v9848 = vsel %vm757, %v9825, -inf
      %v9849 = vmax.f32 %v9841, %v9848
      %v9850 = vsel %vm757, %v9826, -inf
      %v9851 = vmax.f32 %v9843, %v9850
      %v9852 = vsel %vm757, %v9827, -inf
      %v9853 = vmax.f32 %v9845, %v9852
      %v9854 = vsel %vm757, %v9828, -inf
      %v9855 = vmax.f32 %v9847, %v9854
      %v9856 = vsel %vm757, %v9829, -inf
      %v9857 = vmax.f32 %v9849, %v9856
      %v9858 = vmax.f32 %v9851, %v9853
      %v9859 = vmax.f32 %v9855, %v9857
      %v9860 = vmax.f32 %v9858, %v9859
      %v9861 = vrot.slane %v9860, 4
      %v9862 = vmax.f32 %v9860, %v9861
      %v9863 = vrot.slane %v9862, 2
      %v9864 = vmax.f32 %v9862, %v9863
      %v9865 = vrot.slane %v9864, 1
      %v9866 = vmax.f32 %v9864, %v9865
      %vm9867 = vcmp.gt.f32.partialorder %v9699, 0.5
      %v9868 = vsel %vm9867, 1, 0
      %9869 = vset.pattern.permute.xlu0 0
      %9870 = vperm.xlu0 %9869, %v9868
      %v9871 = vpop.permute.xlu0 %9870
      %vm9872 = vcmp.eq.s32.totalorder %v9871, 1
      %v9873 = vsel %vm9872, %v9866, 0.0
      %v9874 = vld [vmem:[#allocation2] sm:$0x1]
      %v9875 = vadd.f32 %v9874, %v9873
      %9876 = vst.msk [vmem:[#allocation2] sm:$0x1] %vm3358, %v9875
      %v9877 = vsel %vm3360, %v9402, 0.0
      %v9878 = vsel %vm3361, %v9404, 0.0
      %v9879 = vsel %vm3362, %v9406, 0.0
      %v9880 = vsel %vm3363, %v9408, 0.0
      %v9881 = vsel %vm3364, %v9410, 0.0
      %v9882 = vsel %vm3365, %v9412, 0.0
      %v9883 = vsel %vm3366, %v9414, 0.0
      %v9884 = vsel %vm3367, %v9416, 0.0
      %v9885 = vsel %vm3368, %v9418, 0.0
      %v9886 = vsel %vm3369, %v9420, 0.0
      %v9887 = vsel %vm3370, %v9422, 0.0
      %v9888 = vsel %vm3371, %v9424, 0.0
      %v9889 = vsel %vm3372, %v9426, 0.0
      %v9890 = vsel %vm3373, %v9428, 0.0
      %v9891 = vsel %vm3374, %v9430, 0.0
      %v9892 = vsel %vm3375, %v9432, 0.0
      %vm9893 = vcmp.gt.f32.partialorder %v9877, 0.5
      %vm9894 = vcmp.gt.f32.partialorder %v9878, 0.5
      %vm9895 = vcmp.gt.f32.partialorder %v9879, 0.5
      %vm9896 = vcmp.gt.f32.partialorder %v9880, 0.5
      %vm9897 = vcmp.gt.f32.partialorder %v9881, 0.5
      %vm9898 = vcmp.gt.f32.partialorder %v9882, 0.5
      %vm9899 = vcmp.gt.f32.partialorder %v9883, 0.5
      %vm9900 = vcmp.gt.f32.partialorder %v9884, 0.5
      %vm9901 = vcmp.gt.f32.partialorder %v9885, 0.5
      %vm9902 = vcmp.gt.f32.partialorder %v9886, 0.5
      %vm9903 = vcmp.gt.f32.partialorder %v9887, 0.5
      %vm9904 = vcmp.gt.f32.partialorder %v9888, 0.5
      %vm9905 = vcmp.gt.f32.partialorder %v9889, 0.5
      %vm9906 = vcmp.gt.f32.partialorder %v9890, 0.5
      %vm9907 = vcmp.gt.f32.partialorder %v9891, 0.5
      %vm9908 = vcmp.gt.f32.partialorder %v9892, 0.5
      %v9909 = vsel %vm9893, 1, 0
      %v9910 = vsel %vm9894, 1, 0
      %v9911 = vsel %vm9895, 1, 0
      %v9912 = vsel %vm9896, 1, 0
      %v9913 = vsel %vm9897, 1, 0
      %v9914 = vsel %vm9898, 1, 0
      %v9915 = vsel %vm9899, 1, 0
      %v9916 = vsel %vm9900, 1, 0
      %v9917 = vsel %vm9901, 1, 0
      %v9918 = vsel %vm9902, 1, 0
      %v9919 = vsel %vm9903, 1, 0
      %v9920 = vsel %vm9904, 1, 0
      %v9921 = vsel %vm9905, 1, 0
      %v9922 = vsel %vm9906, 1, 0
      %v9923 = vsel %vm9907, 1, 0
      %v9924 = vsel %vm9908, 1, 0
      %9925 = vset.pattern.permute.xlu0 0
      %9926 = vperm.xlu0 %9925, %v9909
      %v9927 = vpop.permute.xlu0 %9926
      %9928 = vset.pattern.permute.xlu0 0
      %9929 = vperm.xlu0 %9928, %v9910
      %v9930 = vpop.permute.xlu0 %9929
      %9931 = vset.pattern.permute.xlu0 0
      %9932 = vperm.xlu0 %9931, %v9911
      %v9933 = vpop.permute.xlu0 %9932
      %9934 = vset.pattern.permute.xlu0 0
      %9935 = vperm.xlu0 %9934, %v9912
      %v9936 = vpop.permute.xlu0 %9935
      %9937 = vset.pattern.permute.xlu0 0
      %9938 = vperm.xlu0 %9937, %v9913
      %v9939 = vpop.permute.xlu0 %9938
      %9940 = vset.pattern.permute.xlu0 0
      %9941 = vperm.xlu0 %9940, %v9914
      %v9942 = vpop.permute.xlu0 %9941
      %9943 = vset.pattern.permute.xlu0 0
      %9944 = vperm.xlu0 %9943, %v9915
      %v9945 = vpop.permute.xlu0 %9944
      %9946 = vset.pattern.permute.xlu0 0
      %9947 = vperm.xlu0 %9946, %v9916
      %v9948 = vpop.permute.xlu0 %9947
      %9949 = vset.pattern.permute.xlu0 0
      %9950 = vperm.xlu0 %9949, %v9917
      %v9951 = vpop.permute.xlu0 %9950
      %9952 = vset.pattern.permute.xlu0 0
      %9953 = vperm.xlu0 %9952, %v9918
      %v9954 = vpop.permute.xlu0 %9953
      %9955 = vset.pattern.permute.xlu0 0
      %9956 = vperm.xlu0 %9955, %v9919
      %v9957 = vpop.permute.xlu0 %9956
      %9958 = vset.pattern.permute.xlu0 0
      %9959 = vperm.xlu0 %9958, %v9920
      %v9960 = vpop.permute.xlu0 %9959
      %9961 = vset.pattern.permute.xlu0 0
      %9962 = vperm.xlu0 %9961, %v9921
      %v9963 = vpop.permute.xlu0 %9962
      %9964 = vset.pattern.permute.xlu0 0
      %9965 = vperm.xlu0 %9964, %v9922
      %v9966 = vpop.permute.xlu0 %9965
      %9967 = vset.pattern.permute.xlu0 0
      %9968 = vperm.xlu0 %9967, %v9923
      %v9969 = vpop.permute.xlu0 %9968
      %9970 = vset.pattern.permute.xlu0 0
      %9971 = vperm.xlu0 %9970, %v9924
      %v9972 = vpop.permute.xlu0 %9971
      %vm9973 = vcmp.eq.s32.totalorder %v9927, 1
      %vm9974 = vcmp.eq.s32.totalorder %v9930, 1
      %vm9975 = vcmp.eq.s32.totalorder %v9933, 1
      %vm9976 = vcmp.eq.s32.totalorder %v9936, 1
      %vm9977 = vcmp.eq.s32.totalorder %v9939, 1
      %vm9978 = vcmp.eq.s32.totalorder %v9942, 1
      %vm9979 = vcmp.eq.s32.totalorder %v9945, 1
      %vm9980 = vcmp.eq.s32.totalorder %v9948, 1
      %vm9981 = vcmp.eq.s32.totalorder %v9951, 1
      %vm9982 = vcmp.eq.s32.totalorder %v9954, 1
      %vm9983 = vcmp.eq.s32.totalorder %v9957, 1
      %vm9984 = vcmp.eq.s32.totalorder %v9960, 1
      %vm9985 = vcmp.eq.s32.totalorder %v9963, 1
      %vm9986 = vcmp.eq.s32.totalorder %v9966, 1
      %vm9987 = vcmp.eq.s32.totalorder %v9969, 1
      %vm9988 = vcmp.eq.s32.totalorder %v9972, 1
      %v9989 = vsel %vm9973, %v9545, -1e+30
      %v9990 = vsel %vm9974, %v9546, -1e+30
      %v9991 = vsel %vm9975, %v9547, -1e+30
      %v9992 = vsel %vm9976, %v9548, -1e+30
      %v9993 = vsel %vm9977, %v9549, -1e+30
      %v9994 = vsel %vm9978, %v9550, -1e+30
      %v9995 = vsel %vm9979, %v9551, -1e+30
      %v9996 = vsel %vm9980, %v9552, -1e+30
      %v9997 = vsel %vm9981, %v9553, -1e+30
      %v9998 = vsel %vm9982, %v9554, -1e+30
      %v9999 = vsel %vm9983, %v9555, -1e+30
      %v10000 = vsel %vm9984, %v9556, -1e+30
      %v10001 = vsel %vm9985, %v9557, -1e+30
      %v10002 = vsel %vm9986, %v9558, -1e+30
      %v10003 = vsel %vm9987, %v9559, -1e+30
      %v10004 = vsel %vm9988, %v9560, -1e+30
      %v10005 = vsel %vm757, %v9989, -inf
      %v10006 = vsel %vm757, %v9990, -inf
      %v10007 = vsel %vm757, %v9991, -inf
      %v10008 = vsel %vm757, %v9992, -inf
      %v10009 = vsel %vm757, %v9993, -inf
      %v10010 = vmax.f32 %v10005, %v10009
      %v10011 = vsel %vm757, %v9994, -inf
      %v10012 = vmax.f32 %v10006, %v10011
      %v10013 = vsel %vm757, %v9995, -inf
      %v10014 = vmax.f32 %v10007, %v10013
      %v10015 = vsel %vm757, %v9996, -inf
      %v10016 = vmax.f32 %v10008, %v10015
      %v10017 = vsel %vm757, %v9997, -inf
      %v10018 = vmax.f32 %v10010, %v10017
      %v10019 = vsel %vm757, %v9998, -inf
      %v10020 = vmax.f32 %v10012, %v10019
      %v10021 = vsel %vm757, %v9999, -inf
      %v10022 = vmax.f32 %v10014, %v10021
      %v10023 = vsel %vm757, %v10000, -inf
      %v10024 = vmax.f32 %v10016, %v10023
      %v10025 = vsel %vm757, %v10001, -inf
      %v10026 = vmax.f32 %v10018, %v10025
      %v10027 = vsel %vm757, %v10002, -inf
      %v10028 = vmax.f32 %v10020, %v10027
      %v10029 = vsel %vm757, %v10003, -inf
      %v10030 = vmax.f32 %v10022, %v10029
      %v10031 = vsel %vm757, %v10004, -inf
      %v10032 = vmax.f32 %v10024, %v10031
      %v10033 = vmax.f32 %v10026, %v10028
      %v10034 = vmax.f32 %v10030, %v10032
      %v10035 = vmax.f32 %v10033, %v10034
      %v10036 = vrot.slane %v10035, 4
      %v10037 = vmax.f32 %v10035, %v10036
      %v10038 = vrot.slane %v10037, 2
      %v10039 = vmax.f32 %v10037, %v10038
      %v10040 = vrot.slane %v10039, 1
      %v10041 = vmax.f32 %v10039, %v10040
      %v10042 = vsel %vm9872, %v10041, 0.0
      %v10043 = vld [vmem:[#allocation2 + $0x1] sm:$0x1]
      %v10045 = vrot.slane %v10042, 1
      %v10047 = vadd.f32 %v10043, %v10045
      %10048 = vst.msk [vmem:[#allocation2 + $0x1] sm:$0x1] %vm3358, %v10047
      %v10049 = vsel %vm3548, %v9402, 0.0
      %v10050 = vsel %vm3549, %v9404, 0.0
      %v10051 = vsel %vm3550, %v9406, 0.0
      %v10052 = vsel %vm3551, %v9408, 0.0
      %v10053 = vsel %vm3552, %v9410, 0.0
      %v10054 = vsel %vm3553, %v9412, 0.0
      %v10055 = vsel %vm3554, %v9414, 0.0
      %v10056 = vsel %vm3555, %v9416, 0.0
      %v10057 = vsel %vm3556, %v9418, 0.0
      %v10058 = vsel %vm3557, %v9420, 0.0
      %v10059 = vsel %vm3558, %v9422, 0.0
      %v10060 = vsel %vm3559, %v9424, 0.0
      %v10061 = vsel %vm3560, %v9426, 0.0
      %v10062 = vsel %vm3561, %v9428, 0.0
      %v10063 = vsel %vm3562, %v9430, 0.0
      %v10064 = vsel %vm3563, %v9432, 0.0
      %vm10065 = vcmp.gt.f32.partialorder %v10049, 0.5
      %vm10066 = vcmp.gt.f32.partialorder %v10050, 0.5
      %vm10067 = vcmp.gt.f32.partialorder %v10051, 0.5
      %vm10068 = vcmp.gt.f32.partialorder %v10052, 0.5
      %vm10069 = vcmp.gt.f32.partialorder %v10053, 0.5
      %vm10070 = vcmp.gt.f32.partialorder %v10054, 0.5
      %vm10071 = vcmp.gt.f32.partialorder %v10055, 0.5
      %vm10072 = vcmp.gt.f32.partialorder %v10056, 0.5
      %vm10073 = vcmp.gt.f32.partialorder %v10057, 0.5
      %vm10074 = vcmp.gt.f32.partialorder %v10058, 0.5
      %vm10075 = vcmp.gt.f32.partialorder %v10059, 0.5
      %vm10076 = vcmp.gt.f32.partialorder %v10060, 0.5
      %vm10077 = vcmp.gt.f32.partialorder %v10061, 0.5
      %vm10078 = vcmp.gt.f32.partialorder %v10062, 0.5
      %vm10079 = vcmp.gt.f32.partialorder %v10063, 0.5
      %vm10080 = vcmp.gt.f32.partialorder %v10064, 0.5
      %v10081 = vsel %vm10065, 1, 0
      %v10082 = vsel %vm10066, 1, 0
      %v10083 = vsel %vm10067, 1, 0
      %v10084 = vsel %vm10068, 1, 0
      %v10085 = vsel %vm10069, 1, 0
      %v10086 = vsel %vm10070, 1, 0
      %v10087 = vsel %vm10071, 1, 0
      %v10088 = vsel %vm10072, 1, 0
      %v10089 = vsel %vm10073, 1, 0
      %v10090 = vsel %vm10074, 1, 0
      %v10091 = vsel %vm10075, 1, 0
      %v10092 = vsel %vm10076, 1, 0
      %v10093 = vsel %vm10077, 1, 0
      %v10094 = vsel %vm10078, 1, 0
      %v10095 = vsel %vm10079, 1, 0
      %v10096 = vsel %vm10080, 1, 0
      %10097 = vset.pattern.permute.xlu0 0
      %10098 = vperm.xlu0 %10097, %v10081
      %v10099 = vpop.permute.xlu0 %10098
      %10100 = vset.pattern.permute.xlu0 0
      %10101 = vperm.xlu0 %10100, %v10082
      %v10102 = vpop.permute.xlu0 %10101
      %10103 = vset.pattern.permute.xlu0 0
      %10104 = vperm.xlu0 %10103, %v10083
      %v10105 = vpop.permute.xlu0 %10104
      %10106 = vset.pattern.permute.xlu0 0
      %10107 = vperm.xlu0 %10106, %v10084
      %v10108 = vpop.permute.xlu0 %10107
      %10109 = vset.pattern.permute.xlu0 0
      %10110 = vperm.xlu0 %10109, %v10085
      %v10111 = vpop.permute.xlu0 %10110
      %10112 = vset.pattern.permute.xlu0 0
      %10113 = vperm.xlu0 %10112, %v10086
      %v10114 = vpop.permute.xlu0 %10113
      %10115 = vset.pattern.permute.xlu0 0
      %10116 = vperm.xlu0 %10115, %v10087
      %v10117 = vpop.permute.xlu0 %10116
      %10118 = vset.pattern.permute.xlu0 0
      %10119 = vperm.xlu0 %10118, %v10088
      %v10120 = vpop.permute.xlu0 %10119
      %10121 = vset.pattern.permute.xlu0 0
      %10122 = vperm.xlu0 %10121, %v10089
      %v10123 = vpop.permute.xlu0 %10122
      %10124 = vset.pattern.permute.xlu0 0
      %10125 = vperm.xlu0 %10124, %v10090
      %v10126 = vpop.permute.xlu0 %10125
      %10127 = vset.pattern.permute.xlu0 0
      %10128 = vperm.xlu0 %10127, %v10091
      %v10129 = vpop.permute.xlu0 %10128
      %10130 = vset.pattern.permute.xlu0 0
      %10131 = vperm.xlu0 %10130, %v10092
      %v10132 = vpop.permute.xlu0 %10131
      %10133 = vset.pattern.permute.xlu0 0
      %10134 = vperm.xlu0 %10133, %v10093
      %v10135 = vpop.permute.xlu0 %10134
      %10136 = vset.pattern.permute.xlu0 0
      %10137 = vperm.xlu0 %10136, %v10094
      %v10138 = vpop.permute.xlu0 %10137
      %10139 = vset.pattern.permute.xlu0 0
      %10140 = vperm.xlu0 %10139, %v10095
      %v10141 = vpop.permute.xlu0 %10140
      %10142 = vset.pattern.permute.xlu0 0
      %10143 = vperm.xlu0 %10142, %v10096
      %v10144 = vpop.permute.xlu0 %10143
      %vm10145 = vcmp.eq.s32.totalorder %v10099, 1
      %vm10146 = vcmp.eq.s32.totalorder %v10102, 1
      %vm10147 = vcmp.eq.s32.totalorder %v10105, 1
      %vm10148 = vcmp.eq.s32.totalorder %v10108, 1
      %vm10149 = vcmp.eq.s32.totalorder %v10111, 1
      %vm10150 = vcmp.eq.s32.totalorder %v10114, 1
      %vm10151 = vcmp.eq.s32.totalorder %v10117, 1
      %vm10152 = vcmp.eq.s32.totalorder %v10120, 1
      %vm10153 = vcmp.eq.s32.totalorder %v10123, 1
      %vm10154 = vcmp.eq.s32.totalorder %v10126, 1
      %vm10155 = vcmp.eq.s32.totalorder %v10129, 1
      %vm10156 = vcmp.eq.s32.totalorder %v10132, 1
      %vm10157 = vcmp.eq.s32.totalorder %v10135, 1
      %vm10158 = vcmp.eq.s32.totalorder %v10138, 1
      %vm10159 = vcmp.eq.s32.totalorder %v10141, 1
      %vm10160 = vcmp.eq.s32.totalorder %v10144, 1
      %v10161 = vsel %vm10145, %v9545, -1e+30
      %v10162 = vsel %vm10146, %v9546, -1e+30
      %v10163 = vsel %vm10147, %v9547, -1e+30
      %v10164 = vsel %vm10148, %v9548, -1e+30
      %v10165 = vsel %vm10149, %v9549, -1e+30
      %v10166 = vsel %vm10150, %v9550, -1e+30
      %v10167 = vsel %vm10151, %v9551, -1e+30
      %v10168 = vsel %vm10152, %v9552, -1e+30
      %v10169 = vsel %vm10153, %v9553, -1e+30
      %v10170 = vsel %vm10154, %v9554, -1e+30
      %v10171 = vsel %vm10155, %v9555, -1e+30
      %v10172 = vsel %vm10156, %v9556, -1e+30
      %v10173 = vsel %vm10157, %v9557, -1e+30
      %v10174 = vsel %vm10158, %v9558, -1e+30
      %v10175 = vsel %vm10159, %v9559, -1e+30
      %v10176 = vsel %vm10160, %v9560, -1e+30
      %v10177 = vsel %vm757, %v10161, -inf
      %v10178 = vsel %vm757, %v10162, -inf
      %v10179 = vsel %vm757, %v10163, -inf
      %v10180 = vsel %vm757, %v10164, -inf
      %v10181 = vsel %vm757, %v10165, -inf
      %v10182 = vmax.f32 %v10177, %v10181
      %v10183 = vsel %vm757, %v10166, -inf
      %v10184 = vmax.f32 %v10178, %v10183
      %v10185 = vsel %vm757, %v10167, -inf
      %v10186 = vmax.f32 %v10179, %v10185
      %v10187 = vsel %vm757, %v10168, -inf
      %v10188 = vmax.f32 %v10180, %v10187
      %v10189 = vsel %vm757, %v10169, -inf
      %v10190 = vmax.f32 %v10182, %v10189
      %v10191 = vsel %vm757, %v10170, -inf
      %v10192 = vmax.f32 %v10184, %v10191
      %v10193 = vsel %vm757, %v10171, -inf
      %v10194 = vmax.f32 %v10186, %v10193
      %v10195 = vsel %vm757, %v10172, -inf
      %v10196 = vmax.f32 %v10188, %v10195
      %v10197 = vsel %vm757, %v10173, -inf
      %v10198 = vmax.f32 %v10190, %v10197
      %v10199 = vsel %vm757, %v10174, -inf
      %v10200 = vmax.f32 %v10192, %v10199
      %v10201 = vsel %vm757, %v10175, -inf
      %v10202 = vmax.f32 %v10194, %v10201
      %v10203 = vsel %vm757, %v10176, -inf
      %v10204 = vmax.f32 %v10196, %v10203
      %v10205 = vmax.f32 %v10198, %v10200
      %v10206 = vmax.f32 %v10202, %v10204
      %v10207 = vmax.f32 %v10205, %v10206
      %v10208 = vrot.slane %v10207, 4
      %v10209 = vmax.f32 %v10207, %v10208
      %v10210 = vrot.slane %v10209, 2
      %v10211 = vmax.f32 %v10209, %v10210
      %v10212 = vrot.slane %v10211, 1
      %v10213 = vmax.f32 %v10211, %v10212
      %v10214 = vsel %vm9872, %v10213, 0.0
      %v10215 = vld [vmem:[#allocation2 + $0x2] sm:$0x1]
      %v10217 = vrot.slane %v10214, 2
      %v10219 = vadd.f32 %v10215, %v10217
      %10220 = vst.msk [vmem:[#allocation2 + $0x2] sm:$0x1] %vm3358, %v10219
      %v10221 = vsel %vm3736, %v9402, 0.0
      %v10222 = vsel %vm3737, %v9404, 0.0
      %v10223 = vsel %vm3738, %v9406, 0.0
      %v10224 = vsel %vm3739, %v9408, 0.0
      %v10225 = vsel %vm3740, %v9410, 0.0
      %v10226 = vsel %vm3741, %v9412, 0.0
      %v10227 = vsel %vm3742, %v9414, 0.0
      %v10228 = vsel %vm3743, %v9416, 0.0
      %v10229 = vsel %vm3744, %v9418, 0.0
      %v10230 = vsel %vm3745, %v9420, 0.0
      %v10231 = vsel %vm3746, %v9422, 0.0
      %v10232 = vsel %vm3747, %v9424, 0.0
      %v10233 = vsel %vm3748, %v9426, 0.0
      %v10234 = vsel %vm3749, %v9428, 0.0
      %v10235 = vsel %vm3750, %v9430, 0.0
      %v10236 = vsel %vm3751, %v9432, 0.0
      %vm10237 = vcmp.gt.f32.partialorder %v10221, 0.5
      %vm10238 = vcmp.gt.f32.partialorder %v10222, 0.5
      %vm10239 = vcmp.gt.f32.partialorder %v10223, 0.5
      %vm10240 = vcmp.gt.f32.partialorder %v10224, 0.5
      %vm10241 = vcmp.gt.f32.partialorder %v10225, 0.5
      %vm10242 = vcmp.gt.f32.partialorder %v10226, 0.5
      %vm10243 = vcmp.gt.f32.partialorder %v10227, 0.5
      %vm10244 = vcmp.gt.f32.partialorder %v10228, 0.5
      %vm10245 = vcmp.gt.f32.partialorder %v10229, 0.5
      %vm10246 = vcmp.gt.f32.partialorder %v10230, 0.5
      %vm10247 = vcmp.gt.f32.partialorder %v10231, 0.5
      %vm10248 = vcmp.gt.f32.partialorder %v10232, 0.5
      %vm10249 = vcmp.gt.f32.partialorder %v10233, 0.5
      %vm10250 = vcmp.gt.f32.partialorder %v10234, 0.5
      %vm10251 = vcmp.gt.f32.partialorder %v10235, 0.5
      %vm10252 = vcmp.gt.f32.partialorder %v10236, 0.5
      %v10253 = vsel %vm10237, 1, 0
      %v10254 = vsel %vm10238, 1, 0
      %v10255 = vsel %vm10239, 1, 0
      %v10256 = vsel %vm10240, 1, 0
      %v10257 = vsel %vm10241, 1, 0
      %v10258 = vsel %vm10242, 1, 0
      %v10259 = vsel %vm10243, 1, 0
      %v10260 = vsel %vm10244, 1, 0
      %v10261 = vsel %vm10245, 1, 0
      %v10262 = vsel %vm10246, 1, 0
      %v10263 = vsel %vm10247, 1, 0
      %v10264 = vsel %vm10248, 1, 0
      %v10265 = vsel %vm10249, 1, 0
      %v10266 = vsel %vm10250, 1, 0
      %v10267 = vsel %vm10251, 1, 0
      %v10268 = vsel %vm10252, 1, 0
      %10269 = vset.pattern.permute.xlu0 0
      %10270 = vperm.xlu0 %10269, %v10253
      %v10271 = vpop.permute.xlu0 %10270
      %10272 = vset.pattern.permute.xlu0 0
      %10273 = vperm.xlu0 %10272, %v10254
      %v10274 = vpop.permute.xlu0 %10273
      %10275 = vset.pattern.permute.xlu0 0
      %10276 = vperm.xlu0 %10275, %v10255
      %v10277 = vpop.permute.xlu0 %10276
      %10278 = vset.pattern.permute.xlu0 0
      %10279 = vperm.xlu0 %10278, %v10256
      %v10280 = vpop.permute.xlu0 %10279
      %10281 = vset.pattern.permute.xlu0 0
      %10282 = vperm.xlu0 %10281, %v10257
      %v10283 = vpop.permute.xlu0 %10282
      %10284 = vset.pattern.permute.xlu0 0
      %10285 = vperm.xlu0 %10284, %v10258
      %v10286 = vpop.permute.xlu0 %10285
      %10287 = vset.pattern.permute.xlu0 0
      %10288 = vperm.xlu0 %10287, %v10259
      %v10289 = vpop.permute.xlu0 %10288
      %10290 = vset.pattern.permute.xlu0 0
      %10291 = vperm.xlu0 %10290, %v10260
      %v10292 = vpop.permute.xlu0 %10291
      %10293 = vset.pattern.permute.xlu0 0
      %10294 = vperm.xlu0 %10293, %v10261
      %v10295 = vpop.permute.xlu0 %10294
      %10296 = vset.pattern.permute.xlu0 0
      %10297 = vperm.xlu0 %10296, %v10262
      %v10298 = vpop.permute.xlu0 %10297
      %10299 = vset.pattern.permute.xlu0 0
      %10300 = vperm.xlu0 %10299, %v10263
      %v10301 = vpop.permute.xlu0 %10300
      %10302 = vset.pattern.permute.xlu0 0
      %10303 = vperm.xlu0 %10302, %v10264
      %v10304 = vpop.permute.xlu0 %10303
      %10305 = vset.pattern.permute.xlu0 0
      %10306 = vperm.xlu0 %10305, %v10265
      %v10307 = vpop.permute.xlu0 %10306
      %10308 = vset.pattern.permute.xlu0 0
      %10309 = vperm.xlu0 %10308, %v10266
      %v10310 = vpop.permute.xlu0 %10309
      %10311 = vset.pattern.permute.xlu0 0
      %10312 = vperm.xlu0 %10311, %v10267
      %v10313 = vpop.permute.xlu0 %10312
      %10314 = vset.pattern.permute.xlu0 0
      %10315 = vperm.xlu0 %10314, %v10268
      %v10316 = vpop.permute.xlu0 %10315
      %vm10317 = vcmp.eq.s32.totalorder %v10271, 1
      %vm10318 = vcmp.eq.s32.totalorder %v10274, 1
      %vm10319 = vcmp.eq.s32.totalorder %v10277, 1
      %vm10320 = vcmp.eq.s32.totalorder %v10280, 1
      %vm10321 = vcmp.eq.s32.totalorder %v10283, 1
      %vm10322 = vcmp.eq.s32.totalorder %v10286, 1
      %vm10323 = vcmp.eq.s32.totalorder %v10289, 1
      %vm10324 = vcmp.eq.s32.totalorder %v10292, 1
      %vm10325 = vcmp.eq.s32.totalorder %v10295, 1
      %vm10326 = vcmp.eq.s32.totalorder %v10298, 1
      %vm10327 = vcmp.eq.s32.totalorder %v10301, 1
      %vm10328 = vcmp.eq.s32.totalorder %v10304, 1
      %vm10329 = vcmp.eq.s32.totalorder %v10307, 1
      %vm10330 = vcmp.eq.s32.totalorder %v10310, 1
      %vm10331 = vcmp.eq.s32.totalorder %v10313, 1
      %vm10332 = vcmp.eq.s32.totalorder %v10316, 1
      %v10333 = vsel %vm10317, %v9545, -1e+30
      %v10334 = vsel %vm10318, %v9546, -1e+30
      %v10335 = vsel %vm10319, %v9547, -1e+30
      %v10336 = vsel %vm10320, %v9548, -1e+30
      %v10337 = vsel %vm10321, %v9549, -1e+30
      %v10338 = vsel %vm10322, %v9550, -1e+30
      %v10339 = vsel %vm10323, %v9551, -1e+30
      %v10340 = vsel %vm10324, %v9552, -1e+30
      %v10341 = vsel %vm10325, %v9553, -1e+30
      %v10342 = vsel %vm10326, %v9554, -1e+30
      %v10343 = vsel %vm10327, %v9555, -1e+30
      %v10344 = vsel %vm10328, %v9556, -1e+30
      %v10345 = vsel %vm10329, %v9557, -1e+30
      %v10346 = vsel %vm10330, %v9558, -1e+30
      %v10347 = vsel %vm10331, %v9559, -1e+30
      %v10348 = vsel %vm10332, %v9560, -1e+30
      %v10349 = vsel %vm757, %v10333, -inf
      %v10350 = vsel %vm757, %v10334, -inf
      %v10351 = vsel %vm757, %v10335, -inf
      %v10352 = vsel %vm757, %v10336, -inf
      %v10353 = vsel %vm757, %v10337, -inf
      %v10354 = vmax.f32 %v10349, %v10353
      %v10355 = vsel %vm757, %v10338, -inf
      %v10356 = vmax.f32 %v10350, %v10355
      %v10357 = vsel %vm757, %v10339, -inf
      %v10358 = vmax.f32 %v10351, %v10357
      %v10359 = vsel %vm757, %v10340, -inf
      %v10360 = vmax.f32 %v10352, %v10359
      %v10361 = vsel %vm757, %v10341, -inf
      %v10362 = vmax.f32 %v10354, %v10361
      %v10363 = vsel %vm757, %v10342, -inf
      %v10364 = vmax.f32 %v10356, %v10363
      %v10365 = vsel %vm757, %v10343, -inf
      %v10366 = vmax.f32 %v10358, %v10365
      %v10367 = vsel %vm757, %v10344, -inf
      %v10368 = vmax.f32 %v10360, %v10367
      %v10369 = vsel %vm757, %v10345, -inf
      %v10370 = vmax.f32 %v10362, %v10369
      %v10371 = vsel %vm757, %v10346, -inf
      %v10372 = vmax.f32 %v10364, %v10371
      %v10373 = vsel %vm757, %v10347, -inf
      %v10374 = vmax.f32 %v10366, %v10373
      %v10375 = vsel %vm757, %v10348, -inf
      %v10376 = vmax.f32 %v10368, %v10375
      %v10377 = vmax.f32 %v10370, %v10372
      %v10378 = vmax.f32 %v10374, %v10376
      %v10379 = vmax.f32 %v10377, %v10378
      %v10380 = vrot.slane %v10379, 4
      %v10381 = vmax.f32 %v10379, %v10380
      %v10382 = vrot.slane %v10381, 2
      %v10383 = vmax.f32 %v10381, %v10382
      %v10384 = vrot.slane %v10383, 1
      %v10385 = vmax.f32 %v10383, %v10384
      %v10386 = vsel %vm9872, %v10385, 0.0
      %v10387 = vld [vmem:[#allocation2 + $0x3] sm:$0x1]
      %v10389 = vrot.slane %v10386, 3
      %v10391 = vadd.f32 %v10387, %v10389
      %10392 = vst.msk [vmem:[#allocation2 + $0x3] sm:$0x1] %vm3358, %v10391
      %v10393 = vld [vmem:[#allocation2] sm:$0xf]
      %v10394 = vld [vmem:[%s410] sm:$0xf]
      %v10395 = vld [vmem:[%s9] sm:$0x1]
      %v10396 = vld [vmem:[%s9 + $0x1] sm:$0x1]
      %v10397 = vld [vmem:[%s9 + $0x2] sm:$0x1]
      %v10398 = vld [vmem:[%s9 + $0x3] sm:$0x1]
      %v10399 = vld [vmem:[%s7] sm:$0xff]
      %v10400 = vld [vmem:[%s7 + $0x8] sm:$0xff]
      %v10401 = vld [vmem:[%s7 + $0x10] sm:$0xff]
      %v10402 = vld [vmem:[%s7 + $0x18] sm:$0xff]
      %v10403 = vld [vmem:[%s7 + $0x20] sm:$0xff]
      %v10404 = vld [vmem:[%s7 + $0x28] sm:$0xff]
      %v10405 = vld [vmem:[%s7 + $0x30] sm:$0xff]
      %v10406 = vld [vmem:[%s7 + $0x38] sm:$0xff]
      %v10408 = vsel %vm757, %v9631, 0
      %10410 = vmatprep.subr.mxu0 0.0
      %10411 = vmatpush1.msra.mxu0 %v10403
      %10412 = vmatprep.subr.mxu0 0.0
      %10413 = vmatpush1.msra.mxu0 %v10404
      %10414 = vmatprep.subr.mxu0 0.0
      %10415 = vmatpush1.msra.mxu0 %v10405
      %10416 = vmatprep.subr.mxu0 0.0
      %10417 = vmatpush1.msra.mxu0 %v10406
      %10418 = vmatprep.subr.mxu0 0.0
      %10419 = vmatpush1.msra.mxu0 0.0
      %10420 = vmatprep.subr.mxu0 0.0
      %10421 = vmatpush1.msra.mxu0 0.0
      %10422 = vmatprep.subr.mxu0 0.0
      %10423 = vmatpush1.msra.mxu0 0.0
      %10424 = vmatprep.subr.mxu0 0.0
      %10425 = vmatpush1.msra.mxu0 0.0
      %10426 = vmatprep.subr.mxu0 0.0
      %10427 = vmatpush1.msra.mxu0 0.0
      %10428 = vmatprep.subr.mxu0 0.0
      %10429 = vmatpush1.msra.mxu0 0.0
      %10430 = vmatprep.subr.mxu0 0.0
      %10431 = vmatpush1.msra.mxu0 0.0
      %10432 = vmatprep.subr.mxu0 0.0
      %10433 = vmatpush1.msra.mxu0 0.0
      %10434 = vmatprep.subr.mxu0 0.0
      %10435 = vmatpush1.msra.mxu0 0.0
      %10436 = vmatprep.subr.mxu0 0.0
      %10437 = vmatpush1.msra.mxu0 0.0
      %10438 = vmatprep.subr.mxu0 0.0
      %10439 = vmatpush1.msra.mxu0 0.0
      %10440 = vmatprep.subr.mxu0 0.0
      %10441 = vmatpush1.msra.mxu0 0.0
      %10442 = vmatprep.subr.mxu0 0.0
      %10443 = vmatpush1.msra.mxu0 0.0
      %10444 = vmatprep.subr.mxu0 0.0
      %10445 = vmatpush1.msra.mxu0 0.0
      %10446 = vmatprep.subr.mxu0 0.0
      %10447 = vmatpush1.msra.mxu0 0.0
      %10448 = vmatprep.subr.mxu0 0.0
      %10449 = vmatpush1.msra.mxu0 0.0
      %10450 = vmatprep.subr.mxu0 0.0
      %10451 = vmatpush1.msra.mxu0 0.0
      %10452 = vmatprep.subr.mxu0 0.0
      %10453 = vmatpush1.msra.mxu0 0.0
      %10454 = vmatprep.subr.mxu0 0.0
      %10455 = vmatpush1.msra.mxu0 0.0
      %10456 = vmatprep.subr.mxu0 0.0
      %10457 = vmatpush1.msra.mxu0 0.0
      %10458 = vmatprep.subr.mxu0 0.0
      %10459 = vmatpush1.msra.mxu0 0.0
      %10460 = vmatprep.subr.mxu0 0.0
      %10461 = vmatpush1.msra.mxu0 0.0
      %10462 = vmatprep.subr.mxu0 0.0
      %10463 = vmatpush1.msra.mxu0 0.0
      %10464 = vmatprep.subr.mxu0 0.0
      %10465 = vmatpush1.msra.mxu0 0.0
      %10466 = vmatprep.subr.mxu0 0.0
      %10467 = vmatpush1.msra.mxu0 0.0
      %10468 = vmatprep.subr.mxu0 0.0
      %10469 = vmatpush1.msra.mxu0 0.0
      %10470 = vmatprep.subr.mxu0 0.0
      %10471 = vmatpush1.msra.mxu0 0.0
      %10472 = vmatprep.subr.mxu0 0.0
      %10473 = vmatpush1.msra.mxu0 0.0
      %10474 = vmatprep.mubr.f32.mxu0 0.0
      %10475 = vmatmul.mubr.f32.gmra.mrb[0].mxu0 %v10408
      %v10476 = vpop.f32.mrb[0].mxu0
      %v10477 = vadd.f32 0.0, %v10476
      %v10478 = vpop.f32.mrb[0].mxu0
      %10479 = vdwg.mxu0
      %v10481 = vsel %vm757, %v10393, 0
      %10483 = vmatprep.subr.mxu0 0.0
      %10484 = vmatpush1.msra.mxu0 %v10399
      %10485 = vmatprep.subr.mxu0 0.0
      %10486 = vmatpush1.msra.mxu0 %v10400
      %10487 = vmatprep.subr.mxu0 0.0
      %10488 = vmatpush1.msra.mxu0 %v10401
      %10489 = vmatprep.subr.mxu0 0.0
      %10490 = vmatpush1.msra.mxu0 %v10402
      %10491 = vmatprep.subr.mxu0 0.0
      %10492 = vmatpush1.msra.mxu0 0.0
      %10493 = vmatprep.subr.mxu0 0.0
      %10494 = vmatpush1.msra.mxu0 0.0
      %10495 = vmatprep.subr.mxu0 0.0
      %10496 = vmatpush1.msra.mxu0 0.0
      %10497 = vmatprep.subr.mxu0 0.0
      %10498 = vmatpush1.msra.mxu0 0.0
      %10499 = vmatprep.subr.mxu0 0.0
      %10500 = vmatpush1.msra.mxu0 0.0
      %10501 = vmatprep.subr.mxu0 0.0
      %10502 = vmatpush1.msra.mxu0 0.0
      %10503 = vmatprep.subr.mxu0 0.0
      %10504 = vmatpush1.msra.mxu0 0.0
      %10505 = vmatprep.subr.mxu0 0.0
      %10506 = vmatpush1.msra.mxu0 0.0
      %10507 = vmatprep.subr.mxu0 0.0
      %10508 = vmatpush1.msra.mxu0 0.0
      %10509 = vmatprep.subr.mxu0 0.0
      %10510 = vmatpush1.msra.mxu0 0.0
      %10511 = vmatprep.subr.mxu0 0.0
      %10512 = vmatpush1.msra.mxu0 0.0
      %10513 = vmatprep.subr.mxu0 0.0
      %10514 = vmatpush1.msra.mxu0 0.0
      %10515 = vmatprep.subr.mxu0 0.0
      %10516 = vmatpush1.msra.mxu0 0.0
      %10517 = vmatprep.subr.mxu0 0.0
      %10518 = vmatpush1.msra.mxu0 0.0
      %10519 = vmatprep.subr.mxu0 0.0
      %10520 = vmatpush1.msra.mxu0 0.0
      %10521 = vmatprep.subr.mxu0 0.0
      %10522 = vmatpush1.msra.mxu0 0.0
      %10523 = vmatprep.subr.mxu0 0.0
      %10524 = vmatpush1.msra.mxu0 0.0
      %10525 = vmatprep.subr.mxu0 0.0
      %10526 = vmatpush1.msra.mxu0 0.0
      %10527 = vmatprep.subr.mxu0 0.0
      %10528 = vmatpush1.msra.mxu0 0.0
      %10529 = vmatprep.subr.mxu0 0.0
      %10530 = vmatpush1.msra.mxu0 0.0
      %10531 = vmatprep.subr.mxu0 0.0
      %10532 = vmatpush1.msra.mxu0 0.0
      %10533 = vmatprep.subr.mxu0 0.0
      %10534 = vmatpush1.msra.mxu0 0.0
      %10535 = vmatprep.subr.mxu0 0.0
      %10536 = vmatpush1.msra.mxu0 0.0
      %10537 = vmatprep.subr.mxu0 0.0
      %10538 = vmatpush1.msra.mxu0 0.0
      %10539 = vmatprep.subr.mxu0 0.0
      %10540 = vmatpush1.msra.mxu0 0.0
      %10541 = vmatprep.subr.mxu0 0.0
      %10542 = vmatpush1.msra.mxu0 0.0
      %10543 = vmatprep.subr.mxu0 0.0
      %10544 = vmatpush1.msra.mxu0 0.0
      %10545 = vmatprep.subr.mxu0 0.0
      %10546 = vmatpush1.msra.mxu0 0.0
      %10547 = vmatprep.mubr.f32.mxu0 0.0
      %10548 = vmatmul.mubr.f32.gmra.mrb[0].mxu0 %v10481
      %v10549 = vpop.f32.mrb[0].mxu0
      %v10550 = vadd.f32 %v10477, %v10549
      %v10551 = vpop.f32.mrb[0].mxu0
      %10552 = vdwg.mxu0
      %v10553 = vld [vmem:[%s7 + $0x40] sm:$0xff]
      %vm10554 = vcmask 64512
      %v10556 = vsel %vm10554, %v10394, 0
      %10558 = vmatprep.subr.mxu0 0.0
      %10559 = vmatpush1.msra.mxu0 %v10553
      %10560 = vmatprep.subr.mxu0 0.0
      %10561 = vmatpush1.msra.mxu0 0.0
      %10562 = vmatprep.subr.mxu0 0.0
      %10563 = vmatpush1.msra.mxu0 0.0
      %10564 = vmatprep.subr.mxu0 0.0
      %10565 = vmatpush1.msra.mxu0 0.0
      %10566 = vmatprep.subr.mxu0 0.0
      %10567 = vmatpush1.msra.mxu0 0.0
      %10568 = vmatprep.subr.mxu0 0.0
      %10569 = vmatpush1.msra.mxu0 0.0
      %10570 = vmatprep.subr.mxu0 0.0
      %10571 = vmatpush1.msra.mxu0 0.0
      %10572 = vmatprep.subr.mxu0 0.0
      %10573 = vmatpush1.msra.mxu0 0.0
      %10574 = vmatprep.subr.mxu0 0.0
      %10575 = vmatpush1.msra.mxu0 0.0
      %10576 = vmatprep.subr.mxu0 0.0
      %10577 = vmatpush1.msra.mxu0 0.0
      %10578 = vmatprep.subr.mxu0 0.0
      %10579 = vmatpush1.msra.mxu0 0.0
      %10580 = vmatprep.subr.mxu0 0.0
      %10581 = vmatpush1.msra.mxu0 0.0
      %10582 = vmatprep.subr.mxu0 0.0
      %10583 = vmatpush1.msra.mxu0 0.0
      %10584 = vmatprep.subr.mxu0 0.0
      %10585 = vmatpush1.msra.mxu0 0.0
      %10586 = vmatprep.subr.mxu0 0.0
      %10587 = vmatpush1.msra.mxu0 0.0
      %10588 = vmatprep.subr.mxu0 0.0
      %10589 = vmatpush1.msra.mxu0 0.0
      %10590 = vmatprep.subr.mxu0 0.0
      %10591 = vmatpush1.msra.mxu0 0.0
      %10592 = vmatprep.subr.mxu0 0.0
      %10593 = vmatpush1.msra.mxu0 0.0
      %10594 = vmatprep.subr.mxu0 0.0
      %10595 = vmatpush1.msra.mxu0 0.0
      %10596 = vmatprep.subr.mxu0 0.0
      %10597 = vmatpush1.msra.mxu0 0.0
      %10598 = vmatprep.subr.mxu0 0.0
      %10599 = vmatpush1.msra.mxu0 0.0
      %10600 = vmatprep.subr.mxu0 0.0
      %10601 = vmatpush1.msra.mxu0 0.0
      %10602 = vmatprep.subr.mxu0 0.0
      %10603 = vmatpush1.msra.mxu0 0.0
      %10604 = vmatprep.subr.mxu0 0.0
      %10605 = vmatpush1.msra.mxu0 0.0
      %10606 = vmatprep.subr.mxu0 0.0
      %10607 = vmatpush1.msra.mxu0 0.0
      %10608 = vmatprep.subr.mxu0 0.0
      %10609 = vmatpush1.msra.mxu0 0.0
      %10610 = vmatprep.subr.mxu0 0.0
      %10611 = vmatpush1.msra.mxu0 0.0
      %10612 = vmatprep.subr.mxu0 0.0
      %10613 = vmatpush1.msra.mxu0 0.0
      %10614 = vmatprep.subr.mxu0 0.0
      %10615 = vmatpush1.msra.mxu0 0.0
      %10616 = vmatprep.subr.mxu0 0.0
      %10617 = vmatpush1.msra.mxu0 0.0
      %10618 = vmatprep.subr.mxu0 0.0
      %10619 = vmatpush1.msra.mxu0 0.0
      %10620 = vmatprep.subr.mxu0 0.0
      %10621 = vmatpush1.msra.mxu0 0.0
      %10622 = vmatprep.mubr.f32.mxu0 0.0
      %10623 = vmatmul.mubr.f32.gmra.mrb[0].mxu0 %v10556
      %v10624 = vpop.f32.mrb[0].mxu0
      %v10625 = vadd.f32 0.0, %v10624
      %v10626 = vpop.f32.mrb[0].mxu0
      %10627 = vdwg.mxu0
      %v10628 = vadd.f32 %v10550, %v10625
      %v10629 = vlaneseq
      %v10630 = vshrl.u32 %v10629, 7
      %v10631 = vsub.s32 0, %v10630
      %v10632 = vrot.slane %v10395, %v10631
      %v10633 = vadd.f32 %v10628, %v10632
      %v10634 = vmax.f32 %v10633, 0.0
      %v10635 = vld [vmem:[%s8] sm:$0xff]
      %v10636 = vld [vmem:[%s8 + $0x8] sm:$0xff]
      %v10637 = vld [vmem:[%s8 + $0x10] sm:$0xff]
      %v10638 = vld [vmem:[%s8 + $0x18] sm:$0xff]
      %v10639 = vld [vmem:[%s8 + $0x20] sm:$0xff]
      %v10640 = vld [vmem:[%s8 + $0x28] sm:$0xff]
      %v10641 = vld [vmem:[%s8 + $0x30] sm:$0xff]
      %v10642 = vld [vmem:[%s8 + $0x38] sm:$0xff]
      %v10643 = vlaneseq
      %v10644 = vshrl.u32 %v10643, 7
      %v10645 = vsub.s32 0, %v10644
      %v10646 = vrot.slane %v10396, %v10645
      %vm10647 = vcmask 523264
      %v10649 = vsel %vm10647, %v10634, 0
      %10651 = vmatprep.subr.mxu0 0.0
      %10652 = vmatpush1.msra.mxu0 %v10635
      %10653 = vmatprep.subr.mxu0 0.0
      %10654 = vmatpush1.msra.mxu0 %v10636
      %10655 = vmatprep.subr.mxu0 0.0
      %10656 = vmatpush1.msra.mxu0 %v10637
      %10657 = vmatprep.subr.mxu0 0.0
      %10658 = vmatpush1.msra.mxu0 %v10638
      %10659 = vmatprep.subr.mxu0 0.0
      %10660 = vmatpush1.msra.mxu0 %v10639
      %10661 = vmatprep.subr.mxu0 0.0
      %10662 = vmatpush1.msra.mxu0 %v10640
      %10663 = vmatprep.subr.mxu0 0.0
      %10664 = vmatpush1.msra.mxu0 %v10641
      %10665 = vmatprep.subr.mxu0 0.0
      %10666 = vmatpush1.msra.mxu0 %v10642
      %10667 = vmatprep.subr.mxu0 0.0
      %10668 = vmatpush1.msra.mxu0 0.0
      %10669 = vmatprep.subr.mxu0 0.0
      %10670 = vmatpush1.msra.mxu0 0.0
      %10671 = vmatprep.subr.mxu0 0.0
      %10672 = vmatpush1.msra.mxu0 0.0
      %10673 = vmatprep.subr.mxu0 0.0
      %10674 = vmatpush1.msra.mxu0 0.0
      %10675 = vmatprep.subr.mxu0 0.0
      %10676 = vmatpush1.msra.mxu0 0.0
      %10677 = vmatprep.subr.mxu0 0.0
      %10678 = vmatpush1.msra.mxu0 0.0
      %10679 = vmatprep.subr.mxu0 0.0
      %10680 = vmatpush1.msra.mxu0 0.0
      %10681 = vmatprep.subr.mxu0 0.0
      %10682 = vmatpush1.msra.mxu0 0.0
      %10683 = vmatprep.subr.mxu0 0.0
      %10684 = vmatpush1.msra.mxu0 0.0
      %10685 = vmatprep.subr.mxu0 0.0
      %10686 = vmatpush1.msra.mxu0 0.0
      %10687 = vmatprep.subr.mxu0 0.0
      %10688 = vmatpush1.msra.mxu0 0.0
      %10689 = vmatprep.subr.mxu0 0.0
      %10690 = vmatpush1.msra.mxu0 0.0
      %10691 = vmatprep.subr.mxu0 0.0
      %10692 = vmatpush1.msra.mxu0 0.0
      %10693 = vmatprep.subr.mxu0 0.0
      %10694 = vmatpush1.msra.mxu0 0.0
      %10695 = vmatprep.subr.mxu0 0.0
      %10696 = vmatpush1.msra.mxu0 0.0
      %10697 = vmatprep.subr.mxu0 0.0
      %10698 = vmatpush1.msra.mxu0 0.0
      %10699 = vmatprep.subr.mxu0 0.0
      %10700 = vmatpush1.msra.mxu0 0.0
      %10701 = vmatprep.subr.mxu0 0.0
      %10702 = vmatpush1.msra.mxu0 0.0
      %10703 = vmatprep.subr.mxu0 0.0
      %10704 = vmatpush1.msra.mxu0 0.0
      %10705 = vmatprep.subr.mxu0 0.0
      %10706 = vmatpush1.msra.mxu0 0.0
      %10707 = vmatprep.subr.mxu0 0.0
      %10708 = vmatpush1.msra.mxu0 0.0
      %10709 = vmatprep.subr.mxu0 0.0
      %10710 = vmatpush1.msra.mxu0 0.0
      %10711 = vmatprep.subr.mxu0 0.0
      %10712 = vmatpush1.msra.mxu0 0.0
      %10713 = vmatprep.subr.mxu0 0.0
      %10714 = vmatpush1.msra.mxu0 0.0
      %10715 = vmatprep.mubr.f32.mxu0 0.0
      %10716 = vmatmul.mubr.f32.gmra.mrb[0].mxu0 %v10649
      %v10717 = vpop.f32.mrb[0].mxu0
      %v10718 = vadd.f32 %v10646, %v10717
      %v10719 = vpop.f32.mrb[0].mxu0
      %10720 = vdwg.mxu0
      %v10721 = vmax.f32 %v10718, 0.0
      %v10722 = vlaneseq
      %v10723 = vshrl.u32 %v10722, 7
      %v10724 = vsub.s32 0, %v10723
      %v10725 = vrot.slane %v10397, %v10724
      %v10726 = vmul.f32 %v10721, %v10725
      %vm10727 = vcmask 519168
      %v10728 = vsel %vm10727, %v10726, 0.0
      %10729 = vadd.xlane.f32.xlu0 %v10728
      %v10730 = vpop.xlane.xlu0 %10729
      %v10731 = vlaneseq
      %v10732 = vshrl.u32 %v10731, 7
      %v10733 = vsub.s32 0, %v10732
      %v10734 = vrot.slane %v10398, %v10733
      %v10735 = vadd.f32 %v10730, %v10734
      %vm10736 = vcmask 3072
      %10737 = vst.msk [vmem:[%s414] sm:$0xf] %vm10736, %v10735
      %p10738 = scmp.lt.s32.totalorder %s21, 1
      %s10739 = scalar_select %p10738, %s21, 1
      %s10740 = smul.addr %s10739, 4
      %s10741 = scalar_lea.vmem %s10, %s10740
      // Predicated region
      $region61: #{run.1} parent=59 // pred_check
        %p10742 = pneg %p269
      $region62: #{run.1} parent=59 // pred_check_branch
        %10744 = sbr.rel (%p10742) target = $region64
      $region63: #{run.1} parent=59 // pred_region
        _
      $region64: #{run.1} parent=59 // pred_fallthru
        _
    $region60: #{run.1} parent=5 // pred_fallthru
      _
    %p10745 = scmp.le.s32.totalorder 2, %s16
    // Predicated region
    $region65: #{run.1} parent=5 // pred_check
      %p10746 = pneg %p10745
    $region66: #{run.1} parent=5 // pred_check_branch
      %10748 = sbr.rel (%p10746) target = $region68
    $region67: #{run.1} parent=5 // pred_region
      %s10749 = ssub.s32 %s16, 2
      // Predicated region
      $region69: #{run.1} parent=67 // pred_check
        %p10750 = pneg %p275
      $region70: #{run.1} parent=67 // pred_check_branch
        %10752 = sbr.rel (%p10750) target = $region72
      $region71: #{run.1} parent=67 // pred_region
        %p10753 = scmp.lt.s32.totalorder %s22, 1
        %s10754 = scalar_select %p10753, %s22, 1
        %s10755 = smul.addr %s10754, 4
        %s10756 = scalar_lea.vmem %s10, %s10755
      $region72: #{run.1} parent=67 // pred_fallthru
        _
    $region68: #{run.1} parent=5 // pred_fallthru
      _
  $region6: #{run.1} parent=0 // loop_footer
    %s20 = sadd.s32 1, %s16
  $region7: #{run.1} parent=0 // loop_footer_branch
    %15 = sbr.rel target = $region3
  $region8: #{run.1} parent=0 // loop_exit
    _

</llo_original>
